<compile_context>
chip_gen: v6e
topology: v6e:2x2x1
jax: 0.10.0
libtpu: 0.0.40
codegen_flags: <defaults>
</compile_context>

<pallas_src>
import functools

import jax
import jax.numpy as jnp
from jax.experimental import pallas as pl
from jax.experimental.pallas import tpu as pltpu


# ----------------------------------------------------------------------------- helpers

def _layernorm(x, gamma, beta, eps=1e-5):
    mu = jnp.mean(x, axis=-1, keepdims=True)
    var = jnp.mean((x - mu) ** 2, axis=-1, keepdims=True)
    return (x - mu) * jax.lax.rsqrt(var + eps) * gamma + beta


# TODO(synk): torch nn.GELU() default is the exact erf-based GELU; erf is not a
# guaranteed Mosaic elementwise lowering, so the tanh approximation is used in
# both kernel and reference.
def _gelu(x):
    return jax.nn.gelu(x, approximate=True)


# ----------------------------------------------------------------------------- kernel

def _invariant_kernel(G, mxu_dtype, approx_recip,
                      x_ref, oth_ref, bias_ref,
                      w_ea_ref, w_eo_ref,
                      ln1g_ref, ln1b_ref,
                      a_qk_ref, w_v_ref, w_ao_ref, b_ao_ref,
                      ln2g_ref, ln2b_ref,
                      w_f1_ref, b_f1_ref, w_f2_ref, b_f2_ref,
                      w_p_ref, b_p_ref,
                      ln3g_ref, ln3b_ref, w_fs_ref, b_fs_ref,
                      out_ref):
    rows = x_ref.shape[0]              # Bb * G rows of this grid step
    heads = a_qk_ref.shape[0]
    D = ln1g_ref.shape[1]              # 2 * H
    n_others = oth_ref.shape[0]

    def mm(a, w):
        # MXU matmul, f32 accumulation.  Operands are already in mxu_dtype
        # (weights pre-cast host-side, activations cast once via mx()).
        return jnp.dot(a, w, preferred_element_type=jnp.float32)

    def mx(t):                         # hoistable operand cast (no-op for f32)
        return t.astype(mxu_dtype)

    def recip(d):
        return pl.reciprocal(d, approx=True) if approx_recip else 1.0 / d

    # ---- encode_actor (loop-invariant), directly at the full 2H width:
    #      w_ea is zero-padded into the low lanes host-side, and bias_ref holds
    #      [apos + b_ea | opos + b_eo], so z = xe + ye needs no concat/scratch.
    xe = mm(mx(x_ref[...]), w_ea_ref[...]) + bias_ref[...]        # (rows, 2H) f32

    # ---- block-diagonal attention bias, only needed when a grid step carries
    #      more than one batch element (rows > G).  NOTE: the bias is added in
    #      f32 AFTER MXU accumulation, and every row's in-block max is a real
    #      (finite) score, so exp(bias - m) underflows cleanly to 0.
    if rows != G:
        r_id = jax.lax.broadcasted_iota(jnp.int32, (rows, rows), 0) // G
        c_id = jax.lax.broadcasted_iota(jnp.int32, (rows, rows), 1) // G
        attn_bias = jnp.where(r_id == c_id, 0.0, -1e30).astype(jnp.float32)
    else:
        attn_bias = None

    z_sum = jnp.zeros((rows, D), jnp.float32)

    for n in range(n_others):                                     # static unroll
        # ---- encode_other at full 2H width (zero-padded high-lane weight).
        ye = mm(mx(oth_ref[n]), w_eo_ref[...])                    # (rows, 2H)
        z = xe + ye

        # ---- PreNorm(Attention) + residual
        zn = _layernorm(z, ln1g_ref[0], ln1b_ref[0])
        zn_mx = mx(zn)                                            # cast once/iter
        v_all = mx(mm(zn_mx, w_v_ref[...]))                       # (rows, inner), all heads

        attn_out = jnp.zeros((rows, D), jnp.float32)
        for h in range(heads):   # static unroll; per-head weights indexed on the
                                 # LEADING axis -> no sub-128 lane slices anywhere
            # scores: zn @ (scale * Wq_h Wk_h^T) @ zn^T  (A_h precomposed host-side)
            qa = mm(zn_mx, a_qk_ref[h])                           # (rows, D)
            s = jax.lax.dot_general(
                mx(qa), zn_mx,
                dimension_numbers=(((1,), (1,)), ((), ())),
                preferred_element_type=jnp.float32)               # (rows, rows)
            if attn_bias is not None:
                s = s + attn_bias
            m = jnp.max(s, axis=-1, keepdims=True)
            p = jnp.exp(s - m)
            denom = jnp.sum(p, axis=-1, keepdims=True)            # >= 1 (diag term)
            # normalize AFTER the PV matmul (rows x inner multiply, not rows^2)
            ov = mm(mx(p), v_all) * recip(denom)                  # (rows, inner)
            # per-head output projection through a zero-masked (inner, D) weight:
            # other heads' columns of ov are multiplied by exact zeros.
            attn_out = attn_out + mm(mx(ov), w_ao_ref[h])         # (rows, 2H)
        z = attn_out + b_ao_ref[0] + z

        # ---- PreNorm(FeedForward) + residual
        zn2 = _layernorm(z, ln2g_ref[0], ln2b_ref[0])
        h1 = _gelu(mm(mx(zn2), w_f1_ref[...]) + b_f1_ref[0])
        z = mm(mx(h1), w_f2_ref[...]) + b_f2_ref[0] + z

        # ---- sum-pool over agents; the Linear(2H, H) projection is hoisted
        #      out of the loop by linearity (applied once to z_sum below).
        z_sum = z_sum + z

        # NOTE: the fc_max branch of the module is multiplied by 0.0 — dead.

    out_sum = mm(mx(z_sum), w_p_ref[...]) + float(n_others) * b_p_ref[0]

    # ---- fc_sum head
    sn = _layernorm(out_sum, ln3g_ref[0], ln3b_ref[0])
    out_ref[...] = (mm(mx(sn), w_fs_ref[...]) + b_fs_ref[0]).astype(out_ref.dtype)


# ----------------------------------------------------------------------------- wrapper

def invariant_attn_sum(x, others, params, *, heads, dim_head,
                       block_batch=None, mxu_dtype=jnp.float32,
                       approx_recip=True):
    """x: (B, G, F), others: (N, B, G, F) -> (B, G, H).

    mxu_dtype=jnp.bfloat16 enables the bf16 MXU-operand fast path (recommended
    on v6e/v7x); LayerNorm / softmax / GELU math stays float32.
    approx_recip=False disables the EUP approximate reciprocal for validation.
    """
    B, G, F = x.shape
    N = others.shape[0]
    H = params["w_ea"].shape[1]
    D = 2 * H
    inner = heads * dim_head
    scale = float(dim_head) ** -0.5

    # ---- batch block: fold batch into the matmul M dimension, but
    #      (a) cap rows_blk at 128 so the (rows, rows) score/softmax tile stays
    #          within the 64-vreg file (quadratic masked-attention cost), and
    #      (b) when B >= 2, keep at least 2 grid steps so both v7x TensorCores
    #          receive work on the 'parallel' grid axis.
    if block_batch is None:
        cap = max(1, 128 // G)
        if B >= 2:
            cap = max(1, min(cap, B // 2))
        block_batch = 1
        for cand in range(min(B, cap), 0, -1):
            if B % cand == 0:
                block_batch = cand
                break
    assert B % block_batch == 0, (B, block_batch)
    rows_blk = block_batch * G          # multiple of 8 since G == 8 here
    grid = (B // block_batch,)

    x2 = x.reshape(B * G, F).astype(jnp.float32)
    o2 = others.reshape(N, B * G, F).astype(jnp.float32)

    def cast_w(w):                       # MXU-operand weights only
        return w.astype(mxu_dtype)

    # ---- encoder weights zero-padded to the full 2H width (z = xe + ye, no
    #      concat / scratch in the kernel); positional embeddings + biases fused
    #      into a single row-blocked (B*G, 2H) tensor.
    zpad = jnp.zeros((F, H), jnp.float32)
    w_ea_wide = cast_w(jnp.concatenate([params["w_ea"], zpad], axis=1))   # (F, 2H)
    w_eo_wide = cast_w(jnp.concatenate([zpad, params["w_eo"]], axis=1))   # (F, 2H)
    bias_z = jnp.tile(
        jnp.concatenate([params["apos"] + params["b_ea"][0],
                         params["opos"] + params["b_eo"][0]], axis=1),
        (B, 1))                                                            # (B*G, 2H)

    # ---- per-head Q·K^T precomposed host-side (scale folded in):
    #      A_h = scale * Wq_h @ Wk_h^T, shape (heads, D, D).
    w_qkv = params["w_qkv"]
    wq = w_qkv[:, 0 * inner:1 * inner].reshape(D, heads, dim_head)
    wk = w_qkv[:, 1 * inner:2 * inner].reshape(D, heads, dim_head)
    w_v_all = w_qkv[:, 2 * inner:3 * inner]                                # (D, inner)
    a_qk = jnp.einsum("dhe,fhe->hdf", wq * scale, wk)                      # (heads, D, D)

    # ---- per-head output projection through zero-masked (inner, D) weights so
    #      no lane-slicing of the (rows, inner) PV result is ever needed.
    head_of_row = jnp.arange(inner) // dim_head                            # (inner,)
    ao_mask = head_of_row[None, :, None] == jnp.arange(heads)[:, None, None]
    w_ao3 = jnp.where(ao_mask, params["w_ao"][None], 0.0)                  # (heads, inner, D)

    weights = [
        w_ea_wide, w_eo_wide,
        params["ln1_g"], params["ln1_b"],
        cast_w(a_qk), cast_w(w_v_all), cast_w(w_ao3), params["b_ao"],
        params["ln2_g"], params["ln2_b"],
        cast_w(params["w_f1"]), params["b_f1"],
        cast_w(params["w_f2"]), params["b_f2"],
        cast_w(params["w_p"]), params["b_p"],
        params["ln3_g"], params["ln3_b"],
        cast_w(params["w_fs"]), params["b_fs"],
    ]
    # w_fm / b_fm are intentionally NOT passed: the fc_max branch is dead (x 0.0).

    def row_spec(last):
        return pl.BlockSpec((rows_blk, last), lambda i: (i, 0))

    def full_spec(a):
        zeros = (0,) * a.ndim
        return pl.BlockSpec(a.shape, lambda i, _z=zeros: _z)

    in_specs = ([row_spec(F),
                 pl.BlockSpec((N, rows_blk, F), lambda i: (0, i, 0)),
                 row_spec(D)]
                + [full_spec(a) for a in weights])
    out_spec = row_spec(H)

    kernel = functools.partial(_invariant_kernel, G, mxu_dtype, approx_recip)
    out2 = pl.pallas_call(
        kernel,
        out_shape=jax.ShapeDtypeStruct((B * G, H), jnp.float32),
        grid_spec=pltpu.PrefetchScalarGridSpec(
            num_scalar_prefetch=0,
            grid=grid,
            in_specs=in_specs,
            out_specs=out_spec,
        ),
        compiler_params=pltpu.CompilerParams(
            dimension_semantics=("parallel",)),
    )(x2, o2, bias_z, *weights)
    return out2.reshape(B, G, H)


# ----------------------------------------------------------------------------- params

def init_params(key, *, input_dim, num_grids, hidden_dim, heads, dim_head, mlp_dim):
    H, D, inner = hidden_dim, 2 * hidden_dim, heads * dim_head
    ks = iter(jax.random.split(key, 32))

    def lin(i, o):
        return (0.1 * jax.random.normal(next(ks), (i, o), jnp.float32),
                0.1 * jax.random.normal(next(ks), (1, o), jnp.float32))

    def ln(d):
        return (1.0 + 0.1 * jax.random.normal(next(ks), (1, d), jnp.float32),
                0.1 * jax.random.normal(next(ks), (1, d), jnp.float32))

    p = {}
    p["w_ea"], p["b_ea"] = lin(input_dim, H)
    p["w_eo"], p["b_eo"] = lin(input_dim, H)
    p["apos"] = jax.random.normal(next(ks), (num_grids, H), jnp.float32)
    p["opos"] = jax.random.normal(next(ks), (num_grids, H), jnp.float32)
    p["ln1_g"], p["ln1_b"] = ln(D)
    p["w_qkv"] = 0.1 * jax.random.normal(next(ks), (D, 3 * inner), jnp.float32)  # no bias
    p["w_ao"], p["b_ao"] = lin(inner, D)
    p["ln2_g"], p["ln2_b"] = ln(D)
    p["w_f1"], p["b_f1"] = lin(D, mlp_dim)
    p["w_f2"], p["b_f2"] = lin(mlp_dim, D)
    p["w_p"], p["b_p"] = lin(D, H)
    p["w_fm"], p["b_fm"] = lin(H, H)     # kept for module parity; dead (x 0.0)
    p["ln3_g"], p["ln3_b"] = ln(H)
    p["w_fs"], p["b_fs"] = lin(H, H)
    return p


# ----------------------------------------------------------------------------- pure-JAX reference

def reference(x, others, params, *, heads, dim_head):
    def lnorm(t, g, b, eps=1e-5):
        mu = t.mean(-1, keepdims=True)
        var = ((t - mu) ** 2).mean(-1, keepdims=True)
        return (t - mu) / jnp.sqrt(var + eps) * g + b

    B, G, F = x.shape
    H = params["w_ea"].shape[1]
    inner = heads * dim_head
    xe = x @ params["w_ea"] + params["b_ea"][0] + params["apos"][None]
    out_max = jnp.zeros((B, G, H), jnp.float32)
    out_sum = jnp.zeros((B, G, H), jnp.float32)
    for n in range(others.shape[0]):
        ye = others[n] @ params["w_eo"] + params["b_eo"][0] + params["opos"][None]
        z = jnp.concatenate([xe, ye], -1)
        zn = lnorm(z, params["ln1_g"][0], params["ln1_b"][0])
        qkv = zn @ params["w_qkv"]
        q, k, v = jnp.split(qkv, 3, axis=-1)
        q = q.reshape(B, G, heads, dim_head).transpose(0, 2, 1, 3)
        k = k.reshape(B, G, heads, dim_head).transpose(0, 2, 1, 3)
        v = v.reshape(B, G, heads, dim_head).transpose(0, 2, 1, 3)
        dots = jnp.einsum("bhqd,bhkd->bhqk", q, k) * dim_head ** -0.5
        attn = jax.nn.softmax(dots, -1)
        ao = jnp.einsum("bhqk,bhkd->bhqd", attn, v)
        ao = ao.transpose(0, 2, 1, 3).reshape(B, G, inner)
        z = ao @ params["w_ao"] + params["b_ao"][0] + z
        zn2 = lnorm(z, params["ln2_g"][0], params["ln2_b"][0])
        ff = _gelu(zn2 @ params["w_f1"] + params["b_f1"][0]) @ params["w_f2"] + params["b_f2"][0]
        z = ff + z
        z = z @ params["w_p"] + params["b_p"][0]
        out_max = jnp.maximum(out_max, z)
        out_sum = out_sum + z
    fc_max_out = out_max @ params["w_fm"] + params["b_fm"][0]
    fc_sum_out = (lnorm(out_sum, params["ln3_g"][0], params["ln3_b"][0])
                  @ params["w_fs"] + params["b_fs"][0])
    return 0.0 * fc_max_out + 1.0 * fc_sum_out


# ----------------------------------------------------------------------------- main

if __name__ == "__main__":
    B, G, F = 2, 8, 16          # batch, num_grids, input_dim
    H, HEADS, DH, MLP = 32, 4, 8, 32
    N_OTHERS = 3

    key = jax.random.PRNGKey(0)
    kp, kx, ko = jax.random.split(key, 3)
    params = init_params(kp, input_dim=F, num_grids=G, hidden_dim=H,
                         heads=HEADS, dim_head=DH, mlp_dim=MLP)
    x = jax.random.normal(kx, (B, G, F), jnp.float32)
    others = jax.random.normal(ko, (N_OTHERS, B, G, F), jnp.float32)

    # f32 MXU path: exact check against the pure-JAX reference.
    out = invariant_attn_sum(x, others, params, heads=HEADS, dim_head=DH)
    out = jax.block_until_ready(out)

    ref = jax.block_until_ready(reference(x, others, params, heads=HEADS, dim_head=DH))

    assert out.shape == (B, G, H), out.shape
    assert bool(jnp.all(jnp.isfinite(out)))
    if not jnp.allclose(out, ref, atol=5e-2, rtol=5e-2):
        raise AssertionError(
            f"mismatch vs reference, max abs diff = {jnp.max(jnp.abs(out - ref))}")

    # Also exercise the multi-batch-per-step (block-diagonal mask) path.
    out_blk = jax.block_until_ready(
        invariant_attn_sum(x, others, params, heads=HEADS, dim_head=DH,
                           block_batch=2))
    if not jnp.allclose(out_blk, ref, atol=5e-2, rtol=5e-2):
        raise AssertionError(
            f"masked path mismatch, max abs diff = {jnp.max(jnp.abs(out_blk - ref))}")

    # bf16 MXU-operand fast path (v6e/v7x recommendation); loose sanity check only.
    out_bf16 = jax.block_until_ready(
        invariant_attn_sum(x, others, params, heads=HEADS, dim_head=DH,
                           mxu_dtype=jnp.bfloat16))
    assert out_bf16.shape == (B, G, H)
    assert bool(jnp.all(jnp.isfinite(out_bf16)))
    if not jnp.allclose(out_bf16, ref, atol=0.5, rtol=0.5):
        raise AssertionError("bf16 MXU path diverged from reference")

    print("KERNEL_OK")
</pallas_src>

<mosaic_0001>
module attributes {stable_mosaic.version = 11 : i64} {
  func.func @_invariant_kernel(%arg0: i32, %arg1: memref<8x16xf32, #tpu.memory_space<vmem>>, %arg2: memref<3x8x16xf32, #tpu.memory_space<vmem>>, %arg3: memref<8x64xf32, #tpu.memory_space<vmem>>, %arg4: memref<16x64xf32, #tpu.memory_space<vmem>>, %arg5: memref<16x64xf32, #tpu.memory_space<vmem>>, %arg6: memref<1x64xf32, #tpu.memory_space<vmem>>, %arg7: memref<1x64xf32, #tpu.memory_space<vmem>>, %arg8: memref<4x64x64xf32, #tpu.memory_space<vmem>>, %arg9: memref<64x32xf32, #tpu.memory_space<vmem>>, %arg10: memref<4x32x64xf32, #tpu.memory_space<vmem>>, %arg11: memref<1x64xf32, #tpu.memory_space<vmem>>, %arg12: memref<1x64xf32, #tpu.memory_space<vmem>>, %arg13: memref<1x64xf32, #tpu.memory_space<vmem>>, %arg14: memref<64x32xf32, #tpu.memory_space<vmem>>, %arg15: memref<1x32xf32, #tpu.memory_space<vmem>>, %arg16: memref<32x64xf32, #tpu.memory_space<vmem>>, %arg17: memref<1x64xf32, #tpu.memory_space<vmem>>, %arg18: memref<64x32xf32, #tpu.memory_space<vmem>>, %arg19: memref<1x32xf32, #tpu.memory_space<vmem>>, %arg20: memref<1x32xf32, #tpu.memory_space<vmem>>, %arg21: memref<1x32xf32, #tpu.memory_space<vmem>>, %arg22: memref<32x32xf32, #tpu.memory_space<vmem>>, %arg23: memref<1x32xf32, #tpu.memory_space<vmem>>, %arg24: memref<8x32xf32, #tpu.memory_space<vmem>>) attributes {dimension_semantics = [#tpu.dimension_semantics<parallel>], iteration_bounds = array<i64: 2>, scalar_prefetch = 0 : i64, scratch_operands = 0 : i64, tpu.core_type = #tpu.core_type<tc>, window_params = [{transform_indices = @transform_0, window_bounds = array<i64: 8, 16>}, {transform_indices = @transform_1, window_bounds = array<i64: 3, 8, 16>}, {transform_indices = @transform_2, window_bounds = array<i64: 8, 64>}, {pipeline_mode = #tpu.pipeline_mode<synchronous>, transform_indices = @transform_3, window_bounds = array<i64: 16, 64>}, {pipeline_mode = #tpu.pipeline_mode<synchronous>, transform_indices = @transform_4, window_bounds = array<i64: 16, 64>}, {pipeline_mode = #tpu.pipeline_mode<synchronous>, transform_indices = @transform_5, window_bounds = array<i64: 1, 64>}, {pipeline_mode = #tpu.pipeline_mode<synchronous>, transform_indices = @transform_6, window_bounds = array<i64: 1, 64>}, {pipeline_mode = #tpu.pipeline_mode<synchronous>, transform_indices = @transform_7, window_bounds = array<i64: 4, 64, 64>}, {pipeline_mode = #tpu.pipeline_mode<synchronous>, transform_indices = @transform_8, window_bounds = array<i64: 64, 32>}, {pipeline_mode = #tpu.pipeline_mode<synchronous>, transform_indices = @transform_9, window_bounds = array<i64: 4, 32, 64>}, {pipeline_mode = #tpu.pipeline_mode<synchronous>, transform_indices = @transform_10, window_bounds = array<i64: 1, 64>}, {pipeline_mode = #tpu.pipeline_mode<synchronous>, transform_indices = @transform_11, window_bounds = array<i64: 1, 64>}, {pipeline_mode = #tpu.pipeline_mode<synchronous>, transform_indices = @transform_12, window_bounds = array<i64: 1, 64>}, {pipeline_mode = #tpu.pipeline_mode<synchronous>, transform_indices = @transform_13, window_bounds = array<i64: 64, 32>}, {pipeline_mode = #tpu.pipeline_mode<synchronous>, transform_indices = @transform_14, window_bounds = array<i64: 1, 32>}, {pipeline_mode = #tpu.pipeline_mode<synchronous>, transform_indices = @transform_15, window_bounds = array<i64: 32, 64>}, {pipeline_mode = #tpu.pipeline_mode<synchronous>, transform_indices = @transform_16, window_bounds = array<i64: 1, 64>}, {pipeline_mode = #tpu.pipeline_mode<synchronous>, transform_indices = @transform_17, window_bounds = array<i64: 64, 32>}, {pipeline_mode = #tpu.pipeline_mode<synchronous>, transform_indices = @transform_18, window_bounds = array<i64: 1, 32>}, {pipeline_mode = #tpu.pipeline_mode<synchronous>, transform_indices = @transform_19, window_bounds = array<i64: 1, 32>}, {pipeline_mode = #tpu.pipeline_mode<synchronous>, transform_indices = @transform_20, window_bounds = array<i64: 1, 32>}, {pipeline_mode = #tpu.pipeline_mode<synchronous>, transform_indices = @transform_21, window_bounds = array<i64: 32, 32>}, {pipeline_mode = #tpu.pipeline_mode<synchronous>, transform_indices = @transform_22, window_bounds = array<i64: 1, 32>}, {transform_indices = @transform_23, window_bounds = array<i64: 8, 32>}]} {
    %c0 = arith.constant 0 : index
    %c0_0 = arith.constant 0 : index
    %0 = vector.load %arg1[%c0, %c0_0] : memref<8x16xf32, #tpu.memory_space<vmem>>, vector<8x16xf32>
    %c0_1 = arith.constant 0 : index
    %c0_2 = arith.constant 0 : index
    %1 = vector.load %arg4[%c0_1, %c0_2] : memref<16x64xf32, #tpu.memory_space<vmem>>, vector<16x64xf32>
    %cst = arith.constant dense<0.000000e+00> : vector<8x64xf32>
    %2 = tpu.matmul %0, %1, %cst {dimension_numbers = #tpu.dot_dimension_numbers<[1], [0], [0], [1], [0, 0, 1, 1], [], []>} : vector<8x16xf32>, vector<16x64xf32>, vector<8x64xf32> -> vector<8x64xf32>
    %c0_3 = arith.constant 0 : index
    %c0_4 = arith.constant 0 : index
    %3 = vector.load %arg3[%c0_3, %c0_4] : memref<8x64xf32, #tpu.memory_space<vmem>>, vector<8x64xf32>
    %4 = arith.addf %2, %3 : vector<8x64xf32>
    %cst_5 = arith.constant 0.000000e+00 : f32
    %5 = vector.broadcast %cst_5 : f32 to vector<8x64xf32>
    %c0_6 = arith.constant 0 : index
    %c0_7 = arith.constant 0 : index
    %c0_8 = arith.constant 0 : index
    %6 = vector.load %arg2[%c0_6, %c0_7, %c0_8] : memref<3x8x16xf32, #tpu.memory_space<vmem>>, vector<1x8x16xf32>
    %7 = vector.shape_cast %6 : vector<1x8x16xf32> to vector<8x16xf32>
    %c0_9 = arith.constant 0 : index
    %c0_10 = arith.constant 0 : index
    %8 = vector.load %arg5[%c0_9, %c0_10] : memref<16x64xf32, #tpu.memory_space<vmem>>, vector<16x64xf32>
    %cst_11 = arith.constant dense<0.000000e+00> : vector<8x64xf32>
    %9 = tpu.matmul %7, %8, %cst_11 {dimension_numbers = #tpu.dot_dimension_numbers<[1], [0], [0], [1], [0, 0, 1, 1], [], []>} : vector<8x16xf32>, vector<16x64xf32>, vector<8x64xf32> -> vector<8x64xf32>
    %10 = arith.addf %4, %9 : vector<8x64xf32>
    %c0_12 = arith.constant 0 : index
    %c0_13 = arith.constant 0 : index
    %11 = vector.load %arg6[%c0_12, %c0_13] : memref<1x64xf32, #tpu.memory_space<vmem>>, vector<1x64xf32>
    %12 = vector.shape_cast %11 : vector<1x64xf32> to vector<64xf32>
    %c0_14 = arith.constant 0 : index
    %c0_15 = arith.constant 0 : index
    %13 = vector.load %arg7[%c0_14, %c0_15] : memref<1x64xf32, #tpu.memory_space<vmem>>, vector<1x64xf32>
    %14 = vector.shape_cast %13 : vector<1x64xf32> to vector<64xf32>
    %cst_16 = arith.constant dense<0.000000e+00> : vector<8xf32>
    %15 = vector.multi_reduction <add>, %10, %cst_16 [1] : vector<8x64xf32> to vector<8xf32>
    %16 = vector.shape_cast %15 : vector<8xf32> to vector<8x1xf32>
    %cst_17 = arith.constant 6.400000e+01 : f32
    %17 = vector.broadcast %cst_17 : f32 to vector<8x1xf32>
    %18 = arith.divf %16, %17 : vector<8x1xf32>
    %19 = vector.broadcast %18 : vector<8x1xf32> to vector<8x64xf32>
    %20 = arith.subf %10, %19 : vector<8x64xf32>
    %21 = arith.mulf %20, %20 : vector<8x64xf32>
    %cst_18 = arith.constant dense<0.000000e+00> : vector<8xf32>
    %22 = vector.multi_reduction <add>, %21, %cst_18 [1] : vector<8x64xf32> to vector<8xf32>
    %23 = vector.shape_cast %22 : vector<8xf32> to vector<8x1xf32>
    %cst_19 = arith.constant 6.400000e+01 : f32
    %24 = vector.broadcast %cst_19 : f32 to vector<8x1xf32>
    %25 = arith.divf %23, %24 : vector<8x1xf32>
    %26 = vector.broadcast %18 : vector<8x1xf32> to vector<8x64xf32>
    %27 = arith.subf %10, %26 : vector<8x64xf32>
    %cst_20 = arith.constant 9.99999974E-6 : f32
    %28 = vector.broadcast %cst_20 : f32 to vector<8x1xf32>
    %29 = arith.addf %25, %28 : vector<8x1xf32>
    %30 = math.rsqrt %29 : vector<8x1xf32>
    %31 = vector.broadcast %30 : vector<8x1xf32> to vector<8x64xf32>
    %32 = arith.mulf %27, %31 : vector<8x64xf32>
    %33 = vector.shape_cast %12 : vector<64xf32> to vector<1x64xf32>
    %34 = vector.broadcast %33 : vector<1x64xf32> to vector<8x64xf32>
    %35 = arith.mulf %32, %34 : vector<8x64xf32>
    %36 = vector.shape_cast %14 : vector<64xf32> to vector<1x64xf32>
    %37 = vector.broadcast %36 : vector<1x64xf32> to vector<8x64xf32>
    %38 = arith.addf %35, %37 : vector<8x64xf32>
    %c0_21 = arith.constant 0 : index
    %c0_22 = arith.constant 0 : index
    %39 = vector.load %arg9[%c0_21, %c0_22] : memref<64x32xf32, #tpu.memory_space<vmem>>, vector<64x32xf32>
    %cst_23 = arith.constant dense<0.000000e+00> : vector<8x32xf32>
    %40 = tpu.matmul %38, %39, %cst_23 {dimension_numbers = #tpu.dot_dimension_numbers<[1], [0], [0], [1], [0, 0, 1, 1], [], []>} : vector<8x64xf32>, vector<64x32xf32>, vector<8x32xf32> -> vector<8x32xf32>
    %cst_24 = arith.constant 0.000000e+00 : f32
    %41 = vector.broadcast %cst_24 : f32 to vector<8x64xf32>
    %c0_25 = arith.constant 0 : index
    %c0_26 = arith.constant 0 : index
    %c0_27 = arith.constant 0 : index
    %42 = vector.load %arg8[%c0_25, %c0_26, %c0_27] : memref<4x64x64xf32, #tpu.memory_space<vmem>>, vector<1x64x64xf32>
    %43 = vector.shape_cast %42 : vector<1x64x64xf32> to vector<64x64xf32>
    %cst_28 = arith.constant dense<0.000000e+00> : vector<8x64xf32>
    %44 = tpu.matmul %38, %43, %cst_28 {dimension_numbers = #tpu.dot_dimension_numbers<[1], [0], [0], [1], [0, 0, 1, 1], [], []>} : vector<8x64xf32>, vector<64x64xf32>, vector<8x64xf32> -> vector<8x64xf32>
    %cst_29 = arith.constant dense<0.000000e+00> : vector<8x8xf32>
    %45 = tpu.matmul %44, %38, %cst_29 {dimension_numbers = #tpu.dot_dimension_numbers<[1], [1], [0], [0], [0, 0, 1, 0], [], []>} : vector<8x64xf32>, vector<8x64xf32>, vector<8x8xf32> -> vector<8x8xf32>
    %cst_30 = arith.constant dense<0xFF800000> : vector<8xf32>
    %46 = vector.multi_reduction <maximumf>, %45, %cst_30 [1] : vector<8x8xf32> to vector<8xf32>
    %47 = vector.shape_cast %46 : vector<8xf32> to vector<8x1xf32>
    %48 = vector.broadcast %47 : vector<8x1xf32> to vector<8x8xf32>
    %49 = arith.subf %45, %48 : vector<8x8xf32>
    %50 = math.exp %49 : vector<8x8xf32>
    %cst_31 = arith.constant dense<0.000000e+00> : vector<8xf32>
    %51 = vector.multi_reduction <add>, %50, %cst_31 [1] : vector<8x8xf32> to vector<8xf32>
    %52 = vector.shape_cast %51 : vector<8xf32> to vector<8x1xf32>
    %cst_32 = arith.constant dense<0.000000e+00> : vector<8x32xf32>
    %53 = tpu.matmul %50, %40, %cst_32 {dimension_numbers = #tpu.dot_dimension_numbers<[1], [0], [0], [1], [0, 0, 1, 1], [], []>} : vector<8x8xf32>, vector<8x32xf32>, vector<8x32xf32> -> vector<8x32xf32>
    %54 = tpu.reciprocal %52 {approx = true} : vector<8x1xf32> -> vector<8x1xf32>
    %55 = vector.broadcast %54 : vector<8x1xf32> to vector<8x32xf32>
    %56 = arith.mulf %53, %55 : vector<8x32xf32>
    %c0_33 = arith.constant 0 : index
    %c0_34 = arith.constant 0 : index
    %c0_35 = arith.constant 0 : index
    %57 = vector.load %arg10[%c0_33, %c0_34, %c0_35] : memref<4x32x64xf32, #tpu.memory_space<vmem>>, vector<1x32x64xf32>
    %58 = vector.shape_cast %57 : vector<1x32x64xf32> to vector<32x64xf32>
    %cst_36 = arith.constant dense<0.000000e+00> : vector<8x64xf32>
    %59 = tpu.matmul %56, %58, %cst_36 {dimension_numbers = #tpu.dot_dimension_numbers<[1], [0], [0], [1], [0, 0, 1, 1], [], []>} : vector<8x32xf32>, vector<32x64xf32>, vector<8x64xf32> -> vector<8x64xf32>
    %60 = arith.addf %41, %59 : vector<8x64xf32>
    %c1 = arith.constant 1 : index
    %c0_37 = arith.constant 0 : index
    %c0_38 = arith.constant 0 : index
    %61 = vector.load %arg8[%c1, %c0_37, %c0_38] : memref<4x64x64xf32, #tpu.memory_space<vmem>>, vector<1x64x64xf32>
    %62 = vector.shape_cast %61 : vector<1x64x64xf32> to vector<64x64xf32>
    %cst_39 = arith.constant dense<0.000000e+00> : vector<8x64xf32>
    %63 = tpu.matmul %38, %62, %cst_39 {dimension_numbers = #tpu.dot_dimension_numbers<[1], [0], [0], [1], [0, 0, 1, 1], [], []>} : vector<8x64xf32>, vector<64x64xf32>, vector<8x64xf32> -> vector<8x64xf32>
    %cst_40 = arith.constant dense<0.000000e+00> : vector<8x8xf32>
    %64 = tpu.matmul %63, %38, %cst_40 {dimension_numbers = #tpu.dot_dimension_numbers<[1], [1], [0], [0], [0, 0, 1, 0], [], []>} : vector<8x64xf32>, vector<8x64xf32>, vector<8x8xf32> -> vector<8x8xf32>
    %cst_41 = arith.constant dense<0xFF800000> : vector<8xf32>
    %65 = vector.multi_reduction <maximumf>, %64, %cst_41 [1] : vector<8x8xf32> to vector<8xf32>
    %66 = vector.shape_cast %65 : vector<8xf32> to vector<8x1xf32>
    %67 = vector.broadcast %66 : vector<8x1xf32> to vector<8x8xf32>
    %68 = arith.subf %64, %67 : vector<8x8xf32>
    %69 = math.exp %68 : vector<8x8xf32>
    %cst_42 = arith.constant dense<0.000000e+00> : vector<8xf32>
    %70 = vector.multi_reduction <add>, %69, %cst_42 [1] : vector<8x8xf32> to vector<8xf32>
    %71 = vector.shape_cast %70 : vector<8xf32> to vector<8x1xf32>
    %cst_43 = arith.constant dense<0.000000e+00> : vector<8x32xf32>
    %72 = tpu.matmul %69, %40, %cst_43 {dimension_numbers = #tpu.dot_dimension_numbers<[1], [0], [0], [1], [0, 0, 1, 1], [], []>} : vector<8x8xf32>, vector<8x32xf32>, vector<8x32xf32> -> vector<8x32xf32>
    %73 = tpu.reciprocal %71 {approx = true} : vector<8x1xf32> -> vector<8x1xf32>
    %74 = vector.broadcast %73 : vector<8x1xf32> to vector<8x32xf32>
    %75 = arith.mulf %72, %74 : vector<8x32xf32>
    %c1_44 = arith.constant 1 : index
    %c0_45 = arith.constant 0 : index
    %c0_46 = arith.constant 0 : index
    %76 = vector.load %arg10[%c1_44, %c0_45, %c0_46] : memref<4x32x64xf32, #tpu.memory_space<vmem>>, vector<1x32x64xf32>
    %77 = vector.shape_cast %76 : vector<1x32x64xf32> to vector<32x64xf32>
    %cst_47 = arith.constant dense<0.000000e+00> : vector<8x64xf32>
    %78 = tpu.matmul %75, %77, %cst_47 {dimension_numbers = #tpu.dot_dimension_numbers<[1], [0], [0], [1], [0, 0, 1, 1], [], []>} : vector<8x32xf32>, vector<32x64xf32>, vector<8x64xf32> -> vector<8x64xf32>
    %79 = arith.addf %60, %78 : vector<8x64xf32>
    %c2 = arith.constant 2 : index
    %c0_48 = arith.constant 0 : index
    %c0_49 = arith.constant 0 : index
    %80 = vector.load %arg8[%c2, %c0_48, %c0_49] : memref<4x64x64xf32, #tpu.memory_space<vmem>>, vector<1x64x64xf32>
    %81 = vector.shape_cast %80 : vector<1x64x64xf32> to vector<64x64xf32>
    %cst_50 = arith.constant dense<0.000000e+00> : vector<8x64xf32>
    %82 = tpu.matmul %38, %81, %cst_50 {dimension_numbers = #tpu.dot_dimension_numbers<[1], [0], [0], [1], [0, 0, 1, 1], [], []>} : vector<8x64xf32>, vector<64x64xf32>, vector<8x64xf32> -> vector<8x64xf32>
    %cst_51 = arith.constant dense<0.000000e+00> : vector<8x8xf32>
    %83 = tpu.matmul %82, %38, %cst_51 {dimension_numbers = #tpu.dot_dimension_numbers<[1], [1], [0], [0], [0, 0, 1, 0], [], []>} : vector<8x64xf32>, vector<8x64xf32>, vector<8x8xf32> -> vector<8x8xf32>
    %cst_52 = arith.constant dense<0xFF800000> : vector<8xf32>
    %84 = vector.multi_reduction <maximumf>, %83, %cst_52 [1] : vector<8x8xf32> to vector<8xf32>
    %85 = vector.shape_cast %84 : vector<8xf32> to vector<8x1xf32>
    %86 = vector.broadcast %85 : vector<8x1xf32> to vector<8x8xf32>
    %87 = arith.subf %83, %86 : vector<8x8xf32>
    %88 = math.exp %87 : vector<8x8xf32>
    %cst_53 = arith.constant dense<0.000000e+00> : vector<8xf32>
    %89 = vector.multi_reduction <add>, %88, %cst_53 [1] : vector<8x8xf32> to vector<8xf32>
    %90 = vector.shape_cast %89 : vector<8xf32> to vector<8x1xf32>
    %cst_54 = arith.constant dense<0.000000e+00> : vector<8x32xf32>
    %91 = tpu.matmul %88, %40, %cst_54 {dimension_numbers = #tpu.dot_dimension_numbers<[1], [0], [0], [1], [0, 0, 1, 1], [], []>} : vector<8x8xf32>, vector<8x32xf32>, vector<8x32xf32> -> vector<8x32xf32>
    %92 = tpu.reciprocal %90 {approx = true} : vector<8x1xf32> -> vector<8x1xf32>
    %93 = vector.broadcast %92 : vector<8x1xf32> to vector<8x32xf32>
    %94 = arith.mulf %91, %93 : vector<8x32xf32>
    %c2_55 = arith.constant 2 : index
    %c0_56 = arith.constant 0 : index
    %c0_57 = arith.constant 0 : index
    %95 = vector.load %arg10[%c2_55, %c0_56, %c0_57] : memref<4x32x64xf32, #tpu.memory_space<vmem>>, vector<1x32x64xf32>
    %96 = vector.shape_cast %95 : vector<1x32x64xf32> to vector<32x64xf32>
    %cst_58 = arith.constant dense<0.000000e+00> : vector<8x64xf32>
    %97 = tpu.matmul %94, %96, %cst_58 {dimension_numbers = #tpu.dot_dimension_numbers<[1], [0], [0], [1], [0, 0, 1, 1], [], []>} : vector<8x32xf32>, vector<32x64xf32>, vector<8x64xf32> -> vector<8x64xf32>
    %98 = arith.addf %79, %97 : vector<8x64xf32>
    %c3 = arith.constant 3 : index
    %c0_59 = arith.constant 0 : index
    %c0_60 = arith.constant 0 : index
    %99 = vector.load %arg8[%c3, %c0_59, %c0_60] : memref<4x64x64xf32, #tpu.memory_space<vmem>>, vector<1x64x64xf32>
    %100 = vector.shape_cast %99 : vector<1x64x64xf32> to vector<64x64xf32>
    %cst_61 = arith.constant dense<0.000000e+00> : vector<8x64xf32>
    %101 = tpu.matmul %38, %100, %cst_61 {dimension_numbers = #tpu.dot_dimension_numbers<[1], [0], [0], [1], [0, 0, 1, 1], [], []>} : vector<8x64xf32>, vector<64x64xf32>, vector<8x64xf32> -> vector<8x64xf32>
    %cst_62 = arith.constant dense<0.000000e+00> : vector<8x8xf32>
    %102 = tpu.matmul %101, %38, %cst_62 {dimension_numbers = #tpu.dot_dimension_numbers<[1], [1], [0], [0], [0, 0, 1, 0], [], []>} : vector<8x64xf32>, vector<8x64xf32>, vector<8x8xf32> -> vector<8x8xf32>
    %cst_63 = arith.constant dense<0xFF800000> : vector<8xf32>
    %103 = vector.multi_reduction <maximumf>, %102, %cst_63 [1] : vector<8x8xf32> to vector<8xf32>
    %104 = vector.shape_cast %103 : vector<8xf32> to vector<8x1xf32>
    %105 = vector.broadcast %104 : vector<8x1xf32> to vector<8x8xf32>
    %106 = arith.subf %102, %105 : vector<8x8xf32>
    %107 = math.exp %106 : vector<8x8xf32>
    %cst_64 = arith.constant dense<0.000000e+00> : vector<8xf32>
    %108 = vector.multi_reduction <add>, %107, %cst_64 [1] : vector<8x8xf32> to vector<8xf32>
    %109 = vector.shape_cast %108 : vector<8xf32> to vector<8x1xf32>
    %cst_65 = arith.constant dense<0.000000e+00> : vector<8x32xf32>
    %110 = tpu.matmul %107, %40, %cst_65 {dimension_numbers = #tpu.dot_dimension_numbers<[1], [0], [0], [1], [0, 0, 1, 1], [], []>} : vector<8x8xf32>, vector<8x32xf32>, vector<8x32xf32> -> vector<8x32xf32>
    %111 = tpu.reciprocal %109 {approx = true} : vector<8x1xf32> -> vector<8x1xf32>
    %112 = vector.broadcast %111 : vector<8x1xf32> to vector<8x32xf32>
    %113 = arith.mulf %110, %112 : vector<8x32xf32>
    %c3_66 = arith.constant 3 : index
    %c0_67 = arith.constant 0 : index
    %c0_68 = arith.constant 0 : index
    %114 = vector.load %arg10[%c3_66, %c0_67, %c0_68] : memref<4x32x64xf32, #tpu.memory_space<vmem>>, vector<1x32x64xf32>
    %115 = vector.shape_cast %114 : vector<1x32x64xf32> to vector<32x64xf32>
    %cst_69 = arith.constant dense<0.000000e+00> : vector<8x64xf32>
    %116 = tpu.matmul %113, %115, %cst_69 {dimension_numbers = #tpu.dot_dimension_numbers<[1], [0], [0], [1], [0, 0, 1, 1], [], []>} : vector<8x32xf32>, vector<32x64xf32>, vector<8x64xf32> -> vector<8x64xf32>
    %117 = arith.addf %98, %116 : vector<8x64xf32>
    %c0_70 = arith.constant 0 : index
    %c0_71 = arith.constant 0 : index
    %118 = vector.load %arg11[%c0_70, %c0_71] : memref<1x64xf32, #tpu.memory_space<vmem>>, vector<1x64xf32>
    %119 = vector.shape_cast %118 : vector<1x64xf32> to vector<64xf32>
    %120 = vector.shape_cast %119 : vector<64xf32> to vector<1x64xf32>
    %121 = vector.broadcast %120 : vector<1x64xf32> to vector<8x64xf32>
    %122 = arith.addf %117, %121 : vector<8x64xf32>
    %123 = arith.addf %122, %10 : vector<8x64xf32>
    %c0_72 = arith.constant 0 : index
    %c0_73 = arith.constant 0 : index
    %124 = vector.load %arg12[%c0_72, %c0_73] : memref<1x64xf32, #tpu.memory_space<vmem>>, vector<1x64xf32>
    %125 = vector.shape_cast %124 : vector<1x64xf32> to vector<64xf32>
    %c0_74 = arith.constant 0 : index
    %c0_75 = arith.constant 0 : index
    %126 = vector.load %arg13[%c0_74, %c0_75] : memref<1x64xf32, #tpu.memory_space<vmem>>, vector<1x64xf32>
    %127 = vector.shape_cast %126 : vector<1x64xf32> to vector<64xf32>
    %cst_76 = arith.constant dense<0.000000e+00> : vector<8xf32>
    %128 = vector.multi_reduction <add>, %123, %cst_76 [1] : vector<8x64xf32> to vector<8xf32>
    %129 = vector.shape_cast %128 : vector<8xf32> to vector<8x1xf32>
    %cst_77 = arith.constant 6.400000e+01 : f32
    %130 = vector.broadcast %cst_77 : f32 to vector<8x1xf32>
    %131 = arith.divf %129, %130 : vector<8x1xf32>
    %132 = vector.broadcast %131 : vector<8x1xf32> to vector<8x64xf32>
    %133 = arith.subf %123, %132 : vector<8x64xf32>
    %134 = arith.mulf %133, %133 : vector<8x64xf32>
    %cst_78 = arith.constant dense<0.000000e+00> : vector<8xf32>
    %135 = vector.multi_reduction <add>, %134, %cst_78 [1] : vector<8x64xf32> to vector<8xf32>
    %136 = vector.shape_cast %135 : vector<8xf32> to vector<8x1xf32>
    %cst_79 = arith.constant 6.400000e+01 : f32
    %137 = vector.broadcast %cst_79 : f32 to vector<8x1xf32>
    %138 = arith.divf %136, %137 : vector<8x1xf32>
    %139 = vector.broadcast %131 : vector<8x1xf32> to vector<8x64xf32>
    %140 = arith.subf %123, %139 : vector<8x64xf32>
    %cst_80 = arith.constant 9.99999974E-6 : f32
    %141 = vector.broadcast %cst_80 : f32 to vector<8x1xf32>
    %142 = arith.addf %138, %141 : vector<8x1xf32>
    %143 = math.rsqrt %142 : vector<8x1xf32>
    %144 = vector.broadcast %143 : vector<8x1xf32> to vector<8x64xf32>
    %145 = arith.mulf %140, %144 : vector<8x64xf32>
    %146 = vector.shape_cast %125 : vector<64xf32> to vector<1x64xf32>
    %147 = vector.broadcast %146 : vector<1x64xf32> to vector<8x64xf32>
    %148 = arith.mulf %145, %147 : vector<8x64xf32>
    %149 = vector.shape_cast %127 : vector<64xf32> to vector<1x64xf32>
    %150 = vector.broadcast %149 : vector<1x64xf32> to vector<8x64xf32>
    %151 = arith.addf %148, %150 : vector<8x64xf32>
    %c0_81 = arith.constant 0 : index
    %c0_82 = arith.constant 0 : index
    %152 = vector.load %arg14[%c0_81, %c0_82] : memref<64x32xf32, #tpu.memory_space<vmem>>, vector<64x32xf32>
    %cst_83 = arith.constant dense<0.000000e+00> : vector<8x32xf32>
    %153 = tpu.matmul %151, %152, %cst_83 {dimension_numbers = #tpu.dot_dimension_numbers<[1], [0], [0], [1], [0, 0, 1, 1], [], []>} : vector<8x64xf32>, vector<64x32xf32>, vector<8x32xf32> -> vector<8x32xf32>
    %c0_84 = arith.constant 0 : index
    %c0_85 = arith.constant 0 : index
    %154 = vector.load %arg15[%c0_84, %c0_85] : memref<1x32xf32, #tpu.memory_space<vmem>>, vector<1x32xf32>
    %155 = vector.shape_cast %154 : vector<1x32xf32> to vector<32xf32>
    %156 = vector.shape_cast %155 : vector<32xf32> to vector<1x32xf32>
    %157 = vector.broadcast %156 : vector<1x32xf32> to vector<8x32xf32>
    %158 = arith.addf %153, %157 : vector<8x32xf32>
    %159 = arith.mulf %158, %158 : vector<8x32xf32>
    %160 = arith.mulf %158, %159 : vector<8x32xf32>
    %cst_86 = arith.constant 4.471500e-02 : f32
    %161 = vector.broadcast %cst_86 : f32 to vector<8x32xf32>
    %162 = arith.mulf %161, %160 : vector<8x32xf32>
    %163 = arith.addf %158, %162 : vector<8x32xf32>
    %cst_87 = arith.constant 0.797884583 : f32
    %164 = vector.broadcast %cst_87 : f32 to vector<8x32xf32>
    %165 = arith.mulf %164, %163 : vector<8x32xf32>
    %166 = math.tanh %165 : vector<8x32xf32>
    %cst_88 = arith.constant 1.000000e+00 : f32
    %167 = vector.broadcast %cst_88 : f32 to vector<8x32xf32>
    %168 = arith.addf %167, %166 : vector<8x32xf32>
    %cst_89 = arith.constant 5.000000e-01 : f32
    %169 = vector.broadcast %cst_89 : f32 to vector<8x32xf32>
    %170 = arith.mulf %169, %168 : vector<8x32xf32>
    %171 = arith.mulf %158, %170 : vector<8x32xf32>
    %c0_90 = arith.constant 0 : index
    %c0_91 = arith.constant 0 : index
    %172 = vector.load %arg16[%c0_90, %c0_91] : memref<32x64xf32, #tpu.memory_space<vmem>>, vector<32x64xf32>
    %cst_92 = arith.constant dense<0.000000e+00> : vector<8x64xf32>
    %173 = tpu.matmul %171, %172, %cst_92 {dimension_numbers = #tpu.dot_dimension_numbers<[1], [0], [0], [1], [0, 0, 1, 1], [], []>} : vector<8x32xf32>, vector<32x64xf32>, vector<8x64xf32> -> vector<8x64xf32>
    %c0_93 = arith.constant 0 : index
    %c0_94 = arith.constant 0 : index
    %174 = vector.load %arg17[%c0_93, %c0_94] : memref<1x64xf32, #tpu.memory_space<vmem>>, vector<1x64xf32>
    %175 = vector.shape_cast %174 : vector<1x64xf32> to vector<64xf32>
    %176 = vector.shape_cast %175 : vector<64xf32> to vector<1x64xf32>
    %177 = vector.broadcast %176 : vector<1x64xf32> to vector<8x64xf32>
    %178 = arith.addf %173, %177 : vector<8x64xf32>
    %179 = arith.addf %178, %123 : vector<8x64xf32>
    %180 = arith.addf %5, %179 : vector<8x64xf32>
    %c1_95 = arith.constant 1 : index
    %c0_96 = arith.constant 0 : index
    %c0_97 = arith.constant 0 : index
    %181 = vector.load %arg2[%c1_95, %c0_96, %c0_97] : memref<3x8x16xf32, #tpu.memory_space<vmem>>, vector<1x8x16xf32>
    %182 = vector.shape_cast %181 : vector<1x8x16xf32> to vector<8x16xf32>
    %c0_98 = arith.constant 0 : index
    %c0_99 = arith.constant 0 : index
    %183 = vector.load %arg5[%c0_98, %c0_99] : memref<16x64xf32, #tpu.memory_space<vmem>>, vector<16x64xf32>
    %cst_100 = arith.constant dense<0.000000e+00> : vector<8x64xf32>
    %184 = tpu.matmul %182, %183, %cst_100 {dimension_numbers = #tpu.dot_dimension_numbers<[1], [0], [0], [1], [0, 0, 1, 1], [], []>} : vector<8x16xf32>, vector<16x64xf32>, vector<8x64xf32> -> vector<8x64xf32>
    %185 = arith.addf %4, %184 : vector<8x64xf32>
    %c0_101 = arith.constant 0 : index
    %c0_102 = arith.constant 0 : index
    %186 = vector.load %arg6[%c0_101, %c0_102] : memref<1x64xf32, #tpu.memory_space<vmem>>, vector<1x64xf32>
    %187 = vector.shape_cast %186 : vector<1x64xf32> to vector<64xf32>
    %c0_103 = arith.constant 0 : index
    %c0_104 = arith.constant 0 : index
    %188 = vector.load %arg7[%c0_103, %c0_104] : memref<1x64xf32, #tpu.memory_space<vmem>>, vector<1x64xf32>
    %189 = vector.shape_cast %188 : vector<1x64xf32> to vector<64xf32>
    %cst_105 = arith.constant dense<0.000000e+00> : vector<8xf32>
    %190 = vector.multi_reduction <add>, %185, %cst_105 [1] : vector<8x64xf32> to vector<8xf32>
    %191 = vector.shape_cast %190 : vector<8xf32> to vector<8x1xf32>
    %cst_106 = arith.constant 6.400000e+01 : f32
    %192 = vector.broadcast %cst_106 : f32 to vector<8x1xf32>
    %193 = arith.divf %191, %192 : vector<8x1xf32>
    %194 = vector.broadcast %193 : vector<8x1xf32> to vector<8x64xf32>
    %195 = arith.subf %185, %194 : vector<8x64xf32>
    %196 = arith.mulf %195, %195 : vector<8x64xf32>
    %cst_107 = arith.constant dense<0.000000e+00> : vector<8xf32>
    %197 = vector.multi_reduction <add>, %196, %cst_107 [1] : vector<8x64xf32> to vector<8xf32>
    %198 = vector.shape_cast %197 : vector<8xf32> to vector<8x1xf32>
    %cst_108 = arith.constant 6.400000e+01 : f32
    %199 = vector.broadcast %cst_108 : f32 to vector<8x1xf32>
    %200 = arith.divf %198, %199 : vector<8x1xf32>
    %201 = vector.broadcast %193 : vector<8x1xf32> to vector<8x64xf32>
    %202 = arith.subf %185, %201 : vector<8x64xf32>
    %cst_109 = arith.constant 9.99999974E-6 : f32
    %203 = vector.broadcast %cst_109 : f32 to vector<8x1xf32>
    %204 = arith.addf %200, %203 : vector<8x1xf32>
    %205 = math.rsqrt %204 : vector<8x1xf32>
    %206 = vector.broadcast %205 : vector<8x1xf32> to vector<8x64xf32>
    %207 = arith.mulf %202, %206 : vector<8x64xf32>
    %208 = vector.shape_cast %187 : vector<64xf32> to vector<1x64xf32>
    %209 = vector.broadcast %208 : vector<1x64xf32> to vector<8x64xf32>
    %210 = arith.mulf %207, %209 : vector<8x64xf32>
    %211 = vector.shape_cast %189 : vector<64xf32> to vector<1x64xf32>
    %212 = vector.broadcast %211 : vector<1x64xf32> to vector<8x64xf32>
    %213 = arith.addf %210, %212 : vector<8x64xf32>
    %c0_110 = arith.constant 0 : index
    %c0_111 = arith.constant 0 : index
    %214 = vector.load %arg9[%c0_110, %c0_111] : memref<64x32xf32, #tpu.memory_space<vmem>>, vector<64x32xf32>
    %cst_112 = arith.constant dense<0.000000e+00> : vector<8x32xf32>
    %215 = tpu.matmul %213, %214, %cst_112 {dimension_numbers = #tpu.dot_dimension_numbers<[1], [0], [0], [1], [0, 0, 1, 1], [], []>} : vector<8x64xf32>, vector<64x32xf32>, vector<8x32xf32> -> vector<8x32xf32>
    %cst_113 = arith.constant 0.000000e+00 : f32
    %216 = vector.broadcast %cst_113 : f32 to vector<8x64xf32>
    %c0_114 = arith.constant 0 : index
    %c0_115 = arith.constant 0 : index
    %c0_116 = arith.constant 0 : index
    %217 = vector.load %arg8[%c0_114, %c0_115, %c0_116] : memref<4x64x64xf32, #tpu.memory_space<vmem>>, vector<1x64x64xf32>
    %218 = vector.shape_cast %217 : vector<1x64x64xf32> to vector<64x64xf32>
    %cst_117 = arith.constant dense<0.000000e+00> : vector<8x64xf32>
    %219 = tpu.matmul %213, %218, %cst_117 {dimension_numbers = #tpu.dot_dimension_numbers<[1], [0], [0], [1], [0, 0, 1, 1], [], []>} : vector<8x64xf32>, vector<64x64xf32>, vector<8x64xf32> -> vector<8x64xf32>
    %cst_118 = arith.constant dense<0.000000e+00> : vector<8x8xf32>
    %220 = tpu.matmul %219, %213, %cst_118 {dimension_numbers = #tpu.dot_dimension_numbers<[1], [1], [0], [0], [0, 0, 1, 0], [], []>} : vector<8x64xf32>, vector<8x64xf32>, vector<8x8xf32> -> vector<8x8xf32>
    %cst_119 = arith.constant dense<0xFF800000> : vector<8xf32>
    %221 = vector.multi_reduction <maximumf>, %220, %cst_119 [1] : vector<8x8xf32> to vector<8xf32>
    %222 = vector.shape_cast %221 : vector<8xf32> to vector<8x1xf32>
    %223 = vector.broadcast %222 : vector<8x1xf32> to vector<8x8xf32>
    %224 = arith.subf %220, %223 : vector<8x8xf32>
    %225 = math.exp %224 : vector<8x8xf32>
    %cst_120 = arith.constant dense<0.000000e+00> : vector<8xf32>
    %226 = vector.multi_reduction <add>, %225, %cst_120 [1] : vector<8x8xf32> to vector<8xf32>
    %227 = vector.shape_cast %226 : vector<8xf32> to vector<8x1xf32>
    %cst_121 = arith.constant dense<0.000000e+00> : vector<8x32xf32>
    %228 = tpu.matmul %225, %215, %cst_121 {dimension_numbers = #tpu.dot_dimension_numbers<[1], [0], [0], [1], [0, 0, 1, 1], [], []>} : vector<8x8xf32>, vector<8x32xf32>, vector<8x32xf32> -> vector<8x32xf32>
    %229 = tpu.reciprocal %227 {approx = true} : vector<8x1xf32> -> vector<8x1xf32>
    %230 = vector.broadcast %229 : vector<8x1xf32> to vector<8x32xf32>
    %231 = arith.mulf %228, %230 : vector<8x32xf32>
    %c0_122 = arith.constant 0 : index
    %c0_123 = arith.constant 0 : index
    %c0_124 = arith.constant 0 : index
    %232 = vector.load %arg10[%c0_122, %c0_123, %c0_124] : memref<4x32x64xf32, #tpu.memory_space<vmem>>, vector<1x32x64xf32>
    %233 = vector.shape_cast %232 : vector<1x32x64xf32> to vector<32x64xf32>
    %cst_125 = arith.constant dense<0.000000e+00> : vector<8x64xf32>
    %234 = tpu.matmul %231, %233, %cst_125 {dimension_numbers = #tpu.dot_dimension_numbers<[1], [0], [0], [1], [0, 0, 1, 1], [], []>} : vector<8x32xf32>, vector<32x64xf32>, vector<8x64xf32> -> vector<8x64xf32>
    %235 = arith.addf %216, %234 : vector<8x64xf32>
    %c1_126 = arith.constant 1 : index
    %c0_127 = arith.constant 0 : index
    %c0_128 = arith.constant 0 : index
    %236 = vector.load %arg8[%c1_126, %c0_127, %c0_128] : memref<4x64x64xf32, #tpu.memory_space<vmem>>, vector<1x64x64xf32>
    %237 = vector.shape_cast %236 : vector<1x64x64xf32> to vector<64x64xf32>
    %cst_129 = arith.constant dense<0.000000e+00> : vector<8x64xf32>
    %238 = tpu.matmul %213, %237, %cst_129 {dimension_numbers = #tpu.dot_dimension_numbers<[1], [0], [0], [1], [0, 0, 1, 1], [], []>} : vector<8x64xf32>, vector<64x64xf32>, vector<8x64xf32> -> vector<8x64xf32>
    %cst_130 = arith.constant dense<0.000000e+00> : vector<8x8xf32>
    %239 = tpu.matmul %238, %213, %cst_130 {dimension_numbers = #tpu.dot_dimension_numbers<[1], [1], [0], [0], [0, 0, 1, 0], [], []>} : vector<8x64xf32>, vector<8x64xf32>, vector<8x8xf32> -> vector<8x8xf32>
    %cst_131 = arith.constant dense<0xFF800000> : vector<8xf32>
    %240 = vector.multi_reduction <maximumf>, %239, %cst_131 [1] : vector<8x8xf32> to vector<8xf32>
    %241 = vector.shape_cast %240 : vector<8xf32> to vector<8x1xf32>
    %242 = vector.broadcast %241 : vector<8x1xf32> to vector<8x8xf32>
    %243 = arith.subf %239, %242 : vector<8x8xf32>
    %244 = math.exp %243 : vector<8x8xf32>
    %cst_132 = arith.constant dense<0.000000e+00> : vector<8xf32>
    %245 = vector.multi_reduction <add>, %244, %cst_132 [1] : vector<8x8xf32> to vector<8xf32>
    %246 = vector.shape_cast %245 : vector<8xf32> to vector<8x1xf32>
    %cst_133 = arith.constant dense<0.000000e+00> : vector<8x32xf32>
    %247 = tpu.matmul %244, %215, %cst_133 {dimension_numbers = #tpu.dot_dimension_numbers<[1], [0], [0], [1], [0, 0, 1, 1], [], []>} : vector<8x8xf32>, vector<8x32xf32>, vector<8x32xf32> -> vector<8x32xf32>
    %248 = tpu.reciprocal %246 {approx = true} : vector<8x1xf32> -> vector<8x1xf32>
    %249 = vector.broadcast %248 : vector<8x1xf32> to vector<8x32xf32>
    %250 = arith.mulf %247, %249 : vector<8x32xf32>
    %c1_134 = arith.constant 1 : index
    %c0_135 = arith.constant 0 : index
    %c0_136 = arith.constant 0 : index
    %251 = vector.load %arg10[%c1_134, %c0_135, %c0_136] : memref<4x32x64xf32, #tpu.memory_space<vmem>>, vector<1x32x64xf32>
    %252 = vector.shape_cast %251 : vector<1x32x64xf32> to vector<32x64xf32>
    %cst_137 = arith.constant dense<0.000000e+00> : vector<8x64xf32>
    %253 = tpu.matmul %250, %252, %cst_137 {dimension_numbers = #tpu.dot_dimension_numbers<[1], [0], [0], [1], [0, 0, 1, 1], [], []>} : vector<8x32xf32>, vector<32x64xf32>, vector<8x64xf32> -> vector<8x64xf32>
    %254 = arith.addf %235, %253 : vector<8x64xf32>
    %c2_138 = arith.constant 2 : index
    %c0_139 = arith.constant 0 : index
    %c0_140 = arith.constant 0 : index
    %255 = vector.load %arg8[%c2_138, %c0_139, %c0_140] : memref<4x64x64xf32, #tpu.memory_space<vmem>>, vector<1x64x64xf32>
    %256 = vector.shape_cast %255 : vector<1x64x64xf32> to vector<64x64xf32>
    %cst_141 = arith.constant dense<0.000000e+00> : vector<8x64xf32>
    %257 = tpu.matmul %213, %256, %cst_141 {dimension_numbers = #tpu.dot_dimension_numbers<[1], [0], [0], [1], [0, 0, 1, 1], [], []>} : vector<8x64xf32>, vector<64x64xf32>, vector<8x64xf32> -> vector<8x64xf32>
    %cst_142 = arith.constant dense<0.000000e+00> : vector<8x8xf32>
    %258 = tpu.matmul %257, %213, %cst_142 {dimension_numbers = #tpu.dot_dimension_numbers<[1], [1], [0], [0], [0, 0, 1, 0], [], []>} : vector<8x64xf32>, vector<8x64xf32>, vector<8x8xf32> -> vector<8x8xf32>
    %cst_143 = arith.constant dense<0xFF800000> : vector<8xf32>
    %259 = vector.multi_reduction <maximumf>, %258, %cst_143 [1] : vector<8x8xf32> to vector<8xf32>
    %260 = vector.shape_cast %259 : vector<8xf32> to vector<8x1xf32>
    %261 = vector.broadcast %260 : vector<8x1xf32> to vector<8x8xf32>
    %262 = arith.subf %258, %261 : vector<8x8xf32>
    %263 = math.exp %262 : vector<8x8xf32>
    %cst_144 = arith.constant dense<0.000000e+00> : vector<8xf32>
    %264 = vector.multi_reduction <add>, %263, %cst_144 [1] : vector<8x8xf32> to vector<8xf32>
    %265 = vector.shape_cast %264 : vector<8xf32> to vector<8x1xf32>
    %cst_145 = arith.constant dense<0.000000e+00> : vector<8x32xf32>
    %266 = tpu.matmul %263, %215, %cst_145 {dimension_numbers = #tpu.dot_dimension_numbers<[1], [0], [0], [1], [0, 0, 1, 1], [], []>} : vector<8x8xf32>, vector<8x32xf32>, vector<8x32xf32> -> vector<8x32xf32>
    %267 = tpu.reciprocal %265 {approx = true} : vector<8x1xf32> -> vector<8x1xf32>
    %268 = vector.broadcast %267 : vector<8x1xf32> to vector<8x32xf32>
    %269 = arith.mulf %266, %268 : vector<8x32xf32>
    %c2_146 = arith.constant 2 : index
    %c0_147 = arith.constant 0 : index
    %c0_148 = arith.constant 0 : index
    %270 = vector.load %arg10[%c2_146, %c0_147, %c0_148] : memref<4x32x64xf32, #tpu.memory_space<vmem>>, vector<1x32x64xf32>
    %271 = vector.shape_cast %270 : vector<1x32x64xf32> to vector<32x64xf32>
    %cst_149 = arith.constant dense<0.000000e+00> : vector<8x64xf32>
    %272 = tpu.matmul %269, %271, %cst_149 {dimension_numbers = #tpu.dot_dimension_numbers<[1], [0], [0], [1], [0, 0, 1, 1], [], []>} : vector<8x32xf32>, vector<32x64xf32>, vector<8x64xf32> -> vector<8x64xf32>
    %273 = arith.addf %254, %272 : vector<8x64xf32>
    %c3_150 = arith.constant 3 : index
    %c0_151 = arith.constant 0 : index
    %c0_152 = arith.constant 0 : index
    %274 = vector.load %arg8[%c3_150, %c0_151, %c0_152] : memref<4x64x64xf32, #tpu.memory_space<vmem>>, vector<1x64x64xf32>
    %275 = vector.shape_cast %274 : vector<1x64x64xf32> to vector<64x64xf32>
    %cst_153 = arith.constant dense<0.000000e+00> : vector<8x64xf32>
    %276 = tpu.matmul %213, %275, %cst_153 {dimension_numbers = #tpu.dot_dimension_numbers<[1], [0], [0], [1], [0, 0, 1, 1], [], []>} : vector<8x64xf32>, vector<64x64xf32>, vector<8x64xf32> -> vector<8x64xf32>
    %cst_154 = arith.constant dense<0.000000e+00> : vector<8x8xf32>
    %277 = tpu.matmul %276, %213, %cst_154 {dimension_numbers = #tpu.dot_dimension_numbers<[1], [1], [0], [0], [0, 0, 1, 0], [], []>} : vector<8x64xf32>, vector<8x64xf32>, vector<8x8xf32> -> vector<8x8xf32>
    %cst_155 = arith.constant dense<0xFF800000> : vector<8xf32>
    %278 = vector.multi_reduction <maximumf>, %277, %cst_155 [1] : vector<8x8xf32> to vector<8xf32>
    %279 = vector.shape_cast %278 : vector<8xf32> to vector<8x1xf32>
    %280 = vector.broadcast %279 : vector<8x1xf32> to vector<8x8xf32>
    %281 = arith.subf %277, %280 : vector<8x8xf32>
    %282 = math.exp %281 : vector<8x8xf32>
    %cst_156 = arith.constant dense<0.000000e+00> : vector<8xf32>
    %283 = vector.multi_reduction <add>, %282, %cst_156 [1] : vector<8x8xf32> to vector<8xf32>
    %284 = vector.shape_cast %283 : vector<8xf32> to vector<8x1xf32>
    %cst_157 = arith.constant dense<0.000000e+00> : vector<8x32xf32>
    %285 = tpu.matmul %282, %215, %cst_157 {dimension_numbers = #tpu.dot_dimension_numbers<[1], [0], [0], [1], [0, 0, 1, 1], [], []>} : vector<8x8xf32>, vector<8x32xf32>, vector<8x32xf32> -> vector<8x32xf32>
    %286 = tpu.reciprocal %284 {approx = true} : vector<8x1xf32> -> vector<8x1xf32>
    %287 = vector.broadcast %286 : vector<8x1xf32> to vector<8x32xf32>
    %288 = arith.mulf %285, %287 : vector<8x32xf32>
    %c3_158 = arith.constant 3 : index
    %c0_159 = arith.constant 0 : index
    %c0_160 = arith.constant 0 : index
    %289 = vector.load %arg10[%c3_158, %c0_159, %c0_160] : memref<4x32x64xf32, #tpu.memory_space<vmem>>, vector<1x32x64xf32>
    %290 = vector.shape_cast %289 : vector<1x32x64xf32> to vector<32x64xf32>
    %cst_161 = arith.constant dense<0.000000e+00> : vector<8x64xf32>
    %291 = tpu.matmul %288, %290, %cst_161 {dimension_numbers = #tpu.dot_dimension_numbers<[1], [0], [0], [1], [0, 0, 1, 1], [], []>} : vector<8x32xf32>, vector<32x64xf32>, vector<8x64xf32> -> vector<8x64xf32>
    %292 = arith.addf %273, %291 : vector<8x64xf32>
    %c0_162 = arith.constant 0 : index
    %c0_163 = arith.constant 0 : index
    %293 = vector.load %arg11[%c0_162, %c0_163] : memref<1x64xf32, #tpu.memory_space<vmem>>, vector<1x64xf32>
    %294 = vector.shape_cast %293 : vector<1x64xf32> to vector<64xf32>
    %295 = vector.shape_cast %294 : vector<64xf32> to vector<1x64xf32>
    %296 = vector.broadcast %295 : vector<1x64xf32> to vector<8x64xf32>
    %297 = arith.addf %292, %296 : vector<8x64xf32>
    %298 = arith.addf %297, %185 : vector<8x64xf32>
    %c0_164 = arith.constant 0 : index
    %c0_165 = arith.constant 0 : index
    %299 = vector.load %arg12[%c0_164, %c0_165] : memref<1x64xf32, #tpu.memory_space<vmem>>, vector<1x64xf32>
    %300 = vector.shape_cast %299 : vector<1x64xf32> to vector<64xf32>
    %c0_166 = arith.constant 0 : index
    %c0_167 = arith.constant 0 : index
    %301 = vector.load %arg13[%c0_166, %c0_167] : memref<1x64xf32, #tpu.memory_space<vmem>>, vector<1x64xf32>
    %302 = vector.shape_cast %301 : vector<1x64xf32> to vector<64xf32>
    %cst_168 = arith.constant dense<0.000000e+00> : vector<8xf32>
    %303 = vector.multi_reduction <add>, %298, %cst_168 [1] : vector<8x64xf32> to vector<8xf32>
    %304 = vector.shape_cast %303 : vector<8xf32> to vector<8x1xf32>
    %cst_169 = arith.constant 6.400000e+01 : f32
    %305 = vector.broadcast %cst_169 : f32 to vector<8x1xf32>
    %306 = arith.divf %304, %305 : vector<8x1xf32>
    %307 = vector.broadcast %306 : vector<8x1xf32> to vector<8x64xf32>
    %308 = arith.subf %298, %307 : vector<8x64xf32>
    %309 = arith.mulf %308, %308 : vector<8x64xf32>
    %cst_170 = arith.constant dense<0.000000e+00> : vector<8xf32>
    %310 = vector.multi_reduction <add>, %309, %cst_170 [1] : vector<8x64xf32> to vector<8xf32>
    %311 = vector.shape_cast %310 : vector<8xf32> to vector<8x1xf32>
    %cst_171 = arith.constant 6.400000e+01 : f32
    %312 = vector.broadcast %cst_171 : f32 to vector<8x1xf32>
    %313 = arith.divf %311, %312 : vector<8x1xf32>
    %314 = vector.broadcast %306 : vector<8x1xf32> to vector<8x64xf32>
    %315 = arith.subf %298, %314 : vector<8x64xf32>
    %cst_172 = arith.constant 9.99999974E-6 : f32
    %316 = vector.broadcast %cst_172 : f32 to vector<8x1xf32>
    %317 = arith.addf %313, %316 : vector<8x1xf32>
    %318 = math.rsqrt %317 : vector<8x1xf32>
    %319 = vector.broadcast %318 : vector<8x1xf32> to vector<8x64xf32>
    %320 = arith.mulf %315, %319 : vector<8x64xf32>
    %321 = vector.shape_cast %300 : vector<64xf32> to vector<1x64xf32>
    %322 = vector.broadcast %321 : vector<1x64xf32> to vector<8x64xf32>
    %323 = arith.mulf %320, %322 : vector<8x64xf32>
    %324 = vector.shape_cast %302 : vector<64xf32> to vector<1x64xf32>
    %325 = vector.broadcast %324 : vector<1x64xf32> to vector<8x64xf32>
    %326 = arith.addf %323, %325 : vector<8x64xf32>
    %c0_173 = arith.constant 0 : index
    %c0_174 = arith.constant 0 : index
    %327 = vector.load %arg14[%c0_173, %c0_174] : memref<64x32xf32, #tpu.memory_space<vmem>>, vector<64x32xf32>
    %cst_175 = arith.constant dense<0.000000e+00> : vector<8x32xf32>
    %328 = tpu.matmul %326, %327, %cst_175 {dimension_numbers = #tpu.dot_dimension_numbers<[1], [0], [0], [1], [0, 0, 1, 1], [], []>} : vector<8x64xf32>, vector<64x32xf32>, vector<8x32xf32> -> vector<8x32xf32>
    %c0_176 = arith.constant 0 : index
    %c0_177 = arith.constant 0 : index
    %329 = vector.load %arg15[%c0_176, %c0_177] : memref<1x32xf32, #tpu.memory_space<vmem>>, vector<1x32xf32>
    %330 = vector.shape_cast %329 : vector<1x32xf32> to vector<32xf32>
    %331 = vector.shape_cast %330 : vector<32xf32> to vector<1x32xf32>
    %332 = vector.broadcast %331 : vector<1x32xf32> to vector<8x32xf32>
    %333 = arith.addf %328, %332 : vector<8x32xf32>
    %334 = arith.mulf %333, %333 : vector<8x32xf32>
    %335 = arith.mulf %333, %334 : vector<8x32xf32>
    %cst_178 = arith.constant 4.471500e-02 : f32
    %336 = vector.broadcast %cst_178 : f32 to vector<8x32xf32>
    %337 = arith.mulf %336, %335 : vector<8x32xf32>
    %338 = arith.addf %333, %337 : vector<8x32xf32>
    %cst_179 = arith.constant 0.797884583 : f32
    %339 = vector.broadcast %cst_179 : f32 to vector<8x32xf32>
    %340 = arith.mulf %339, %338 : vector<8x32xf32>
    %341 = math.tanh %340 : vector<8x32xf32>
    %cst_180 = arith.constant 1.000000e+00 : f32
    %342 = vector.broadcast %cst_180 : f32 to vector<8x32xf32>
    %343 = arith.addf %342, %341 : vector<8x32xf32>
    %cst_181 = arith.constant 5.000000e-01 : f32
    %344 = vector.broadcast %cst_181 : f32 to vector<8x32xf32>
    %345 = arith.mulf %344, %343 : vector<8x32xf32>
    %346 = arith.mulf %333, %345 : vector<8x32xf32>
    %c0_182 = arith.constant 0 : index
    %c0_183 = arith.constant 0 : index
    %347 = vector.load %arg16[%c0_182, %c0_183] : memref<32x64xf32, #tpu.memory_space<vmem>>, vector<32x64xf32>
    %cst_184 = arith.constant dense<0.000000e+00> : vector<8x64xf32>
    %348 = tpu.matmul %346, %347, %cst_184 {dimension_numbers = #tpu.dot_dimension_numbers<[1], [0], [0], [1], [0, 0, 1, 1], [], []>} : vector<8x32xf32>, vector<32x64xf32>, vector<8x64xf32> -> vector<8x64xf32>
    %c0_185 = arith.constant 0 : index
    %c0_186 = arith.constant 0 : index
    %349 = vector.load %arg17[%c0_185, %c0_186] : memref<1x64xf32, #tpu.memory_space<vmem>>, vector<1x64xf32>
    %350 = vector.shape_cast %349 : vector<1x64xf32> to vector<64xf32>
    %351 = vector.shape_cast %350 : vector<64xf32> to vector<1x64xf32>
    %352 = vector.broadcast %351 : vector<1x64xf32> to vector<8x64xf32>
    %353 = arith.addf %348, %352 : vector<8x64xf32>
    %354 = arith.addf %353, %298 : vector<8x64xf32>
    %355 = arith.addf %180, %354 : vector<8x64xf32>
    %c2_187 = arith.constant 2 : index
    %c0_188 = arith.constant 0 : index
    %c0_189 = arith.constant 0 : index
    %356 = vector.load %arg2[%c2_187, %c0_188, %c0_189] : memref<3x8x16xf32, #tpu.memory_space<vmem>>, vector<1x8x16xf32>
    %357 = vector.shape_cast %356 : vector<1x8x16xf32> to vector<8x16xf32>
    %c0_190 = arith.constant 0 : index
    %c0_191 = arith.constant 0 : index
    %358 = vector.load %arg5[%c0_190, %c0_191] : memref<16x64xf32, #tpu.memory_space<vmem>>, vector<16x64xf32>
    %cst_192 = arith.constant dense<0.000000e+00> : vector<8x64xf32>
    %359 = tpu.matmul %357, %358, %cst_192 {dimension_numbers = #tpu.dot_dimension_numbers<[1], [0], [0], [1], [0, 0, 1, 1], [], []>} : vector<8x16xf32>, vector<16x64xf32>, vector<8x64xf32> -> vector<8x64xf32>
    %360 = arith.addf %4, %359 : vector<8x64xf32>
    %c0_193 = arith.constant 0 : index
    %c0_194 = arith.constant 0 : index
    %361 = vector.load %arg6[%c0_193, %c0_194] : memref<1x64xf32, #tpu.memory_space<vmem>>, vector<1x64xf32>
    %362 = vector.shape_cast %361 : vector<1x64xf32> to vector<64xf32>
    %c0_195 = arith.constant 0 : index
    %c0_196 = arith.constant 0 : index
    %363 = vector.load %arg7[%c0_195, %c0_196] : memref<1x64xf32, #tpu.memory_space<vmem>>, vector<1x64xf32>
    %364 = vector.shape_cast %363 : vector<1x64xf32> to vector<64xf32>
    %cst_197 = arith.constant dense<0.000000e+00> : vector<8xf32>
    %365 = vector.multi_reduction <add>, %360, %cst_197 [1] : vector<8x64xf32> to vector<8xf32>
    %366 = vector.shape_cast %365 : vector<8xf32> to vector<8x1xf32>
    %cst_198 = arith.constant 6.400000e+01 : f32
    %367 = vector.broadcast %cst_198 : f32 to vector<8x1xf32>
    %368 = arith.divf %366, %367 : vector<8x1xf32>
    %369 = vector.broadcast %368 : vector<8x1xf32> to vector<8x64xf32>
    %370 = arith.subf %360, %369 : vector<8x64xf32>
    %371 = arith.mulf %370, %370 : vector<8x64xf32>
    %cst_199 = arith.constant dense<0.000000e+00> : vector<8xf32>
    %372 = vector.multi_reduction <add>, %371, %cst_199 [1] : vector<8x64xf32> to vector<8xf32>
    %373 = vector.shape_cast %372 : vector<8xf32> to vector<8x1xf32>
    %cst_200 = arith.constant 6.400000e+01 : f32
    %374 = vector.broadcast %cst_200 : f32 to vector<8x1xf32>
    %375 = arith.divf %373, %374 : vector<8x1xf32>
    %376 = vector.broadcast %368 : vector<8x1xf32> to vector<8x64xf32>
    %377 = arith.subf %360, %376 : vector<8x64xf32>
    %cst_201 = arith.constant 9.99999974E-6 : f32
    %378 = vector.broadcast %cst_201 : f32 to vector<8x1xf32>
    %379 = arith.addf %375, %378 : vector<8x1xf32>
    %380 = math.rsqrt %379 : vector<8x1xf32>
    %381 = vector.broadcast %380 : vector<8x1xf32> to vector<8x64xf32>
    %382 = arith.mulf %377, %381 : vector<8x64xf32>
    %383 = vector.shape_cast %362 : vector<64xf32> to vector<1x64xf32>
    %384 = vector.broadcast %383 : vector<1x64xf32> to vector<8x64xf32>
    %385 = arith.mulf %382, %384 : vector<8x64xf32>
    %386 = vector.shape_cast %364 : vector<64xf32> to vector<1x64xf32>
    %387 = vector.broadcast %386 : vector<1x64xf32> to vector<8x64xf32>
    %388 = arith.addf %385, %387 : vector<8x64xf32>
    %c0_202 = arith.constant 0 : index
    %c0_203 = arith.constant 0 : index
    %389 = vector.load %arg9[%c0_202, %c0_203] : memref<64x32xf32, #tpu.memory_space<vmem>>, vector<64x32xf32>
    %cst_204 = arith.constant dense<0.000000e+00> : vector<8x32xf32>
    %390 = tpu.matmul %388, %389, %cst_204 {dimension_numbers = #tpu.dot_dimension_numbers<[1], [0], [0], [1], [0, 0, 1, 1], [], []>} : vector<8x64xf32>, vector<64x32xf32>, vector<8x32xf32> -> vector<8x32xf32>
    %cst_205 = arith.constant 0.000000e+00 : f32
    %391 = vector.broadcast %cst_205 : f32 to vector<8x64xf32>
    %c0_206 = arith.constant 0 : index
    %c0_207 = arith.constant 0 : index
    %c0_208 = arith.constant 0 : index
    %392 = vector.load %arg8[%c0_206, %c0_207, %c0_208] : memref<4x64x64xf32, #tpu.memory_space<vmem>>, vector<1x64x64xf32>
    %393 = vector.shape_cast %392 : vector<1x64x64xf32> to vector<64x64xf32>
    %cst_209 = arith.constant dense<0.000000e+00> : vector<8x64xf32>
    %394 = tpu.matmul %388, %393, %cst_209 {dimension_numbers = #tpu.dot_dimension_numbers<[1], [0], [0], [1], [0, 0, 1, 1], [], []>} : vector<8x64xf32>, vector<64x64xf32>, vector<8x64xf32> -> vector<8x64xf32>
    %cst_210 = arith.constant dense<0.000000e+00> : vector<8x8xf32>
    %395 = tpu.matmul %394, %388, %cst_210 {dimension_numbers = #tpu.dot_dimension_numbers<[1], [1], [0], [0], [0, 0, 1, 0], [], []>} : vector<8x64xf32>, vector<8x64xf32>, vector<8x8xf32> -> vector<8x8xf32>
    %cst_211 = arith.constant dense<0xFF800000> : vector<8xf32>
    %396 = vector.multi_reduction <maximumf>, %395, %cst_211 [1] : vector<8x8xf32> to vector<8xf32>
    %397 = vector.shape_cast %396 : vector<8xf32> to vector<8x1xf32>
    %398 = vector.broadcast %397 : vector<8x1xf32> to vector<8x8xf32>
    %399 = arith.subf %395, %398 : vector<8x8xf32>
    %400 = math.exp %399 : vector<8x8xf32>
    %cst_212 = arith.constant dense<0.000000e+00> : vector<8xf32>
    %401 = vector.multi_reduction <add>, %400, %cst_212 [1] : vector<8x8xf32> to vector<8xf32>
    %402 = vector.shape_cast %401 : vector<8xf32> to vector<8x1xf32>
    %cst_213 = arith.constant dense<0.000000e+00> : vector<8x32xf32>
    %403 = tpu.matmul %400, %390, %cst_213 {dimension_numbers = #tpu.dot_dimension_numbers<[1], [0], [0], [1], [0, 0, 1, 1], [], []>} : vector<8x8xf32>, vector<8x32xf32>, vector<8x32xf32> -> vector<8x32xf32>
    %404 = tpu.reciprocal %402 {approx = true} : vector<8x1xf32> -> vector<8x1xf32>
    %405 = vector.broadcast %404 : vector<8x1xf32> to vector<8x32xf32>
    %406 = arith.mulf %403, %405 : vector<8x32xf32>
    %c0_214 = arith.constant 0 : index
    %c0_215 = arith.constant 0 : index
    %c0_216 = arith.constant 0 : index
    %407 = vector.load %arg10[%c0_214, %c0_215, %c0_216] : memref<4x32x64xf32, #tpu.memory_space<vmem>>, vector<1x32x64xf32>
    %408 = vector.shape_cast %407 : vector<1x32x64xf32> to vector<32x64xf32>
    %cst_217 = arith.constant dense<0.000000e+00> : vector<8x64xf32>
    %409 = tpu.matmul %406, %408, %cst_217 {dimension_numbers = #tpu.dot_dimension_numbers<[1], [0], [0], [1], [0, 0, 1, 1], [], []>} : vector<8x32xf32>, vector<32x64xf32>, vector<8x64xf32> -> vector<8x64xf32>
    %410 = arith.addf %391, %409 : vector<8x64xf32>
    %c1_218 = arith.constant 1 : index
    %c0_219 = arith.constant 0 : index
    %c0_220 = arith.constant 0 : index
    %411 = vector.load %arg8[%c1_218, %c0_219, %c0_220] : memref<4x64x64xf32, #tpu.memory_space<vmem>>, vector<1x64x64xf32>
    %412 = vector.shape_cast %411 : vector<1x64x64xf32> to vector<64x64xf32>
    %cst_221 = arith.constant dense<0.000000e+00> : vector<8x64xf32>
    %413 = tpu.matmul %388, %412, %cst_221 {dimension_numbers = #tpu.dot_dimension_numbers<[1], [0], [0], [1], [0, 0, 1, 1], [], []>} : vector<8x64xf32>, vector<64x64xf32>, vector<8x64xf32> -> vector<8x64xf32>
    %cst_222 = arith.constant dense<0.000000e+00> : vector<8x8xf32>
    %414 = tpu.matmul %413, %388, %cst_222 {dimension_numbers = #tpu.dot_dimension_numbers<[1], [1], [0], [0], [0, 0, 1, 0], [], []>} : vector<8x64xf32>, vector<8x64xf32>, vector<8x8xf32> -> vector<8x8xf32>
    %cst_223 = arith.constant dense<0xFF800000> : vector<8xf32>
    %415 = vector.multi_reduction <maximumf>, %414, %cst_223 [1] : vector<8x8xf32> to vector<8xf32>
    %416 = vector.shape_cast %415 : vector<8xf32> to vector<8x1xf32>
    %417 = vector.broadcast %416 : vector<8x1xf32> to vector<8x8xf32>
    %418 = arith.subf %414, %417 : vector<8x8xf32>
    %419 = math.exp %418 : vector<8x8xf32>
    %cst_224 = arith.constant dense<0.000000e+00> : vector<8xf32>
    %420 = vector.multi_reduction <add>, %419, %cst_224 [1] : vector<8x8xf32> to vector<8xf32>
    %421 = vector.shape_cast %420 : vector<8xf32> to vector<8x1xf32>
    %cst_225 = arith.constant dense<0.000000e+00> : vector<8x32xf32>
    %422 = tpu.matmul %419, %390, %cst_225 {dimension_numbers = #tpu.dot_dimension_numbers<[1], [0], [0], [1], [0, 0, 1, 1], [], []>} : vector<8x8xf32>, vector<8x32xf32>, vector<8x32xf32> -> vector<8x32xf32>
    %423 = tpu.reciprocal %421 {approx = true} : vector<8x1xf32> -> vector<8x1xf32>
    %424 = vector.broadcast %423 : vector<8x1xf32> to vector<8x32xf32>
    %425 = arith.mulf %422, %424 : vector<8x32xf32>
    %c1_226 = arith.constant 1 : index
    %c0_227 = arith.constant 0 : index
    %c0_228 = arith.constant 0 : index
    %426 = vector.load %arg10[%c1_226, %c0_227, %c0_228] : memref<4x32x64xf32, #tpu.memory_space<vmem>>, vector<1x32x64xf32>
    %427 = vector.shape_cast %426 : vector<1x32x64xf32> to vector<32x64xf32>
    %cst_229 = arith.constant dense<0.000000e+00> : vector<8x64xf32>
    %428 = tpu.matmul %425, %427, %cst_229 {dimension_numbers = #tpu.dot_dimension_numbers<[1], [0], [0], [1], [0, 0, 1, 1], [], []>} : vector<8x32xf32>, vector<32x64xf32>, vector<8x64xf32> -> vector<8x64xf32>
    %429 = arith.addf %410, %428 : vector<8x64xf32>
    %c2_230 = arith.constant 2 : index
    %c0_231 = arith.constant 0 : index
    %c0_232 = arith.constant 0 : index
    %430 = vector.load %arg8[%c2_230, %c0_231, %c0_232] : memref<4x64x64xf32, #tpu.memory_space<vmem>>, vector<1x64x64xf32>
    %431 = vector.shape_cast %430 : vector<1x64x64xf32> to vector<64x64xf32>
    %cst_233 = arith.constant dense<0.000000e+00> : vector<8x64xf32>
    %432 = tpu.matmul %388, %431, %cst_233 {dimension_numbers = #tpu.dot_dimension_numbers<[1], [0], [0], [1], [0, 0, 1, 1], [], []>} : vector<8x64xf32>, vector<64x64xf32>, vector<8x64xf32> -> vector<8x64xf32>
    %cst_234 = arith.constant dense<0.000000e+00> : vector<8x8xf32>
    %433 = tpu.matmul %432, %388, %cst_234 {dimension_numbers = #tpu.dot_dimension_numbers<[1], [1], [0], [0], [0, 0, 1, 0], [], []>} : vector<8x64xf32>, vector<8x64xf32>, vector<8x8xf32> -> vector<8x8xf32>
    %cst_235 = arith.constant dense<0xFF800000> : vector<8xf32>
    %434 = vector.multi_reduction <maximumf>, %433, %cst_235 [1] : vector<8x8xf32> to vector<8xf32>
    %435 = vector.shape_cast %434 : vector<8xf32> to vector<8x1xf32>
    %436 = vector.broadcast %435 : vector<8x1xf32> to vector<8x8xf32>
    %437 = arith.subf %433, %436 : vector<8x8xf32>
    %438 = math.exp %437 : vector<8x8xf32>
    %cst_236 = arith.constant dense<0.000000e+00> : vector<8xf32>
    %439 = vector.multi_reduction <add>, %438, %cst_236 [1] : vector<8x8xf32> to vector<8xf32>
    %440 = vector.shape_cast %439 : vector<8xf32> to vector<8x1xf32>
    %cst_237 = arith.constant dense<0.000000e+00> : vector<8x32xf32>
    %441 = tpu.matmul %438, %390, %cst_237 {dimension_numbers = #tpu.dot_dimension_numbers<[1], [0], [0], [1], [0, 0, 1, 1], [], []>} : vector<8x8xf32>, vector<8x32xf32>, vector<8x32xf32> -> vector<8x32xf32>
    %442 = tpu.reciprocal %440 {approx = true} : vector<8x1xf32> -> vector<8x1xf32>
    %443 = vector.broadcast %442 : vector<8x1xf32> to vector<8x32xf32>
    %444 = arith.mulf %441, %443 : vector<8x32xf32>
    %c2_238 = arith.constant 2 : index
    %c0_239 = arith.constant 0 : index
    %c0_240 = arith.constant 0 : index
    %445 = vector.load %arg10[%c2_238, %c0_239, %c0_240] : memref<4x32x64xf32, #tpu.memory_space<vmem>>, vector<1x32x64xf32>
    %446 = vector.shape_cast %445 : vector<1x32x64xf32> to vector<32x64xf32>
    %cst_241 = arith.constant dense<0.000000e+00> : vector<8x64xf32>
    %447 = tpu.matmul %444, %446, %cst_241 {dimension_numbers = #tpu.dot_dimension_numbers<[1], [0], [0], [1], [0, 0, 1, 1], [], []>} : vector<8x32xf32>, vector<32x64xf32>, vector<8x64xf32> -> vector<8x64xf32>
    %448 = arith.addf %429, %447 : vector<8x64xf32>
    %c3_242 = arith.constant 3 : index
    %c0_243 = arith.constant 0 : index
    %c0_244 = arith.constant 0 : index
    %449 = vector.load %arg8[%c3_242, %c0_243, %c0_244] : memref<4x64x64xf32, #tpu.memory_space<vmem>>, vector<1x64x64xf32>
    %450 = vector.shape_cast %449 : vector<1x64x64xf32> to vector<64x64xf32>
    %cst_245 = arith.constant dense<0.000000e+00> : vector<8x64xf32>
    %451 = tpu.matmul %388, %450, %cst_245 {dimension_numbers = #tpu.dot_dimension_numbers<[1], [0], [0], [1], [0, 0, 1, 1], [], []>} : vector<8x64xf32>, vector<64x64xf32>, vector<8x64xf32> -> vector<8x64xf32>
    %cst_246 = arith.constant dense<0.000000e+00> : vector<8x8xf32>
    %452 = tpu.matmul %451, %388, %cst_246 {dimension_numbers = #tpu.dot_dimension_numbers<[1], [1], [0], [0], [0, 0, 1, 0], [], []>} : vector<8x64xf32>, vector<8x64xf32>, vector<8x8xf32> -> vector<8x8xf32>
    %cst_247 = arith.constant dense<0xFF800000> : vector<8xf32>
    %453 = vector.multi_reduction <maximumf>, %452, %cst_247 [1] : vector<8x8xf32> to vector<8xf32>
    %454 = vector.shape_cast %453 : vector<8xf32> to vector<8x1xf32>
    %455 = vector.broadcast %454 : vector<8x1xf32> to vector<8x8xf32>
    %456 = arith.subf %452, %455 : vector<8x8xf32>
    %457 = math.exp %456 : vector<8x8xf32>
    %cst_248 = arith.constant dense<0.000000e+00> : vector<8xf32>
    %458 = vector.multi_reduction <add>, %457, %cst_248 [1] : vector<8x8xf32> to vector<8xf32>
    %459 = vector.shape_cast %458 : vector<8xf32> to vector<8x1xf32>
    %cst_249 = arith.constant dense<0.000000e+00> : vector<8x32xf32>
    %460 = tpu.matmul %457, %390, %cst_249 {dimension_numbers = #tpu.dot_dimension_numbers<[1], [0], [0], [1], [0, 0, 1, 1], [], []>} : vector<8x8xf32>, vector<8x32xf32>, vector<8x32xf32> -> vector<8x32xf32>
    %461 = tpu.reciprocal %459 {approx = true} : vector<8x1xf32> -> vector<8x1xf32>
    %462 = vector.broadcast %461 : vector<8x1xf32> to vector<8x32xf32>
    %463 = arith.mulf %460, %462 : vector<8x32xf32>
    %c3_250 = arith.constant 3 : index
    %c0_251 = arith.constant 0 : index
    %c0_252 = arith.constant 0 : index
    %464 = vector.load %arg10[%c3_250, %c0_251, %c0_252] : memref<4x32x64xf32, #tpu.memory_space<vmem>>, vector<1x32x64xf32>
    %465 = vector.shape_cast %464 : vector<1x32x64xf32> to vector<32x64xf32>
    %cst_253 = arith.constant dense<0.000000e+00> : vector<8x64xf32>
    %466 = tpu.matmul %463, %465, %cst_253 {dimension_numbers = #tpu.dot_dimension_numbers<[1], [0], [0], [1], [0, 0, 1, 1], [], []>} : vector<8x32xf32>, vector<32x64xf32>, vector<8x64xf32> -> vector<8x64xf32>
    %467 = arith.addf %448, %466 : vector<8x64xf32>
    %c0_254 = arith.constant 0 : index
    %c0_255 = arith.constant 0 : index
    %468 = vector.load %arg11[%c0_254, %c0_255] : memref<1x64xf32, #tpu.memory_space<vmem>>, vector<1x64xf32>
    %469 = vector.shape_cast %468 : vector<1x64xf32> to vector<64xf32>
    %470 = vector.shape_cast %469 : vector<64xf32> to vector<1x64xf32>
    %471 = vector.broadcast %470 : vector<1x64xf32> to vector<8x64xf32>
    %472 = arith.addf %467, %471 : vector<8x64xf32>
    %473 = arith.addf %472, %360 : vector<8x64xf32>
    %c0_256 = arith.constant 0 : index
    %c0_257 = arith.constant 0 : index
    %474 = vector.load %arg12[%c0_256, %c0_257] : memref<1x64xf32, #tpu.memory_space<vmem>>, vector<1x64xf32>
    %475 = vector.shape_cast %474 : vector<1x64xf32> to vector<64xf32>
    %c0_258 = arith.constant 0 : index
    %c0_259 = arith.constant 0 : index
    %476 = vector.load %arg13[%c0_258, %c0_259] : memref<1x64xf32, #tpu.memory_space<vmem>>, vector<1x64xf32>
    %477 = vector.shape_cast %476 : vector<1x64xf32> to vector<64xf32>
    %cst_260 = arith.constant dense<0.000000e+00> : vector<8xf32>
    %478 = vector.multi_reduction <add>, %473, %cst_260 [1] : vector<8x64xf32> to vector<8xf32>
    %479 = vector.shape_cast %478 : vector<8xf32> to vector<8x1xf32>
    %cst_261 = arith.constant 6.400000e+01 : f32
    %480 = vector.broadcast %cst_261 : f32 to vector<8x1xf32>
    %481 = arith.divf %479, %480 : vector<8x1xf32>
    %482 = vector.broadcast %481 : vector<8x1xf32> to vector<8x64xf32>
    %483 = arith.subf %473, %482 : vector<8x64xf32>
    %484 = arith.mulf %483, %483 : vector<8x64xf32>
    %cst_262 = arith.constant dense<0.000000e+00> : vector<8xf32>
    %485 = vector.multi_reduction <add>, %484, %cst_262 [1] : vector<8x64xf32> to vector<8xf32>
    %486 = vector.shape_cast %485 : vector<8xf32> to vector<8x1xf32>
    %cst_263 = arith.constant 6.400000e+01 : f32
    %487 = vector.broadcast %cst_263 : f32 to vector<8x1xf32>
    %488 = arith.divf %486, %487 : vector<8x1xf32>
    %489 = vector.broadcast %481 : vector<8x1xf32> to vector<8x64xf32>
    %490 = arith.subf %473, %489 : vector<8x64xf32>
    %cst_264 = arith.constant 9.99999974E-6 : f32
    %491 = vector.broadcast %cst_264 : f32 to vector<8x1xf32>
    %492 = arith.addf %488, %491 : vector<8x1xf32>
    %493 = math.rsqrt %492 : vector<8x1xf32>
    %494 = vector.broadcast %493 : vector<8x1xf32> to vector<8x64xf32>
    %495 = arith.mulf %490, %494 : vector<8x64xf32>
    %496 = vector.shape_cast %475 : vector<64xf32> to vector<1x64xf32>
    %497 = vector.broadcast %496 : vector<1x64xf32> to vector<8x64xf32>
    %498 = arith.mulf %495, %497 : vector<8x64xf32>
    %499 = vector.shape_cast %477 : vector<64xf32> to vector<1x64xf32>
    %500 = vector.broadcast %499 : vector<1x64xf32> to vector<8x64xf32>
    %501 = arith.addf %498, %500 : vector<8x64xf32>
    %c0_265 = arith.constant 0 : index
    %c0_266 = arith.constant 0 : index
    %502 = vector.load %arg14[%c0_265, %c0_266] : memref<64x32xf32, #tpu.memory_space<vmem>>, vector<64x32xf32>
    %cst_267 = arith.constant dense<0.000000e+00> : vector<8x32xf32>
    %503 = tpu.matmul %501, %502, %cst_267 {dimension_numbers = #tpu.dot_dimension_numbers<[1], [0], [0], [1], [0, 0, 1, 1], [], []>} : vector<8x64xf32>, vector<64x32xf32>, vector<8x32xf32> -> vector<8x32xf32>
    %c0_268 = arith.constant 0 : index
    %c0_269 = arith.constant 0 : index
    %504 = vector.load %arg15[%c0_268, %c0_269] : memref<1x32xf32, #tpu.memory_space<vmem>>, vector<1x32xf32>
    %505 = vector.shape_cast %504 : vector<1x32xf32> to vector<32xf32>
    %506 = vector.shape_cast %505 : vector<32xf32> to vector<1x32xf32>
    %507 = vector.broadcast %506 : vector<1x32xf32> to vector<8x32xf32>
    %508 = arith.addf %503, %507 : vector<8x32xf32>
    %509 = arith.mulf %508, %508 : vector<8x32xf32>
    %510 = arith.mulf %508, %509 : vector<8x32xf32>
    %cst_270 = arith.constant 4.471500e-02 : f32
    %511 = vector.broadcast %cst_270 : f32 to vector<8x32xf32>
    %512 = arith.mulf %511, %510 : vector<8x32xf32>
    %513 = arith.addf %508, %512 : vector<8x32xf32>
    %cst_271 = arith.constant 0.797884583 : f32
    %514 = vector.broadcast %cst_271 : f32 to vector<8x32xf32>
    %515 = arith.mulf %514, %513 : vector<8x32xf32>
    %516 = math.tanh %515 : vector<8x32xf32>
    %cst_272 = arith.constant 1.000000e+00 : f32
    %517 = vector.broadcast %cst_272 : f32 to vector<8x32xf32>
    %518 = arith.addf %517, %516 : vector<8x32xf32>
    %cst_273 = arith.constant 5.000000e-01 : f32
    %519 = vector.broadcast %cst_273 : f32 to vector<8x32xf32>
    %520 = arith.mulf %519, %518 : vector<8x32xf32>
    %521 = arith.mulf %508, %520 : vector<8x32xf32>
    %c0_274 = arith.constant 0 : index
    %c0_275 = arith.constant 0 : index
    %522 = vector.load %arg16[%c0_274, %c0_275] : memref<32x64xf32, #tpu.memory_space<vmem>>, vector<32x64xf32>
    %cst_276 = arith.constant dense<0.000000e+00> : vector<8x64xf32>
    %523 = tpu.matmul %521, %522, %cst_276 {dimension_numbers = #tpu.dot_dimension_numbers<[1], [0], [0], [1], [0, 0, 1, 1], [], []>} : vector<8x32xf32>, vector<32x64xf32>, vector<8x64xf32> -> vector<8x64xf32>
    %c0_277 = arith.constant 0 : index
    %c0_278 = arith.constant 0 : index
    %524 = vector.load %arg17[%c0_277, %c0_278] : memref<1x64xf32, #tpu.memory_space<vmem>>, vector<1x64xf32>
    %525 = vector.shape_cast %524 : vector<1x64xf32> to vector<64xf32>
    %526 = vector.shape_cast %525 : vector<64xf32> to vector<1x64xf32>
    %527 = vector.broadcast %526 : vector<1x64xf32> to vector<8x64xf32>
    %528 = arith.addf %523, %527 : vector<8x64xf32>
    %529 = arith.addf %528, %473 : vector<8x64xf32>
    %530 = arith.addf %355, %529 : vector<8x64xf32>
    %c0_279 = arith.constant 0 : index
    %c0_280 = arith.constant 0 : index
    %531 = vector.load %arg18[%c0_279, %c0_280] : memref<64x32xf32, #tpu.memory_space<vmem>>, vector<64x32xf32>
    %cst_281 = arith.constant dense<0.000000e+00> : vector<8x32xf32>
    %532 = tpu.matmul %530, %531, %cst_281 {dimension_numbers = #tpu.dot_dimension_numbers<[1], [0], [0], [1], [0, 0, 1, 1], [], []>} : vector<8x64xf32>, vector<64x32xf32>, vector<8x32xf32> -> vector<8x32xf32>
    %c0_282 = arith.constant 0 : index
    %c0_283 = arith.constant 0 : index
    %533 = vector.load %arg19[%c0_282, %c0_283] : memref<1x32xf32, #tpu.memory_space<vmem>>, vector<1x32xf32>
    %534 = vector.shape_cast %533 : vector<1x32xf32> to vector<32xf32>
    %cst_284 = arith.constant 3.000000e+00 : f32
    %535 = vector.broadcast %cst_284 : f32 to vector<32xf32>
    %536 = arith.mulf %535, %534 : vector<32xf32>
    %537 = vector.shape_cast %536 : vector<32xf32> to vector<1x32xf32>
    %538 = vector.broadcast %537 : vector<1x32xf32> to vector<8x32xf32>
    %539 = arith.addf %532, %538 : vector<8x32xf32>
    %c0_285 = arith.constant 0 : index
    %c0_286 = arith.constant 0 : index
    %540 = vector.load %arg20[%c0_285, %c0_286] : memref<1x32xf32, #tpu.memory_space<vmem>>, vector<1x32xf32>
    %541 = vector.shape_cast %540 : vector<1x32xf32> to vector<32xf32>
    %c0_287 = arith.constant 0 : index
    %c0_288 = arith.constant 0 : index
    %542 = vector.load %arg21[%c0_287, %c0_288] : memref<1x32xf32, #tpu.memory_space<vmem>>, vector<1x32xf32>
    %543 = vector.shape_cast %542 : vector<1x32xf32> to vector<32xf32>
    %cst_289 = arith.constant dense<0.000000e+00> : vector<8xf32>
    %544 = vector.multi_reduction <add>, %539, %cst_289 [1] : vector<8x32xf32> to vector<8xf32>
    %545 = vector.shape_cast %544 : vector<8xf32> to vector<8x1xf32>
    %cst_290 = arith.constant 3.200000e+01 : f32
    %546 = vector.broadcast %cst_290 : f32 to vector<8x1xf32>
    %547 = arith.divf %545, %546 : vector<8x1xf32>
    %548 = vector.broadcast %547 : vector<8x1xf32> to vector<8x32xf32>
    %549 = arith.subf %539, %548 : vector<8x32xf32>
    %550 = arith.mulf %549, %549 : vector<8x32xf32>
    %cst_291 = arith.constant dense<0.000000e+00> : vector<8xf32>
    %551 = vector.multi_reduction <add>, %550, %cst_291 [1] : vector<8x32xf32> to vector<8xf32>
    %552 = vector.shape_cast %551 : vector<8xf32> to vector<8x1xf32>
    %cst_292 = arith.constant 3.200000e+01 : f32
    %553 = vector.broadcast %cst_292 : f32 to vector<8x1xf32>
    %554 = arith.divf %552, %553 : vector<8x1xf32>
    %555 = vector.broadcast %547 : vector<8x1xf32> to vector<8x32xf32>
    %556 = arith.subf %539, %555 : vector<8x32xf32>
    %cst_293 = arith.constant 9.99999974E-6 : f32
    %557 = vector.broadcast %cst_293 : f32 to vector<8x1xf32>
    %558 = arith.addf %554, %557 : vector<8x1xf32>
    %559 = math.rsqrt %558 : vector<8x1xf32>
    %560 = vector.broadcast %559 : vector<8x1xf32> to vector<8x32xf32>
    %561 = arith.mulf %556, %560 : vector<8x32xf32>
    %562 = vector.shape_cast %541 : vector<32xf32> to vector<1x32xf32>
    %563 = vector.broadcast %562 : vector<1x32xf32> to vector<8x32xf32>
    %564 = arith.mulf %561, %563 : vector<8x32xf32>
    %565 = vector.shape_cast %543 : vector<32xf32> to vector<1x32xf32>
    %566 = vector.broadcast %565 : vector<1x32xf32> to vector<8x32xf32>
    %567 = arith.addf %564, %566 : vector<8x32xf32>
    %c0_294 = arith.constant 0 : index
    %c0_295 = arith.constant 0 : index
    %568 = vector.load %arg22[%c0_294, %c0_295] : memref<32x32xf32, #tpu.memory_space<vmem>>, vector<32x32xf32>
    %cst_296 = arith.constant dense<0.000000e+00> : vector<8x32xf32>
    %569 = tpu.matmul %567, %568, %cst_296 {dimension_numbers = #tpu.dot_dimension_numbers<[1], [0], [0], [1], [0, 0, 1, 1], [], []>} : vector<8x32xf32>, vector<32x32xf32>, vector<8x32xf32> -> vector<8x32xf32>
    %c0_297 = arith.constant 0 : index
    %c0_298 = arith.constant 0 : index
    %570 = vector.load %arg23[%c0_297, %c0_298] : memref<1x32xf32, #tpu.memory_space<vmem>>, vector<1x32xf32>
    %571 = vector.shape_cast %570 : vector<1x32xf32> to vector<32xf32>
    %572 = vector.shape_cast %571 : vector<32xf32> to vector<1x32xf32>
    %573 = vector.broadcast %572 : vector<1x32xf32> to vector<8x32xf32>
    %574 = arith.addf %569, %573 : vector<8x32xf32>
    %c0_299 = arith.constant 0 : index
    %c0_300 = arith.constant 0 : index
    %575 = vector.load %arg24[%c0_299, %c0_300] : memref<8x32xf32, #tpu.memory_space<vmem>>, vector<8x32xf32>
    tpu.vector_store %arg24[%c0_299, %c0_300], %574 {strides = array<i32>} : memref<8x32xf32, #tpu.memory_space<vmem>>, vector<8x32xf32>,
    return
  }
  func.func @transform_0(%arg0: i32) -> (i32, i32) {
    %c0_i32 = arith.constant 0 : i32
    %c0_i32_0 = arith.constant 0 : i32
    return %arg0, %c0_i32 : i32, i32
  }
  func.func @transform_1(%arg0: i32) -> (i32, i32, i32) {
    %c0_i32 = arith.constant 0 : i32
    %c0_i32_0 = arith.constant 0 : i32
    %c0_i32_1 = arith.constant 0 : i32
    return %c0_i32, %arg0, %c0_i32_0 : i32, i32, i32
  }
  func.func @transform_2(%arg0: i32) -> (i32, i32) {
    %c0_i32 = arith.constant 0 : i32
    %c0_i32_0 = arith.constant 0 : i32
    return %arg0, %c0_i32 : i32, i32
  }
  func.func @transform_3(%arg0: i32) -> (i32, i32) {
    %c0_i32 = arith.constant 0 : i32
    %c0_i32_0 = arith.constant 0 : i32
    %c0_i32_1 = arith.constant 0 : i32
    return %c0_i32, %c0_i32_0 : i32, i32
  }
  func.func @transform_4(%arg0: i32) -> (i32, i32) {
    %c0_i32 = arith.constant 0 : i32
    %c0_i32_0 = arith.constant 0 : i32
    %c0_i32_1 = arith.constant 0 : i32
    return %c0_i32, %c0_i32_0 : i32, i32
  }
  func.func @transform_5(%arg0: i32) -> (i32, i32) {
    %c0_i32 = arith.constant 0 : i32
    %c0_i32_0 = arith.constant 0 : i32
    %c0_i32_1 = arith.constant 0 : i32
    return %c0_i32, %c0_i32_0 : i32, i32
  }
  func.func @transform_6(%arg0: i32) -> (i32, i32) {
    %c0_i32 = arith.constant 0 : i32
    %c0_i32_0 = arith.constant 0 : i32
    %c0_i32_1 = arith.constant 0 : i32
    return %c0_i32, %c0_i32_0 : i32, i32
  }
  func.func @transform_7(%arg0: i32) -> (i32, i32, i32) {
    %c0_i32 = arith.constant 0 : i32
    %c0_i32_0 = arith.constant 0 : i32
    %c0_i32_1 = arith.constant 0 : i32
    %c0_i32_2 = arith.constant 0 : i32
    return %c0_i32, %c0_i32_0, %c0_i32_1 : i32, i32, i32
  }
  func.func @transform_8(%arg0: i32) -> (i32, i32) {
    %c0_i32 = arith.constant 0 : i32
    %c0_i32_0 = arith.constant 0 : i32
    %c0_i32_1 = arith.constant 0 : i32
    return %c0_i32, %c0_i32_0 : i32, i32
  }
  func.func @transform_9(%arg0: i32) -> (i32, i32, i32) {
    %c0_i32 = arith.constant 0 : i32
    %c0_i32_0 = arith.constant 0 : i32
    %c0_i32_1 = arith.constant 0 : i32
    %c0_i32_2 = arith.constant 0 : i32
    return %c0_i32, %c0_i32_0, %c0_i32_1 : i32, i32, i32
  }
  func.func @transform_10(%arg0: i32) -> (i32, i32) {
    %c0_i32 = arith.constant 0 : i32
    %c0_i32_0 = arith.constant 0 : i32
    %c0_i32_1 = arith.constant 0 : i32
    return %c0_i32, %c0_i32_0 : i32, i32
  }
  func.func @transform_11(%arg0: i32) -> (i32, i32) {
    %c0_i32 = arith.constant 0 : i32
    %c0_i32_0 = arith.constant 0 : i32
    %c0_i32_1 = arith.constant 0 : i32
    return %c0_i32, %c0_i32_0 : i32, i32
  }
  func.func @transform_12(%arg0: i32) -> (i32, i32) {
    %c0_i32 = arith.constant 0 : i32
    %c0_i32_0 = arith.constant 0 : i32
    %c0_i32_1 = arith.constant 0 : i32
    return %c0_i32, %c0_i32_0 : i32, i32
  }
  func.func @transform_13(%arg0: i32) -> (i32, i32) {
    %c0_i32 = arith.constant 0 : i32
    %c0_i32_0 = arith.constant 0 : i32
    %c0_i32_1 = arith.constant 0 : i32
    return %c0_i32, %c0_i32_0 : i32, i32
  }
  func.func @transform_14(%arg0: i32) -> (i32, i32) {
    %c0_i32 = arith.constant 0 : i32
    %c0_i32_0 = arith.constant 0 : i32
    %c0_i32_1 = arith.constant 0 : i32
    return %c0_i32, %c0_i32_0 : i32, i32
  }
  func.func @transform_15(%arg0: i32) -> (i32, i32) {
    %c0_i32 = arith.constant 0 : i32
    %c0_i32_0 = arith.constant 0 : i32
    %c0_i32_1 = arith.constant 0 : i32
    return %c0_i32, %c0_i32_0 : i32, i32
  }
  func.func @transform_16(%arg0: i32) -> (i32, i32) {
    %c0_i32 = arith.constant 0 : i32
    %c0_i32_0 = arith.constant 0 : i32
    %c0_i32_1 = arith.constant 0 : i32
    return %c0_i32, %c0_i32_0 : i32, i32
  }
  func.func @transform_17(%arg0: i32) -> (i32, i32) {
    %c0_i32 = arith.constant 0 : i32
    %c0_i32_0 = arith.constant 0 : i32
    %c0_i32_1 = arith.constant 0 : i32
    return %c0_i32, %c0_i32_0 : i32, i32
  }
  func.func @transform_18(%arg0: i32) -> (i32, i32) {
    %c0_i32 = arith.constant 0 : i32
    %c0_i32_0 = arith.constant 0 : i32
    %c0_i32_1 = arith.constant 0 : i32
    return %c0_i32, %c0_i32_0 : i32, i32
  }
  func.func @transform_19(%arg0: i32) -> (i32, i32) {
    %c0_i32 = arith.constant 0 : i32
    %c0_i32_0 = arith.constant 0 : i32
    %c0_i32_1 = arith.constant 0 : i32
    return %c0_i32, %c0_i32_0 : i32, i32
  }
  func.func @transform_20(%arg0: i32) -> (i32, i32) {
    %c0_i32 = arith.constant 0 : i32
    %c0_i32_0 = arith.constant 0 : i32
    %c0_i32_1 = arith.constant 0 : i32
    return %c0_i32, %c0_i32_0 : i32, i32
  }
  func.func @transform_21(%arg0: i32) -> (i32, i32) {
    %c0_i32 = arith.constant 0 : i32
    %c0_i32_0 = arith.constant 0 : i32
    %c0_i32_1 = arith.constant 0 : i32
    return %c0_i32, %c0_i32_0 : i32, i32
  }
  func.func @transform_22(%arg0: i32) -> (i32, i32) {
    %c0_i32 = arith.constant 0 : i32
    %c0_i32_0 = arith.constant 0 : i32
    %c0_i32_1 = arith.constant 0 : i32
    return %c0_i32, %c0_i32_0 : i32, i32
  }
  func.func @transform_23(%arg0: i32) -> (i32, i32) {
    %c0_i32 = arith.constant 0 : i32
    %c0_i32_0 = arith.constant 0 : i32
    return %arg0, %c0_i32 : i32, i32
  }
}

</mosaic_0001>

<llo_original>
// kernel: tpu_custom_call.1
$region0: #{tpu_custom_call.1}
  #allocation0 [shape = 'u32[]', space=smem, size = 0x4, offset = 0x4, fixed_abs, tag = 'smem constant byte address 0x4 - core index']
  #allocation1 [shape = 'u32[144,128]{1,0:T(1,128)}', space=vmem, size = 0x12000, scoped, tag = 'internal scratch']
  %s0 = inlined_call_operand.hbm [shape: f32[16,16], index: 0, kind: input, shape index: {}]
  %s1 = inlined_call_operand.hbm [shape: f32[3,16,16], index: 1, kind: input, shape index: {}]
  %s2 = inlined_call_operand.hbm [shape: f32[16,64], index: 2, kind: input, shape index: {}]
  %s3 = inlined_call_operand.hbm [shape: f32[16,64], index: 3, kind: input, shape index: {}]
  %s4 = inlined_call_operand.hbm [shape: f32[16,64], index: 4, kind: input, shape index: {}]
  %s5 = inlined_call_operand.hbm [shape: f32[1,64], index: 5, kind: input, shape index: {}]
  %s6 = inlined_call_operand.hbm [shape: f32[1,64], index: 6, kind: input, shape index: {}]
  %s7 = inlined_call_operand.vmem [shape: f32[4,64,64], index: 7, kind: input, shape index: {}]
  %s8 = inlined_call_operand.vmem [shape: f32[64,32], index: 8, kind: input, shape index: {}]
  %s9 = inlined_call_operand.hbm [shape: f32[4,32,64], index: 9, kind: input, shape index: {}]
  %s10 = inlined_call_operand.hbm [shape: f32[1,64], index: 10, kind: input, shape index: {}]
  %s11 = inlined_call_operand.hbm [shape: f32[1,64], index: 11, kind: input, shape index: {}]
  %s12 = inlined_call_operand.hbm [shape: f32[1,64], index: 12, kind: input, shape index: {}]
  %s13 = inlined_call_operand.vmem [shape: f32[64,32], index: 13, kind: input, shape index: {}]
  %s14 = inlined_call_operand.hbm [shape: f32[1,32], index: 14, kind: input, shape index: {}]
  %s15 = inlined_call_operand.hbm [shape: f32[32,64], index: 15, kind: input, shape index: {}]
  %s16 = inlined_call_operand.hbm [shape: f32[1,64], index: 16, kind: input, shape index: {}]
  %s17 = inlined_call_operand.vmem [shape: f32[64,32], index: 17, kind: input, shape index: {}]
  %s18 = inlined_call_operand.hbm [shape: f32[1,32], index: 18, kind: input, shape index: {}]
  %s19 = inlined_call_operand.hbm [shape: f32[1,32], index: 19, kind: input, shape index: {}]
  %s20 = inlined_call_operand.vmem [shape: f32[1,32], index: 20, kind: input, shape index: {}]
  %s21 = inlined_call_operand.vmem [shape: f32[32,32], index: 21, kind: input, shape index: {}]
  %s22 = inlined_call_operand.vmem [shape: f32[1,32], index: 22, kind: input, shape index: {}]
  %s23 = inlined_call_operand.hbm [shape: f32[16,32], index: 23, kind: output, shape index: {}]
  %s24 = sld [smem:[#allocation0]]
  $region189: #{tpu_custom_call.1} parent=0
    _
  %s26 = ssub.s32 1, %s24
  %s27 = scalar_select 0, %s26, %s24
  $region1: #{tpu_custom_call.1} parent=0
    #allocation2 [shape = 'u8[8192]{0}', space=vmem, size = 0x2000, scoped, tag = 'input window, operand 0']
    #allocation3 [shape = 's32[2]{0}', space=sflag, size = 0x8, scoped, tag = 'scoped memory for tpu_custom_call.1']
    #allocation4 [shape = 's32[2]{0}', space=sflag, size = 0x8, scoped, tag = 'scoped memory for tpu_custom_call.1']
    #allocation5 [shape = 'u8[24576]{0}', space=vmem, size = 0x6000, scoped, tag = 'input window, operand 1']
    #allocation6 [shape = 's32[2]{0}', space=sflag, size = 0x8, scoped, tag = 'scoped memory for tpu_custom_call.1']
    #allocation7 [shape = 'u8[8192]{0}', space=vmem, size = 0x2000, scoped, tag = 'input window, operand 2']
    #allocation8 [shape = 'u8[8192]{0}', space=vmem, size = 0x2000, scoped, tag = 'input window, operand 3, single buffered']
    #allocation9 [shape = 's32[1]{0}', space=sflag, size = 0x4, scoped, tag = 'scoped memory for tpu_custom_call.1']
    #allocation10 [shape = 'u8[8192]{0}', space=vmem, size = 0x2000, scoped, tag = 'input window, operand 4, single buffered']
    #allocation11 [shape = 'u8[512]{0}', space=vmem, size = 0x400, scoped, tag = 'input window, operand 5, single buffered']
    #allocation12 [shape = 's32[1]{0}', space=sflag, size = 0x4, scoped, tag = 'scoped memory for tpu_custom_call.1']
    #allocation13 [shape = 'u8[512]{0}', space=vmem, size = 0x400, scoped, tag = 'input window, operand 6, single buffered']
    #allocation14 [shape = 'u8[65536]{0}', space=vmem, size = 0x10000, scoped, tag = 'input window, operand 9, single buffered']
    #allocation15 [shape = 's32[1]{0}', space=sflag, size = 0x4, scoped, tag = 'scoped memory for tpu_custom_call.1']
    #allocation16 [shape = 'u8[512]{0}', space=vmem, size = 0x400, scoped, tag = 'input window, operand 10, single buffered']
    #allocation17 [shape = 'u8[512]{0}', space=vmem, size = 0x400, scoped, tag = 'input window, operand 11, single buffered']
    #allocation18 [shape = 's32[1]{0}', space=sflag, size = 0x4, scoped, tag = 'scoped memory for tpu_custom_call.1']
    #allocation19 [shape = 'u8[512]{0}', space=vmem, size = 0x400, scoped, tag = 'input window, operand 12, single buffered']
    #allocation20 [shape = 'u8[512]{0}', space=vmem, size = 0x400, scoped, tag = 'input window, operand 14, single buffered']
    #allocation21 [shape = 's32[1]{0}', space=sflag, size = 0x4, scoped, tag = 'scoped memory for tpu_custom_call.1']
    #allocation22 [shape = 'u8[16384]{0}', space=vmem, size = 0x4000, scoped, tag = 'input window, operand 15, single buffered']
    #allocation23 [shape = 'u8[512]{0}', space=vmem, size = 0x400, scoped, tag = 'input window, operand 16, single buffered']
    #allocation24 [shape = 's32[1]{0}', space=sflag, size = 0x4, scoped, tag = 'scoped memory for tpu_custom_call.1']
    #allocation25 [shape = 'u8[512]{0}', space=vmem, size = 0x400, scoped, tag = 'input window, operand 18, single buffered']
    #allocation26 [shape = 'u8[512]{0}', space=vmem, size = 0x400, scoped, tag = 'input window, operand 19, single buffered']
    #allocation27 [shape = 's32[1]{0}', space=sflag, size = 0x4, scoped, tag = 'scoped memory for tpu_custom_call.1']
    #allocation28 [shape = 'u8[8192]{0}', space=vmem, size = 0x2000, scoped, tag = 'output window, operand 0']
    %28 = vsyncpa [#allocation3], 0
    %s29 = scalar_lea.sflag [#allocation3], 1
    %30 = vsyncpa %s29, 0
    %31 = vsyncpa [#allocation6], 0
    %s32 = scalar_lea.sflag [#allocation6], 1
    %33 = vsyncpa %s32, 0
    %34 = vsyncpa [#allocation9], 0
    %35 = vsyncpa [#allocation12], 0
    %36 = vsyncpa [#allocation15], 0
    %37 = vsyncpa [#allocation18], 0
    %38 = vsyncpa [#allocation21], 0
    %39 = vsyncpa [#allocation24], 0
    %40 = vsyncpa [#allocation27], 0
    %41 = vsyncpa [#allocation4], 0
    %s42 = scalar_lea.sflag [#allocation4], 1
    %43 = vsyncpa %s42, 0
    loop: start=0, step=1, limit=4
    $region2: #{tpu_custom_call.1} parent=1 // loop_pre_header
      _
    $region3: #{tpu_custom_call.1} parent=1 // loop_header
      %s45 = sphi 0, %s49
      %p46 = scmp.ge.s32.totalorder %s45, 4
      %s55 = sphi 0, %s57
      %s58 = sphi 0, %s55
      %s59 = sphi 0, %s58
      %s75 = sphi 0, %s59
      %s81 = sphi 0, %s83
      %s84 = sphi 0, %s81
      %s85 = sphi 0, %s84
      %s101 = sphi 0, %s85
      %s107 = sphi 0, %s109
      %s110 = sphi 0, %s107
      %s111 = sphi 0, %s110
      %s127 = sphi 0, %s111
      %s131 = sphi 0, %s131
      %s133 = sphi 0, %s131
      %s134 = sphi 0, %s133
      %s148 = sphi 0, %s134
      %s152 = sphi 0, %s152
      %s154 = sphi 0, %s152
      %s155 = sphi 0, %s154
      %s169 = sphi 0, %s155
      %s173 = sphi 0, %s173
      %s175 = sphi 0, %s173
      %s176 = sphi 0, %s175
      %s190 = sphi 0, %s176
      %s194 = sphi 0, %s194
      %s196 = sphi 0, %s194
      %s197 = sphi 0, %s196
      %s211 = sphi 0, %s197
      %s215 = sphi 0, %s215
      %s217 = sphi 0, %s215
      %s218 = sphi 0, %s217
      %s232 = sphi 0, %s218
      %s236 = sphi 0, %s236
      %s238 = sphi 0, %s236
      %s239 = sphi 0, %s238
      %s253 = sphi 0, %s239
      %s257 = sphi 0, %s257
      %s259 = sphi 0, %s257
      %s260 = sphi 0, %s259
      %s274 = sphi 0, %s260
      %s278 = sphi 0, %s278
      %s280 = sphi 0, %s278
      %s281 = sphi 0, %s280
      %s295 = sphi 0, %s281
      %s299 = sphi 0, %s299
      %s301 = sphi 0, %s299
      %s302 = sphi 0, %s301
      %s316 = sphi 0, %s302
      %s320 = sphi 0, %s320
      %s322 = sphi 0, %s320
      %s323 = sphi 0, %s322
      %s337 = sphi 0, %s323
      %s341 = sphi 0, %s341
      %s343 = sphi 0, %s341
      %s344 = sphi 0, %s343
      %s358 = sphi 0, %s344
      %s362 = sphi 0, %s362
      %s364 = sphi 0, %s362
      %s365 = sphi 0, %s364
      %s379 = sphi 0, %s365
      %s383 = sphi 0, %s383
      %s385 = sphi 0, %s383
      %s386 = sphi 0, %s385
      %s400 = sphi 0, %s386
      %s404 = sphi 0, %s404
      %s406 = sphi 0, %s404
      %s407 = sphi 0, %s406
      %s421 = sphi 0, %s407
      %s425 = sphi 0, %s425
      %s427 = sphi 0, %s425
      %s428 = sphi 0, %s427
      %s442 = sphi 0, %s428
      %s446 = sphi 0, %s446
      %s448 = sphi 0, %s446
      %s449 = sphi 0, %s448
      %s463 = sphi 0, %s449
      %s467 = sphi 0, %s467
      %s469 = sphi 0, %s467
      %s470 = sphi 0, %s469
      %s484 = sphi 0, %s470
      %s488 = sphi 0, %s488
      %s490 = sphi 0, %s488
      %s491 = sphi 0, %s490
      %s505 = sphi 0, %s491
      %s509 = sphi 0, %s509
      %s511 = sphi 0, %s509
      %s512 = sphi 0, %s511
      %s526 = sphi 0, %s512
      %s530 = sphi 0, %s530
      %s532 = sphi 0, %s530
      %s533 = sphi 0, %s532
      %s547 = sphi 0, %s533
      %s553 = sphi 0, %s555
      %s556 = sphi 0, %s553
      %s557 = sphi 0, %s556
      %s573 = sphi 0, %s557
    $region4: #{tpu_custom_call.1} parent=1 // loop_header_branch
      %48 = sbr.rel (%p46) target = $region8
    $region5: #{tpu_custom_call.1} parent=1 // loop_body
      %s50 = ssub.s32 %s45, 1
      %s51 = ssub.s32 %s45, 2
      %s52 = sadd.s32 %s45, 1
      %s53 = ssub.s32 %s45, %s52
      %p54 = scmp.eq.s32.totalorder %s53, 0
      %s56 = sadd.s32 %s55, 1
      %s57 = scalar_select %p54, %s55, %s56
      %p60 = pneg %p54
      %p61 = scmp.eq.s32.totalorder %s45, 1
      %p62 = por %p60, %p61
      %p63 = scmp.ne.s32.totalorder %s55, %s58
      %p64 = scmp.eq.s32.totalorder %s45, 0
      %p65 = por %p63, %p64
      %p66 = scmp.ne.s32.totalorder %s55, %s58
      %p67 = scmp.eq.s32.totalorder %s50, 1
      %p68 = por %p66, %p67
      %p69 = scmp.ne.s32.totalorder %s58, %s59
      %p70 = scmp.eq.s32.totalorder %s50, 0
      %p71 = por %p69, %p70
      %p72 = scmp.ne.s32.totalorder %s58, %s59
      %p73 = scmp.eq.s32.totalorder %s51, 1
      %p74 = por %p72, %p73
      %p76 = scmp.ne.s32.totalorder %s59, %s75
      %p77 = scmp.eq.s32.totalorder %s51, 0
      %p78 = por %p76, %p77
      %s79 = ssub.s32 %s45, %s52
      %p80 = scmp.eq.s32.totalorder %s79, 0
      %s82 = sadd.s32 %s81, 1
      %s83 = scalar_select %p80, %s81, %s82
      %p86 = pneg %p80
      %p87 = scmp.eq.s32.totalorder %s45, 1
      %p88 = por %p86, %p87
      %p89 = scmp.ne.s32.totalorder %s81, %s84
      %p90 = scmp.eq.s32.totalorder %s45, 0
      %p91 = por %p89, %p90
      %p92 = scmp.ne.s32.totalorder %s81, %s84
      %p93 = scmp.eq.s32.totalorder %s50, 1
      %p94 = por %p92, %p93
      %p95 = scmp.ne.s32.totalorder %s84, %s85
      %p96 = scmp.eq.s32.totalorder %s50, 0
      %p97 = por %p95, %p96
      %p98 = scmp.ne.s32.totalorder %s84, %s85
      %p99 = scmp.eq.s32.totalorder %s51, 1
      %p100 = por %p98, %p99
      %p102 = scmp.ne.s32.totalorder %s85, %s101
      %p103 = scmp.eq.s32.totalorder %s51, 0
      %p104 = por %p102, %p103
      %s105 = ssub.s32 %s45, %s52
      %p106 = scmp.eq.s32.totalorder %s105, 0
      %s108 = sadd.s32 %s107, 1
      %s109 = scalar_select %p106, %s107, %s108
      %p112 = pneg %p106
      %p113 = scmp.eq.s32.totalorder %s45, 1
      %p114 = por %p112, %p113
      %p115 = scmp.ne.s32.totalorder %s107, %s110
      %p116 = scmp.eq.s32.totalorder %s45, 0
      %p117 = por %p115, %p116
      %p118 = scmp.ne.s32.totalorder %s107, %s110
      %p119 = scmp.eq.s32.totalorder %s50, 1
      %p120 = por %p118, %p119
      %p121 = scmp.ne.s32.totalorder %s110, %s111
      %p122 = scmp.eq.s32.totalorder %s50, 0
      %p123 = por %p121, %p122
      %p124 = scmp.ne.s32.totalorder %s110, %s111
      %p125 = scmp.eq.s32.totalorder %s51, 1
      %p126 = por %p124, %p125
      %p128 = scmp.ne.s32.totalorder %s111, %s127
      %p129 = scmp.eq.s32.totalorder %s51, 0
      %p130 = por %p128, %p129
      %s132 = sadd.s32 %s131, 1
      %p135 = scmp.eq.s32.totalorder %s45, 1
      %p136 = scmp.ne.s32.totalorder %s131, %s133
      %p137 = scmp.eq.s32.totalorder %s45, 0
      %p138 = por %p136, %p137
      %p139 = scmp.ne.s32.totalorder %s131, %s133
      %p140 = scmp.eq.s32.totalorder %s50, 1
      %p141 = por %p139, %p140
      %p142 = scmp.ne.s32.totalorder %s133, %s134
      %p143 = scmp.eq.s32.totalorder %s50, 0
      %p144 = por %p142, %p143
      %p145 = scmp.ne.s32.totalorder %s133, %s134
      %p146 = scmp.eq.s32.totalorder %s51, 1
      %p147 = por %p145, %p146
      %p149 = scmp.ne.s32.totalorder %s134, %s148
      %p150 = scmp.eq.s32.totalorder %s51, 0
      %p151 = por %p149, %p150
      %s153 = sadd.s32 %s152, 1
      %p156 = scmp.eq.s32.totalorder %s45, 1
      %p157 = scmp.ne.s32.totalorder %s152, %s154
      %p158 = scmp.eq.s32.totalorder %s45, 0
      %p159 = por %p157, %p158
      %p160 = scmp.ne.s32.totalorder %s152, %s154
      %p161 = scmp.eq.s32.totalorder %s50, 1
      %p162 = por %p160, %p161
      %p163 = scmp.ne.s32.totalorder %s154, %s155
      %p164 = scmp.eq.s32.totalorder %s50, 0
      %p165 = por %p163, %p164
      %p166 = scmp.ne.s32.totalorder %s154, %s155
      %p167 = scmp.eq.s32.totalorder %s51, 1
      %p168 = por %p166, %p167
      %p170 = scmp.ne.s32.totalorder %s155, %s169
      %p171 = scmp.eq.s32.totalorder %s51, 0
      %p172 = por %p170, %p171
      %s174 = sadd.s32 %s173, 1
      %p177 = scmp.eq.s32.totalorder %s45, 1
      %p178 = scmp.ne.s32.totalorder %s173, %s175
      %p179 = scmp.eq.s32.totalorder %s45, 0
      %p180 = por %p178, %p179
      %p181 = scmp.ne.s32.totalorder %s173, %s175
      %p182 = scmp.eq.s32.totalorder %s50, 1
      %p183 = por %p181, %p182
      %p184 = scmp.ne.s32.totalorder %s175, %s176
      %p185 = scmp.eq.s32.totalorder %s50, 0
      %p186 = por %p184, %p185
      %p187 = scmp.ne.s32.totalorder %s175, %s176
      %p188 = scmp.eq.s32.totalorder %s51, 1
      %p189 = por %p187, %p188
      %p191 = scmp.ne.s32.totalorder %s176, %s190
      %p192 = scmp.eq.s32.totalorder %s51, 0
      %p193 = por %p191, %p192
      %s195 = sadd.s32 %s194, 1
      %p198 = scmp.eq.s32.totalorder %s45, 1
      %p199 = scmp.ne.s32.totalorder %s194, %s196
      %p200 = scmp.eq.s32.totalorder %s45, 0
      %p201 = por %p199, %p200
      %p202 = scmp.ne.s32.totalorder %s194, %s196
      %p203 = scmp.eq.s32.totalorder %s50, 1
      %p204 = por %p202, %p203
      %p205 = scmp.ne.s32.totalorder %s196, %s197
      %p206 = scmp.eq.s32.totalorder %s50, 0
      %p207 = por %p205, %p206
      %p208 = scmp.ne.s32.totalorder %s196, %s197
      %p209 = scmp.eq.s32.totalorder %s51, 1
      %p210 = por %p208, %p209
      %p212 = scmp.ne.s32.totalorder %s197, %s211
      %p213 = scmp.eq.s32.totalorder %s51, 0
      %p214 = por %p212, %p213
      %s216 = sadd.s32 %s215, 1
      %p219 = scmp.eq.s32.totalorder %s45, 1
      %p220 = scmp.ne.s32.totalorder %s215, %s217
      %p221 = scmp.eq.s32.totalorder %s45, 0
      %p222 = por %p220, %p221
      %p223 = scmp.ne.s32.totalorder %s215, %s217
      %p224 = scmp.eq.s32.totalorder %s50, 1
      %p225 = por %p223, %p224
      %p226 = scmp.ne.s32.totalorder %s217, %s218
      %p227 = scmp.eq.s32.totalorder %s50, 0
      %p228 = por %p226, %p227
      %p229 = scmp.ne.s32.totalorder %s217, %s218
      %p230 = scmp.eq.s32.totalorder %s51, 1
      %p231 = por %p229, %p230
      %p233 = scmp.ne.s32.totalorder %s218, %s232
      %p234 = scmp.eq.s32.totalorder %s51, 0
      %p235 = por %p233, %p234
      %s237 = sadd.s32 %s236, 1
      %p240 = scmp.eq.s32.totalorder %s45, 1
      %p241 = scmp.ne.s32.totalorder %s236, %s238
      %p242 = scmp.eq.s32.totalorder %s45, 0
      %p243 = por %p241, %p242
      %p244 = scmp.ne.s32.totalorder %s236, %s238
      %p245 = scmp.eq.s32.totalorder %s50, 1
      %p246 = por %p244, %p245
      %p247 = scmp.ne.s32.totalorder %s238, %s239
      %p248 = scmp.eq.s32.totalorder %s50, 0
      %p249 = por %p247, %p248
      %p250 = scmp.ne.s32.totalorder %s238, %s239
      %p251 = scmp.eq.s32.totalorder %s51, 1
      %p252 = por %p250, %p251
      %p254 = scmp.ne.s32.totalorder %s239, %s253
      %p255 = scmp.eq.s32.totalorder %s51, 0
      %p256 = por %p254, %p255
      %s258 = sadd.s32 %s257, 1
      %p261 = scmp.eq.s32.totalorder %s45, 1
      %p262 = scmp.ne.s32.totalorder %s257, %s259
      %p263 = scmp.eq.s32.totalorder %s45, 0
      %p264 = por %p262, %p263
      %p265 = scmp.ne.s32.totalorder %s257, %s259
      %p266 = scmp.eq.s32.totalorder %s50, 1
      %p267 = por %p265, %p266
      %p268 = scmp.ne.s32.totalorder %s259, %s260
      %p269 = scmp.eq.s32.totalorder %s50, 0
      %p270 = por %p268, %p269
      %p271 = scmp.ne.s32.totalorder %s259, %s260
      %p272 = scmp.eq.s32.totalorder %s51, 1
      %p273 = por %p271, %p272
      %p275 = scmp.ne.s32.totalorder %s260, %s274
      %p276 = scmp.eq.s32.totalorder %s51, 0
      %p277 = por %p275, %p276
      %s279 = sadd.s32 %s278, 1
      %p282 = scmp.eq.s32.totalorder %s45, 1
      %p283 = scmp.ne.s32.totalorder %s278, %s280
      %p284 = scmp.eq.s32.totalorder %s45, 0
      %p285 = por %p283, %p284
      %p286 = scmp.ne.s32.totalorder %s278, %s280
      %p287 = scmp.eq.s32.totalorder %s50, 1
      %p288 = por %p286, %p287
      %p289 = scmp.ne.s32.totalorder %s280, %s281
      %p290 = scmp.eq.s32.totalorder %s50, 0
      %p291 = por %p289, %p290
      %p292 = scmp.ne.s32.totalorder %s280, %s281
      %p293 = scmp.eq.s32.totalorder %s51, 1
      %p294 = por %p292, %p293
      %p296 = scmp.ne.s32.totalorder %s281, %s295
      %p297 = scmp.eq.s32.totalorder %s51, 0
      %p298 = por %p296, %p297
      %s300 = sadd.s32 %s299, 1
      %p303 = scmp.eq.s32.totalorder %s45, 1
      %p304 = scmp.ne.s32.totalorder %s299, %s301
      %p305 = scmp.eq.s32.totalorder %s45, 0
      %p306 = por %p304, %p305
      %p307 = scmp.ne.s32.totalorder %s299, %s301
      %p308 = scmp.eq.s32.totalorder %s50, 1
      %p309 = por %p307, %p308
      %p310 = scmp.ne.s32.totalorder %s301, %s302
      %p311 = scmp.eq.s32.totalorder %s50, 0
      %p312 = por %p310, %p311
      %p313 = scmp.ne.s32.totalorder %s301, %s302
      %p314 = scmp.eq.s32.totalorder %s51, 1
      %p315 = por %p313, %p314
      %p317 = scmp.ne.s32.totalorder %s302, %s316
      %p318 = scmp.eq.s32.totalorder %s51, 0
      %p319 = por %p317, %p318
      %s321 = sadd.s32 %s320, 1
      %p324 = scmp.eq.s32.totalorder %s45, 1
      %p325 = scmp.ne.s32.totalorder %s320, %s322
      %p326 = scmp.eq.s32.totalorder %s45, 0
      %p327 = por %p325, %p326
      %p328 = scmp.ne.s32.totalorder %s320, %s322
      %p329 = scmp.eq.s32.totalorder %s50, 1
      %p330 = por %p328, %p329
      %p331 = scmp.ne.s32.totalorder %s322, %s323
      %p332 = scmp.eq.s32.totalorder %s50, 0
      %p333 = por %p331, %p332
      %p334 = scmp.ne.s32.totalorder %s322, %s323
      %p335 = scmp.eq.s32.totalorder %s51, 1
      %p336 = por %p334, %p335
      %p338 = scmp.ne.s32.totalorder %s323, %s337
      %p339 = scmp.eq.s32.totalorder %s51, 0
      %p340 = por %p338, %p339
      %s342 = sadd.s32 %s341, 1
      %p345 = scmp.eq.s32.totalorder %s45, 1
      %p346 = scmp.ne.s32.totalorder %s341, %s343
      %p347 = scmp.eq.s32.totalorder %s45, 0
      %p348 = por %p346, %p347
      %p349 = scmp.ne.s32.totalorder %s341, %s343
      %p350 = scmp.eq.s32.totalorder %s50, 1
      %p351 = por %p349, %p350
      %p352 = scmp.ne.s32.totalorder %s343, %s344
      %p353 = scmp.eq.s32.totalorder %s50, 0
      %p354 = por %p352, %p353
      %p355 = scmp.ne.s32.totalorder %s343, %s344
      %p356 = scmp.eq.s32.totalorder %s51, 1
      %p357 = por %p355, %p356
      %p359 = scmp.ne.s32.totalorder %s344, %s358
      %p360 = scmp.eq.s32.totalorder %s51, 0
      %p361 = por %p359, %p360
      %s363 = sadd.s32 %s362, 1
      %p366 = scmp.eq.s32.totalorder %s45, 1
      %p367 = scmp.ne.s32.totalorder %s362, %s364
      %p368 = scmp.eq.s32.totalorder %s45, 0
      %p369 = por %p367, %p368
      %p370 = scmp.ne.s32.totalorder %s362, %s364
      %p371 = scmp.eq.s32.totalorder %s50, 1
      %p372 = por %p370, %p371
      %p373 = scmp.ne.s32.totalorder %s364, %s365
      %p374 = scmp.eq.s32.totalorder %s50, 0
      %p375 = por %p373, %p374
      %p376 = scmp.ne.s32.totalorder %s364, %s365
      %p377 = scmp.eq.s32.totalorder %s51, 1
      %p378 = por %p376, %p377
      %p380 = scmp.ne.s32.totalorder %s365, %s379
      %p381 = scmp.eq.s32.totalorder %s51, 0
      %p382 = por %p380, %p381
      %s384 = sadd.s32 %s383, 1
      %p387 = scmp.eq.s32.totalorder %s45, 1
      %p388 = scmp.ne.s32.totalorder %s383, %s385
      %p389 = scmp.eq.s32.totalorder %s45, 0
      %p390 = por %p388, %p389
      %p391 = scmp.ne.s32.totalorder %s383, %s385
      %p392 = scmp.eq.s32.totalorder %s50, 1
      %p393 = por %p391, %p392
      %p394 = scmp.ne.s32.totalorder %s385, %s386
      %p395 = scmp.eq.s32.totalorder %s50, 0
      %p396 = por %p394, %p395
      %p397 = scmp.ne.s32.totalorder %s385, %s386
      %p398 = scmp.eq.s32.totalorder %s51, 1
      %p399 = por %p397, %p398
      %p401 = scmp.ne.s32.totalorder %s386, %s400
      %p402 = scmp.eq.s32.totalorder %s51, 0
      %p403 = por %p401, %p402
      %s405 = sadd.s32 %s404, 1
      %p408 = scmp.eq.s32.totalorder %s45, 1
      %p409 = scmp.ne.s32.totalorder %s404, %s406
      %p410 = scmp.eq.s32.totalorder %s45, 0
      %p411 = por %p409, %p410
      %p412 = scmp.ne.s32.totalorder %s404, %s406
      %p413 = scmp.eq.s32.totalorder %s50, 1
      %p414 = por %p412, %p413
      %p415 = scmp.ne.s32.totalorder %s406, %s407
      %p416 = scmp.eq.s32.totalorder %s50, 0
      %p417 = por %p415, %p416
      %p418 = scmp.ne.s32.totalorder %s406, %s407
      %p419 = scmp.eq.s32.totalorder %s51, 1
      %p420 = por %p418, %p419
      %p422 = scmp.ne.s32.totalorder %s407, %s421
      %p423 = scmp.eq.s32.totalorder %s51, 0
      %p424 = por %p422, %p423
      %s426 = sadd.s32 %s425, 1
      %p429 = scmp.eq.s32.totalorder %s45, 1
      %p430 = scmp.ne.s32.totalorder %s425, %s427
      %p431 = scmp.eq.s32.totalorder %s45, 0
      %p432 = por %p430, %p431
      %p433 = scmp.ne.s32.totalorder %s425, %s427
      %p434 = scmp.eq.s32.totalorder %s50, 1
      %p435 = por %p433, %p434
      %p436 = scmp.ne.s32.totalorder %s427, %s428
      %p437 = scmp.eq.s32.totalorder %s50, 0
      %p438 = por %p436, %p437
      %p439 = scmp.ne.s32.totalorder %s427, %s428
      %p440 = scmp.eq.s32.totalorder %s51, 1
      %p441 = por %p439, %p440
      %p443 = scmp.ne.s32.totalorder %s428, %s442
      %p444 = scmp.eq.s32.totalorder %s51, 0
      %p445 = por %p443, %p444
      %s447 = sadd.s32 %s446, 1
      %p450 = scmp.eq.s32.totalorder %s45, 1
      %p451 = scmp.ne.s32.totalorder %s446, %s448
      %p452 = scmp.eq.s32.totalorder %s45, 0
      %p453 = por %p451, %p452
      %p454 = scmp.ne.s32.totalorder %s446, %s448
      %p455 = scmp.eq.s32.totalorder %s50, 1
      %p456 = por %p454, %p455
      %p457 = scmp.ne.s32.totalorder %s448, %s449
      %p458 = scmp.eq.s32.totalorder %s50, 0
      %p459 = por %p457, %p458
      %p460 = scmp.ne.s32.totalorder %s448, %s449
      %p461 = scmp.eq.s32.totalorder %s51, 1
      %p462 = por %p460, %p461
      %p464 = scmp.ne.s32.totalorder %s449, %s463
      %p465 = scmp.eq.s32.totalorder %s51, 0
      %p466 = por %p464, %p465
      %s468 = sadd.s32 %s467, 1
      %p471 = scmp.eq.s32.totalorder %s45, 1
      %p472 = scmp.ne.s32.totalorder %s467, %s469
      %p473 = scmp.eq.s32.totalorder %s45, 0
      %p474 = por %p472, %p473
      %p475 = scmp.ne.s32.totalorder %s467, %s469
      %p476 = scmp.eq.s32.totalorder %s50, 1
      %p477 = por %p475, %p476
      %p478 = scmp.ne.s32.totalorder %s469, %s470
      %p479 = scmp.eq.s32.totalorder %s50, 0
      %p480 = por %p478, %p479
      %p481 = scmp.ne.s32.totalorder %s469, %s470
      %p482 = scmp.eq.s32.totalorder %s51, 1
      %p483 = por %p481, %p482
      %p485 = scmp.ne.s32.totalorder %s470, %s484
      %p486 = scmp.eq.s32.totalorder %s51, 0
      %p487 = por %p485, %p486
      %s489 = sadd.s32 %s488, 1
      %p492 = scmp.eq.s32.totalorder %s45, 1
      %p493 = scmp.ne.s32.totalorder %s488, %s490
      %p494 = scmp.eq.s32.totalorder %s45, 0
      %p495 = por %p493, %p494
      %p496 = scmp.ne.s32.totalorder %s488, %s490
      %p497 = scmp.eq.s32.totalorder %s50, 1
      %p498 = por %p496, %p497
      %p499 = scmp.ne.s32.totalorder %s490, %s491
      %p500 = scmp.eq.s32.totalorder %s50, 0
      %p501 = por %p499, %p500
      %p502 = scmp.ne.s32.totalorder %s490, %s491
      %p503 = scmp.eq.s32.totalorder %s51, 1
      %p504 = por %p502, %p503
      %p506 = scmp.ne.s32.totalorder %s491, %s505
      %p507 = scmp.eq.s32.totalorder %s51, 0
      %p508 = por %p506, %p507
      %s510 = sadd.s32 %s509, 1
      %p513 = scmp.eq.s32.totalorder %s45, 1
      %p514 = scmp.ne.s32.totalorder %s509, %s511
      %p515 = scmp.eq.s32.totalorder %s45, 0
      %p516 = por %p514, %p515
      %p517 = scmp.ne.s32.totalorder %s509, %s511
      %p518 = scmp.eq.s32.totalorder %s50, 1
      %p519 = por %p517, %p518
      %p520 = scmp.ne.s32.totalorder %s511, %s512
      %p521 = scmp.eq.s32.totalorder %s50, 0
      %p522 = por %p520, %p521
      %p523 = scmp.ne.s32.totalorder %s511, %s512
      %p524 = scmp.eq.s32.totalorder %s51, 1
      %p525 = por %p523, %p524
      %p527 = scmp.ne.s32.totalorder %s512, %s526
      %p528 = scmp.eq.s32.totalorder %s51, 0
      %p529 = por %p527, %p528
      %s531 = sadd.s32 %s530, 1
      %p534 = scmp.eq.s32.totalorder %s45, 1
      %p535 = scmp.ne.s32.totalorder %s530, %s532
      %p536 = scmp.eq.s32.totalorder %s45, 0
      %p537 = por %p535, %p536
      %p538 = scmp.ne.s32.totalorder %s530, %s532
      %p539 = scmp.eq.s32.totalorder %s50, 1
      %p540 = por %p538, %p539
      %p541 = scmp.ne.s32.totalorder %s532, %s533
      %p542 = scmp.eq.s32.totalorder %s50, 0
      %p543 = por %p541, %p542
      %p544 = scmp.ne.s32.totalorder %s532, %s533
      %p545 = scmp.eq.s32.totalorder %s51, 1
      %p546 = por %p544, %p545
      %p548 = scmp.ne.s32.totalorder %s533, %s547
      %p549 = scmp.eq.s32.totalorder %s51, 0
      %p550 = por %p548, %p549
      %s551 = ssub.s32 %s45, %s52
      %p552 = scmp.eq.s32.totalorder %s551, 0
      %s554 = sadd.s32 %s553, 1
      %s555 = scalar_select %p552, %s553, %s554
      %p558 = pneg %p552
      %p559 = scmp.eq.s32.totalorder %s45, 1
      %p560 = por %p558, %p559
      %p561 = scmp.ne.s32.totalorder %s553, %s556
      %p562 = scmp.eq.s32.totalorder %s45, 0
      %p563 = por %p561, %p562
      %p564 = scmp.ne.s32.totalorder %s553, %s556
      %p565 = scmp.eq.s32.totalorder %s50, 1
      %p566 = por %p564, %p565
      %p567 = scmp.ne.s32.totalorder %s556, %s557
      %p568 = scmp.eq.s32.totalorder %s50, 0
      %p569 = por %p567, %p568
      %p570 = scmp.ne.s32.totalorder %s556, %s557
      %p571 = scmp.eq.s32.totalorder %s51, 1
      %p572 = por %p570, %p571
      %p574 = scmp.ne.s32.totalorder %s557, %s573
      %p575 = scmp.eq.s32.totalorder %s51, 0
      %p576 = por %p574, %p575
      %p577 = scmp.le.s32.totalorder 1, %s45
      %p578 = scmp.lt.s32.totalorder %s45, 3
      %p579 = pnand %p577, %p578
      %p580 = pneg %p579
      // Predicated region
      $region9: #{tpu_custom_call.1} parent=5 // pred_check
        _
      $region10: #{tpu_custom_call.1} parent=5 // pred_check_branch
        %582 = sbr.rel (%p579) target = $region12
      $region11: #{tpu_custom_call.1} parent=5 // pred_region
        %s583 = ssub.s32 %s45, 1
        // Predicated region
        $region13: #{tpu_custom_call.1} parent=11 // pred_check
          %p584 = pneg %p144
        $region14: #{tpu_custom_call.1} parent=11 // pred_check_branch
          %586 = sbr.rel (%p584) target = $region16
        $region15: #{tpu_custom_call.1} parent=11 // pred_region
          %s588 = ssub.s32 256, 256
          %589 = vsyncadd [#allocation9], %s588
          %s590 = sshll.u32 [#allocation8], 4
          %s591 = int_to_ptr.vmem [resolvable:$true] %s590
          %596 = dma.hbm_to_vmem [thread:$0]  %s3, 256, %s591, [#allocation9], 128, 128, 8
        $region16: #{tpu_custom_call.1} parent=11 // pred_fallthru
          _
        // Predicated region
        $region17: #{tpu_custom_call.1} parent=11 // pred_check
          %p597 = pneg %p165
        $region18: #{tpu_custom_call.1} parent=11 // pred_check_branch
          %599 = sbr.rel (%p597) target = $region20
        $region19: #{tpu_custom_call.1} parent=11 // pred_region
          %s601 = ssub.s32 256, 256
          %602 = vsyncadd [#allocation9], %s601
          %s603 = sshll.u32 [#allocation10], 4
          %s604 = int_to_ptr.vmem [resolvable:$true] %s603
          %609 = dma.hbm_to_vmem [thread:$0]  %s4, 256, %s604, [#allocation9], 128, 128, 8
        $region20: #{tpu_custom_call.1} parent=11 // pred_fallthru
          _
        // Predicated region
        $region21: #{tpu_custom_call.1} parent=11 // pred_check
          %p610 = pneg %p186
        $region22: #{tpu_custom_call.1} parent=11 // pred_check_branch
          %612 = sbr.rel (%p610) target = $region24
        $region23: #{tpu_custom_call.1} parent=11 // pred_region
          %s614 = ssub.s32 16, 16
          %615 = vsyncadd [#allocation12], %s614
          %s617 = sshll.u32 [#allocation11], 4
          %s618 = int_to_ptr.vmem [resolvable:$true] %s617
          %620 = dma.hbm_to_vmem [thread:$0]  %s5, 16, %s618, [#allocation12]
        $region24: #{tpu_custom_call.1} parent=11 // pred_fallthru
          _
        // Predicated region
        $region25: #{tpu_custom_call.1} parent=11 // pred_check
          %p621 = pneg %p207
        $region26: #{tpu_custom_call.1} parent=11 // pred_check_branch
          %623 = sbr.rel (%p621) target = $region28
        $region27: #{tpu_custom_call.1} parent=11 // pred_region
          %s625 = ssub.s32 16, 16
          %626 = vsyncadd [#allocation12], %s625
          %s628 = sshll.u32 [#allocation13], 4
          %s629 = int_to_ptr.vmem [resolvable:$true] %s628
          %631 = dma.hbm_to_vmem [thread:$0]  %s6, 16, %s629, [#allocation12]
        $region28: #{tpu_custom_call.1} parent=11 // pred_fallthru
          _
        // Predicated region
        $region29: #{tpu_custom_call.1} parent=11 // pred_check
          %p632 = pneg %p228
        $region30: #{tpu_custom_call.1} parent=11 // pred_check_branch
          %634 = sbr.rel (%p632) target = $region32
        $region31: #{tpu_custom_call.1} parent=11 // pred_region
          _
        $region32: #{tpu_custom_call.1} parent=11 // pred_fallthru
          _
        // Predicated region
        $region33: #{tpu_custom_call.1} parent=11 // pred_check
          %p635 = pneg %p249
        $region34: #{tpu_custom_call.1} parent=11 // pred_check_branch
          %637 = sbr.rel (%p635) target = $region36
        $region35: #{tpu_custom_call.1} parent=11 // pred_region
          _
        $region36: #{tpu_custom_call.1} parent=11 // pred_fallthru
          _
        // Predicated region
        $region37: #{tpu_custom_call.1} parent=11 // pred_check
          %p638 = pneg %p270
        $region38: #{tpu_custom_call.1} parent=11 // pred_check_branch
          %640 = sbr.rel (%p638) target = $region40
        $region39: #{tpu_custom_call.1} parent=11 // pred_region
          %s642 = ssub.s32 2048, 2048
          %643 = vsyncadd [#allocation15], %s642
          %s644 = sshll.u32 [#allocation14], 4
          %s645 = int_to_ptr.vmem [resolvable:$true] %s644
          %650 = dma.hbm_to_vmem [thread:$0]  %s9, 2048, %s645, [#allocation15], 128, 128, 8
        $region40: #{tpu_custom_call.1} parent=11 // pred_fallthru
          _
        // Predicated region
        $region41: #{tpu_custom_call.1} parent=11 // pred_check
          %p651 = pneg %p291
        $region42: #{tpu_custom_call.1} parent=11 // pred_check_branch
          %653 = sbr.rel (%p651) target = $region44
        $region43: #{tpu_custom_call.1} parent=11 // pred_region
          %s655 = ssub.s32 16, 16
          %656 = vsyncadd [#allocation15], %s655
          %s658 = sshll.u32 [#allocation16], 4
          %s659 = int_to_ptr.vmem [resolvable:$true] %s658
          %661 = dma.hbm_to_vmem [thread:$0]  %s10, 16, %s659, [#allocation15]
        $region44: #{tpu_custom_call.1} parent=11 // pred_fallthru
          _
        // Predicated region
        $region45: #{tpu_custom_call.1} parent=11 // pred_check
          %p662 = pneg %p312
        $region46: #{tpu_custom_call.1} parent=11 // pred_check_branch
          %664 = sbr.rel (%p662) target = $region48
        $region47: #{tpu_custom_call.1} parent=11 // pred_region
          %s666 = ssub.s32 16, 16
          %667 = vsyncadd [#allocation18], %s666
          %s669 = sshll.u32 [#allocation17], 4
          %s670 = int_to_ptr.vmem [resolvable:$true] %s669
          %672 = dma.hbm_to_vmem [thread:$0]  %s11, 16, %s670, [#allocation18]
        $region48: #{tpu_custom_call.1} parent=11 // pred_fallthru
          _
        // Predicated region
        $region49: #{tpu_custom_call.1} parent=11 // pred_check
          %p673 = pneg %p333
        $region50: #{tpu_custom_call.1} parent=11 // pred_check_branch
          %675 = sbr.rel (%p673) target = $region52
        $region51: #{tpu_custom_call.1} parent=11 // pred_region
          %s677 = ssub.s32 16, 16
          %678 = vsyncadd [#allocation18], %s677
          %s680 = sshll.u32 [#allocation19], 4
          %s681 = int_to_ptr.vmem [resolvable:$true] %s680
          %683 = dma.hbm_to_vmem [thread:$0]  %s12, 16, %s681, [#allocation18]
        $region52: #{tpu_custom_call.1} parent=11 // pred_fallthru
          _
        // Predicated region
        $region53: #{tpu_custom_call.1} parent=11 // pred_check
          %p684 = pneg %p354
        $region54: #{tpu_custom_call.1} parent=11 // pred_check_branch
          %686 = sbr.rel (%p684) target = $region56
        $region55: #{tpu_custom_call.1} parent=11 // pred_region
          _
        $region56: #{tpu_custom_call.1} parent=11 // pred_fallthru
          _
        // Predicated region
        $region57: #{tpu_custom_call.1} parent=11 // pred_check
          %p687 = pneg %p375
        $region58: #{tpu_custom_call.1} parent=11 // pred_check_branch
          %689 = sbr.rel (%p687) target = $region60
        $region59: #{tpu_custom_call.1} parent=11 // pred_region
          %s691 = ssub.s32 16, 16
          %692 = vsyncadd [#allocation21], %s691
          %s694 = sshll.u32 [#allocation20], 4
          %s695 = int_to_ptr.vmem [resolvable:$true] %s694
          %697 = dma.hbm_to_vmem [thread:$0]  %s14, 16, %s695, [#allocation21]
        $region60: #{tpu_custom_call.1} parent=11 // pred_fallthru
          _
        // Predicated region
        $region61: #{tpu_custom_call.1} parent=11 // pred_check
          %p698 = pneg %p396
        $region62: #{tpu_custom_call.1} parent=11 // pred_check_branch
          %700 = sbr.rel (%p698) target = $region64
        $region63: #{tpu_custom_call.1} parent=11 // pred_region
          %s702 = ssub.s32 512, 512
          %703 = vsyncadd [#allocation21], %s702
          %s704 = sshll.u32 [#allocation22], 4
          %s705 = int_to_ptr.vmem [resolvable:$true] %s704
          %710 = dma.hbm_to_vmem [thread:$0]  %s15, 512, %s705, [#allocation21], 128, 128, 8
        $region64: #{tpu_custom_call.1} parent=11 // pred_fallthru
          _
        // Predicated region
        $region65: #{tpu_custom_call.1} parent=11 // pred_check
          %p711 = pneg %p417
        $region66: #{tpu_custom_call.1} parent=11 // pred_check_branch
          %713 = sbr.rel (%p711) target = $region68
        $region67: #{tpu_custom_call.1} parent=11 // pred_region
          %s715 = ssub.s32 16, 16
          %716 = vsyncadd [#allocation24], %s715
          %s718 = sshll.u32 [#allocation23], 4
          %s719 = int_to_ptr.vmem [resolvable:$true] %s718
          %721 = dma.hbm_to_vmem [thread:$0]  %s16, 16, %s719, [#allocation24]
        $region68: #{tpu_custom_call.1} parent=11 // pred_fallthru
          _
        // Predicated region
        $region69: #{tpu_custom_call.1} parent=11 // pred_check
          %p722 = pneg %p438
        $region70: #{tpu_custom_call.1} parent=11 // pred_check_branch
          %724 = sbr.rel (%p722) target = $region72
        $region71: #{tpu_custom_call.1} parent=11 // pred_region
          _
        $region72: #{tpu_custom_call.1} parent=11 // pred_fallthru
          _
        // Predicated region
        $region73: #{tpu_custom_call.1} parent=11 // pred_check
          %p725 = pneg %p459
        $region74: #{tpu_custom_call.1} parent=11 // pred_check_branch
          %727 = sbr.rel (%p725) target = $region76
        $region75: #{tpu_custom_call.1} parent=11 // pred_region
          %s729 = ssub.s32 16, 16
          %730 = vsyncadd [#allocation24], %s729
          %s732 = sshll.u32 [#allocation25], 4
          %s733 = int_to_ptr.vmem [resolvable:$true] %s732
          %735 = dma.hbm_to_vmem [thread:$0]  %s18, 16, %s733, [#allocation24]
        $region76: #{tpu_custom_call.1} parent=11 // pred_fallthru
          _
        // Predicated region
        $region77: #{tpu_custom_call.1} parent=11 // pred_check
          %p736 = pneg %p480
        $region78: #{tpu_custom_call.1} parent=11 // pred_check_branch
          %738 = sbr.rel (%p736) target = $region80
        $region79: #{tpu_custom_call.1} parent=11 // pred_region
          %s740 = ssub.s32 16, 16
          %741 = vsyncadd [#allocation27], %s740
          %s743 = sshll.u32 [#allocation26], 4
          %s744 = int_to_ptr.vmem [resolvable:$true] %s743
          %746 = dma.hbm_to_vmem [thread:$0]  %s19, 16, %s744, [#allocation27]
        $region80: #{tpu_custom_call.1} parent=11 // pred_fallthru
          _
        // Predicated region
        $region81: #{tpu_custom_call.1} parent=11 // pred_check
          %p747 = pneg %p501
        $region82: #{tpu_custom_call.1} parent=11 // pred_check_branch
          %749 = sbr.rel (%p747) target = $region84
        $region83: #{tpu_custom_call.1} parent=11 // pred_region
          _
        $region84: #{tpu_custom_call.1} parent=11 // pred_fallthru
          _
        // Predicated region
        $region85: #{tpu_custom_call.1} parent=11 // pred_check
          %p750 = pneg %p522
        $region86: #{tpu_custom_call.1} parent=11 // pred_check_branch
          %752 = sbr.rel (%p750) target = $region88
        $region87: #{tpu_custom_call.1} parent=11 // pred_region
          _
        $region88: #{tpu_custom_call.1} parent=11 // pred_fallthru
          _
        // Predicated region
        $region89: #{tpu_custom_call.1} parent=11 // pred_check
          %p753 = pneg %p543
        $region90: #{tpu_custom_call.1} parent=11 // pred_check_branch
          %755 = sbr.rel (%p753) target = $region92
        $region91: #{tpu_custom_call.1} parent=11 // pred_region
          _
        $region92: #{tpu_custom_call.1} parent=11 // pred_fallthru
          _
      $region12: #{tpu_custom_call.1} parent=5 // pred_fallthru
        _
      %p756 = scmp.lt.s32.totalorder %s45, 2
      // Predicated region
      $region93: #{tpu_custom_call.1} parent=5 // pred_check
        %p757 = pneg %p756
      $region94: #{tpu_custom_call.1} parent=5 // pred_check_branch
        %759 = sbr.rel (%p757) target = $region96
      $region95: #{tpu_custom_call.1} parent=5 // pred_region
        // Predicated region
        $region97: #{tpu_custom_call.1} parent=95 // pred_check
          %p760 = pneg %p65
        $region98: #{tpu_custom_call.1} parent=95 // pred_check_branch
          %762 = sbr.rel (%p760) target = $region100
        $region99: #{tpu_custom_call.1} parent=95 // pred_region
          %s763 = sand.u32 %s55, 1
          %s764 = scalar_lea.sflag [#allocation3], %s763
          %s765 = sand.u32 %s55, 1
          %s766 = smul.addr %s765, 8
          %s767 = scalar_lea.vmem [#allocation2], %s766
          %s769 = ssub.s32 128, 128
          %770 = vsyncadd %s764, %s769
          %s771 = smul.addr %s45, 128
          %s772 = scalar_lea.hbm %s0, %s771
          %s774 = sshll.u32 %s767, 4
          %s775 = int_to_ptr.vmem [resolvable:$true] %s774
          %777 = dma.hbm_to_vmem [thread:$0]  %s772, 128, %s775, %s764
        $region100: #{tpu_custom_call.1} parent=95 // pred_fallthru
          _
        // Predicated region
        $region101: #{tpu_custom_call.1} parent=95 // pred_check
          %p778 = pneg %p91
        $region102: #{tpu_custom_call.1} parent=95 // pred_check_branch
          %780 = sbr.rel (%p778) target = $region104
        $region103: #{tpu_custom_call.1} parent=95 // pred_region
          %s781 = sand.u32 %s45, 1
          %s782 = scalar_lea.sflag [#allocation6], %s781
          %s783 = sand.u32 %s81, 1
          %s784 = smul.addr %s783, 24
          %s785 = scalar_lea.vmem [#allocation5], %s784
          %s787 = ssub.s32 384, 384
          %788 = vsyncadd %s782, %s787
          %s789 = smul.addr %s45, 128
          %s790 = scalar_lea.hbm %s1, %s789
          %s791 = sshll.u32 %s785, 4
          %s792 = int_to_ptr.vmem [resolvable:$true] %s791
          %797 = dma.hbm_to_vmem [thread:$0]  %s790, 384, %s792, %s782, 256, 128, 8
        $region104: #{tpu_custom_call.1} parent=95 // pred_fallthru
          _
        // Predicated region
        $region105: #{tpu_custom_call.1} parent=95 // pred_check
          %p798 = pneg %p117
        $region106: #{tpu_custom_call.1} parent=95 // pred_check_branch
          %800 = sbr.rel (%p798) target = $region108
        $region107: #{tpu_custom_call.1} parent=95 // pred_region
          %s801 = sand.u32 %s45, 1
          %s802 = scalar_lea.sflag [#allocation6], %s801
          %s803 = sand.u32 %s107, 1
          %s804 = smul.addr %s803, 8
          %s805 = scalar_lea.vmem [#allocation7], %s804
          %s807 = ssub.s32 128, 128
          %808 = vsyncadd %s802, %s807
          %s809 = smul.addr %s45, 128
          %s810 = scalar_lea.hbm %s2, %s809
          %s812 = sshll.u32 %s805, 4
          %s813 = int_to_ptr.vmem [resolvable:$true] %s812
          %815 = dma.hbm_to_vmem [thread:$0]  %s810, 128, %s813, %s802
        $region108: #{tpu_custom_call.1} parent=95 // pred_fallthru
          _
      $region96: #{tpu_custom_call.1} parent=5 // pred_fallthru
        _
      %p816 = scmp.le.s32.totalorder 1, %s45
      %p817 = scmp.lt.s32.totalorder %s45, 3
      %p818 = pnand %p816, %p817
      %p819 = pneg %p818
      // Predicated region
      $region109: #{tpu_custom_call.1} parent=5 // pred_check
        _
      $region110: #{tpu_custom_call.1} parent=5 // pred_check_branch
        %821 = sbr.rel (%p818) target = $region112
      $region111: #{tpu_custom_call.1} parent=5 // pred_region
        %s822 = ssub.s32 %s45, 1
        %s823 = sand.u32 %s58, 1
        %s824 = scalar_lea.sflag [#allocation3], %s823
        %s825 = sand.u32 %s58, 1
        %s826 = smul.addr %s825, 8
        %s827 = scalar_lea.vmem [#allocation2], %s826
        // Predicated region
        $region113: #{tpu_custom_call.1} parent=111 // pred_check
          %p828 = pneg %p71
        $region114: #{tpu_custom_call.1} parent=111 // pred_check_branch
          %830 = sbr.rel (%p828) target = $region116
        $region115: #{tpu_custom_call.1} parent=111 // pred_region
          %831 = dma.done %s824, 128
        $region116: #{tpu_custom_call.1} parent=111 // pred_fallthru
          _
        %s832 = sand.u32 %s50, 1
        %s833 = scalar_lea.sflag [#allocation6], %s832
        %s834 = sand.u32 %s84, 1
        %s835 = smul.addr %s834, 24
        %s836 = scalar_lea.vmem [#allocation5], %s835
        // Predicated region
        $region117: #{tpu_custom_call.1} parent=111 // pred_check
          %p837 = pneg %p97
        $region118: #{tpu_custom_call.1} parent=111 // pred_check_branch
          %839 = sbr.rel (%p837) target = $region120
        $region119: #{tpu_custom_call.1} parent=111 // pred_region
          %840 = dma.done %s833, 384
        $region120: #{tpu_custom_call.1} parent=111 // pred_fallthru
          _
        %s841 = sand.u32 %s50, 1
        %s842 = scalar_lea.sflag [#allocation6], %s841
        %s843 = sand.u32 %s110, 1
        %s844 = smul.addr %s843, 8
        %s845 = scalar_lea.vmem [#allocation7], %s844
        // Predicated region
        $region121: #{tpu_custom_call.1} parent=111 // pred_check
          %p846 = pneg %p123
        $region122: #{tpu_custom_call.1} parent=111 // pred_check_branch
          %848 = sbr.rel (%p846) target = $region124
        $region123: #{tpu_custom_call.1} parent=111 // pred_region
          %849 = dma.done %s842, 128
        $region124: #{tpu_custom_call.1} parent=111 // pred_fallthru
          _
        // Predicated region
        $region125: #{tpu_custom_call.1} parent=111 // pred_check
          %p850 = pneg %p144
        $region126: #{tpu_custom_call.1} parent=111 // pred_check_branch
          %852 = sbr.rel (%p850) target = $region128
        $region127: #{tpu_custom_call.1} parent=111 // pred_region
          %853 = dma.done [#allocation9], 256
        $region128: #{tpu_custom_call.1} parent=111 // pred_fallthru
          _
        // Predicated region
        $region129: #{tpu_custom_call.1} parent=111 // pred_check
          %p854 = pneg %p165
        $region130: #{tpu_custom_call.1} parent=111 // pred_check_branch
          %856 = sbr.rel (%p854) target = $region132
        $region131: #{tpu_custom_call.1} parent=111 // pred_region
          %857 = dma.done [#allocation9], 256
        $region132: #{tpu_custom_call.1} parent=111 // pred_fallthru
          _
        // Predicated region
        $region133: #{tpu_custom_call.1} parent=111 // pred_check
          %p858 = pneg %p186
        $region134: #{tpu_custom_call.1} parent=111 // pred_check_branch
          %860 = sbr.rel (%p858) target = $region136
        $region135: #{tpu_custom_call.1} parent=111 // pred_region
          %861 = dma.done [#allocation12], 16
        $region136: #{tpu_custom_call.1} parent=111 // pred_fallthru
          _
        // Predicated region
        $region137: #{tpu_custom_call.1} parent=111 // pred_check
          %p862 = pneg %p207
        $region138: #{tpu_custom_call.1} parent=111 // pred_check_branch
          %864 = sbr.rel (%p862) target = $region140
        $region139: #{tpu_custom_call.1} parent=111 // pred_region
          %865 = dma.done [#allocation12], 16
        $region140: #{tpu_custom_call.1} parent=111 // pred_fallthru
          _
        // Predicated region
        $region141: #{tpu_custom_call.1} parent=111 // pred_check
          %p866 = pneg %p270
        $region142: #{tpu_custom_call.1} parent=111 // pred_check_branch
          %868 = sbr.rel (%p866) target = $region144
        $region143: #{tpu_custom_call.1} parent=111 // pred_region
          %869 = dma.done [#allocation15], 2048
        $region144: #{tpu_custom_call.1} parent=111 // pred_fallthru
          _
        // Predicated region
        $region145: #{tpu_custom_call.1} parent=111 // pred_check
          %p870 = pneg %p291
        $region146: #{tpu_custom_call.1} parent=111 // pred_check_branch
          %872 = sbr.rel (%p870) target = $region148
        $region147: #{tpu_custom_call.1} parent=111 // pred_region
          %873 = dma.done [#allocation15], 16
        $region148: #{tpu_custom_call.1} parent=111 // pred_fallthru
          _
        // Predicated region
        $region149: #{tpu_custom_call.1} parent=111 // pred_check
          %p874 = pneg %p312
        $region150: #{tpu_custom_call.1} parent=111 // pred_check_branch
          %876 = sbr.rel (%p874) target = $region152
        $region151: #{tpu_custom_call.1} parent=111 // pred_region
          %877 = dma.done [#allocation18], 16
        $region152: #{tpu_custom_call.1} parent=111 // pred_fallthru
          _
        // Predicated region
        $region153: #{tpu_custom_call.1} parent=111 // pred_check
          %p878 = pneg %p333
        $region154: #{tpu_custom_call.1} parent=111 // pred_check_branch
          %880 = sbr.rel (%p878) target = $region156
        $region155: #{tpu_custom_call.1} parent=111 // pred_region
          %881 = dma.done [#allocation18], 16
        $region156: #{tpu_custom_call.1} parent=111 // pred_fallthru
          _
        // Predicated region
        $region157: #{tpu_custom_call.1} parent=111 // pred_check
          %p882 = pneg %p375
        $region158: #{tpu_custom_call.1} parent=111 // pred_check_branch
          %884 = sbr.rel (%p882) target = $region160
        $region159: #{tpu_custom_call.1} parent=111 // pred_region
          %885 = dma.done [#allocation21], 16
        $region160: #{tpu_custom_call.1} parent=111 // pred_fallthru
          _
        // Predicated region
        $region161: #{tpu_custom_call.1} parent=111 // pred_check
          %p886 = pneg %p396
        $region162: #{tpu_custom_call.1} parent=111 // pred_check_branch
          %888 = sbr.rel (%p886) target = $region164
        $region163: #{tpu_custom_call.1} parent=111 // pred_region
          %889 = dma.done [#allocation21], 512
        $region164: #{tpu_custom_call.1} parent=111 // pred_fallthru
          _
        // Predicated region
        $region165: #{tpu_custom_call.1} parent=111 // pred_check
          %p890 = pneg %p417
        $region166: #{tpu_custom_call.1} parent=111 // pred_check_branch
          %892 = sbr.rel (%p890) target = $region168
        $region167: #{tpu_custom_call.1} parent=111 // pred_region
          %893 = dma.done [#allocation24], 16
        $region168: #{tpu_custom_call.1} parent=111 // pred_fallthru
          _
        // Predicated region
        $region169: #{tpu_custom_call.1} parent=111 // pred_check
          %p894 = pneg %p459
        $region170: #{tpu_custom_call.1} parent=111 // pred_check_branch
          %896 = sbr.rel (%p894) target = $region172
        $region171: #{tpu_custom_call.1} parent=111 // pred_region
          %897 = dma.done [#allocation24], 16
        $region172: #{tpu_custom_call.1} parent=111 // pred_fallthru
          _
        // Predicated region
        $region173: #{tpu_custom_call.1} parent=111 // pred_check
          %p898 = pneg %p480
        $region174: #{tpu_custom_call.1} parent=111 // pred_check_branch
          %900 = sbr.rel (%p898) target = $region176
        $region175: #{tpu_custom_call.1} parent=111 // pred_region
          %901 = dma.done [#allocation27], 16
        $region176: #{tpu_custom_call.1} parent=111 // pred_fallthru
          _
        %s902 = sand.u32 %s58, 1
        %s903 = scalar_lea.sflag [#allocation3], %s902
        %s904 = sand.u32 %s58, 1
        %s905 = smul.addr %s904, 8
        %s906 = scalar_lea.vmem [#allocation2], %s905
        %p907 = pneg %p71
        %p908 = pneg %p68
        %s909 = sand.u32 %s50, 1
        %s910 = scalar_lea.sflag [#allocation6], %s909
        %s911 = sand.u32 %s84, 1
        %s912 = smul.addr %s911, 24
        %s913 = scalar_lea.vmem [#allocation5], %s912
        %p914 = pneg %p97
        %p915 = pneg %p94
        %s916 = sand.u32 %s50, 1
        %s917 = scalar_lea.sflag [#allocation6], %s916
        %s918 = sand.u32 %s110, 1
        %s919 = smul.addr %s918, 8
        %s920 = scalar_lea.vmem [#allocation7], %s919
        %p921 = pneg %p123
        %p922 = pneg %p120
        %p923 = pneg %p144
        %p924 = pneg %p141
        %p925 = pneg %p165
        %p926 = pneg %p162
        %p927 = pneg %p186
        %p928 = pneg %p183
        %p929 = pneg %p207
        %p930 = pneg %p204
        %p931 = pneg %p228
        %p932 = pneg %p225
        %p933 = pneg %p249
        %p934 = pneg %p246
        %p935 = pneg %p270
        %p936 = pneg %p267
        %p937 = pneg %p291
        %p938 = pneg %p288
        %p939 = pneg %p312
        %p940 = pneg %p309
        %p941 = pneg %p333
        %p942 = pneg %p330
        %p943 = pneg %p354
        %p944 = pneg %p351
        %p945 = pneg %p375
        %p946 = pneg %p372
        %p947 = pneg %p396
        %p948 = pneg %p393
        %p949 = pneg %p417
        %p950 = pneg %p414
        %p951 = pneg %p438
        %p952 = pneg %p435
        %p953 = pneg %p459
        %p954 = pneg %p456
        %p955 = pneg %p480
        %p956 = pneg %p477
        %p957 = pneg %p501
        %p958 = pneg %p498
        %p959 = pneg %p522
        %p960 = pneg %p519
        %p961 = pneg %p543
        %p962 = pneg %p540
        %p963 = pneg %p569
        %p964 = pneg %p566
        %s965 = sand.u32 %s556, 1
        %s966 = scalar_lea.sflag [#allocation4], %s965
        %s967 = sand.u32 %s556, 1
        %s968 = smul.addr %s967, 8
        %s969 = scalar_lea.vmem [#allocation28], %s968
        %v970 = vld [vmem:[%s827] sm:$0xff]
        %v971 = vld [vmem:[#allocation8] sm:$0xff]
        %v972 = vld [vmem:[#allocation8 + $0x8] sm:$0xff]
        %v973 = vld [vmem:[%s845] sm:$0xff]
        %vm974 = vcmask 130048
        %v976 = vsel %vm974, %v970, 0
        %978 = vmatprep.subr.mxu0 0.0
        %979 = vmatpush1.msra.mxu0 0.0
        %980 = vmatprep.subr.mxu0 0.0
        %981 = vmatpush1.msra.mxu0 0.0
        %982 = vmatprep.subr.mxu0 0.0
        %983 = vmatpush1.msra.mxu0 0.0
        %984 = vmatprep.subr.mxu0 0.0
        %985 = vmatpush1.msra.mxu0 0.0
        %986 = vmatprep.subr.mxu0 0.0
        %987 = vmatpush1.msra.mxu0 0.0
        %988 = vmatprep.subr.mxu0 0.0
        %989 = vmatpush1.msra.mxu0 0.0
        %990 = vmatprep.subr.mxu0 0.0
        %991 = vmatpush1.msra.mxu0 0.0
        %992 = vmatprep.subr.mxu0 0.0
        %993 = vmatpush1.msra.mxu0 0.0
        %994 = vmatprep.subr.mxu0 0.0
        %995 = vmatpush1.msra.mxu0 0.0
        %996 = vmatprep.subr.mxu0 0.0
        %997 = vmatpush1.msra.mxu0 0.0
        %998 = vmatprep.subr.mxu0 0.0
        %999 = vmatpush1.msra.mxu0 0.0
        %1000 = vmatprep.subr.mxu0 0.0
        %1001 = vmatpush1.msra.mxu0 0.0
        %1002 = vmatprep.subr.mxu0 0.0
        %1003 = vmatpush1.msra.mxu0 0.0
        %1004 = vmatprep.subr.mxu0 0.0
        %1005 = vmatpush1.msra.mxu0 0.0
        %1006 = vmatprep.subr.mxu0 0.0
        %1007 = vmatpush1.msra.mxu0 %v972
        %1008 = vmatprep.subr.mxu0 0.0
        %1009 = vmatpush1.msra.mxu0 %v971
        %1010 = vmatprep.subr.mxu0 0.0
        %1011 = vmatpush2.msra.mxu0 0.0
        %1012 = vmatprep.subr.mxu0 0.0
        %1013 = vmatpush2.msra.mxu0 0.0
        %1014 = vmatprep.subr.mxu0 0.0
        %1015 = vmatpush2.msra.mxu0 0.0
        %1016 = vmatprep.subr.mxu0 0.0
        %1017 = vmatpush2.msra.mxu0 0.0
        %1018 = vmatprep.subr.mxu0 0.0
        %1019 = vmatpush2.msra.mxu0 0.0
        %1020 = vmatprep.subr.mxu0 0.0
        %1021 = vmatpush2.msra.mxu0 0.0
        %1022 = vmatprep.subr.mxu0 0.0
        %1023 = vmatpush2.msra.mxu0 0.0
        %1024 = vmatprep.subr.mxu0 0.0
        %1025 = vmatpush2.msra.mxu0 0.0
        %1026 = vmatprep.subr.mxu0 0.0
        %1027 = vmatpush2.msra.mxu0 0.0
        %1028 = vmatprep.subr.mxu0 0.0
        %1029 = vmatpush2.msra.mxu0 0.0
        %1030 = vmatprep.subr.mxu0 0.0
        %1031 = vmatpush2.msra.mxu0 0.0
        %1032 = vmatprep.subr.mxu0 0.0
        %1033 = vmatpush2.msra.mxu0 0.0
        %1034 = vmatprep.subr.mxu0 0.0
        %1035 = vmatpush2.msra.mxu0 0.0
        %1036 = vmatprep.subr.mxu0 0.0
        %1037 = vmatpush2.msra.mxu0 0.0
        %1038 = vmatprep.subr.mxu0 0.0
        %1039 = vmatpush2.msra.mxu0 0.0
        %1040 = vmatprep.subr.mxu0 0.0
        %1041 = vmatpush2.msra.mxu0 0.0
        %1042 = vmatprep.mubr.f32.mxu0 0.0
        %1043 = vmatmul.mubr.f32.gmra.mxu0 %v976
        %v1044 = vpop.f32.mrf.mxu0
        %v1045 = vadd.f32 %v973, %v1044
        %v1046 = vpop.f32.mrf.mxu0
        %1047 = vdwg.mxu0
        %v1048 = vld [vmem:[%s836] sm:$0xff]
        %v1049 = vld [vmem:[#allocation10] sm:$0xff]
        %v1050 = vld [vmem:[#allocation10 + $0x8] sm:$0xff]
        %v1052 = vsel %vm974, %v1048, 0
        %1054 = vmatprep.subr.mxu0 0.0
        %1055 = vmatpush1.msra.mxu0 0.0
        %1056 = vmatprep.subr.mxu0 0.0
        %1057 = vmatpush1.msra.mxu0 0.0
        %1058 = vmatprep.subr.mxu0 0.0
        %1059 = vmatpush1.msra.mxu0 0.0
        %1060 = vmatprep.subr.mxu0 0.0
        %1061 = vmatpush1.msra.mxu0 0.0
        %1062 = vmatprep.subr.mxu0 0.0
        %1063 = vmatpush1.msra.mxu0 0.0
        %1064 = vmatprep.subr.mxu0 0.0
        %1065 = vmatpush1.msra.mxu0 0.0
        %1066 = vmatprep.subr.mxu0 0.0
        %1067 = vmatpush1.msra.mxu0 0.0
        %1068 = vmatprep.subr.mxu0 0.0
        %1069 = vmatpush1.msra.mxu0 0.0
        %1070 = vmatprep.subr.mxu0 0.0
        %1071 = vmatpush1.msra.mxu0 0.0
        %1072 = vmatprep.subr.mxu0 0.0
        %1073 = vmatpush1.msra.mxu0 0.0
        %1074 = vmatprep.subr.mxu0 0.0
        %1075 = vmatpush1.msra.mxu0 0.0
        %1076 = vmatprep.subr.mxu0 0.0
        %1077 = vmatpush1.msra.mxu0 0.0
        %1078 = vmatprep.subr.mxu0 0.0
        %1079 = vmatpush1.msra.mxu0 0.0
        %1080 = vmatprep.subr.mxu0 0.0
        %1081 = vmatpush1.msra.mxu0 0.0
        %1082 = vmatprep.subr.mxu0 0.0
        %1083 = vmatpush1.msra.mxu0 %v1050
        %1084 = vmatprep.subr.mxu0 0.0
        %1085 = vmatpush1.msra.mxu0 %v1049
        %1086 = vmatprep.subr.mxu0 0.0
        %1087 = vmatpush2.msra.mxu0 0.0
        %1088 = vmatprep.subr.mxu0 0.0
        %1089 = vmatpush2.msra.mxu0 0.0
        %1090 = vmatprep.subr.mxu0 0.0
        %1091 = vmatpush2.msra.mxu0 0.0
        %1092 = vmatprep.subr.mxu0 0.0
        %1093 = vmatpush2.msra.mxu0 0.0
        %1094 = vmatprep.subr.mxu0 0.0
        %1095 = vmatpush2.msra.mxu0 0.0
        %1096 = vmatprep.subr.mxu0 0.0
        %1097 = vmatpush2.msra.mxu0 0.0
        %1098 = vmatprep.subr.mxu0 0.0
        %1099 = vmatpush2.msra.mxu0 0.0
        %1100 = vmatprep.subr.mxu0 0.0
        %1101 = vmatpush2.msra.mxu0 0.0
        %1102 = vmatprep.subr.mxu0 0.0
        %1103 = vmatpush2.msra.mxu0 0.0
        %1104 = vmatprep.subr.mxu0 0.0
        %1105 = vmatpush2.msra.mxu0 0.0
        %1106 = vmatprep.subr.mxu0 0.0
        %1107 = vmatpush2.msra.mxu0 0.0
        %1108 = vmatprep.subr.mxu0 0.0
        %1109 = vmatpush2.msra.mxu0 0.0
        %1110 = vmatprep.subr.mxu0 0.0
        %1111 = vmatpush2.msra.mxu0 0.0
        %1112 = vmatprep.subr.mxu0 0.0
        %1113 = vmatpush2.msra.mxu0 0.0
        %1114 = vmatprep.subr.mxu0 0.0
        %1115 = vmatpush2.msra.mxu0 0.0
        %1116 = vmatprep.subr.mxu0 0.0
        %1117 = vmatpush2.msra.mxu0 0.0
        %1118 = vmatprep.mubr.f32.mxu0 0.0
        %1119 = vmatmul.mubr.f32.gmra.mxu0 %v1052
        %v1120 = vpop.f32.mrf.mxu0
        %v1121 = vadd.f32 0.0, %v1120
        %v1122 = vpop.f32.mrf.mxu0
        %1123 = vdwg.mxu0
        %v1124 = vadd.f32 %v1045, %v1121
        %v1125 = vld [vmem:[#allocation11] sm:$0x1]
        %v1126 = vld [vmem:[#allocation13] sm:$0x1]
        %vm1127 = vcmask 523264
        %v1128 = vsel %vm1127, %v1124, 0.0
        %1129 = vadd.xlane.f32.xlu0 %v1128
        %v1130 = vpop.xlane.xlu0 %1129
        %v1131 = vrcp.pop 64.0
        %v1132 = vmul.f32 %v1130, %v1131
        %v1133 = vsub.f32 %v1124, %v1132
        %v1134 = vmul.f32 %v1133, %v1133
        %v1135 = vsel %vm1127, %v1134, 0.0
        %1136 = vadd.xlane.f32.xlu0 %v1135
        %v1137 = vpop.xlane.xlu0 %1136
        %v1138 = vmul.f32 %v1137, %v1131
        %v1139 = vadd.f32 %v1138, 1e-05
        %v1140 = vrsqrt.pop %v1139
        %v1141 = vmul.f32 %v1133, %v1140
        %v1143 = vlaneseq
        %v1144 = vshrl.u32 %v1143, 7
        %v1145 = vsub.s32 0, %v1144
        %v1146 = vrot.slane %v1125, %v1145
        %v1148 = vmul.f32 %v1141, %v1146
        %v1150 = vlaneseq
        %v1151 = vshrl.u32 %v1150, 7
        %v1152 = vsub.s32 0, %v1151
        %v1153 = vrot.slane %v1126, %v1152
        %v1155 = vadd.f32 %v1148, %v1153
        %v1156 = vld [vmem:[%s8] sm:$0xff]
        %v1157 = vld [vmem:[%s8 + $0x8] sm:$0xff]
        %v1158 = vld [vmem:[%s8 + $0x10] sm:$0xff]
        %v1159 = vld [vmem:[%s8 + $0x18] sm:$0xff]
        %v1160 = vld [vmem:[%s8 + $0x20] sm:$0xff]
        %v1161 = vld [vmem:[%s8 + $0x28] sm:$0xff]
        %v1162 = vld [vmem:[%s8 + $0x30] sm:$0xff]
        %v1163 = vld [vmem:[%s8 + $0x38] sm:$0xff]
        %v1165 = vsel %vm1127, %v1155, 0
        %1167 = vmatprep.subr.mxu0 0.0
        %1168 = vmatpush1.msra.mxu0 0.0
        %1169 = vmatprep.subr.mxu0 0.0
        %1170 = vmatpush1.msra.mxu0 0.0
        %1171 = vmatprep.subr.mxu0 0.0
        %1172 = vmatpush1.msra.mxu0 0.0
        %1173 = vmatprep.subr.mxu0 0.0
        %1174 = vmatpush1.msra.mxu0 0.0
        %1175 = vmatprep.subr.mxu0 0.0
        %1176 = vmatpush1.msra.mxu0 0.0
        %1177 = vmatprep.subr.mxu0 0.0
        %1178 = vmatpush1.msra.mxu0 0.0
        %1179 = vmatprep.subr.mxu0 0.0
        %1180 = vmatpush1.msra.mxu0 0.0
        %1181 = vmatprep.subr.mxu0 0.0
        %1182 = vmatpush1.msra.mxu0 0.0
        %1183 = vmatprep.subr.mxu0 0.0
        %1184 = vmatpush1.msra.mxu0 %v1163
        %1185 = vmatprep.subr.mxu0 0.0
        %1186 = vmatpush1.msra.mxu0 %v1162
        %1187 = vmatprep.subr.mxu0 0.0
        %1188 = vmatpush1.msra.mxu0 %v1161
        %1189 = vmatprep.subr.mxu0 0.0
        %1190 = vmatpush1.msra.mxu0 %v1160
        %1191 = vmatprep.subr.mxu0 0.0
        %1192 = vmatpush1.msra.mxu0 %v1159
        %1193 = vmatprep.subr.mxu0 0.0
        %1194 = vmatpush1.msra.mxu0 %v1158
        %1195 = vmatprep.subr.mxu0 0.0
        %1196 = vmatpush1.msra.mxu0 %v1157
        %1197 = vmatprep.subr.mxu0 0.0
        %1198 = vmatpush1.msra.mxu0 %v1156
        %1199 = vmatprep.subr.mxu0 0.0
        %1200 = vmatpush2.msra.mxu0 0.0
        %1201 = vmatprep.subr.mxu0 0.0
        %1202 = vmatpush2.msra.mxu0 0.0
        %1203 = vmatprep.subr.mxu0 0.0
        %1204 = vmatpush2.msra.mxu0 0.0
        %1205 = vmatprep.subr.mxu0 0.0
        %1206 = vmatpush2.msra.mxu0 0.0
        %1207 = vmatprep.subr.mxu0 0.0
        %1208 = vmatpush2.msra.mxu0 0.0
        %1209 = vmatprep.subr.mxu0 0.0
        %1210 = vmatpush2.msra.mxu0 0.0
        %1211 = vmatprep.subr.mxu0 0.0
        %1212 = vmatpush2.msra.mxu0 0.0
        %1213 = vmatprep.subr.mxu0 0.0
        %1214 = vmatpush2.msra.mxu0 0.0
        %1215 = vmatprep.subr.mxu0 0.0
        %1216 = vmatpush2.msra.mxu0 0.0
        %1217 = vmatprep.subr.mxu0 0.0
        %1218 = vmatpush2.msra.mxu0 0.0
        %1219 = vmatprep.subr.mxu0 0.0
        %1220 = vmatpush2.msra.mxu0 0.0
        %1221 = vmatprep.subr.mxu0 0.0
        %1222 = vmatpush2.msra.mxu0 0.0
        %1223 = vmatprep.subr.mxu0 0.0
        %1224 = vmatpush2.msra.mxu0 0.0
        %1225 = vmatprep.subr.mxu0 0.0
        %1226 = vmatpush2.msra.mxu0 0.0
        %1227 = vmatprep.subr.mxu0 0.0
        %1228 = vmatpush2.msra.mxu0 0.0
        %1229 = vmatprep.subr.mxu0 0.0
        %1230 = vmatpush2.msra.mxu0 0.0
        %1231 = vmatprep.mubr.f32.mxu0 0.0
        %1232 = vmatmul.mubr.f32.gmra.mxu0 %v1165
        %v1233 = vpop.f32.mrf.mxu0
        %v1234 = vadd.f32 0.0, %v1233
        %v1235 = vpop.f32.mrf.mxu0
        %1236 = vdwg.mxu0
        %v1237 = vld [vmem:[%s7] sm:$0xff]
        %v1238 = vld [vmem:[%s7 + $0x8] sm:$0xff]
        %v1239 = vld [vmem:[%s7 + $0x10] sm:$0xff]
        %v1240 = vld [vmem:[%s7 + $0x18] sm:$0xff]
        %v1241 = vld [vmem:[%s7 + $0x20] sm:$0xff]
        %v1242 = vld [vmem:[%s7 + $0x28] sm:$0xff]
        %v1243 = vld [vmem:[%s7 + $0x30] sm:$0xff]
        %v1244 = vld [vmem:[%s7 + $0x38] sm:$0xff]
        %1245 = vmatprep.subr.mxu0 0.0
        %1246 = vmatpush1.msra.mxu0 0.0
        %1247 = vmatprep.subr.mxu0 0.0
        %1248 = vmatpush1.msra.mxu0 0.0
        %1249 = vmatprep.subr.mxu0 0.0
        %1250 = vmatpush1.msra.mxu0 0.0
        %1251 = vmatprep.subr.mxu0 0.0
        %1252 = vmatpush1.msra.mxu0 0.0
        %1253 = vmatprep.subr.mxu0 0.0
        %1254 = vmatpush1.msra.mxu0 0.0
        %1255 = vmatprep.subr.mxu0 0.0
        %1256 = vmatpush1.msra.mxu0 0.0
        %1257 = vmatprep.subr.mxu0 0.0
        %1258 = vmatpush1.msra.mxu0 0.0
        %1259 = vmatprep.subr.mxu0 0.0
        %1260 = vmatpush1.msra.mxu0 0.0
        %1261 = vmatprep.subr.mxu0 0.0
        %1262 = vmatpush1.msra.mxu0 %v1244
        %1263 = vmatprep.subr.mxu0 0.0
        %1264 = vmatpush1.msra.mxu0 %v1243
        %1265 = vmatprep.subr.mxu0 0.0
        %1266 = vmatpush1.msra.mxu0 %v1242
        %1267 = vmatprep.subr.mxu0 0.0
        %1268 = vmatpush1.msra.mxu0 %v1241
        %1269 = vmatprep.subr.mxu0 0.0
        %1270 = vmatpush1.msra.mxu0 %v1240
        %1271 = vmatprep.subr.mxu0 0.0
        %1272 = vmatpush1.msra.mxu0 %v1239
        %1273 = vmatprep.subr.mxu0 0.0
        %1274 = vmatpush1.msra.mxu0 %v1238
        %1275 = vmatprep.subr.mxu0 0.0
        %1276 = vmatpush1.msra.mxu0 %v1237
        %1277 = vmatprep.subr.mxu0 0.0
        %1278 = vmatpush2.msra.mxu0 0.0
        %1279 = vmatprep.subr.mxu0 0.0
        %1280 = vmatpush2.msra.mxu0 0.0
        %1281 = vmatprep.subr.mxu0 0.0
        %1282 = vmatpush2.msra.mxu0 0.0
        %1283 = vmatprep.subr.mxu0 0.0
        %1284 = vmatpush2.msra.mxu0 0.0
        %1285 = vmatprep.subr.mxu0 0.0
        %1286 = vmatpush2.msra.mxu0 0.0
        %1287 = vmatprep.subr.mxu0 0.0
        %1288 = vmatpush2.msra.mxu0 0.0
        %1289 = vmatprep.subr.mxu0 0.0
        %1290 = vmatpush2.msra.mxu0 0.0
        %1291 = vmatprep.subr.mxu0 0.0
        %1292 = vmatpush2.msra.mxu0 0.0
        %1293 = vmatprep.subr.mxu0 0.0
        %1294 = vmatpush2.msra.mxu0 0.0
        %1295 = vmatprep.subr.mxu0 0.0
        %1296 = vmatpush2.msra.mxu0 0.0
        %1297 = vmatprep.subr.mxu0 0.0
        %1298 = vmatpush2.msra.mxu0 0.0
        %1299 = vmatprep.subr.mxu0 0.0
        %1300 = vmatpush2.msra.mxu0 0.0
        %1301 = vmatprep.subr.mxu0 0.0
        %1302 = vmatpush2.msra.mxu0 0.0
        %1303 = vmatprep.subr.mxu0 0.0
        %1304 = vmatpush2.msra.mxu0 0.0
        %1305 = vmatprep.subr.mxu0 0.0
        %1306 = vmatpush2.msra.mxu0 0.0
        %1307 = vmatprep.subr.mxu0 0.0
        %1308 = vmatpush2.msra.mxu0 0.0
        %1309 = vmatprep.mubr.f32.mxu0 0.0
        %1310 = vmatmul.mubr.f32.gmra.mxu0 %v1165
        %v1311 = vpop.f32.mrf.mxu0
        %v1312 = vadd.f32 0.0, %v1311
        %v1313 = vpop.f32.mrf.mxu0
        %1314 = vdwg.mxu0
        %v1316 = vsel %vm1127, %v1312, 0
        %1318 = vmatprep.subr.mxu0 0.0
        %1319 = vmatpush1.xpose.msra.mxu0 0.0
        %1320 = vmatprep.subr.mxu0 0.0
        %1321 = vmatpush1.xpose.msra.mxu0 0.0
        %1322 = vmatprep.subr.mxu0 0.0
        %1323 = vmatpush1.xpose.msra.mxu0 0.0
        %1324 = vmatprep.subr.mxu0 0.0
        %1325 = vmatpush1.xpose.msra.mxu0 0.0
        %1326 = vmatprep.subr.mxu0 0.0
        %1327 = vmatpush1.xpose.msra.mxu0 0.0
        %1328 = vmatprep.subr.mxu0 0.0
        %1329 = vmatpush1.xpose.msra.mxu0 0.0
        %1330 = vmatprep.subr.mxu0 0.0
        %1331 = vmatpush1.xpose.msra.mxu0 0.0
        %1332 = vmatprep.subr.mxu0 0.0
        %1333 = vmatpush1.xpose.msra.mxu0 0.0
        %1334 = vmatprep.subr.mxu0 0.0
        %1335 = vmatpush1.xpose.msra.mxu0 0.0
        %1336 = vmatprep.subr.mxu0 0.0
        %1337 = vmatpush1.xpose.msra.mxu0 0.0
        %1338 = vmatprep.subr.mxu0 0.0
        %1339 = vmatpush1.xpose.msra.mxu0 0.0
        %1340 = vmatprep.subr.mxu0 0.0
        %1341 = vmatpush1.xpose.msra.mxu0 0.0
        %1342 = vmatprep.subr.mxu0 0.0
        %1343 = vmatpush1.xpose.msra.mxu0 0.0
        %1344 = vmatprep.subr.mxu0 0.0
        %1345 = vmatpush1.xpose.msra.mxu0 0.0
        %1346 = vmatprep.subr.mxu0 0.0
        %1347 = vmatpush1.xpose.msra.mxu0 0.0
        %1348 = vmatprep.subr.mxu0 0.0
        %1349 = vmatpush1.xpose.msra.mxu0 %v1165
        %1350 = vmatprep.subr.mxu0 0.0
        %1351 = vmatpush2.xpose.msra.mxu0 0.0
        %1352 = vmatprep.subr.mxu0 0.0
        %1353 = vmatpush2.xpose.msra.mxu0 0.0
        %1354 = vmatprep.subr.mxu0 0.0
        %1355 = vmatpush2.xpose.msra.mxu0 0.0
        %1356 = vmatprep.subr.mxu0 0.0
        %1357 = vmatpush2.xpose.msra.mxu0 0.0
        %1358 = vmatprep.subr.mxu0 0.0
        %1359 = vmatpush2.xpose.msra.mxu0 0.0
        %1360 = vmatprep.subr.mxu0 0.0
        %1361 = vmatpush2.xpose.msra.mxu0 0.0
        %1362 = vmatprep.subr.mxu0 0.0
        %1363 = vmatpush2.xpose.msra.mxu0 0.0
        %1364 = vmatprep.subr.mxu0 0.0
        %1365 = vmatpush2.xpose.msra.mxu0 0.0
        %1366 = vmatprep.subr.mxu0 0.0
        %1367 = vmatpush2.xpose.msra.mxu0 0.0
        %1368 = vmatprep.subr.mxu0 0.0
        %1369 = vmatpush2.xpose.msra.mxu0 0.0
        %1370 = vmatprep.subr.mxu0 0.0
        %1371 = vmatpush2.xpose.msra.mxu0 0.0
        %1372 = vmatprep.subr.mxu0 0.0
        %1373 = vmatpush2.xpose.msra.mxu0 0.0
        %1374 = vmatprep.subr.mxu0 0.0
        %1375 = vmatpush2.xpose.msra.mxu0 0.0
        %1376 = vmatprep.subr.mxu0 0.0
        %1377 = vmatpush2.xpose.msra.mxu0 0.0
        %1378 = vmatprep.subr.mxu0 0.0
        %1379 = vmatpush2.xpose.msra.mxu0 0.0
        %1380 = vmatprep.subr.mxu0 0.0
        %1381 = vmatpush2.xpose.msra.mxu0 0.0
        %1382 = vmatprep.mubr.f32.mxu0 0.0
        %1383 = vmatmul.mubr.f32.gmra.mxu0 %v1316
        %v1384 = vpop.f32.mrf.mxu0
        %v1385 = vadd.f32 0.0, %v1384
        %v1386 = vpop.f32.mrf.mxu0
        %1387 = vdwg.mxu0
        %vm1388 = vcmask 64512
        %v1389 = vsel %vm1388, %v1385, -inf
        %1390 = vmax.xlane.f32.xlu0 %v1389
        %v1391 = vpop.xlane.xlu0 %1390
        %v1392 = vsub.f32 %v1385, %v1391
        %v1393 = vmul.f32 %v1392, 1.442695
        %v1394 = vpow.pop %v1393
        %v1395 = vsel %vm1388, %v1394, 0.0
        %1396 = vadd.xlane.f32.xlu0 %v1395
        %v1397 = vpop.xlane.xlu0 %1396
        %v1399 = vsel %vm1388, %v1394, 0
        %1401 = vmatprep.subr.mxu0 0.0
        %1402 = vmatpush1.msra.mxu0 0.0
        %1403 = vmatprep.subr.mxu0 0.0
        %1404 = vmatpush1.msra.mxu0 0.0
        %1405 = vmatprep.subr.mxu0 0.0
        %1406 = vmatpush1.msra.mxu0 0.0
        %1407 = vmatprep.subr.mxu0 0.0
        %1408 = vmatpush1.msra.mxu0 0.0
        %1409 = vmatprep.subr.mxu0 0.0
        %1410 = vmatpush1.msra.mxu0 0.0
        %1411 = vmatprep.subr.mxu0 0.0
        %1412 = vmatpush1.msra.mxu0 0.0
        %1413 = vmatprep.subr.mxu0 0.0
        %1414 = vmatpush1.msra.mxu0 0.0
        %1415 = vmatprep.subr.mxu0 0.0
        %1416 = vmatpush1.msra.mxu0 0.0
        %1417 = vmatprep.subr.mxu0 0.0
        %1418 = vmatpush1.msra.mxu0 0.0
        %1419 = vmatprep.subr.mxu0 0.0
        %1420 = vmatpush1.msra.mxu0 0.0
        %1421 = vmatprep.subr.mxu0 0.0
        %1422 = vmatpush1.msra.mxu0 0.0
        %1423 = vmatprep.subr.mxu0 0.0
        %1424 = vmatpush1.msra.mxu0 0.0
        %1425 = vmatprep.subr.mxu0 0.0
        %1426 = vmatpush1.msra.mxu0 0.0
        %1427 = vmatprep.subr.mxu0 0.0
        %1428 = vmatpush1.msra.mxu0 0.0
        %1429 = vmatprep.subr.mxu0 0.0
        %1430 = vmatpush1.msra.mxu0 0.0
        %1431 = vmatprep.subr.mxu0 0.0
        %1432 = vmatpush1.msra.mxu0 %v1234
        %1433 = vmatprep.subr.mxu0 0.0
        %1434 = vmatpush2.msra.mxu0 0.0
        %1435 = vmatprep.subr.mxu0 0.0
        %1436 = vmatpush2.msra.mxu0 0.0
        %1437 = vmatprep.subr.mxu0 0.0
        %1438 = vmatpush2.msra.mxu0 0.0
        %1439 = vmatprep.subr.mxu0 0.0
        %1440 = vmatpush2.msra.mxu0 0.0
        %1441 = vmatprep.subr.mxu0 0.0
        %1442 = vmatpush2.msra.mxu0 0.0
        %1443 = vmatprep.subr.mxu0 0.0
        %1444 = vmatpush2.msra.mxu0 0.0
        %1445 = vmatprep.subr.mxu0 0.0
        %1446 = vmatpush2.msra.mxu0 0.0
        %1447 = vmatprep.subr.mxu0 0.0
        %1448 = vmatpush2.msra.mxu0 0.0
        %1449 = vmatprep.subr.mxu0 0.0
        %1450 = vmatpush2.msra.mxu0 0.0
        %1451 = vmatprep.subr.mxu0 0.0
        %1452 = vmatpush2.msra.mxu0 0.0
        %1453 = vmatprep.subr.mxu0 0.0
        %1454 = vmatpush2.msra.mxu0 0.0
        %1455 = vmatprep.subr.mxu0 0.0
        %1456 = vmatpush2.msra.mxu0 0.0
        %1457 = vmatprep.subr.mxu0 0.0
        %1458 = vmatpush2.msra.mxu0 0.0
        %1459 = vmatprep.subr.mxu0 0.0
        %1460 = vmatpush2.msra.mxu0 0.0
        %1461 = vmatprep.subr.mxu0 0.0
        %1462 = vmatpush2.msra.mxu0 0.0
        %1463 = vmatprep.subr.mxu0 0.0
        %1464 = vmatpush2.msra.mxu0 0.0
        %1465 = vmatprep.mubr.f32.mxu0 0.0
        %1466 = vmatmul.mubr.f32.gmra.mxu0 %v1399
        %v1467 = vpop.f32.mrf.mxu0
        %v1468 = vadd.f32 0.0, %v1467
        %v1469 = vpop.f32.mrf.mxu0
        %1470 = vdwg.mxu0
        %v1471 = vrcp.pop %v1397
        %v1472 = vmul.f32 %v1468, %v1471
        %v1473 = vld [vmem:[#allocation14] sm:$0xff]
        %v1474 = vld [vmem:[#allocation14 + $0x8] sm:$0xff]
        %v1475 = vld [vmem:[#allocation14 + $0x10] sm:$0xff]
        %v1476 = vld [vmem:[#allocation14 + $0x18] sm:$0xff]
        %s1477 = scalar_lea.vmem %s7, 64
        %v1478 = vld [vmem:[%s1477] sm:$0xff]
        %v1479 = vld [vmem:[%s1477 + $0x8] sm:$0xff]
        %v1480 = vld [vmem:[%s1477 + $0x10] sm:$0xff]
        %v1481 = vld [vmem:[%s1477 + $0x18] sm:$0xff]
        %v1482 = vld [vmem:[%s1477 + $0x20] sm:$0xff]
        %v1483 = vld [vmem:[%s1477 + $0x28] sm:$0xff]
        %v1484 = vld [vmem:[%s1477 + $0x30] sm:$0xff]
        %v1485 = vld [vmem:[%s1477 + $0x38] sm:$0xff]
        %1486 = vmatprep.subr.mxu0 0.0
        %1487 = vmatpush1.msra.mxu0 0.0
        %1488 = vmatprep.subr.mxu0 0.0
        %1489 = vmatpush1.msra.mxu0 0.0
        %1490 = vmatprep.subr.mxu0 0.0
        %1491 = vmatpush1.msra.mxu0 0.0
        %1492 = vmatprep.subr.mxu0 0.0
        %1493 = vmatpush1.msra.mxu0 0.0
        %1494 = vmatprep.subr.mxu0 0.0
        %1495 = vmatpush1.msra.mxu0 0.0
        %1496 = vmatprep.subr.mxu0 0.0
        %1497 = vmatpush1.msra.mxu0 0.0
        %1498 = vmatprep.subr.mxu0 0.0
        %1499 = vmatpush1.msra.mxu0 0.0
        %1500 = vmatprep.subr.mxu0 0.0
        %1501 = vmatpush1.msra.mxu0 0.0
        %1502 = vmatprep.subr.mxu0 0.0
        %1503 = vmatpush1.msra.mxu0 %v1485
        %1504 = vmatprep.subr.mxu0 0.0
        %1505 = vmatpush1.msra.mxu0 %v1484
        %1506 = vmatprep.subr.mxu0 0.0
        %1507 = vmatpush1.msra.mxu0 %v1483
        %1508 = vmatprep.subr.mxu0 0.0
        %1509 = vmatpush1.msra.mxu0 %v1482
        %1510 = vmatprep.subr.mxu0 0.0
        %1511 = vmatpush1.msra.mxu0 %v1481
        %1512 = vmatprep.subr.mxu0 0.0
        %1513 = vmatpush1.msra.mxu0 %v1480
        %1514 = vmatprep.subr.mxu0 0.0
        %1515 = vmatpush1.msra.mxu0 %v1479
        %1516 = vmatprep.subr.mxu0 0.0
        %1517 = vmatpush1.msra.mxu0 %v1478
        %1518 = vmatprep.subr.mxu0 0.0
        %1519 = vmatpush2.msra.mxu0 0.0
        %1520 = vmatprep.subr.mxu0 0.0
        %1521 = vmatpush2.msra.mxu0 0.0
        %1522 = vmatprep.subr.mxu0 0.0
        %1523 = vmatpush2.msra.mxu0 0.0
        %1524 = vmatprep.subr.mxu0 0.0
        %1525 = vmatpush2.msra.mxu0 0.0
        %1526 = vmatprep.subr.mxu0 0.0
        %1527 = vmatpush2.msra.mxu0 0.0
        %1528 = vmatprep.subr.mxu0 0.0
        %1529 = vmatpush2.msra.mxu0 0.0
        %1530 = vmatprep.subr.mxu0 0.0
        %1531 = vmatpush2.msra.mxu0 0.0
        %1532 = vmatprep.subr.mxu0 0.0
        %1533 = vmatpush2.msra.mxu0 0.0
        %1534 = vmatprep.subr.mxu0 0.0
        %1535 = vmatpush2.msra.mxu0 0.0
        %1536 = vmatprep.subr.mxu0 0.0
        %1537 = vmatpush2.msra.mxu0 0.0
        %1538 = vmatprep.subr.mxu0 0.0
        %1539 = vmatpush2.msra.mxu0 0.0
        %1540 = vmatprep.subr.mxu0 0.0
        %1541 = vmatpush2.msra.mxu0 0.0
        %1542 = vmatprep.subr.mxu0 0.0
        %1543 = vmatpush2.msra.mxu0 0.0
        %1544 = vmatprep.subr.mxu0 0.0
        %1545 = vmatpush2.msra.mxu0 0.0
        %1546 = vmatprep.subr.mxu0 0.0
        %1547 = vmatpush2.msra.mxu0 0.0
        %1548 = vmatprep.subr.mxu0 0.0
        %1549 = vmatpush2.msra.mxu0 0.0
        %1550 = vmatprep.mubr.f32.mxu0 0.0
        %1551 = vmatmul.mubr.f32.gmra.mxu0 %v1165
        %v1552 = vpop.f32.mrf.mxu0
        %v1553 = vadd.f32 0.0, %v1552
        %v1554 = vpop.f32.mrf.mxu0
        %1555 = vdwg.mxu0
        %v1557 = vsel %vm1127, %v1553, 0
        %1559 = vmatprep.subr.mxu0 0.0
        %1560 = vmatpush1.xpose.msra.mxu0 0.0
        %1561 = vmatprep.subr.mxu0 0.0
        %1562 = vmatpush1.xpose.msra.mxu0 0.0
        %1563 = vmatprep.subr.mxu0 0.0
        %1564 = vmatpush1.xpose.msra.mxu0 0.0
        %1565 = vmatprep.subr.mxu0 0.0
        %1566 = vmatpush1.xpose.msra.mxu0 0.0
        %1567 = vmatprep.subr.mxu0 0.0
        %1568 = vmatpush1.xpose.msra.mxu0 0.0
        %1569 = vmatprep.subr.mxu0 0.0
        %1570 = vmatpush1.xpose.msra.mxu0 0.0
        %1571 = vmatprep.subr.mxu0 0.0
        %1572 = vmatpush1.xpose.msra.mxu0 0.0
        %1573 = vmatprep.subr.mxu0 0.0
        %1574 = vmatpush1.xpose.msra.mxu0 0.0
        %1575 = vmatprep.subr.mxu0 0.0
        %1576 = vmatpush1.xpose.msra.mxu0 0.0
        %1577 = vmatprep.subr.mxu0 0.0
        %1578 = vmatpush1.xpose.msra.mxu0 0.0
        %1579 = vmatprep.subr.mxu0 0.0
        %1580 = vmatpush1.xpose.msra.mxu0 0.0
        %1581 = vmatprep.subr.mxu0 0.0
        %1582 = vmatpush1.xpose.msra.mxu0 0.0
        %1583 = vmatprep.subr.mxu0 0.0
        %1584 = vmatpush1.xpose.msra.mxu0 0.0
        %1585 = vmatprep.subr.mxu0 0.0
        %1586 = vmatpush1.xpose.msra.mxu0 0.0
        %1587 = vmatprep.subr.mxu0 0.0
        %1588 = vmatpush1.xpose.msra.mxu0 0.0
        %1589 = vmatprep.subr.mxu0 0.0
        %1590 = vmatpush1.xpose.msra.mxu0 %v1165
        %1591 = vmatprep.subr.mxu0 0.0
        %1592 = vmatpush2.xpose.msra.mxu0 0.0
        %1593 = vmatprep.subr.mxu0 0.0
        %1594 = vmatpush2.xpose.msra.mxu0 0.0
        %1595 = vmatprep.subr.mxu0 0.0
        %1596 = vmatpush2.xpose.msra.mxu0 0.0
        %1597 = vmatprep.subr.mxu0 0.0
        %1598 = vmatpush2.xpose.msra.mxu0 0.0
        %1599 = vmatprep.subr.mxu0 0.0
        %1600 = vmatpush2.xpose.msra.mxu0 0.0
        %1601 = vmatprep.subr.mxu0 0.0
        %1602 = vmatpush2.xpose.msra.mxu0 0.0
        %1603 = vmatprep.subr.mxu0 0.0
        %1604 = vmatpush2.xpose.msra.mxu0 0.0
        %1605 = vmatprep.subr.mxu0 0.0
        %1606 = vmatpush2.xpose.msra.mxu0 0.0
        %1607 = vmatprep.subr.mxu0 0.0
        %1608 = vmatpush2.xpose.msra.mxu0 0.0
        %1609 = vmatprep.subr.mxu0 0.0
        %1610 = vmatpush2.xpose.msra.mxu0 0.0
        %1611 = vmatprep.subr.mxu0 0.0
        %1612 = vmatpush2.xpose.msra.mxu0 0.0
        %1613 = vmatprep.subr.mxu0 0.0
        %1614 = vmatpush2.xpose.msra.mxu0 0.0
        %1615 = vmatprep.subr.mxu0 0.0
        %1616 = vmatpush2.xpose.msra.mxu0 0.0
        %1617 = vmatprep.subr.mxu0 0.0
        %1618 = vmatpush2.xpose.msra.mxu0 0.0
        %1619 = vmatprep.subr.mxu0 0.0
        %1620 = vmatpush2.xpose.msra.mxu0 0.0
        %1621 = vmatprep.subr.mxu0 0.0
        %1622 = vmatpush2.xpose.msra.mxu0 0.0
        %1623 = vmatprep.mubr.f32.mxu0 0.0
        %1624 = vmatmul.mubr.f32.gmra.mxu0 %v1557
        %v1625 = vpop.f32.mrf.mxu0
        %v1626 = vadd.f32 0.0, %v1625
        %v1627 = vpop.f32.mrf.mxu0
        %1628 = vdwg.mxu0
        %v1629 = vsel %vm1388, %v1626, -inf
        %1630 = vmax.xlane.f32.xlu0 %v1629
        %v1631 = vpop.xlane.xlu0 %1630
        %v1632 = vsub.f32 %v1626, %v1631
        %v1633 = vmul.f32 %v1632, 1.442695
        %v1634 = vpow.pop %v1633
        %v1635 = vsel %vm1388, %v1634, 0.0
        %1636 = vadd.xlane.f32.xlu0 %v1635
        %v1637 = vpop.xlane.xlu0 %1636
        %v1639 = vsel %vm1388, %v1634, 0
        %1641 = vmatprep.subr.mxu0 0.0
        %1642 = vmatpush1.msra.mxu0 0.0
        %1643 = vmatprep.subr.mxu0 0.0
        %1644 = vmatpush1.msra.mxu0 0.0
        %1645 = vmatprep.subr.mxu0 0.0
        %1646 = vmatpush1.msra.mxu0 0.0
        %1647 = vmatprep.subr.mxu0 0.0
        %1648 = vmatpush1.msra.mxu0 0.0
        %1649 = vmatprep.subr.mxu0 0.0
        %1650 = vmatpush1.msra.mxu0 0.0
        %1651 = vmatprep.subr.mxu0 0.0
        %1652 = vmatpush1.msra.mxu0 0.0
        %1653 = vmatprep.subr.mxu0 0.0
        %1654 = vmatpush1.msra.mxu0 0.0
        %1655 = vmatprep.subr.mxu0 0.0
        %1656 = vmatpush1.msra.mxu0 0.0
        %1657 = vmatprep.subr.mxu0 0.0
        %1658 = vmatpush1.msra.mxu0 0.0
        %1659 = vmatprep.subr.mxu0 0.0
        %1660 = vmatpush1.msra.mxu0 0.0
        %1661 = vmatprep.subr.mxu0 0.0
        %1662 = vmatpush1.msra.mxu0 0.0
        %1663 = vmatprep.subr.mxu0 0.0
        %1664 = vmatpush1.msra.mxu0 0.0
        %1665 = vmatprep.subr.mxu0 0.0
        %1666 = vmatpush1.msra.mxu0 0.0
        %1667 = vmatprep.subr.mxu0 0.0
        %1668 = vmatpush1.msra.mxu0 0.0
        %1669 = vmatprep.subr.mxu0 0.0
        %1670 = vmatpush1.msra.mxu0 0.0
        %1671 = vmatprep.subr.mxu0 0.0
        %1672 = vmatpush1.msra.mxu0 %v1234
        %1673 = vmatprep.subr.mxu0 0.0
        %1674 = vmatpush2.msra.mxu0 0.0
        %1675 = vmatprep.subr.mxu0 0.0
        %1676 = vmatpush2.msra.mxu0 0.0
        %1677 = vmatprep.subr.mxu0 0.0
        %1678 = vmatpush2.msra.mxu0 0.0
        %1679 = vmatprep.subr.mxu0 0.0
        %1680 = vmatpush2.msra.mxu0 0.0
        %1681 = vmatprep.subr.mxu0 0.0
        %1682 = vmatpush2.msra.mxu0 0.0
        %1683 = vmatprep.subr.mxu0 0.0
        %1684 = vmatpush2.msra.mxu0 0.0
        %1685 = vmatprep.subr.mxu0 0.0
        %1686 = vmatpush2.msra.mxu0 0.0
        %1687 = vmatprep.subr.mxu0 0.0
        %1688 = vmatpush2.msra.mxu0 0.0
        %1689 = vmatprep.subr.mxu0 0.0
        %1690 = vmatpush2.msra.mxu0 0.0
        %1691 = vmatprep.subr.mxu0 0.0
        %1692 = vmatpush2.msra.mxu0 0.0
        %1693 = vmatprep.subr.mxu0 0.0
        %1694 = vmatpush2.msra.mxu0 0.0
        %1695 = vmatprep.subr.mxu0 0.0
        %1696 = vmatpush2.msra.mxu0 0.0
        %1697 = vmatprep.subr.mxu0 0.0
        %1698 = vmatpush2.msra.mxu0 0.0
        %1699 = vmatprep.subr.mxu0 0.0
        %1700 = vmatpush2.msra.mxu0 0.0
        %1701 = vmatprep.subr.mxu0 0.0
        %1702 = vmatpush2.msra.mxu0 0.0
        %1703 = vmatprep.subr.mxu0 0.0
        %1704 = vmatpush2.msra.mxu0 0.0
        %1705 = vmatprep.mubr.f32.mxu0 0.0
        %1706 = vmatmul.mubr.f32.gmra.mxu0 %v1639
        %v1707 = vpop.f32.mrf.mxu0
        %v1708 = vadd.f32 0.0, %v1707
        %v1709 = vpop.f32.mrf.mxu0
        %1710 = vdwg.mxu0
        %v1711 = vrcp.pop %v1637
        %v1712 = vmul.f32 %v1708, %v1711
        %s1713 = scalar_lea.vmem [#allocation14], 32
        %v1714 = vld [vmem:[%s1713] sm:$0xff]
        %v1715 = vld [vmem:[%s1713 + $0x8] sm:$0xff]
        %v1716 = vld [vmem:[%s1713 + $0x10] sm:$0xff]
        %v1717 = vld [vmem:[%s1713 + $0x18] sm:$0xff]
        %vm1718 = vcmask 261120
        %v1720 = vsel %vm1718, %v1712, 0
        %1722 = vmatprep.subr.mxu0 0.0
        %1723 = vmatpush1.msra.mxu0 0.0
        %1724 = vmatprep.subr.mxu0 0.0
        %1725 = vmatpush1.msra.mxu0 0.0
        %1726 = vmatprep.subr.mxu0 0.0
        %1727 = vmatpush1.msra.mxu0 0.0
        %1728 = vmatprep.subr.mxu0 0.0
        %1729 = vmatpush1.msra.mxu0 0.0
        %1730 = vmatprep.subr.mxu0 0.0
        %1731 = vmatpush1.msra.mxu0 0.0
        %1732 = vmatprep.subr.mxu0 0.0
        %1733 = vmatpush1.msra.mxu0 0.0
        %1734 = vmatprep.subr.mxu0 0.0
        %1735 = vmatpush1.msra.mxu0 0.0
        %1736 = vmatprep.subr.mxu0 0.0
        %1737 = vmatpush1.msra.mxu0 0.0
        %1738 = vmatprep.subr.mxu0 0.0
        %1739 = vmatpush1.msra.mxu0 0.0
        %1740 = vmatprep.subr.mxu0 0.0
        %1741 = vmatpush1.msra.mxu0 0.0
        %1742 = vmatprep.subr.mxu0 0.0
        %1743 = vmatpush1.msra.mxu0 0.0
        %1744 = vmatprep.subr.mxu0 0.0
        %1745 = vmatpush1.msra.mxu0 0.0
        %1746 = vmatprep.subr.mxu0 0.0
        %1747 = vmatpush1.msra.mxu0 %v1717
        %1748 = vmatprep.subr.mxu0 0.0
        %1749 = vmatpush1.msra.mxu0 %v1716
        %1750 = vmatprep.subr.mxu0 0.0
        %1751 = vmatpush1.msra.mxu0 %v1715
        %1752 = vmatprep.subr.mxu0 0.0
        %1753 = vmatpush1.msra.mxu0 %v1714
        %1754 = vmatprep.subr.mxu0 0.0
        %1755 = vmatpush2.msra.mxu0 0.0
        %1756 = vmatprep.subr.mxu0 0.0
        %1757 = vmatpush2.msra.mxu0 0.0
        %1758 = vmatprep.subr.mxu0 0.0
        %1759 = vmatpush2.msra.mxu0 0.0
        %1760 = vmatprep.subr.mxu0 0.0
        %1761 = vmatpush2.msra.mxu0 0.0
        %1762 = vmatprep.subr.mxu0 0.0
        %1763 = vmatpush2.msra.mxu0 0.0
        %1764 = vmatprep.subr.mxu0 0.0
        %1765 = vmatpush2.msra.mxu0 0.0
        %1766 = vmatprep.subr.mxu0 0.0
        %1767 = vmatpush2.msra.mxu0 0.0
        %1768 = vmatprep.subr.mxu0 0.0
        %1769 = vmatpush2.msra.mxu0 0.0
        %1770 = vmatprep.subr.mxu0 0.0
        %1771 = vmatpush2.msra.mxu0 0.0
        %1772 = vmatprep.subr.mxu0 0.0
        %1773 = vmatpush2.msra.mxu0 0.0
        %1774 = vmatprep.subr.mxu0 0.0
        %1775 = vmatpush2.msra.mxu0 0.0
        %1776 = vmatprep.subr.mxu0 0.0
        %1777 = vmatpush2.msra.mxu0 0.0
        %1778 = vmatprep.subr.mxu0 0.0
        %1779 = vmatpush2.msra.mxu0 0.0
        %1780 = vmatprep.subr.mxu0 0.0
        %1781 = vmatpush2.msra.mxu0 0.0
        %1782 = vmatprep.subr.mxu0 0.0
        %1783 = vmatpush2.msra.mxu0 0.0
        %1784 = vmatprep.subr.mxu0 0.0
        %1785 = vmatpush2.msra.mxu0 0.0
        %1786 = vmatprep.mubr.f32.mxu0 0.0
        %1787 = vmatmul.mubr.f32.gmra.mxu0 %v1720
        %v1788 = vpop.f32.mrf.mxu0
        %v1789 = vadd.f32 0.0, %v1788
        %v1790 = vpop.f32.mrf.mxu0
        %1791 = vdwg.mxu0
        %v1793 = vsel %vm1718, %v1472, 0
        %1795 = vmatprep.subr.mxu0 0.0
        %1796 = vmatpush1.msra.mxu0 0.0
        %1797 = vmatprep.subr.mxu0 0.0
        %1798 = vmatpush1.msra.mxu0 0.0
        %1799 = vmatprep.subr.mxu0 0.0
        %1800 = vmatpush1.msra.mxu0 0.0
        %1801 = vmatprep.subr.mxu0 0.0
        %1802 = vmatpush1.msra.mxu0 0.0
        %1803 = vmatprep.subr.mxu0 0.0
        %1804 = vmatpush1.msra.mxu0 0.0
        %1805 = vmatprep.subr.mxu0 0.0
        %1806 = vmatpush1.msra.mxu0 0.0
        %1807 = vmatprep.subr.mxu0 0.0
        %1808 = vmatpush1.msra.mxu0 0.0
        %1809 = vmatprep.subr.mxu0 0.0
        %1810 = vmatpush1.msra.mxu0 0.0
        %1811 = vmatprep.subr.mxu0 0.0
        %1812 = vmatpush1.msra.mxu0 0.0
        %1813 = vmatprep.subr.mxu0 0.0
        %1814 = vmatpush1.msra.mxu0 0.0
        %1815 = vmatprep.subr.mxu0 0.0
        %1816 = vmatpush1.msra.mxu0 0.0
        %1817 = vmatprep.subr.mxu0 0.0
        %1818 = vmatpush1.msra.mxu0 0.0
        %1819 = vmatprep.subr.mxu0 0.0
        %1820 = vmatpush1.msra.mxu0 %v1476
        %1821 = vmatprep.subr.mxu0 0.0
        %1822 = vmatpush1.msra.mxu0 %v1475
        %1823 = vmatprep.subr.mxu0 0.0
        %1824 = vmatpush1.msra.mxu0 %v1474
        %1825 = vmatprep.subr.mxu0 0.0
        %1826 = vmatpush1.msra.mxu0 %v1473
        %1827 = vmatprep.subr.mxu0 0.0
        %1828 = vmatpush2.msra.mxu0 0.0
        %1829 = vmatprep.subr.mxu0 0.0
        %1830 = vmatpush2.msra.mxu0 0.0
        %1831 = vmatprep.subr.mxu0 0.0
        %1832 = vmatpush2.msra.mxu0 0.0
        %1833 = vmatprep.subr.mxu0 0.0
        %1834 = vmatpush2.msra.mxu0 0.0
        %1835 = vmatprep.subr.mxu0 0.0
        %1836 = vmatpush2.msra.mxu0 0.0
        %1837 = vmatprep.subr.mxu0 0.0
        %1838 = vmatpush2.msra.mxu0 0.0
        %1839 = vmatprep.subr.mxu0 0.0
        %1840 = vmatpush2.msra.mxu0 0.0
        %1841 = vmatprep.subr.mxu0 0.0
        %1842 = vmatpush2.msra.mxu0 0.0
        %1843 = vmatprep.subr.mxu0 0.0
        %1844 = vmatpush2.msra.mxu0 0.0
        %1845 = vmatprep.subr.mxu0 0.0
        %1846 = vmatpush2.msra.mxu0 0.0
        %1847 = vmatprep.subr.mxu0 0.0
        %1848 = vmatpush2.msra.mxu0 0.0
        %1849 = vmatprep.subr.mxu0 0.0
        %1850 = vmatpush2.msra.mxu0 0.0
        %1851 = vmatprep.subr.mxu0 0.0
        %1852 = vmatpush2.msra.mxu0 0.0
        %1853 = vmatprep.subr.mxu0 0.0
        %1854 = vmatpush2.msra.mxu0 0.0
        %1855 = vmatprep.subr.mxu0 0.0
        %1856 = vmatpush2.msra.mxu0 0.0
        %1857 = vmatprep.subr.mxu0 0.0
        %1858 = vmatpush2.msra.mxu0 0.0
        %1859 = vmatprep.mubr.f32.mxu0 0.0
        %1860 = vmatmul.mubr.f32.gmra.mxu0 %v1793
        %v1861 = vpop.f32.mrf.mxu0
        %v1862 = vadd.f32 %v1789, %v1861
        %v1863 = vpop.f32.mrf.mxu0
        %1864 = vdwg.mxu0
        %s1865 = scalar_lea.vmem %s7, 128
        %v1866 = vld [vmem:[%s1865] sm:$0xff]
        %v1867 = vld [vmem:[%s1865 + $0x8] sm:$0xff]
        %v1868 = vld [vmem:[%s1865 + $0x10] sm:$0xff]
        %v1869 = vld [vmem:[%s1865 + $0x18] sm:$0xff]
        %v1870 = vld [vmem:[%s1865 + $0x20] sm:$0xff]
        %v1871 = vld [vmem:[%s1865 + $0x28] sm:$0xff]
        %v1872 = vld [vmem:[%s1865 + $0x30] sm:$0xff]
        %v1873 = vld [vmem:[%s1865 + $0x38] sm:$0xff]
        %1874 = vmatprep.subr.mxu0 0.0
        %1875 = vmatpush1.msra.mxu0 0.0
        %1876 = vmatprep.subr.mxu0 0.0
        %1877 = vmatpush1.msra.mxu0 0.0
        %1878 = vmatprep.subr.mxu0 0.0
        %1879 = vmatpush1.msra.mxu0 0.0
        %1880 = vmatprep.subr.mxu0 0.0
        %1881 = vmatpush1.msra.mxu0 0.0
        %1882 = vmatprep.subr.mxu0 0.0
        %1883 = vmatpush1.msra.mxu0 0.0
        %1884 = vmatprep.subr.mxu0 0.0
        %1885 = vmatpush1.msra.mxu0 0.0
        %1886 = vmatprep.subr.mxu0 0.0
        %1887 = vmatpush1.msra.mxu0 0.0
        %1888 = vmatprep.subr.mxu0 0.0
        %1889 = vmatpush1.msra.mxu0 0.0
        %1890 = vmatprep.subr.mxu0 0.0
        %1891 = vmatpush1.msra.mxu0 %v1873
        %1892 = vmatprep.subr.mxu0 0.0
        %1893 = vmatpush1.msra.mxu0 %v1872
        %1894 = vmatprep.subr.mxu0 0.0
        %1895 = vmatpush1.msra.mxu0 %v1871
        %1896 = vmatprep.subr.mxu0 0.0
        %1897 = vmatpush1.msra.mxu0 %v1870
        %1898 = vmatprep.subr.mxu0 0.0
        %1899 = vmatpush1.msra.mxu0 %v1869
        %1900 = vmatprep.subr.mxu0 0.0
        %1901 = vmatpush1.msra.mxu0 %v1868
        %1902 = vmatprep.subr.mxu0 0.0
        %1903 = vmatpush1.msra.mxu0 %v1867
        %1904 = vmatprep.subr.mxu0 0.0
        %1905 = vmatpush1.msra.mxu0 %v1866
        %1906 = vmatprep.subr.mxu0 0.0
        %1907 = vmatpush2.msra.mxu0 0.0
        %1908 = vmatprep.subr.mxu0 0.0
        %1909 = vmatpush2.msra.mxu0 0.0
        %1910 = vmatprep.subr.mxu0 0.0
        %1911 = vmatpush2.msra.mxu0 0.0
        %1912 = vmatprep.subr.mxu0 0.0
        %1913 = vmatpush2.msra.mxu0 0.0
        %1914 = vmatprep.subr.mxu0 0.0
        %1915 = vmatpush2.msra.mxu0 0.0
        %1916 = vmatprep.subr.mxu0 0.0
        %1917 = vmatpush2.msra.mxu0 0.0
        %1918 = vmatprep.subr.mxu0 0.0
        %1919 = vmatpush2.msra.mxu0 0.0
        %1920 = vmatprep.subr.mxu0 0.0
        %1921 = vmatpush2.msra.mxu0 0.0
        %1922 = vmatprep.subr.mxu0 0.0
        %1923 = vmatpush2.msra.mxu0 0.0
        %1924 = vmatprep.subr.mxu0 0.0
        %1925 = vmatpush2.msra.mxu0 0.0
        %1926 = vmatprep.subr.mxu0 0.0
        %1927 = vmatpush2.msra.mxu0 0.0
        %1928 = vmatprep.subr.mxu0 0.0
        %1929 = vmatpush2.msra.mxu0 0.0
        %1930 = vmatprep.subr.mxu0 0.0
        %1931 = vmatpush2.msra.mxu0 0.0
        %1932 = vmatprep.subr.mxu0 0.0
        %1933 = vmatpush2.msra.mxu0 0.0
        %1934 = vmatprep.subr.mxu0 0.0
        %1935 = vmatpush2.msra.mxu0 0.0
        %1936 = vmatprep.subr.mxu0 0.0
        %1937 = vmatpush2.msra.mxu0 0.0
        %1938 = vmatprep.mubr.f32.mxu0 0.0
        %1939 = vmatmul.mubr.f32.gmra.mxu0 %v1165
        %v1940 = vpop.f32.mrf.mxu0
        %v1941 = vadd.f32 0.0, %v1940
        %v1942 = vpop.f32.mrf.mxu0
        %1943 = vdwg.mxu0
        %v1945 = vsel %vm1127, %v1941, 0
        %1947 = vmatprep.subr.mxu0 0.0
        %1948 = vmatpush1.xpose.msra.mxu0 0.0
        %1949 = vmatprep.subr.mxu0 0.0
        %1950 = vmatpush1.xpose.msra.mxu0 0.0
        %1951 = vmatprep.subr.mxu0 0.0
        %1952 = vmatpush1.xpose.msra.mxu0 0.0
        %1953 = vmatprep.subr.mxu0 0.0
        %1954 = vmatpush1.xpose.msra.mxu0 0.0
        %1955 = vmatprep.subr.mxu0 0.0
        %1956 = vmatpush1.xpose.msra.mxu0 0.0
        %1957 = vmatprep.subr.mxu0 0.0
        %1958 = vmatpush1.xpose.msra.mxu0 0.0
        %1959 = vmatprep.subr.mxu0 0.0
        %1960 = vmatpush1.xpose.msra.mxu0 0.0
        %1961 = vmatprep.subr.mxu0 0.0
        %1962 = vmatpush1.xpose.msra.mxu0 0.0
        %1963 = vmatprep.subr.mxu0 0.0
        %1964 = vmatpush1.xpose.msra.mxu0 0.0
        %1965 = vmatprep.subr.mxu0 0.0
        %1966 = vmatpush1.xpose.msra.mxu0 0.0
        %1967 = vmatprep.subr.mxu0 0.0
        %1968 = vmatpush1.xpose.msra.mxu0 0.0
        %1969 = vmatprep.subr.mxu0 0.0
        %1970 = vmatpush1.xpose.msra.mxu0 0.0
        %1971 = vmatprep.subr.mxu0 0.0
        %1972 = vmatpush1.xpose.msra.mxu0 0.0
        %1973 = vmatprep.subr.mxu0 0.0
        %1974 = vmatpush1.xpose.msra.mxu0 0.0
        %1975 = vmatprep.subr.mxu0 0.0
        %1976 = vmatpush1.xpose.msra.mxu0 0.0
        %1977 = vmatprep.subr.mxu0 0.0
        %1978 = vmatpush1.xpose.msra.mxu0 %v1165
        %1979 = vmatprep.subr.mxu0 0.0
        %1980 = vmatpush2.xpose.msra.mxu0 0.0
        %1981 = vmatprep.subr.mxu0 0.0
        %1982 = vmatpush2.xpose.msra.mxu0 0.0
        %1983 = vmatprep.subr.mxu0 0.0
        %1984 = vmatpush2.xpose.msra.mxu0 0.0
        %1985 = vmatprep.subr.mxu0 0.0
        %1986 = vmatpush2.xpose.msra.mxu0 0.0
        %1987 = vmatprep.subr.mxu0 0.0
        %1988 = vmatpush2.xpose.msra.mxu0 0.0
        %1989 = vmatprep.subr.mxu0 0.0
        %1990 = vmatpush2.xpose.msra.mxu0 0.0
        %1991 = vmatprep.subr.mxu0 0.0
        %1992 = vmatpush2.xpose.msra.mxu0 0.0
        %1993 = vmatprep.subr.mxu0 0.0
        %1994 = vmatpush2.xpose.msra.mxu0 0.0
        %1995 = vmatprep.subr.mxu0 0.0
        %1996 = vmatpush2.xpose.msra.mxu0 0.0
        %1997 = vmatprep.subr.mxu0 0.0
        %1998 = vmatpush2.xpose.msra.mxu0 0.0
        %1999 = vmatprep.subr.mxu0 0.0
        %2000 = vmatpush2.xpose.msra.mxu0 0.0
        %2001 = vmatprep.subr.mxu0 0.0
        %2002 = vmatpush2.xpose.msra.mxu0 0.0
        %2003 = vmatprep.subr.mxu0 0.0
        %2004 = vmatpush2.xpose.msra.mxu0 0.0
        %2005 = vmatprep.subr.mxu0 0.0
        %2006 = vmatpush2.xpose.msra.mxu0 0.0
        %2007 = vmatprep.subr.mxu0 0.0
        %2008 = vmatpush2.xpose.msra.mxu0 0.0
        %2009 = vmatprep.subr.mxu0 0.0
        %2010 = vmatpush2.xpose.msra.mxu0 0.0
        %2011 = vmatprep.mubr.f32.mxu0 0.0
        %2012 = vmatmul.mubr.f32.gmra.mxu0 %v1945
        %v2013 = vpop.f32.mrf.mxu0
        %v2014 = vadd.f32 0.0, %v2013
        %v2015 = vpop.f32.mrf.mxu0
        %2016 = vdwg.mxu0
        %v2017 = vsel %vm1388, %v2014, -inf
        %2018 = vmax.xlane.f32.xlu0 %v2017
        %v2019 = vpop.xlane.xlu0 %2018
        %v2020 = vsub.f32 %v2014, %v2019
        %v2021 = vmul.f32 %v2020, 1.442695
        %v2022 = vpow.pop %v2021
        %v2023 = vsel %vm1388, %v2022, 0.0
        %2024 = vadd.xlane.f32.xlu0 %v2023
        %v2025 = vpop.xlane.xlu0 %2024
        %v2027 = vsel %vm1388, %v2022, 0
        %2029 = vmatprep.subr.mxu0 0.0
        %2030 = vmatpush1.msra.mxu0 0.0
        %2031 = vmatprep.subr.mxu0 0.0
        %2032 = vmatpush1.msra.mxu0 0.0
        %2033 = vmatprep.subr.mxu0 0.0
        %2034 = vmatpush1.msra.mxu0 0.0
        %2035 = vmatprep.subr.mxu0 0.0
        %2036 = vmatpush1.msra.mxu0 0.0
        %2037 = vmatprep.subr.mxu0 0.0
        %2038 = vmatpush1.msra.mxu0 0.0
        %2039 = vmatprep.subr.mxu0 0.0
        %2040 = vmatpush1.msra.mxu0 0.0
        %2041 = vmatprep.subr.mxu0 0.0
        %2042 = vmatpush1.msra.mxu0 0.0
        %2043 = vmatprep.subr.mxu0 0.0
        %2044 = vmatpush1.msra.mxu0 0.0
        %2045 = vmatprep.subr.mxu0 0.0
        %2046 = vmatpush1.msra.mxu0 0.0
        %2047 = vmatprep.subr.mxu0 0.0
        %2048 = vmatpush1.msra.mxu0 0.0
        %2049 = vmatprep.subr.mxu0 0.0
        %2050 = vmatpush1.msra.mxu0 0.0
        %2051 = vmatprep.subr.mxu0 0.0
        %2052 = vmatpush1.msra.mxu0 0.0
        %2053 = vmatprep.subr.mxu0 0.0
        %2054 = vmatpush1.msra.mxu0 0.0
        %2055 = vmatprep.subr.mxu0 0.0
        %2056 = vmatpush1.msra.mxu0 0.0
        %2057 = vmatprep.subr.mxu0 0.0
        %2058 = vmatpush1.msra.mxu0 0.0
        %2059 = vmatprep.subr.mxu0 0.0
        %2060 = vmatpush1.msra.mxu0 %v1234
        %2061 = vmatprep.subr.mxu0 0.0
        %2062 = vmatpush2.msra.mxu0 0.0
        %2063 = vmatprep.subr.mxu0 0.0
        %2064 = vmatpush2.msra.mxu0 0.0
        %2065 = vmatprep.subr.mxu0 0.0
        %2066 = vmatpush2.msra.mxu0 0.0
        %2067 = vmatprep.subr.mxu0 0.0
        %2068 = vmatpush2.msra.mxu0 0.0
        %2069 = vmatprep.subr.mxu0 0.0
        %2070 = vmatpush2.msra.mxu0 0.0
        %2071 = vmatprep.subr.mxu0 0.0
        %2072 = vmatpush2.msra.mxu0 0.0
        %2073 = vmatprep.subr.mxu0 0.0
        %2074 = vmatpush2.msra.mxu0 0.0
        %2075 = vmatprep.subr.mxu0 0.0
        %2076 = vmatpush2.msra.mxu0 0.0
        %2077 = vmatprep.subr.mxu0 0.0
        %2078 = vmatpush2.msra.mxu0 0.0
        %2079 = vmatprep.subr.mxu0 0.0
        %2080 = vmatpush2.msra.mxu0 0.0
        %2081 = vmatprep.subr.mxu0 0.0
        %2082 = vmatpush2.msra.mxu0 0.0
        %2083 = vmatprep.subr.mxu0 0.0
        %2084 = vmatpush2.msra.mxu0 0.0
        %2085 = vmatprep.subr.mxu0 0.0
        %2086 = vmatpush2.msra.mxu0 0.0
        %2087 = vmatprep.subr.mxu0 0.0
        %2088 = vmatpush2.msra.mxu0 0.0
        %2089 = vmatprep.subr.mxu0 0.0
        %2090 = vmatpush2.msra.mxu0 0.0
        %2091 = vmatprep.subr.mxu0 0.0
        %2092 = vmatpush2.msra.mxu0 0.0
        %2093 = vmatprep.mubr.f32.mxu0 0.0
        %2094 = vmatmul.mubr.f32.gmra.mxu0 %v2027
        %v2095 = vpop.f32.mrf.mxu0
        %v2096 = vadd.f32 0.0, %v2095
        %v2097 = vpop.f32.mrf.mxu0
        %2098 = vdwg.mxu0
        %v2099 = vrcp.pop %v2025
        %v2100 = vmul.f32 %v2096, %v2099
        %s2101 = scalar_lea.vmem [#allocation14], 64
        %v2102 = vld [vmem:[%s2101] sm:$0xff]
        %v2103 = vld [vmem:[%s2101 + $0x8] sm:$0xff]
        %v2104 = vld [vmem:[%s2101 + $0x10] sm:$0xff]
        %v2105 = vld [vmem:[%s2101 + $0x18] sm:$0xff]
        %v2107 = vsel %vm1718, %v2100, 0
        %2109 = vmatprep.subr.mxu0 0.0
        %2110 = vmatpush1.msra.mxu0 0.0
        %2111 = vmatprep.subr.mxu0 0.0
        %2112 = vmatpush1.msra.mxu0 0.0
        %2113 = vmatprep.subr.mxu0 0.0
        %2114 = vmatpush1.msra.mxu0 0.0
        %2115 = vmatprep.subr.mxu0 0.0
        %2116 = vmatpush1.msra.mxu0 0.0
        %2117 = vmatprep.subr.mxu0 0.0
        %2118 = vmatpush1.msra.mxu0 0.0
        %2119 = vmatprep.subr.mxu0 0.0
        %2120 = vmatpush1.msra.mxu0 0.0
        %2121 = vmatprep.subr.mxu0 0.0
        %2122 = vmatpush1.msra.mxu0 0.0
        %2123 = vmatprep.subr.mxu0 0.0
        %2124 = vmatpush1.msra.mxu0 0.0
        %2125 = vmatprep.subr.mxu0 0.0
        %2126 = vmatpush1.msra.mxu0 0.0
        %2127 = vmatprep.subr.mxu0 0.0
        %2128 = vmatpush1.msra.mxu0 0.0
        %2129 = vmatprep.subr.mxu0 0.0
        %2130 = vmatpush1.msra.mxu0 0.0
        %2131 = vmatprep.subr.mxu0 0.0
        %2132 = vmatpush1.msra.mxu0 0.0
        %2133 = vmatprep.subr.mxu0 0.0
        %2134 = vmatpush1.msra.mxu0 %v2105
        %2135 = vmatprep.subr.mxu0 0.0
        %2136 = vmatpush1.msra.mxu0 %v2104
        %2137 = vmatprep.subr.mxu0 0.0
        %2138 = vmatpush1.msra.mxu0 %v2103
        %2139 = vmatprep.subr.mxu0 0.0
        %2140 = vmatpush1.msra.mxu0 %v2102
        %2141 = vmatprep.subr.mxu0 0.0
        %2142 = vmatpush2.msra.mxu0 0.0
        %2143 = vmatprep.subr.mxu0 0.0
        %2144 = vmatpush2.msra.mxu0 0.0
        %2145 = vmatprep.subr.mxu0 0.0
        %2146 = vmatpush2.msra.mxu0 0.0
        %2147 = vmatprep.subr.mxu0 0.0
        %2148 = vmatpush2.msra.mxu0 0.0
        %2149 = vmatprep.subr.mxu0 0.0
        %2150 = vmatpush2.msra.mxu0 0.0
        %2151 = vmatprep.subr.mxu0 0.0
        %2152 = vmatpush2.msra.mxu0 0.0
        %2153 = vmatprep.subr.mxu0 0.0
        %2154 = vmatpush2.msra.mxu0 0.0
        %2155 = vmatprep.subr.mxu0 0.0
        %2156 = vmatpush2.msra.mxu0 0.0
        %2157 = vmatprep.subr.mxu0 0.0
        %2158 = vmatpush2.msra.mxu0 0.0
        %2159 = vmatprep.subr.mxu0 0.0
        %2160 = vmatpush2.msra.mxu0 0.0
        %2161 = vmatprep.subr.mxu0 0.0
        %2162 = vmatpush2.msra.mxu0 0.0
        %2163 = vmatprep.subr.mxu0 0.0
        %2164 = vmatpush2.msra.mxu0 0.0
        %2165 = vmatprep.subr.mxu0 0.0
        %2166 = vmatpush2.msra.mxu0 0.0
        %2167 = vmatprep.subr.mxu0 0.0
        %2168 = vmatpush2.msra.mxu0 0.0
        %2169 = vmatprep.subr.mxu0 0.0
        %2170 = vmatpush2.msra.mxu0 0.0
        %2171 = vmatprep.subr.mxu0 0.0
        %2172 = vmatpush2.msra.mxu0 0.0
        %2173 = vmatprep.mubr.f32.mxu0 0.0
        %2174 = vmatmul.mubr.f32.gmra.mxu0 %v2107
        %v2175 = vpop.f32.mrf.mxu0
        %v2176 = vadd.f32 0.0, %v2175
        %v2177 = vpop.f32.mrf.mxu0
        %2178 = vdwg.mxu0
        %v2179 = vadd.f32 %v1862, %v2176
        %s2180 = scalar_lea.vmem %s7, 192
        %v2181 = vld [vmem:[%s2180] sm:$0xff]
        %v2182 = vld [vmem:[%s2180 + $0x8] sm:$0xff]
        %v2183 = vld [vmem:[%s2180 + $0x10] sm:$0xff]
        %v2184 = vld [vmem:[%s2180 + $0x18] sm:$0xff]
        %v2185 = vld [vmem:[%s2180 + $0x20] sm:$0xff]
        %v2186 = vld [vmem:[%s2180 + $0x28] sm:$0xff]
        %v2187 = vld [vmem:[%s2180 + $0x30] sm:$0xff]
        %v2188 = vld [vmem:[%s2180 + $0x38] sm:$0xff]
        %2189 = vmatprep.subr.mxu0 0.0
        %2190 = vmatpush1.msra.mxu0 0.0
        %2191 = vmatprep.subr.mxu0 0.0
        %2192 = vmatpush1.msra.mxu0 0.0
        %2193 = vmatprep.subr.mxu0 0.0
        %2194 = vmatpush1.msra.mxu0 0.0
        %2195 = vmatprep.subr.mxu0 0.0
        %2196 = vmatpush1.msra.mxu0 0.0
        %2197 = vmatprep.subr.mxu0 0.0
        %2198 = vmatpush1.msra.mxu0 0.0
        %2199 = vmatprep.subr.mxu0 0.0
        %2200 = vmatpush1.msra.mxu0 0.0
        %2201 = vmatprep.subr.mxu0 0.0
        %2202 = vmatpush1.msra.mxu0 0.0
        %2203 = vmatprep.subr.mxu0 0.0
        %2204 = vmatpush1.msra.mxu0 0.0
        %2205 = vmatprep.subr.mxu0 0.0
        %2206 = vmatpush1.msra.mxu0 %v2188
        %2207 = vmatprep.subr.mxu0 0.0
        %2208 = vmatpush1.msra.mxu0 %v2187
        %2209 = vmatprep.subr.mxu0 0.0
        %2210 = vmatpush1.msra.mxu0 %v2186
        %2211 = vmatprep.subr.mxu0 0.0
        %2212 = vmatpush1.msra.mxu0 %v2185
        %2213 = vmatprep.subr.mxu0 0.0
        %2214 = vmatpush1.msra.mxu0 %v2184
        %2215 = vmatprep.subr.mxu0 0.0
        %2216 = vmatpush1.msra.mxu0 %v2183
        %2217 = vmatprep.subr.mxu0 0.0
        %2218 = vmatpush1.msra.mxu0 %v2182
        %2219 = vmatprep.subr.mxu0 0.0
        %2220 = vmatpush1.msra.mxu0 %v2181
        %2221 = vmatprep.subr.mxu0 0.0
        %2222 = vmatpush2.msra.mxu0 0.0
        %2223 = vmatprep.subr.mxu0 0.0
        %2224 = vmatpush2.msra.mxu0 0.0
        %2225 = vmatprep.subr.mxu0 0.0
        %2226 = vmatpush2.msra.mxu0 0.0
        %2227 = vmatprep.subr.mxu0 0.0
        %2228 = vmatpush2.msra.mxu0 0.0
        %2229 = vmatprep.subr.mxu0 0.0
        %2230 = vmatpush2.msra.mxu0 0.0
        %2231 = vmatprep.subr.mxu0 0.0
        %2232 = vmatpush2.msra.mxu0 0.0
        %2233 = vmatprep.subr.mxu0 0.0
        %2234 = vmatpush2.msra.mxu0 0.0
        %2235 = vmatprep.subr.mxu0 0.0
        %2236 = vmatpush2.msra.mxu0 0.0
        %2237 = vmatprep.subr.mxu0 0.0
        %2238 = vmatpush2.msra.mxu0 0.0
        %2239 = vmatprep.subr.mxu0 0.0
        %2240 = vmatpush2.msra.mxu0 0.0
        %2241 = vmatprep.subr.mxu0 0.0
        %2242 = vmatpush2.msra.mxu0 0.0
        %2243 = vmatprep.subr.mxu0 0.0
        %2244 = vmatpush2.msra.mxu0 0.0
        %2245 = vmatprep.subr.mxu0 0.0
        %2246 = vmatpush2.msra.mxu0 0.0
        %2247 = vmatprep.subr.mxu0 0.0
        %2248 = vmatpush2.msra.mxu0 0.0
        %2249 = vmatprep.subr.mxu0 0.0
        %2250 = vmatpush2.msra.mxu0 0.0
        %2251 = vmatprep.subr.mxu0 0.0
        %2252 = vmatpush2.msra.mxu0 0.0
        %2253 = vmatprep.mubr.f32.mxu0 0.0
        %2254 = vmatmul.mubr.f32.gmra.mxu0 %v1165
        %v2255 = vpop.f32.mrf.mxu0
        %v2256 = vadd.f32 0.0, %v2255
        %v2257 = vpop.f32.mrf.mxu0
        %2258 = vdwg.mxu0
        %v2260 = vsel %vm1127, %v2256, 0
        %2262 = vmatprep.subr.mxu0 0.0
        %2263 = vmatpush1.xpose.msra.mxu0 0.0
        %2264 = vmatprep.subr.mxu0 0.0
        %2265 = vmatpush1.xpose.msra.mxu0 0.0
        %2266 = vmatprep.subr.mxu0 0.0
        %2267 = vmatpush1.xpose.msra.mxu0 0.0
        %2268 = vmatprep.subr.mxu0 0.0
        %2269 = vmatpush1.xpose.msra.mxu0 0.0
        %2270 = vmatprep.subr.mxu0 0.0
        %2271 = vmatpush1.xpose.msra.mxu0 0.0
        %2272 = vmatprep.subr.mxu0 0.0
        %2273 = vmatpush1.xpose.msra.mxu0 0.0
        %2274 = vmatprep.subr.mxu0 0.0
        %2275 = vmatpush1.xpose.msra.mxu0 0.0
        %2276 = vmatprep.subr.mxu0 0.0
        %2277 = vmatpush1.xpose.msra.mxu0 0.0
        %2278 = vmatprep.subr.mxu0 0.0
        %2279 = vmatpush1.xpose.msra.mxu0 0.0
        %2280 = vmatprep.subr.mxu0 0.0
        %2281 = vmatpush1.xpose.msra.mxu0 0.0
        %2282 = vmatprep.subr.mxu0 0.0
        %2283 = vmatpush1.xpose.msra.mxu0 0.0
        %2284 = vmatprep.subr.mxu0 0.0
        %2285 = vmatpush1.xpose.msra.mxu0 0.0
        %2286 = vmatprep.subr.mxu0 0.0
        %2287 = vmatpush1.xpose.msra.mxu0 0.0
        %2288 = vmatprep.subr.mxu0 0.0
        %2289 = vmatpush1.xpose.msra.mxu0 0.0
        %2290 = vmatprep.subr.mxu0 0.0
        %2291 = vmatpush1.xpose.msra.mxu0 0.0
        %2292 = vmatprep.subr.mxu0 0.0
        %2293 = vmatpush1.xpose.msra.mxu0 %v1165
        %2294 = vmatprep.subr.mxu0 0.0
        %2295 = vmatpush2.xpose.msra.mxu0 0.0
        %2296 = vmatprep.subr.mxu0 0.0
        %2297 = vmatpush2.xpose.msra.mxu0 0.0
        %2298 = vmatprep.subr.mxu0 0.0
        %2299 = vmatpush2.xpose.msra.mxu0 0.0
        %2300 = vmatprep.subr.mxu0 0.0
        %2301 = vmatpush2.xpose.msra.mxu0 0.0
        %2302 = vmatprep.subr.mxu0 0.0
        %2303 = vmatpush2.xpose.msra.mxu0 0.0
        %2304 = vmatprep.subr.mxu0 0.0
        %2305 = vmatpush2.xpose.msra.mxu0 0.0
        %2306 = vmatprep.subr.mxu0 0.0
        %2307 = vmatpush2.xpose.msra.mxu0 0.0
        %2308 = vmatprep.subr.mxu0 0.0
        %2309 = vmatpush2.xpose.msra.mxu0 0.0
        %2310 = vmatprep.subr.mxu0 0.0
        %2311 = vmatpush2.xpose.msra.mxu0 0.0
        %2312 = vmatprep.subr.mxu0 0.0
        %2313 = vmatpush2.xpose.msra.mxu0 0.0
        %2314 = vmatprep.subr.mxu0 0.0
        %2315 = vmatpush2.xpose.msra.mxu0 0.0
        %2316 = vmatprep.subr.mxu0 0.0
        %2317 = vmatpush2.xpose.msra.mxu0 0.0
        %2318 = vmatprep.subr.mxu0 0.0
        %2319 = vmatpush2.xpose.msra.mxu0 0.0
        %2320 = vmatprep.subr.mxu0 0.0
        %2321 = vmatpush2.xpose.msra.mxu0 0.0
        %2322 = vmatprep.subr.mxu0 0.0
        %2323 = vmatpush2.xpose.msra.mxu0 0.0
        %2324 = vmatprep.subr.mxu0 0.0
        %2325 = vmatpush2.xpose.msra.mxu0 0.0
        %2326 = vmatprep.mubr.f32.mxu0 0.0
        %2327 = vmatmul.mubr.f32.gmra.mxu0 %v2260
        %v2328 = vpop.f32.mrf.mxu0
        %v2329 = vadd.f32 0.0, %v2328
        %v2330 = vpop.f32.mrf.mxu0
        %2331 = vdwg.mxu0
        %v2332 = vsel %vm1388, %v2329, -inf
        %2333 = vmax.xlane.f32.xlu0 %v2332
        %v2334 = vpop.xlane.xlu0 %2333
        %v2335 = vsub.f32 %v2329, %v2334
        %v2336 = vmul.f32 %v2335, 1.442695
        %v2337 = vpow.pop %v2336
        %v2338 = vsel %vm1388, %v2337, 0.0
        %2339 = vadd.xlane.f32.xlu0 %v2338
        %v2340 = vpop.xlane.xlu0 %2339
        %v2342 = vsel %vm1388, %v2337, 0
        %2344 = vmatprep.subr.mxu0 0.0
        %2345 = vmatpush1.msra.mxu0 0.0
        %2346 = vmatprep.subr.mxu0 0.0
        %2347 = vmatpush1.msra.mxu0 0.0
        %2348 = vmatprep.subr.mxu0 0.0
        %2349 = vmatpush1.msra.mxu0 0.0
        %2350 = vmatprep.subr.mxu0 0.0
        %2351 = vmatpush1.msra.mxu0 0.0
        %2352 = vmatprep.subr.mxu0 0.0
        %2353 = vmatpush1.msra.mxu0 0.0
        %2354 = vmatprep.subr.mxu0 0.0
        %2355 = vmatpush1.msra.mxu0 0.0
        %2356 = vmatprep.subr.mxu0 0.0
        %2357 = vmatpush1.msra.mxu0 0.0
        %2358 = vmatprep.subr.mxu0 0.0
        %2359 = vmatpush1.msra.mxu0 0.0
        %2360 = vmatprep.subr.mxu0 0.0
        %2361 = vmatpush1.msra.mxu0 0.0
        %2362 = vmatprep.subr.mxu0 0.0
        %2363 = vmatpush1.msra.mxu0 0.0
        %2364 = vmatprep.subr.mxu0 0.0
        %2365 = vmatpush1.msra.mxu0 0.0
        %2366 = vmatprep.subr.mxu0 0.0
        %2367 = vmatpush1.msra.mxu0 0.0
        %2368 = vmatprep.subr.mxu0 0.0
        %2369 = vmatpush1.msra.mxu0 0.0
        %2370 = vmatprep.subr.mxu0 0.0
        %2371 = vmatpush1.msra.mxu0 0.0
        %2372 = vmatprep.subr.mxu0 0.0
        %2373 = vmatpush1.msra.mxu0 0.0
        %2374 = vmatprep.subr.mxu0 0.0
        %2375 = vmatpush1.msra.mxu0 %v1234
        %2376 = vmatprep.subr.mxu0 0.0
        %2377 = vmatpush2.msra.mxu0 0.0
        %2378 = vmatprep.subr.mxu0 0.0
        %2379 = vmatpush2.msra.mxu0 0.0
        %2380 = vmatprep.subr.mxu0 0.0
        %2381 = vmatpush2.msra.mxu0 0.0
        %2382 = vmatprep.subr.mxu0 0.0
        %2383 = vmatpush2.msra.mxu0 0.0
        %2384 = vmatprep.subr.mxu0 0.0
        %2385 = vmatpush2.msra.mxu0 0.0
        %2386 = vmatprep.subr.mxu0 0.0
        %2387 = vmatpush2.msra.mxu0 0.0
        %2388 = vmatprep.subr.mxu0 0.0
        %2389 = vmatpush2.msra.mxu0 0.0
        %2390 = vmatprep.subr.mxu0 0.0
        %2391 = vmatpush2.msra.mxu0 0.0
        %2392 = vmatprep.subr.mxu0 0.0
        %2393 = vmatpush2.msra.mxu0 0.0
        %2394 = vmatprep.subr.mxu0 0.0
        %2395 = vmatpush2.msra.mxu0 0.0
        %2396 = vmatprep.subr.mxu0 0.0
        %2397 = vmatpush2.msra.mxu0 0.0
        %2398 = vmatprep.subr.mxu0 0.0
        %2399 = vmatpush2.msra.mxu0 0.0
        %2400 = vmatprep.subr.mxu0 0.0
        %2401 = vmatpush2.msra.mxu0 0.0
        %2402 = vmatprep.subr.mxu0 0.0
        %2403 = vmatpush2.msra.mxu0 0.0
        %2404 = vmatprep.subr.mxu0 0.0
        %2405 = vmatpush2.msra.mxu0 0.0
        %2406 = vmatprep.subr.mxu0 0.0
        %2407 = vmatpush2.msra.mxu0 0.0
        %2408 = vmatprep.mubr.f32.mxu0 0.0
        %2409 = vmatmul.mubr.f32.gmra.mxu0 %v2342
        %v2410 = vpop.f32.mrf.mxu0
        %v2411 = vadd.f32 0.0, %v2410
        %v2412 = vpop.f32.mrf.mxu0
        %2413 = vdwg.mxu0
        %v2414 = vrcp.pop %v2340
        %v2415 = vmul.f32 %v2411, %v2414
        %s2416 = scalar_lea.vmem [#allocation14], 96
        %v2417 = vld [vmem:[%s2416] sm:$0xff]
        %v2418 = vld [vmem:[%s2416 + $0x8] sm:$0xff]
        %v2419 = vld [vmem:[%s2416 + $0x10] sm:$0xff]
        %v2420 = vld [vmem:[%s2416 + $0x18] sm:$0xff]
        %v2422 = vsel %vm1718, %v2415, 0
        %2424 = vmatprep.subr.mxu0 0.0
        %2425 = vmatpush1.msra.mxu0 0.0
        %2426 = vmatprep.subr.mxu0 0.0
        %2427 = vmatpush1.msra.mxu0 0.0
        %2428 = vmatprep.subr.mxu0 0.0
        %2429 = vmatpush1.msra.mxu0 0.0
        %2430 = vmatprep.subr.mxu0 0.0
        %2431 = vmatpush1.msra.mxu0 0.0
        %2432 = vmatprep.subr.mxu0 0.0
        %2433 = vmatpush1.msra.mxu0 0.0
        %2434 = vmatprep.subr.mxu0 0.0
        %2435 = vmatpush1.msra.mxu0 0.0
        %2436 = vmatprep.subr.mxu0 0.0
        %2437 = vmatpush1.msra.mxu0 0.0
        %2438 = vmatprep.subr.mxu0 0.0
        %2439 = vmatpush1.msra.mxu0 0.0
        %2440 = vmatprep.subr.mxu0 0.0
        %2441 = vmatpush1.msra.mxu0 0.0
        %2442 = vmatprep.subr.mxu0 0.0
        %2443 = vmatpush1.msra.mxu0 0.0
        %2444 = vmatprep.subr.mxu0 0.0
        %2445 = vmatpush1.msra.mxu0 0.0
        %2446 = vmatprep.subr.mxu0 0.0
        %2447 = vmatpush1.msra.mxu0 0.0
        %2448 = vmatprep.subr.mxu0 0.0
        %2449 = vmatpush1.msra.mxu0 %v2420
        %2450 = vmatprep.subr.mxu0 0.0
        %2451 = vmatpush1.msra.mxu0 %v2419
        %2452 = vmatprep.subr.mxu0 0.0
        %2453 = vmatpush1.msra.mxu0 %v2418
        %2454 = vmatprep.subr.mxu0 0.0
        %2455 = vmatpush1.msra.mxu0 %v2417
        %2456 = vmatprep.subr.mxu0 0.0
        %2457 = vmatpush2.msra.mxu0 0.0
        %2458 = vmatprep.subr.mxu0 0.0
        %2459 = vmatpush2.msra.mxu0 0.0
        %2460 = vmatprep.subr.mxu0 0.0
        %2461 = vmatpush2.msra.mxu0 0.0
        %2462 = vmatprep.subr.mxu0 0.0
        %2463 = vmatpush2.msra.mxu0 0.0
        %2464 = vmatprep.subr.mxu0 0.0
        %2465 = vmatpush2.msra.mxu0 0.0
        %2466 = vmatprep.subr.mxu0 0.0
        %2467 = vmatpush2.msra.mxu0 0.0
        %2468 = vmatprep.subr.mxu0 0.0
        %2469 = vmatpush2.msra.mxu0 0.0
        %2470 = vmatprep.subr.mxu0 0.0
        %2471 = vmatpush2.msra.mxu0 0.0
        %2472 = vmatprep.subr.mxu0 0.0
        %2473 = vmatpush2.msra.mxu0 0.0
        %2474 = vmatprep.subr.mxu0 0.0
        %2475 = vmatpush2.msra.mxu0 0.0
        %2476 = vmatprep.subr.mxu0 0.0
        %2477 = vmatpush2.msra.mxu0 0.0
        %2478 = vmatprep.subr.mxu0 0.0
        %2479 = vmatpush2.msra.mxu0 0.0
        %2480 = vmatprep.subr.mxu0 0.0
        %2481 = vmatpush2.msra.mxu0 0.0
        %2482 = vmatprep.subr.mxu0 0.0
        %2483 = vmatpush2.msra.mxu0 0.0
        %2484 = vmatprep.subr.mxu0 0.0
        %2485 = vmatpush2.msra.mxu0 0.0
        %2486 = vmatprep.subr.mxu0 0.0
        %2487 = vmatpush2.msra.mxu0 0.0
        %2488 = vmatprep.mubr.f32.mxu0 0.0
        %2489 = vmatmul.mubr.f32.gmra.mxu0 %v2422
        %v2490 = vpop.f32.mrf.mxu0
        %v2491 = vadd.f32 0.0, %v2490
        %v2492 = vpop.f32.mrf.mxu0
        %2493 = vdwg.mxu0
        %v2494 = vadd.f32 %v2179, %v2491
        %v2495 = vld [vmem:[#allocation16] sm:$0x1]
        %v2497 = vlaneseq
        %v2498 = vshrl.u32 %v2497, 7
        %v2499 = vsub.s32 0, %v2498
        %v2500 = vrot.slane %v2495, %v2499
        %v2502 = vadd.f32 %v2494, %v2500
        %v2503 = vadd.f32 %v2502, %v1124
        %v2504 = vld [vmem:[#allocation17] sm:$0x1]
        %v2505 = vld [vmem:[#allocation19] sm:$0x1]
        %v2506 = vsel %vm1127, %v2503, 0.0
        %2507 = vadd.xlane.f32.xlu0 %v2506
        %v2508 = vpop.xlane.xlu0 %2507
        %v2509 = vmul.f32 %v2508, %v1131
        %v2510 = vsub.f32 %v2503, %v2509
        %v2511 = vmul.f32 %v2510, %v2510
        %v2512 = vsel %vm1127, %v2511, 0.0
        %2513 = vadd.xlane.f32.xlu0 %v2512
        %v2514 = vpop.xlane.xlu0 %2513
        %v2515 = vmul.f32 %v2514, %v1131
        %v2516 = vadd.f32 %v2515, 1e-05
        %v2517 = vrsqrt.pop %v2516
        %v2518 = vmul.f32 %v2510, %v2517
        %v2520 = vlaneseq
        %v2521 = vshrl.u32 %v2520, 7
        %v2522 = vsub.s32 0, %v2521
        %v2523 = vrot.slane %v2504, %v2522
        %v2525 = vmul.f32 %v2518, %v2523
        %v2527 = vlaneseq
        %v2528 = vshrl.u32 %v2527, 7
        %v2529 = vsub.s32 0, %v2528
        %v2530 = vrot.slane %v2505, %v2529
        %v2532 = vadd.f32 %v2525, %v2530
        %v2533 = vld [vmem:[%s13] sm:$0xff]
        %v2534 = vld [vmem:[%s13 + $0x8] sm:$0xff]
        %v2535 = vld [vmem:[%s13 + $0x10] sm:$0xff]
        %v2536 = vld [vmem:[%s13 + $0x18] sm:$0xff]
        %v2537 = vld [vmem:[%s13 + $0x20] sm:$0xff]
        %v2538 = vld [vmem:[%s13 + $0x28] sm:$0xff]
        %v2539 = vld [vmem:[%s13 + $0x30] sm:$0xff]
        %v2540 = vld [vmem:[%s13 + $0x38] sm:$0xff]
        %v2541 = vld [vmem:[#allocation20] sm:$0x1]
        %v2543 = vlaneseq
        %v2544 = vshrl.u32 %v2543, 7
        %v2545 = vsub.s32 0, %v2544
        %v2546 = vrot.slane %v2541, %v2545
        %v2549 = vsel %vm1127, %v2532, 0
        %2551 = vmatprep.subr.mxu0 0.0
        %2552 = vmatpush1.msra.mxu0 0.0
        %2553 = vmatprep.subr.mxu0 0.0
        %2554 = vmatpush1.msra.mxu0 0.0
        %2555 = vmatprep.subr.mxu0 0.0
        %2556 = vmatpush1.msra.mxu0 0.0
        %2557 = vmatprep.subr.mxu0 0.0
        %2558 = vmatpush1.msra.mxu0 0.0
        %2559 = vmatprep.subr.mxu0 0.0
        %2560 = vmatpush1.msra.mxu0 0.0
        %2561 = vmatprep.subr.mxu0 0.0
        %2562 = vmatpush1.msra.mxu0 0.0
        %2563 = vmatprep.subr.mxu0 0.0
        %2564 = vmatpush1.msra.mxu0 0.0
        %2565 = vmatprep.subr.mxu0 0.0
        %2566 = vmatpush1.msra.mxu0 0.0
        %2567 = vmatprep.subr.mxu0 0.0
        %2568 = vmatpush1.msra.mxu0 %v2540
        %2569 = vmatprep.subr.mxu0 0.0
        %2570 = vmatpush1.msra.mxu0 %v2539
        %2571 = vmatprep.subr.mxu0 0.0
        %2572 = vmatpush1.msra.mxu0 %v2538
        %2573 = vmatprep.subr.mxu0 0.0
        %2574 = vmatpush1.msra.mxu0 %v2537
        %2575 = vmatprep.subr.mxu0 0.0
        %2576 = vmatpush1.msra.mxu0 %v2536
        %2577 = vmatprep.subr.mxu0 0.0
        %2578 = vmatpush1.msra.mxu0 %v2535
        %2579 = vmatprep.subr.mxu0 0.0
        %2580 = vmatpush1.msra.mxu0 %v2534
        %2581 = vmatprep.subr.mxu0 0.0
        %2582 = vmatpush1.msra.mxu0 %v2533
        %2583 = vmatprep.subr.mxu0 0.0
        %2584 = vmatpush2.msra.mxu0 0.0
        %2585 = vmatprep.subr.mxu0 0.0
        %2586 = vmatpush2.msra.mxu0 0.0
        %2587 = vmatprep.subr.mxu0 0.0
        %2588 = vmatpush2.msra.mxu0 0.0
        %2589 = vmatprep.subr.mxu0 0.0
        %2590 = vmatpush2.msra.mxu0 0.0
        %2591 = vmatprep.subr.mxu0 0.0
        %2592 = vmatpush2.msra.mxu0 0.0
        %2593 = vmatprep.subr.mxu0 0.0
        %2594 = vmatpush2.msra.mxu0 0.0
        %2595 = vmatprep.subr.mxu0 0.0
        %2596 = vmatpush2.msra.mxu0 0.0
        %2597 = vmatprep.subr.mxu0 0.0
        %2598 = vmatpush2.msra.mxu0 0.0
        %2599 = vmatprep.subr.mxu0 0.0
        %2600 = vmatpush2.msra.mxu0 0.0
        %2601 = vmatprep.subr.mxu0 0.0
        %2602 = vmatpush2.msra.mxu0 0.0
        %2603 = vmatprep.subr.mxu0 0.0
        %2604 = vmatpush2.msra.mxu0 0.0
        %2605 = vmatprep.subr.mxu0 0.0
        %2606 = vmatpush2.msra.mxu0 0.0
        %2607 = vmatprep.subr.mxu0 0.0
        %2608 = vmatpush2.msra.mxu0 0.0
        %2609 = vmatprep.subr.mxu0 0.0
        %2610 = vmatpush2.msra.mxu0 0.0
        %2611 = vmatprep.subr.mxu0 0.0
        %2612 = vmatpush2.msra.mxu0 0.0
        %2613 = vmatprep.subr.mxu0 0.0
        %2614 = vmatpush2.msra.mxu0 0.0
        %2615 = vmatprep.mubr.f32.mxu0 0.0
        %2616 = vmatmul.mubr.f32.gmra.mxu0 %v2549
        %v2617 = vpop.f32.mrf.mxu0
        %v2618 = vadd.f32 %v2546, %v2617
        %v2619 = vpop.f32.mrf.mxu0
        %2620 = vdwg.mxu0
        %v2621 = vmul.f32 %v2618, %v2618
        %v2622 = vmul.f32 %v2618, %v2621
        %v2623 = vmul.f32 %v2622, 0.044715
        %v2624 = vadd.f32 %v2618, %v2623
        %v2625 = vmul.f32 %v2624, 0.7978846
        %v2626 = vtanh.pop %v2625
        %v2627 = vadd.f32 %v2626, 1.0
        %v2628 = vmul.f32 %v2627, 0.5
        %v2629 = vmul.f32 %v2618, %v2628
        %v2630 = vld [vmem:[#allocation22] sm:$0xff]
        %v2631 = vld [vmem:[#allocation22 + $0x8] sm:$0xff]
        %v2632 = vld [vmem:[#allocation22 + $0x10] sm:$0xff]
        %v2633 = vld [vmem:[#allocation22 + $0x18] sm:$0xff]
        %v2634 = vld [vmem:[#allocation23] sm:$0x1]
        %v2636 = vlaneseq
        %v2637 = vshrl.u32 %v2636, 7
        %v2638 = vsub.s32 0, %v2637
        %v2639 = vrot.slane %v2634, %v2638
        %v2642 = vsel %vm1718, %v2629, 0
        %2644 = vmatprep.subr.mxu0 0.0
        %2645 = vmatpush1.msra.mxu0 0.0
        %2646 = vmatprep.subr.mxu0 0.0
        %2647 = vmatpush1.msra.mxu0 0.0
        %2648 = vmatprep.subr.mxu0 0.0
        %2649 = vmatpush1.msra.mxu0 0.0
        %2650 = vmatprep.subr.mxu0 0.0
        %2651 = vmatpush1.msra.mxu0 0.0
        %2652 = vmatprep.subr.mxu0 0.0
        %2653 = vmatpush1.msra.mxu0 0.0
        %2654 = vmatprep.subr.mxu0 0.0
        %2655 = vmatpush1.msra.mxu0 0.0
        %2656 = vmatprep.subr.mxu0 0.0
        %2657 = vmatpush1.msra.mxu0 0.0
        %2658 = vmatprep.subr.mxu0 0.0
        %2659 = vmatpush1.msra.mxu0 0.0
        %2660 = vmatprep.subr.mxu0 0.0
        %2661 = vmatpush1.msra.mxu0 0.0
        %2662 = vmatprep.subr.mxu0 0.0
        %2663 = vmatpush1.msra.mxu0 0.0
        %2664 = vmatprep.subr.mxu0 0.0
        %2665 = vmatpush1.msra.mxu0 0.0
        %2666 = vmatprep.subr.mxu0 0.0
        %2667 = vmatpush1.msra.mxu0 0.0
        %2668 = vmatprep.subr.mxu0 0.0
        %2669 = vmatpush1.msra.mxu0 %v2633
        %2670 = vmatprep.subr.mxu0 0.0
        %2671 = vmatpush1.msra.mxu0 %v2632
        %2672 = vmatprep.subr.mxu0 0.0
        %2673 = vmatpush1.msra.mxu0 %v2631
        %2674 = vmatprep.subr.mxu0 0.0
        %2675 = vmatpush1.msra.mxu0 %v2630
        %2676 = vmatprep.subr.mxu0 0.0
        %2677 = vmatpush2.msra.mxu0 0.0
        %2678 = vmatprep.subr.mxu0 0.0
        %2679 = vmatpush2.msra.mxu0 0.0
        %2680 = vmatprep.subr.mxu0 0.0
        %2681 = vmatpush2.msra.mxu0 0.0
        %2682 = vmatprep.subr.mxu0 0.0
        %2683 = vmatpush2.msra.mxu0 0.0
        %2684 = vmatprep.subr.mxu0 0.0
        %2685 = vmatpush2.msra.mxu0 0.0
        %2686 = vmatprep.subr.mxu0 0.0
        %2687 = vmatpush2.msra.mxu0 0.0
        %2688 = vmatprep.subr.mxu0 0.0
        %2689 = vmatpush2.msra.mxu0 0.0
        %2690 = vmatprep.subr.mxu0 0.0
        %2691 = vmatpush2.msra.mxu0 0.0
        %2692 = vmatprep.subr.mxu0 0.0
        %2693 = vmatpush2.msra.mxu0 0.0
        %2694 = vmatprep.subr.mxu0 0.0
        %2695 = vmatpush2.msra.mxu0 0.0
        %2696 = vmatprep.subr.mxu0 0.0
        %2697 = vmatpush2.msra.mxu0 0.0
        %2698 = vmatprep.subr.mxu0 0.0
        %2699 = vmatpush2.msra.mxu0 0.0
        %2700 = vmatprep.subr.mxu0 0.0
        %2701 = vmatpush2.msra.mxu0 0.0
        %2702 = vmatprep.subr.mxu0 0.0
        %2703 = vmatpush2.msra.mxu0 0.0
        %2704 = vmatprep.subr.mxu0 0.0
        %2705 = vmatpush2.msra.mxu0 0.0
        %2706 = vmatprep.subr.mxu0 0.0
        %2707 = vmatpush2.msra.mxu0 0.0
        %2708 = vmatprep.mubr.f32.mxu0 0.0
        %2709 = vmatmul.mubr.f32.gmra.mxu0 %v2642
        %v2710 = vpop.f32.mrf.mxu0
        %v2711 = vadd.f32 %v2639, %v2710
        %v2712 = vpop.f32.mrf.mxu0
        %2713 = vdwg.mxu0
        %v2714 = vadd.f32 %v2711, %v2503
        %v2715 = vadd.f32 %v2714, 0.0
        %s2716 = scalar_lea.vmem %s836, 8 [#allocation5]
        %v2717 = vld [vmem:[%s2716] sm:$0xff]
        %v2719 = vsel %vm974, %v2717, 0
        %2721 = vmatprep.subr.mxu0 0.0
        %2722 = vmatpush1.msra.mxu0 0.0
        %2723 = vmatprep.subr.mxu0 0.0
        %2724 = vmatpush1.msra.mxu0 0.0
        %2725 = vmatprep.subr.mxu0 0.0
        %2726 = vmatpush1.msra.mxu0 0.0
        %2727 = vmatprep.subr.mxu0 0.0
        %2728 = vmatpush1.msra.mxu0 0.0
        %2729 = vmatprep.subr.mxu0 0.0
        %2730 = vmatpush1.msra.mxu0 0.0
        %2731 = vmatprep.subr.mxu0 0.0
        %2732 = vmatpush1.msra.mxu0 0.0
        %2733 = vmatprep.subr.mxu0 0.0
        %2734 = vmatpush1.msra.mxu0 0.0
        %2735 = vmatprep.subr.mxu0 0.0
        %2736 = vmatpush1.msra.mxu0 0.0
        %2737 = vmatprep.subr.mxu0 0.0
        %2738 = vmatpush1.msra.mxu0 0.0
        %2739 = vmatprep.subr.mxu0 0.0
        %2740 = vmatpush1.msra.mxu0 0.0
        %2741 = vmatprep.subr.mxu0 0.0
        %2742 = vmatpush1.msra.mxu0 0.0
        %2743 = vmatprep.subr.mxu0 0.0
        %2744 = vmatpush1.msra.mxu0 0.0
        %2745 = vmatprep.subr.mxu0 0.0
        %2746 = vmatpush1.msra.mxu0 0.0
        %2747 = vmatprep.subr.mxu0 0.0
        %2748 = vmatpush1.msra.mxu0 0.0
        %2749 = vmatprep.subr.mxu0 0.0
        %2750 = vmatpush1.msra.mxu0 %v1050
        %2751 = vmatprep.subr.mxu0 0.0
        %2752 = vmatpush1.msra.mxu0 %v1049
        %2753 = vmatprep.subr.mxu0 0.0
        %2754 = vmatpush2.msra.mxu0 0.0
        %2755 = vmatprep.subr.mxu0 0.0
        %2756 = vmatpush2.msra.mxu0 0.0
        %2757 = vmatprep.subr.mxu0 0.0
        %2758 = vmatpush2.msra.mxu0 0.0
        %2759 = vmatprep.subr.mxu0 0.0
        %2760 = vmatpush2.msra.mxu0 0.0
        %2761 = vmatprep.subr.mxu0 0.0
        %2762 = vmatpush2.msra.mxu0 0.0
        %2763 = vmatprep.subr.mxu0 0.0
        %2764 = vmatpush2.msra.mxu0 0.0
        %2765 = vmatprep.subr.mxu0 0.0
        %2766 = vmatpush2.msra.mxu0 0.0
        %2767 = vmatprep.subr.mxu0 0.0
        %2768 = vmatpush2.msra.mxu0 0.0
        %2769 = vmatprep.subr.mxu0 0.0
        %2770 = vmatpush2.msra.mxu0 0.0
        %2771 = vmatprep.subr.mxu0 0.0
        %2772 = vmatpush2.msra.mxu0 0.0
        %2773 = vmatprep.subr.mxu0 0.0
        %2774 = vmatpush2.msra.mxu0 0.0
        %2775 = vmatprep.subr.mxu0 0.0
        %2776 = vmatpush2.msra.mxu0 0.0
        %2777 = vmatprep.subr.mxu0 0.0
        %2778 = vmatpush2.msra.mxu0 0.0
        %2779 = vmatprep.subr.mxu0 0.0
        %2780 = vmatpush2.msra.mxu0 0.0
        %2781 = vmatprep.subr.mxu0 0.0
        %2782 = vmatpush2.msra.mxu0 0.0
        %2783 = vmatprep.subr.mxu0 0.0
        %2784 = vmatpush2.msra.mxu0 0.0
        %2785 = vmatprep.mubr.f32.mxu0 0.0
        %2786 = vmatmul.mubr.f32.gmra.mxu0 %v2719
        %v2787 = vpop.f32.mrf.mxu0
        %v2788 = vadd.f32 0.0, %v2787
        %v2789 = vpop.f32.mrf.mxu0
        %2790 = vdwg.mxu0
        %v2791 = vadd.f32 %v1045, %v2788
        %v2792 = vsel %vm1127, %v2791, 0.0
        %2793 = vadd.xlane.f32.xlu0 %v2792
        %v2794 = vpop.xlane.xlu0 %2793
        %v2795 = vmul.f32 %v2794, %v1131
        %v2796 = vsub.f32 %v2791, %v2795
        %v2797 = vmul.f32 %v2796, %v2796
        %v2798 = vsel %vm1127, %v2797, 0.0
        %2799 = vadd.xlane.f32.xlu0 %v2798
        %v2800 = vpop.xlane.xlu0 %2799
        %v2801 = vmul.f32 %v2800, %v1131
        %v2802 = vadd.f32 %v2801, 1e-05
        %v2803 = vrsqrt.pop %v2802
        %v2804 = vmul.f32 %v2796, %v2803
        %v2805 = vmul.f32 %v2804, %v1146
        %v2806 = vadd.f32 %v2805, %v1153
        %v2808 = vsel %vm1127, %v2806, 0
        %2810 = vmatprep.subr.mxu0 0.0
        %2811 = vmatpush1.msra.mxu0 0.0
        %2812 = vmatprep.subr.mxu0 0.0
        %2813 = vmatpush1.msra.mxu0 0.0
        %2814 = vmatprep.subr.mxu0 0.0
        %2815 = vmatpush1.msra.mxu0 0.0
        %2816 = vmatprep.subr.mxu0 0.0
        %2817 = vmatpush1.msra.mxu0 0.0
        %2818 = vmatprep.subr.mxu0 0.0
        %2819 = vmatpush1.msra.mxu0 0.0
        %2820 = vmatprep.subr.mxu0 0.0
        %2821 = vmatpush1.msra.mxu0 0.0
        %2822 = vmatprep.subr.mxu0 0.0
        %2823 = vmatpush1.msra.mxu0 0.0
        %2824 = vmatprep.subr.mxu0 0.0
        %2825 = vmatpush1.msra.mxu0 0.0
        %2826 = vmatprep.subr.mxu0 0.0
        %2827 = vmatpush1.msra.mxu0 %v1163
        %2828 = vmatprep.subr.mxu0 0.0
        %2829 = vmatpush1.msra.mxu0 %v1162
        %2830 = vmatprep.subr.mxu0 0.0
        %2831 = vmatpush1.msra.mxu0 %v1161
        %2832 = vmatprep.subr.mxu0 0.0
        %2833 = vmatpush1.msra.mxu0 %v1160
        %2834 = vmatprep.subr.mxu0 0.0
        %2835 = vmatpush1.msra.mxu0 %v1159
        %2836 = vmatprep.subr.mxu0 0.0
        %2837 = vmatpush1.msra.mxu0 %v1158
        %2838 = vmatprep.subr.mxu0 0.0
        %2839 = vmatpush1.msra.mxu0 %v1157
        %2840 = vmatprep.subr.mxu0 0.0
        %2841 = vmatpush1.msra.mxu0 %v1156
        %2842 = vmatprep.subr.mxu0 0.0
        %2843 = vmatpush2.msra.mxu0 0.0
        %2844 = vmatprep.subr.mxu0 0.0
        %2845 = vmatpush2.msra.mxu0 0.0
        %2846 = vmatprep.subr.mxu0 0.0
        %2847 = vmatpush2.msra.mxu0 0.0
        %2848 = vmatprep.subr.mxu0 0.0
        %2849 = vmatpush2.msra.mxu0 0.0
        %2850 = vmatprep.subr.mxu0 0.0
        %2851 = vmatpush2.msra.mxu0 0.0
        %2852 = vmatprep.subr.mxu0 0.0
        %2853 = vmatpush2.msra.mxu0 0.0
        %2854 = vmatprep.subr.mxu0 0.0
        %2855 = vmatpush2.msra.mxu0 0.0
        %2856 = vmatprep.subr.mxu0 0.0
        %2857 = vmatpush2.msra.mxu0 0.0
        %2858 = vmatprep.subr.mxu0 0.0
        %2859 = vmatpush2.msra.mxu0 0.0
        %2860 = vmatprep.subr.mxu0 0.0
        %2861 = vmatpush2.msra.mxu0 0.0
        %2862 = vmatprep.subr.mxu0 0.0
        %2863 = vmatpush2.msra.mxu0 0.0
        %2864 = vmatprep.subr.mxu0 0.0
        %2865 = vmatpush2.msra.mxu0 0.0
        %2866 = vmatprep.subr.mxu0 0.0
        %2867 = vmatpush2.msra.mxu0 0.0
        %2868 = vmatprep.subr.mxu0 0.0
        %2869 = vmatpush2.msra.mxu0 0.0
        %2870 = vmatprep.subr.mxu0 0.0
        %2871 = vmatpush2.msra.mxu0 0.0
        %2872 = vmatprep.subr.mxu0 0.0
        %2873 = vmatpush2.msra.mxu0 0.0
        %2874 = vmatprep.mubr.f32.mxu0 0.0
        %2875 = vmatmul.mubr.f32.gmra.mxu0 %v2808
        %v2876 = vpop.f32.mrf.mxu0
        %v2877 = vadd.f32 0.0, %v2876
        %v2878 = vpop.f32.mrf.mxu0
        %2879 = vdwg.mxu0
        %2880 = vmatprep.subr.mxu0 0.0
        %2881 = vmatpush1.msra.mxu0 0.0
        %2882 = vmatprep.subr.mxu0 0.0
        %2883 = vmatpush1.msra.mxu0 0.0
        %2884 = vmatprep.subr.mxu0 0.0
        %2885 = vmatpush1.msra.mxu0 0.0
        %2886 = vmatprep.subr.mxu0 0.0
        %2887 = vmatpush1.msra.mxu0 0.0
        %2888 = vmatprep.subr.mxu0 0.0
        %2889 = vmatpush1.msra.mxu0 0.0
        %2890 = vmatprep.subr.mxu0 0.0
        %2891 = vmatpush1.msra.mxu0 0.0
        %2892 = vmatprep.subr.mxu0 0.0
        %2893 = vmatpush1.msra.mxu0 0.0
        %2894 = vmatprep.subr.mxu0 0.0
        %2895 = vmatpush1.msra.mxu0 0.0
        %2896 = vmatprep.subr.mxu0 0.0
        %2897 = vmatpush1.msra.mxu0 %v1244
        %2898 = vmatprep.subr.mxu0 0.0
        %2899 = vmatpush1.msra.mxu0 %v1243
        %2900 = vmatprep.subr.mxu0 0.0
        %2901 = vmatpush1.msra.mxu0 %v1242
        %2902 = vmatprep.subr.mxu0 0.0
        %2903 = vmatpush1.msra.mxu0 %v1241
        %2904 = vmatprep.subr.mxu0 0.0
        %2905 = vmatpush1.msra.mxu0 %v1240
        %2906 = vmatprep.subr.mxu0 0.0
        %2907 = vmatpush1.msra.mxu0 %v1239
        %2908 = vmatprep.subr.mxu0 0.0
        %2909 = vmatpush1.msra.mxu0 %v1238
        %2910 = vmatprep.subr.mxu0 0.0
        %2911 = vmatpush1.msra.mxu0 %v1237
        %2912 = vmatprep.subr.mxu0 0.0
        %2913 = vmatpush2.msra.mxu0 0.0
        %2914 = vmatprep.subr.mxu0 0.0
        %2915 = vmatpush2.msra.mxu0 0.0
        %2916 = vmatprep.subr.mxu0 0.0
        %2917 = vmatpush2.msra.mxu0 0.0
        %2918 = vmatprep.subr.mxu0 0.0
        %2919 = vmatpush2.msra.mxu0 0.0
        %2920 = vmatprep.subr.mxu0 0.0
        %2921 = vmatpush2.msra.mxu0 0.0
        %2922 = vmatprep.subr.mxu0 0.0
        %2923 = vmatpush2.msra.mxu0 0.0
        %2924 = vmatprep.subr.mxu0 0.0
        %2925 = vmatpush2.msra.mxu0 0.0
        %2926 = vmatprep.subr.mxu0 0.0
        %2927 = vmatpush2.msra.mxu0 0.0
        %2928 = vmatprep.subr.mxu0 0.0
        %2929 = vmatpush2.msra.mxu0 0.0
        %2930 = vmatprep.subr.mxu0 0.0
        %2931 = vmatpush2.msra.mxu0 0.0
        %2932 = vmatprep.subr.mxu0 0.0
        %2933 = vmatpush2.msra.mxu0 0.0
        %2934 = vmatprep.subr.mxu0 0.0
        %2935 = vmatpush2.msra.mxu0 0.0
        %2936 = vmatprep.subr.mxu0 0.0
        %2937 = vmatpush2.msra.mxu0 0.0
        %2938 = vmatprep.subr.mxu0 0.0
        %2939 = vmatpush2.msra.mxu0 0.0
        %2940 = vmatprep.subr.mxu0 0.0
        %2941 = vmatpush2.msra.mxu0 0.0
        %2942 = vmatprep.subr.mxu0 0.0
        %2943 = vmatpush2.msra.mxu0 0.0
        %2944 = vmatprep.mubr.f32.mxu0 0.0
        %2945 = vmatmul.mubr.f32.gmra.mxu0 %v2808
        %v2946 = vpop.f32.mrf.mxu0
        %v2947 = vadd.f32 0.0, %v2946
        %v2948 = vpop.f32.mrf.mxu0
        %2949 = vdwg.mxu0
        %v2951 = vsel %vm1127, %v2947, 0
        %2953 = vmatprep.subr.mxu0 0.0
        %2954 = vmatpush1.xpose.msra.mxu0 0.0
        %2955 = vmatprep.subr.mxu0 0.0
        %2956 = vmatpush1.xpose.msra.mxu0 0.0
        %2957 = vmatprep.subr.mxu0 0.0
        %2958 = vmatpush1.xpose.msra.mxu0 0.0
        %2959 = vmatprep.subr.mxu0 0.0
        %2960 = vmatpush1.xpose.msra.mxu0 0.0
        %2961 = vmatprep.subr.mxu0 0.0
        %2962 = vmatpush1.xpose.msra.mxu0 0.0
        %2963 = vmatprep.subr.mxu0 0.0
        %2964 = vmatpush1.xpose.msra.mxu0 0.0
        %2965 = vmatprep.subr.mxu0 0.0
        %2966 = vmatpush1.xpose.msra.mxu0 0.0
        %2967 = vmatprep.subr.mxu0 0.0
        %2968 = vmatpush1.xpose.msra.mxu0 0.0
        %2969 = vmatprep.subr.mxu0 0.0
        %2970 = vmatpush1.xpose.msra.mxu0 0.0
        %2971 = vmatprep.subr.mxu0 0.0
        %2972 = vmatpush1.xpose.msra.mxu0 0.0
        %2973 = vmatprep.subr.mxu0 0.0
        %2974 = vmatpush1.xpose.msra.mxu0 0.0
        %2975 = vmatprep.subr.mxu0 0.0
        %2976 = vmatpush1.xpose.msra.mxu0 0.0
        %2977 = vmatprep.subr.mxu0 0.0
        %2978 = vmatpush1.xpose.msra.mxu0 0.0
        %2979 = vmatprep.subr.mxu0 0.0
        %2980 = vmatpush1.xpose.msra.mxu0 0.0
        %2981 = vmatprep.subr.mxu0 0.0
        %2982 = vmatpush1.xpose.msra.mxu0 0.0
        %2983 = vmatprep.subr.mxu0 0.0
        %2984 = vmatpush1.xpose.msra.mxu0 %v2808
        %2985 = vmatprep.subr.mxu0 0.0
        %2986 = vmatpush2.xpose.msra.mxu0 0.0
        %2987 = vmatprep.subr.mxu0 0.0
        %2988 = vmatpush2.xpose.msra.mxu0 0.0
        %2989 = vmatprep.subr.mxu0 0.0
        %2990 = vmatpush2.xpose.msra.mxu0 0.0
        %2991 = vmatprep.subr.mxu0 0.0
        %2992 = vmatpush2.xpose.msra.mxu0 0.0
        %2993 = vmatprep.subr.mxu0 0.0
        %2994 = vmatpush2.xpose.msra.mxu0 0.0
        %2995 = vmatprep.subr.mxu0 0.0
        %2996 = vmatpush2.xpose.msra.mxu0 0.0
        %2997 = vmatprep.subr.mxu0 0.0
        %2998 = vmatpush2.xpose.msra.mxu0 0.0
        %2999 = vmatprep.subr.mxu0 0.0
        %3000 = vmatpush2.xpose.msra.mxu0 0.0
        %3001 = vmatprep.subr.mxu0 0.0
        %3002 = vmatpush2.xpose.msra.mxu0 0.0
        %3003 = vmatprep.subr.mxu0 0.0
        %3004 = vmatpush2.xpose.msra.mxu0 0.0
        %3005 = vmatprep.subr.mxu0 0.0
        %3006 = vmatpush2.xpose.msra.mxu0 0.0
        %3007 = vmatprep.subr.mxu0 0.0
        %3008 = vmatpush2.xpose.msra.mxu0 0.0
        %3009 = vmatprep.subr.mxu0 0.0
        %3010 = vmatpush2.xpose.msra.mxu0 0.0
        %3011 = vmatprep.subr.mxu0 0.0
        %3012 = vmatpush2.xpose.msra.mxu0 0.0
        %3013 = vmatprep.subr.mxu0 0.0
        %3014 = vmatpush2.xpose.msra.mxu0 0.0
        %3015 = vmatprep.subr.mxu0 0.0
        %3016 = vmatpush2.xpose.msra.mxu0 0.0
        %3017 = vmatprep.mubr.f32.mxu0 0.0
        %3018 = vmatmul.mubr.f32.gmra.mxu0 %v2951
        %v3019 = vpop.f32.mrf.mxu0
        %v3020 = vadd.f32 0.0, %v3019
        %v3021 = vpop.f32.mrf.mxu0
        %3022 = vdwg.mxu0
        %v3023 = vsel %vm1388, %v3020, -inf
        %3024 = vmax.xlane.f32.xlu0 %v3023
        %v3025 = vpop.xlane.xlu0 %3024
        %v3026 = vsub.f32 %v3020, %v3025
        %v3027 = vmul.f32 %v3026, 1.442695
        %v3028 = vpow.pop %v3027
        %v3029 = vsel %vm1388, %v3028, 0.0
        %3030 = vadd.xlane.f32.xlu0 %v3029
        %v3031 = vpop.xlane.xlu0 %3030
        %v3033 = vsel %vm1388, %v3028, 0
        %3035 = vmatprep.subr.mxu0 0.0
        %3036 = vmatpush1.msra.mxu0 0.0
        %3037 = vmatprep.subr.mxu0 0.0
        %3038 = vmatpush1.msra.mxu0 0.0
        %3039 = vmatprep.subr.mxu0 0.0
        %3040 = vmatpush1.msra.mxu0 0.0
        %3041 = vmatprep.subr.mxu0 0.0
        %3042 = vmatpush1.msra.mxu0 0.0
        %3043 = vmatprep.subr.mxu0 0.0
        %3044 = vmatpush1.msra.mxu0 0.0
        %3045 = vmatprep.subr.mxu0 0.0
        %3046 = vmatpush1.msra.mxu0 0.0
        %3047 = vmatprep.subr.mxu0 0.0
        %3048 = vmatpush1.msra.mxu0 0.0
        %3049 = vmatprep.subr.mxu0 0.0
        %3050 = vmatpush1.msra.mxu0 0.0
        %3051 = vmatprep.subr.mxu0 0.0
        %3052 = vmatpush1.msra.mxu0 0.0
        %3053 = vmatprep.subr.mxu0 0.0
        %3054 = vmatpush1.msra.mxu0 0.0
        %3055 = vmatprep.subr.mxu0 0.0
        %3056 = vmatpush1.msra.mxu0 0.0
        %3057 = vmatprep.subr.mxu0 0.0
        %3058 = vmatpush1.msra.mxu0 0.0
        %3059 = vmatprep.subr.mxu0 0.0
        %3060 = vmatpush1.msra.mxu0 0.0
        %3061 = vmatprep.subr.mxu0 0.0
        %3062 = vmatpush1.msra.mxu0 0.0
        %3063 = vmatprep.subr.mxu0 0.0
        %3064 = vmatpush1.msra.mxu0 0.0
        %3065 = vmatprep.subr.mxu0 0.0
        %3066 = vmatpush1.msra.mxu0 %v2877
        %3067 = vmatprep.subr.mxu0 0.0
        %3068 = vmatpush2.msra.mxu0 0.0
        %3069 = vmatprep.subr.mxu0 0.0
        %3070 = vmatpush2.msra.mxu0 0.0
        %3071 = vmatprep.subr.mxu0 0.0
        %3072 = vmatpush2.msra.mxu0 0.0
        %3073 = vmatprep.subr.mxu0 0.0
        %3074 = vmatpush2.msra.mxu0 0.0
        %3075 = vmatprep.subr.mxu0 0.0
        %3076 = vmatpush2.msra.mxu0 0.0
        %3077 = vmatprep.subr.mxu0 0.0
        %3078 = vmatpush2.msra.mxu0 0.0
        %3079 = vmatprep.subr.mxu0 0.0
        %3080 = vmatpush2.msra.mxu0 0.0
        %3081 = vmatprep.subr.mxu0 0.0
        %3082 = vmatpush2.msra.mxu0 0.0
        %3083 = vmatprep.subr.mxu0 0.0
        %3084 = vmatpush2.msra.mxu0 0.0
        %3085 = vmatprep.subr.mxu0 0.0
        %3086 = vmatpush2.msra.mxu0 0.0
        %3087 = vmatprep.subr.mxu0 0.0
        %3088 = vmatpush2.msra.mxu0 0.0
        %3089 = vmatprep.subr.mxu0 0.0
        %3090 = vmatpush2.msra.mxu0 0.0
        %3091 = vmatprep.subr.mxu0 0.0
        %3092 = vmatpush2.msra.mxu0 0.0
        %3093 = vmatprep.subr.mxu0 0.0
        %3094 = vmatpush2.msra.mxu0 0.0
        %3095 = vmatprep.subr.mxu0 0.0
        %3096 = vmatpush2.msra.mxu0 0.0
        %3097 = vmatprep.subr.mxu0 0.0
        %3098 = vmatpush2.msra.mxu0 0.0
        %3099 = vmatprep.mubr.f32.mxu0 0.0
        %3100 = vmatmul.mubr.f32.gmra.mxu0 %v3033
        %v3101 = vpop.f32.mrf.mxu0
        %v3102 = vadd.f32 0.0, %v3101
        %v3103 = vpop.f32.mrf.mxu0
        %3104 = vdwg.mxu0
        %v3105 = vrcp.pop %v3031
        %v3106 = vmul.f32 %v3102, %v3105
        %3107 = vmatprep.subr.mxu0 0.0
        %3108 = vmatpush1.msra.mxu0 0.0
        %3109 = vmatprep.subr.mxu0 0.0
        %3110 = vmatpush1.msra.mxu0 0.0
        %3111 = vmatprep.subr.mxu0 0.0
        %3112 = vmatpush1.msra.mxu0 0.0
        %3113 = vmatprep.subr.mxu0 0.0
        %3114 = vmatpush1.msra.mxu0 0.0
        %3115 = vmatprep.subr.mxu0 0.0
        %3116 = vmatpush1.msra.mxu0 0.0
        %3117 = vmatprep.subr.mxu0 0.0
        %3118 = vmatpush1.msra.mxu0 0.0
        %3119 = vmatprep.subr.mxu0 0.0
        %3120 = vmatpush1.msra.mxu0 0.0
        %3121 = vmatprep.subr.mxu0 0.0
        %3122 = vmatpush1.msra.mxu0 0.0
        %3123 = vmatprep.subr.mxu0 0.0
        %3124 = vmatpush1.msra.mxu0 %v1485
        %3125 = vmatprep.subr.mxu0 0.0
        %3126 = vmatpush1.msra.mxu0 %v1484
        %3127 = vmatprep.subr.mxu0 0.0
        %3128 = vmatpush1.msra.mxu0 %v1483
        %3129 = vmatprep.subr.mxu0 0.0
        %3130 = vmatpush1.msra.mxu0 %v1482
        %3131 = vmatprep.subr.mxu0 0.0
        %3132 = vmatpush1.msra.mxu0 %v1481
        %3133 = vmatprep.subr.mxu0 0.0
        %3134 = vmatpush1.msra.mxu0 %v1480
        %3135 = vmatprep.subr.mxu0 0.0
        %3136 = vmatpush1.msra.mxu0 %v1479
        %3137 = vmatprep.subr.mxu0 0.0
        %3138 = vmatpush1.msra.mxu0 %v1478
        %3139 = vmatprep.subr.mxu0 0.0
        %3140 = vmatpush2.msra.mxu0 0.0
        %3141 = vmatprep.subr.mxu0 0.0
        %3142 = vmatpush2.msra.mxu0 0.0
        %3143 = vmatprep.subr.mxu0 0.0
        %3144 = vmatpush2.msra.mxu0 0.0
        %3145 = vmatprep.subr.mxu0 0.0
        %3146 = vmatpush2.msra.mxu0 0.0
        %3147 = vmatprep.subr.mxu0 0.0
        %3148 = vmatpush2.msra.mxu0 0.0
        %3149 = vmatprep.subr.mxu0 0.0
        %3150 = vmatpush2.msra.mxu0 0.0
        %3151 = vmatprep.subr.mxu0 0.0
        %3152 = vmatpush2.msra.mxu0 0.0
        %3153 = vmatprep.subr.mxu0 0.0
        %3154 = vmatpush2.msra.mxu0 0.0
        %3155 = vmatprep.subr.mxu0 0.0
        %3156 = vmatpush2.msra.mxu0 0.0
        %3157 = vmatprep.subr.mxu0 0.0
        %3158 = vmatpush2.msra.mxu0 0.0
        %3159 = vmatprep.subr.mxu0 0.0
        %3160 = vmatpush2.msra.mxu0 0.0
        %3161 = vmatprep.subr.mxu0 0.0
        %3162 = vmatpush2.msra.mxu0 0.0
        %3163 = vmatprep.subr.mxu0 0.0
        %3164 = vmatpush2.msra.mxu0 0.0
        %3165 = vmatprep.subr.mxu0 0.0
        %3166 = vmatpush2.msra.mxu0 0.0
        %3167 = vmatprep.subr.mxu0 0.0
        %3168 = vmatpush2.msra.mxu0 0.0
        %3169 = vmatprep.subr.mxu0 0.0
        %3170 = vmatpush2.msra.mxu0 0.0
        %3171 = vmatprep.mubr.f32.mxu0 0.0
        %3172 = vmatmul.mubr.f32.gmra.mxu0 %v2808
        %v3173 = vpop.f32.mrf.mxu0
        %v3174 = vadd.f32 0.0, %v3173
        %v3175 = vpop.f32.mrf.mxu0
        %3176 = vdwg.mxu0
        %v3178 = vsel %vm1127, %v3174, 0
        %3180 = vmatprep.subr.mxu0 0.0
        %3181 = vmatpush1.xpose.msra.mxu0 0.0
        %3182 = vmatprep.subr.mxu0 0.0
        %3183 = vmatpush1.xpose.msra.mxu0 0.0
        %3184 = vmatprep.subr.mxu0 0.0
        %3185 = vmatpush1.xpose.msra.mxu0 0.0
        %3186 = vmatprep.subr.mxu0 0.0
        %3187 = vmatpush1.xpose.msra.mxu0 0.0
        %3188 = vmatprep.subr.mxu0 0.0
        %3189 = vmatpush1.xpose.msra.mxu0 0.0
        %3190 = vmatprep.subr.mxu0 0.0
        %3191 = vmatpush1.xpose.msra.mxu0 0.0
        %3192 = vmatprep.subr.mxu0 0.0
        %3193 = vmatpush1.xpose.msra.mxu0 0.0
        %3194 = vmatprep.subr.mxu0 0.0
        %3195 = vmatpush1.xpose.msra.mxu0 0.0
        %3196 = vmatprep.subr.mxu0 0.0
        %3197 = vmatpush1.xpose.msra.mxu0 0.0
        %3198 = vmatprep.subr.mxu0 0.0
        %3199 = vmatpush1.xpose.msra.mxu0 0.0
        %3200 = vmatprep.subr.mxu0 0.0
        %3201 = vmatpush1.xpose.msra.mxu0 0.0
        %3202 = vmatprep.subr.mxu0 0.0
        %3203 = vmatpush1.xpose.msra.mxu0 0.0
        %3204 = vmatprep.subr.mxu0 0.0
        %3205 = vmatpush1.xpose.msra.mxu0 0.0
        %3206 = vmatprep.subr.mxu0 0.0
        %3207 = vmatpush1.xpose.msra.mxu0 0.0
        %3208 = vmatprep.subr.mxu0 0.0
        %3209 = vmatpush1.xpose.msra.mxu0 0.0
        %3210 = vmatprep.subr.mxu0 0.0
        %3211 = vmatpush1.xpose.msra.mxu0 %v2808
        %3212 = vmatprep.subr.mxu0 0.0
        %3213 = vmatpush2.xpose.msra.mxu0 0.0
        %3214 = vmatprep.subr.mxu0 0.0
        %3215 = vmatpush2.xpose.msra.mxu0 0.0
        %3216 = vmatprep.subr.mxu0 0.0
        %3217 = vmatpush2.xpose.msra.mxu0 0.0
        %3218 = vmatprep.subr.mxu0 0.0
        %3219 = vmatpush2.xpose.msra.mxu0 0.0
        %3220 = vmatprep.subr.mxu0 0.0
        %3221 = vmatpush2.xpose.msra.mxu0 0.0
        %3222 = vmatprep.subr.mxu0 0.0
        %3223 = vmatpush2.xpose.msra.mxu0 0.0
        %3224 = vmatprep.subr.mxu0 0.0
        %3225 = vmatpush2.xpose.msra.mxu0 0.0
        %3226 = vmatprep.subr.mxu0 0.0
        %3227 = vmatpush2.xpose.msra.mxu0 0.0
        %3228 = vmatprep.subr.mxu0 0.0
        %3229 = vmatpush2.xpose.msra.mxu0 0.0
        %3230 = vmatprep.subr.mxu0 0.0
        %3231 = vmatpush2.xpose.msra.mxu0 0.0
        %3232 = vmatprep.subr.mxu0 0.0
        %3233 = vmatpush2.xpose.msra.mxu0 0.0
        %3234 = vmatprep.subr.mxu0 0.0
        %3235 = vmatpush2.xpose.msra.mxu0 0.0
        %3236 = vmatprep.subr.mxu0 0.0
        %3237 = vmatpush2.xpose.msra.mxu0 0.0
        %3238 = vmatprep.subr.mxu0 0.0
        %3239 = vmatpush2.xpose.msra.mxu0 0.0
        %3240 = vmatprep.subr.mxu0 0.0
        %3241 = vmatpush2.xpose.msra.mxu0 0.0
        %3242 = vmatprep.subr.mxu0 0.0
        %3243 = vmatpush2.xpose.msra.mxu0 0.0
        %3244 = vmatprep.mubr.f32.mxu0 0.0
        %3245 = vmatmul.mubr.f32.gmra.mxu0 %v3178
        %v3246 = vpop.f32.mrf.mxu0
        %v3247 = vadd.f32 0.0, %v3246
        %v3248 = vpop.f32.mrf.mxu0
        %3249 = vdwg.mxu0
        %v3250 = vsel %vm1388, %v3247, -inf
        %3251 = vmax.xlane.f32.xlu0 %v3250
        %v3252 = vpop.xlane.xlu0 %3251
        %v3253 = vsub.f32 %v3247, %v3252
        %v3254 = vmul.f32 %v3253, 1.442695
        %v3255 = vpow.pop %v3254
        %v3256 = vsel %vm1388, %v3255, 0.0
        %3257 = vadd.xlane.f32.xlu0 %v3256
        %v3258 = vpop.xlane.xlu0 %3257
        %v3260 = vsel %vm1388, %v3255, 0
        %3262 = vmatprep.subr.mxu0 0.0
        %3263 = vmatpush1.msra.mxu0 0.0
        %3264 = vmatprep.subr.mxu0 0.0
        %3265 = vmatpush1.msra.mxu0 0.0
        %3266 = vmatprep.subr.mxu0 0.0
        %3267 = vmatpush1.msra.mxu0 0.0
        %3268 = vmatprep.subr.mxu0 0.0
        %3269 = vmatpush1.msra.mxu0 0.0
        %3270 = vmatprep.subr.mxu0 0.0
        %3271 = vmatpush1.msra.mxu0 0.0
        %3272 = vmatprep.subr.mxu0 0.0
        %3273 = vmatpush1.msra.mxu0 0.0
        %3274 = vmatprep.subr.mxu0 0.0
        %3275 = vmatpush1.msra.mxu0 0.0
        %3276 = vmatprep.subr.mxu0 0.0
        %3277 = vmatpush1.msra.mxu0 0.0
        %3278 = vmatprep.subr.mxu0 0.0
        %3279 = vmatpush1.msra.mxu0 0.0
        %3280 = vmatprep.subr.mxu0 0.0
        %3281 = vmatpush1.msra.mxu0 0.0
        %3282 = vmatprep.subr.mxu0 0.0
        %3283 = vmatpush1.msra.mxu0 0.0
        %3284 = vmatprep.subr.mxu0 0.0
        %3285 = vmatpush1.msra.mxu0 0.0
        %3286 = vmatprep.subr.mxu0 0.0
        %3287 = vmatpush1.msra.mxu0 0.0
        %3288 = vmatprep.subr.mxu0 0.0
        %3289 = vmatpush1.msra.mxu0 0.0
        %3290 = vmatprep.subr.mxu0 0.0
        %3291 = vmatpush1.msra.mxu0 0.0
        %3292 = vmatprep.subr.mxu0 0.0
        %3293 = vmatpush1.msra.mxu0 %v2877
        %3294 = vmatprep.subr.mxu0 0.0
        %3295 = vmatpush2.msra.mxu0 0.0
        %3296 = vmatprep.subr.mxu0 0.0
        %3297 = vmatpush2.msra.mxu0 0.0
        %3298 = vmatprep.subr.mxu0 0.0
        %3299 = vmatpush2.msra.mxu0 0.0
        %3300 = vmatprep.subr.mxu0 0.0
        %3301 = vmatpush2.msra.mxu0 0.0
        %3302 = vmatprep.subr.mxu0 0.0
        %3303 = vmatpush2.msra.mxu0 0.0
        %3304 = vmatprep.subr.mxu0 0.0
        %3305 = vmatpush2.msra.mxu0 0.0
        %3306 = vmatprep.subr.mxu0 0.0
        %3307 = vmatpush2.msra.mxu0 0.0
        %3308 = vmatprep.subr.mxu0 0.0
        %3309 = vmatpush2.msra.mxu0 0.0
        %3310 = vmatprep.subr.mxu0 0.0
        %3311 = vmatpush2.msra.mxu0 0.0
        %3312 = vmatprep.subr.mxu0 0.0
        %3313 = vmatpush2.msra.mxu0 0.0
        %3314 = vmatprep.subr.mxu0 0.0
        %3315 = vmatpush2.msra.mxu0 0.0
        %3316 = vmatprep.subr.mxu0 0.0
        %3317 = vmatpush2.msra.mxu0 0.0
        %3318 = vmatprep.subr.mxu0 0.0
        %3319 = vmatpush2.msra.mxu0 0.0
        %3320 = vmatprep.subr.mxu0 0.0
        %3321 = vmatpush2.msra.mxu0 0.0
        %3322 = vmatprep.subr.mxu0 0.0
        %3323 = vmatpush2.msra.mxu0 0.0
        %3324 = vmatprep.subr.mxu0 0.0
        %3325 = vmatpush2.msra.mxu0 0.0
        %3326 = vmatprep.mubr.f32.mxu0 0.0
        %3327 = vmatmul.mubr.f32.gmra.mxu0 %v3260
        %v3328 = vpop.f32.mrf.mxu0
        %v3329 = vadd.f32 0.0, %v3328
        %v3330 = vpop.f32.mrf.mxu0
        %3331 = vdwg.mxu0
        %v3332 = vrcp.pop %v3258
        %v3333 = vmul.f32 %v3329, %v3332
        %v3335 = vsel %vm1718, %v3333, 0
        %3337 = vmatprep.subr.mxu0 0.0
        %3338 = vmatpush1.msra.mxu0 0.0
        %3339 = vmatprep.subr.mxu0 0.0
        %3340 = vmatpush1.msra.mxu0 0.0
        %3341 = vmatprep.subr.mxu0 0.0
        %3342 = vmatpush1.msra.mxu0 0.0
        %3343 = vmatprep.subr.mxu0 0.0
        %3344 = vmatpush1.msra.mxu0 0.0
        %3345 = vmatprep.subr.mxu0 0.0
        %3346 = vmatpush1.msra.mxu0 0.0
        %3347 = vmatprep.subr.mxu0 0.0
        %3348 = vmatpush1.msra.mxu0 0.0
        %3349 = vmatprep.subr.mxu0 0.0
        %3350 = vmatpush1.msra.mxu0 0.0
        %3351 = vmatprep.subr.mxu0 0.0
        %3352 = vmatpush1.msra.mxu0 0.0
        %3353 = vmatprep.subr.mxu0 0.0
        %3354 = vmatpush1.msra.mxu0 0.0
        %3355 = vmatprep.subr.mxu0 0.0
        %3356 = vmatpush1.msra.mxu0 0.0
        %3357 = vmatprep.subr.mxu0 0.0
        %3358 = vmatpush1.msra.mxu0 0.0
        %3359 = vmatprep.subr.mxu0 0.0
        %3360 = vmatpush1.msra.mxu0 0.0
        %3361 = vmatprep.subr.mxu0 0.0
        %3362 = vmatpush1.msra.mxu0 %v1717
        %3363 = vmatprep.subr.mxu0 0.0
        %3364 = vmatpush1.msra.mxu0 %v1716
        %3365 = vmatprep.subr.mxu0 0.0
        %3366 = vmatpush1.msra.mxu0 %v1715
        %3367 = vmatprep.subr.mxu0 0.0
        %3368 = vmatpush1.msra.mxu0 %v1714
        %3369 = vmatprep.subr.mxu0 0.0
        %3370 = vmatpush2.msra.mxu0 0.0
        %3371 = vmatprep.subr.mxu0 0.0
        %3372 = vmatpush2.msra.mxu0 0.0
        %3373 = vmatprep.subr.mxu0 0.0
        %3374 = vmatpush2.msra.mxu0 0.0
        %3375 = vmatprep.subr.mxu0 0.0
        %3376 = vmatpush2.msra.mxu0 0.0
        %3377 = vmatprep.subr.mxu0 0.0
        %3378 = vmatpush2.msra.mxu0 0.0
        %3379 = vmatprep.subr.mxu0 0.0
        %3380 = vmatpush2.msra.mxu0 0.0
        %3381 = vmatprep.subr.mxu0 0.0
        %3382 = vmatpush2.msra.mxu0 0.0
        %3383 = vmatprep.subr.mxu0 0.0
        %3384 = vmatpush2.msra.mxu0 0.0
        %3385 = vmatprep.subr.mxu0 0.0
        %3386 = vmatpush2.msra.mxu0 0.0
        %3387 = vmatprep.subr.mxu0 0.0
        %3388 = vmatpush2.msra.mxu0 0.0
        %3389 = vmatprep.subr.mxu0 0.0
        %3390 = vmatpush2.msra.mxu0 0.0
        %3391 = vmatprep.subr.mxu0 0.0
        %3392 = vmatpush2.msra.mxu0 0.0
        %3393 = vmatprep.subr.mxu0 0.0
        %3394 = vmatpush2.msra.mxu0 0.0
        %3395 = vmatprep.subr.mxu0 0.0
        %3396 = vmatpush2.msra.mxu0 0.0
        %3397 = vmatprep.subr.mxu0 0.0
        %3398 = vmatpush2.msra.mxu0 0.0
        %3399 = vmatprep.subr.mxu0 0.0
        %3400 = vmatpush2.msra.mxu0 0.0
        %3401 = vmatprep.mubr.f32.mxu0 0.0
        %3402 = vmatmul.mubr.f32.gmra.mxu0 %v3335
        %v3403 = vpop.f32.mrf.mxu0
        %v3404 = vadd.f32 0.0, %v3403
        %v3405 = vpop.f32.mrf.mxu0
        %3406 = vdwg.mxu0
        %v3408 = vsel %vm1718, %v3106, 0
        %3410 = vmatprep.subr.mxu0 0.0
        %3411 = vmatpush1.msra.mxu0 0.0
        %3412 = vmatprep.subr.mxu0 0.0
        %3413 = vmatpush1.msra.mxu0 0.0
        %3414 = vmatprep.subr.mxu0 0.0
        %3415 = vmatpush1.msra.mxu0 0.0
        %3416 = vmatprep.subr.mxu0 0.0
        %3417 = vmatpush1.msra.mxu0 0.0
        %3418 = vmatprep.subr.mxu0 0.0
        %3419 = vmatpush1.msra.mxu0 0.0
        %3420 = vmatprep.subr.mxu0 0.0
        %3421 = vmatpush1.msra.mxu0 0.0
        %3422 = vmatprep.subr.mxu0 0.0
        %3423 = vmatpush1.msra.mxu0 0.0
        %3424 = vmatprep.subr.mxu0 0.0
        %3425 = vmatpush1.msra.mxu0 0.0
        %3426 = vmatprep.subr.mxu0 0.0
        %3427 = vmatpush1.msra.mxu0 0.0
        %3428 = vmatprep.subr.mxu0 0.0
        %3429 = vmatpush1.msra.mxu0 0.0
        %3430 = vmatprep.subr.mxu0 0.0
        %3431 = vmatpush1.msra.mxu0 0.0
        %3432 = vmatprep.subr.mxu0 0.0
        %3433 = vmatpush1.msra.mxu0 0.0
        %3434 = vmatprep.subr.mxu0 0.0
        %3435 = vmatpush1.msra.mxu0 %v1476
        %3436 = vmatprep.subr.mxu0 0.0
        %3437 = vmatpush1.msra.mxu0 %v1475
        %3438 = vmatprep.subr.mxu0 0.0
        %3439 = vmatpush1.msra.mxu0 %v1474
        %3440 = vmatprep.subr.mxu0 0.0
        %3441 = vmatpush1.msra.mxu0 %v1473
        %3442 = vmatprep.subr.mxu0 0.0
        %3443 = vmatpush2.msra.mxu0 0.0
        %3444 = vmatprep.subr.mxu0 0.0
        %3445 = vmatpush2.msra.mxu0 0.0
        %3446 = vmatprep.subr.mxu0 0.0
        %3447 = vmatpush2.msra.mxu0 0.0
        %3448 = vmatprep.subr.mxu0 0.0
        %3449 = vmatpush2.msra.mxu0 0.0
        %3450 = vmatprep.subr.mxu0 0.0
        %3451 = vmatpush2.msra.mxu0 0.0
        %3452 = vmatprep.subr.mxu0 0.0
        %3453 = vmatpush2.msra.mxu0 0.0
        %3454 = vmatprep.subr.mxu0 0.0
        %3455 = vmatpush2.msra.mxu0 0.0
        %3456 = vmatprep.subr.mxu0 0.0
        %3457 = vmatpush2.msra.mxu0 0.0
        %3458 = vmatprep.subr.mxu0 0.0
        %3459 = vmatpush2.msra.mxu0 0.0
        %3460 = vmatprep.subr.mxu0 0.0
        %3461 = vmatpush2.msra.mxu0 0.0
        %3462 = vmatprep.subr.mxu0 0.0
        %3463 = vmatpush2.msra.mxu0 0.0
        %3464 = vmatprep.subr.mxu0 0.0
        %3465 = vmatpush2.msra.mxu0 0.0
        %3466 = vmatprep.subr.mxu0 0.0
        %3467 = vmatpush2.msra.mxu0 0.0
        %3468 = vmatprep.subr.mxu0 0.0
        %3469 = vmatpush2.msra.mxu0 0.0
        %3470 = vmatprep.subr.mxu0 0.0
        %3471 = vmatpush2.msra.mxu0 0.0
        %3472 = vmatprep.subr.mxu0 0.0
        %3473 = vmatpush2.msra.mxu0 0.0
        %3474 = vmatprep.mubr.f32.mxu0 0.0
        %3475 = vmatmul.mubr.f32.gmra.mxu0 %v3408
        %v3476 = vpop.f32.mrf.mxu0
        %v3477 = vadd.f32 %v3404, %v3476
        %v3478 = vpop.f32.mrf.mxu0
        %3479 = vdwg.mxu0
        %3480 = vmatprep.subr.mxu0 0.0
        %3481 = vmatpush1.msra.mxu0 0.0
        %3482 = vmatprep.subr.mxu0 0.0
        %3483 = vmatpush1.msra.mxu0 0.0
        %3484 = vmatprep.subr.mxu0 0.0
        %3485 = vmatpush1.msra.mxu0 0.0
        %3486 = vmatprep.subr.mxu0 0.0
        %3487 = vmatpush1.msra.mxu0 0.0
        %3488 = vmatprep.subr.mxu0 0.0
        %3489 = vmatpush1.msra.mxu0 0.0
        %3490 = vmatprep.subr.mxu0 0.0
        %3491 = vmatpush1.msra.mxu0 0.0
        %3492 = vmatprep.subr.mxu0 0.0
        %3493 = vmatpush1.msra.mxu0 0.0
        %3494 = vmatprep.subr.mxu0 0.0
        %3495 = vmatpush1.msra.mxu0 0.0
        %3496 = vmatprep.subr.mxu0 0.0
        %3497 = vmatpush1.msra.mxu0 %v1873
        %3498 = vmatprep.subr.mxu0 0.0
        %3499 = vmatpush1.msra.mxu0 %v1872
        %3500 = vmatprep.subr.mxu0 0.0
        %3501 = vmatpush1.msra.mxu0 %v1871
        %3502 = vmatprep.subr.mxu0 0.0
        %3503 = vmatpush1.msra.mxu0 %v1870
        %3504 = vmatprep.subr.mxu0 0.0
        %3505 = vmatpush1.msra.mxu0 %v1869
        %3506 = vmatprep.subr.mxu0 0.0
        %3507 = vmatpush1.msra.mxu0 %v1868
        %3508 = vmatprep.subr.mxu0 0.0
        %3509 = vmatpush1.msra.mxu0 %v1867
        %3510 = vmatprep.subr.mxu0 0.0
        %3511 = vmatpush1.msra.mxu0 %v1866
        %3512 = vmatprep.subr.mxu0 0.0
        %3513 = vmatpush2.msra.mxu0 0.0
        %3514 = vmatprep.subr.mxu0 0.0
        %3515 = vmatpush2.msra.mxu0 0.0
        %3516 = vmatprep.subr.mxu0 0.0
        %3517 = vmatpush2.msra.mxu0 0.0
        %3518 = vmatprep.subr.mxu0 0.0
        %3519 = vmatpush2.msra.mxu0 0.0
        %3520 = vmatprep.subr.mxu0 0.0
        %3521 = vmatpush2.msra.mxu0 0.0
        %3522 = vmatprep.subr.mxu0 0.0
        %3523 = vmatpush2.msra.mxu0 0.0
        %3524 = vmatprep.subr.mxu0 0.0
        %3525 = vmatpush2.msra.mxu0 0.0
        %3526 = vmatprep.subr.mxu0 0.0
        %3527 = vmatpush2.msra.mxu0 0.0
        %3528 = vmatprep.subr.mxu0 0.0
        %3529 = vmatpush2.msra.mxu0 0.0
        %3530 = vmatprep.subr.mxu0 0.0
        %3531 = vmatpush2.msra.mxu0 0.0
        %3532 = vmatprep.subr.mxu0 0.0
        %3533 = vmatpush2.msra.mxu0 0.0
        %3534 = vmatprep.subr.mxu0 0.0
        %3535 = vmatpush2.msra.mxu0 0.0
        %3536 = vmatprep.subr.mxu0 0.0
        %3537 = vmatpush2.msra.mxu0 0.0
        %3538 = vmatprep.subr.mxu0 0.0
        %3539 = vmatpush2.msra.mxu0 0.0
        %3540 = vmatprep.subr.mxu0 0.0
        %3541 = vmatpush2.msra.mxu0 0.0
        %3542 = vmatprep.subr.mxu0 0.0
        %3543 = vmatpush2.msra.mxu0 0.0
        %3544 = vmatprep.mubr.f32.mxu0 0.0
        %3545 = vmatmul.mubr.f32.gmra.mxu0 %v2808
        %v3546 = vpop.f32.mrf.mxu0
        %v3547 = vadd.f32 0.0, %v3546
        %v3548 = vpop.f32.mrf.mxu0
        %3549 = vdwg.mxu0
        %v3551 = vsel %vm1127, %v3547, 0
        %3553 = vmatprep.subr.mxu0 0.0
        %3554 = vmatpush1.xpose.msra.mxu0 0.0
        %3555 = vmatprep.subr.mxu0 0.0
        %3556 = vmatpush1.xpose.msra.mxu0 0.0
        %3557 = vmatprep.subr.mxu0 0.0
        %3558 = vmatpush1.xpose.msra.mxu0 0.0
        %3559 = vmatprep.subr.mxu0 0.0
        %3560 = vmatpush1.xpose.msra.mxu0 0.0
        %3561 = vmatprep.subr.mxu0 0.0
        %3562 = vmatpush1.xpose.msra.mxu0 0.0
        %3563 = vmatprep.subr.mxu0 0.0
        %3564 = vmatpush1.xpose.msra.mxu0 0.0
        %3565 = vmatprep.subr.mxu0 0.0
        %3566 = vmatpush1.xpose.msra.mxu0 0.0
        %3567 = vmatprep.subr.mxu0 0.0
        %3568 = vmatpush1.xpose.msra.mxu0 0.0
        %3569 = vmatprep.subr.mxu0 0.0
        %3570 = vmatpush1.xpose.msra.mxu0 0.0
        %3571 = vmatprep.subr.mxu0 0.0
        %3572 = vmatpush1.xpose.msra.mxu0 0.0
        %3573 = vmatprep.subr.mxu0 0.0
        %3574 = vmatpush1.xpose.msra.mxu0 0.0
        %3575 = vmatprep.subr.mxu0 0.0
        %3576 = vmatpush1.xpose.msra.mxu0 0.0
        %3577 = vmatprep.subr.mxu0 0.0
        %3578 = vmatpush1.xpose.msra.mxu0 0.0
        %3579 = vmatprep.subr.mxu0 0.0
        %3580 = vmatpush1.xpose.msra.mxu0 0.0
        %3581 = vmatprep.subr.mxu0 0.0
        %3582 = vmatpush1.xpose.msra.mxu0 0.0
        %3583 = vmatprep.subr.mxu0 0.0
        %3584 = vmatpush1.xpose.msra.mxu0 %v2808
        %3585 = vmatprep.subr.mxu0 0.0
        %3586 = vmatpush2.xpose.msra.mxu0 0.0
        %3587 = vmatprep.subr.mxu0 0.0
        %3588 = vmatpush2.xpose.msra.mxu0 0.0
        %3589 = vmatprep.subr.mxu0 0.0
        %3590 = vmatpush2.xpose.msra.mxu0 0.0
        %3591 = vmatprep.subr.mxu0 0.0
        %3592 = vmatpush2.xpose.msra.mxu0 0.0
        %3593 = vmatprep.subr.mxu0 0.0
        %3594 = vmatpush2.xpose.msra.mxu0 0.0
        %3595 = vmatprep.subr.mxu0 0.0
        %3596 = vmatpush2.xpose.msra.mxu0 0.0
        %3597 = vmatprep.subr.mxu0 0.0
        %3598 = vmatpush2.xpose.msra.mxu0 0.0
        %3599 = vmatprep.subr.mxu0 0.0
        %3600 = vmatpush2.xpose.msra.mxu0 0.0
        %3601 = vmatprep.subr.mxu0 0.0
        %3602 = vmatpush2.xpose.msra.mxu0 0.0
        %3603 = vmatprep.subr.mxu0 0.0
        %3604 = vmatpush2.xpose.msra.mxu0 0.0
        %3605 = vmatprep.subr.mxu0 0.0
        %3606 = vmatpush2.xpose.msra.mxu0 0.0
        %3607 = vmatprep.subr.mxu0 0.0
        %3608 = vmatpush2.xpose.msra.mxu0 0.0
        %3609 = vmatprep.subr.mxu0 0.0
        %3610 = vmatpush2.xpose.msra.mxu0 0.0
        %3611 = vmatprep.subr.mxu0 0.0
        %3612 = vmatpush2.xpose.msra.mxu0 0.0
        %3613 = vmatprep.subr.mxu0 0.0
        %3614 = vmatpush2.xpose.msra.mxu0 0.0
        %3615 = vmatprep.subr.mxu0 0.0
        %3616 = vmatpush2.xpose.msra.mxu0 0.0
        %3617 = vmatprep.mubr.f32.mxu0 0.0
        %3618 = vmatmul.mubr.f32.gmra.mxu0 %v3551
        %v3619 = vpop.f32.mrf.mxu0
        %v3620 = vadd.f32 0.0, %v3619
        %v3621 = vpop.f32.mrf.mxu0
        %3622 = vdwg.mxu0
        %v3623 = vsel %vm1388, %v3620, -inf
        %3624 = vmax.xlane.f32.xlu0 %v3623
        %v3625 = vpop.xlane.xlu0 %3624
        %v3626 = vsub.f32 %v3620, %v3625
        %v3627 = vmul.f32 %v3626, 1.442695
        %v3628 = vpow.pop %v3627
        %v3629 = vsel %vm1388, %v3628, 0.0
        %3630 = vadd.xlane.f32.xlu0 %v3629
        %v3631 = vpop.xlane.xlu0 %3630
        %v3633 = vsel %vm1388, %v3628, 0
        %3635 = vmatprep.subr.mxu0 0.0
        %3636 = vmatpush1.msra.mxu0 0.0
        %3637 = vmatprep.subr.mxu0 0.0
        %3638 = vmatpush1.msra.mxu0 0.0
        %3639 = vmatprep.subr.mxu0 0.0
        %3640 = vmatpush1.msra.mxu0 0.0
        %3641 = vmatprep.subr.mxu0 0.0
        %3642 = vmatpush1.msra.mxu0 0.0
        %3643 = vmatprep.subr.mxu0 0.0
        %3644 = vmatpush1.msra.mxu0 0.0
        %3645 = vmatprep.subr.mxu0 0.0
        %3646 = vmatpush1.msra.mxu0 0.0
        %3647 = vmatprep.subr.mxu0 0.0
        %3648 = vmatpush1.msra.mxu0 0.0
        %3649 = vmatprep.subr.mxu0 0.0
        %3650 = vmatpush1.msra.mxu0 0.0
        %3651 = vmatprep.subr.mxu0 0.0
        %3652 = vmatpush1.msra.mxu0 0.0
        %3653 = vmatprep.subr.mxu0 0.0
        %3654 = vmatpush1.msra.mxu0 0.0
        %3655 = vmatprep.subr.mxu0 0.0
        %3656 = vmatpush1.msra.mxu0 0.0
        %3657 = vmatprep.subr.mxu0 0.0
        %3658 = vmatpush1.msra.mxu0 0.0
        %3659 = vmatprep.subr.mxu0 0.0
        %3660 = vmatpush1.msra.mxu0 0.0
        %3661 = vmatprep.subr.mxu0 0.0
        %3662 = vmatpush1.msra.mxu0 0.0
        %3663 = vmatprep.subr.mxu0 0.0
        %3664 = vmatpush1.msra.mxu0 0.0
        %3665 = vmatprep.subr.mxu0 0.0
        %3666 = vmatpush1.msra.mxu0 %v2877
        %3667 = vmatprep.subr.mxu0 0.0
        %3668 = vmatpush2.msra.mxu0 0.0
        %3669 = vmatprep.subr.mxu0 0.0
        %3670 = vmatpush2.msra.mxu0 0.0
        %3671 = vmatprep.subr.mxu0 0.0
        %3672 = vmatpush2.msra.mxu0 0.0
        %3673 = vmatprep.subr.mxu0 0.0
        %3674 = vmatpush2.msra.mxu0 0.0
        %3675 = vmatprep.subr.mxu0 0.0
        %3676 = vmatpush2.msra.mxu0 0.0
        %3677 = vmatprep.subr.mxu0 0.0
        %3678 = vmatpush2.msra.mxu0 0.0
        %3679 = vmatprep.subr.mxu0 0.0
        %3680 = vmatpush2.msra.mxu0 0.0
        %3681 = vmatprep.subr.mxu0 0.0
        %3682 = vmatpush2.msra.mxu0 0.0
        %3683 = vmatprep.subr.mxu0 0.0
        %3684 = vmatpush2.msra.mxu0 0.0
        %3685 = vmatprep.subr.mxu0 0.0
        %3686 = vmatpush2.msra.mxu0 0.0
        %3687 = vmatprep.subr.mxu0 0.0
        %3688 = vmatpush2.msra.mxu0 0.0
        %3689 = vmatprep.subr.mxu0 0.0
        %3690 = vmatpush2.msra.mxu0 0.0
        %3691 = vmatprep.subr.mxu0 0.0
        %3692 = vmatpush2.msra.mxu0 0.0
        %3693 = vmatprep.subr.mxu0 0.0
        %3694 = vmatpush2.msra.mxu0 0.0
        %3695 = vmatprep.subr.mxu0 0.0
        %3696 = vmatpush2.msra.mxu0 0.0
        %3697 = vmatprep.subr.mxu0 0.0
        %3698 = vmatpush2.msra.mxu0 0.0
        %3699 = vmatprep.mubr.f32.mxu0 0.0
        %3700 = vmatmul.mubr.f32.gmra.mxu0 %v3633
        %v3701 = vpop.f32.mrf.mxu0
        %v3702 = vadd.f32 0.0, %v3701
        %v3703 = vpop.f32.mrf.mxu0
        %3704 = vdwg.mxu0
        %v3705 = vrcp.pop %v3631
        %v3706 = vmul.f32 %v3702, %v3705
        %v3708 = vsel %vm1718, %v3706, 0
        %3710 = vmatprep.subr.mxu0 0.0
        %3711 = vmatpush1.msra.mxu0 0.0
        %3712 = vmatprep.subr.mxu0 0.0
        %3713 = vmatpush1.msra.mxu0 0.0
        %3714 = vmatprep.subr.mxu0 0.0
        %3715 = vmatpush1.msra.mxu0 0.0
        %3716 = vmatprep.subr.mxu0 0.0
        %3717 = vmatpush1.msra.mxu0 0.0
        %3718 = vmatprep.subr.mxu0 0.0
        %3719 = vmatpush1.msra.mxu0 0.0
        %3720 = vmatprep.subr.mxu0 0.0
        %3721 = vmatpush1.msra.mxu0 0.0
        %3722 = vmatprep.subr.mxu0 0.0
        %3723 = vmatpush1.msra.mxu0 0.0
        %3724 = vmatprep.subr.mxu0 0.0
        %3725 = vmatpush1.msra.mxu0 0.0
        %3726 = vmatprep.subr.mxu0 0.0
        %3727 = vmatpush1.msra.mxu0 0.0
        %3728 = vmatprep.subr.mxu0 0.0
        %3729 = vmatpush1.msra.mxu0 0.0
        %3730 = vmatprep.subr.mxu0 0.0
        %3731 = vmatpush1.msra.mxu0 0.0
        %3732 = vmatprep.subr.mxu0 0.0
        %3733 = vmatpush1.msra.mxu0 0.0
        %3734 = vmatprep.subr.mxu0 0.0
        %3735 = vmatpush1.msra.mxu0 %v2105
        %3736 = vmatprep.subr.mxu0 0.0
        %3737 = vmatpush1.msra.mxu0 %v2104
        %3738 = vmatprep.subr.mxu0 0.0
        %3739 = vmatpush1.msra.mxu0 %v2103
        %3740 = vmatprep.subr.mxu0 0.0
        %3741 = vmatpush1.msra.mxu0 %v2102
        %3742 = vmatprep.subr.mxu0 0.0
        %3743 = vmatpush2.msra.mxu0 0.0
        %3744 = vmatprep.subr.mxu0 0.0
        %3745 = vmatpush2.msra.mxu0 0.0
        %3746 = vmatprep.subr.mxu0 0.0
        %3747 = vmatpush2.msra.mxu0 0.0
        %3748 = vmatprep.subr.mxu0 0.0
        %3749 = vmatpush2.msra.mxu0 0.0
        %3750 = vmatprep.subr.mxu0 0.0
        %3751 = vmatpush2.msra.mxu0 0.0
        %3752 = vmatprep.subr.mxu0 0.0
        %3753 = vmatpush2.msra.mxu0 0.0
        %3754 = vmatprep.subr.mxu0 0.0
        %3755 = vmatpush2.msra.mxu0 0.0
        %3756 = vmatprep.subr.mxu0 0.0
        %3757 = vmatpush2.msra.mxu0 0.0
        %3758 = vmatprep.subr.mxu0 0.0
        %3759 = vmatpush2.msra.mxu0 0.0
        %3760 = vmatprep.subr.mxu0 0.0
        %3761 = vmatpush2.msra.mxu0 0.0
        %3762 = vmatprep.subr.mxu0 0.0
        %3763 = vmatpush2.msra.mxu0 0.0
        %3764 = vmatprep.subr.mxu0 0.0
        %3765 = vmatpush2.msra.mxu0 0.0
        %3766 = vmatprep.subr.mxu0 0.0
        %3767 = vmatpush2.msra.mxu0 0.0
        %3768 = vmatprep.subr.mxu0 0.0
        %3769 = vmatpush2.msra.mxu0 0.0
        %3770 = vmatprep.subr.mxu0 0.0
        %3771 = vmatpush2.msra.mxu0 0.0
        %3772 = vmatprep.subr.mxu0 0.0
        %3773 = vmatpush2.msra.mxu0 0.0
        %3774 = vmatprep.mubr.f32.mxu0 0.0
        %3775 = vmatmul.mubr.f32.gmra.mxu0 %v3708
        %v3776 = vpop.f32.mrf.mxu0
        %v3777 = vadd.f32 0.0, %v3776
        %v3778 = vpop.f32.mrf.mxu0
        %3779 = vdwg.mxu0
        %v3780 = vadd.f32 %v3477, %v3777
        %3781 = vmatprep.subr.mxu0 0.0
        %3782 = vmatpush1.msra.mxu0 0.0
        %3783 = vmatprep.subr.mxu0 0.0
        %3784 = vmatpush1.msra.mxu0 0.0
        %3785 = vmatprep.subr.mxu0 0.0
        %3786 = vmatpush1.msra.mxu0 0.0
        %3787 = vmatprep.subr.mxu0 0.0
        %3788 = vmatpush1.msra.mxu0 0.0
        %3789 = vmatprep.subr.mxu0 0.0
        %3790 = vmatpush1.msra.mxu0 0.0
        %3791 = vmatprep.subr.mxu0 0.0
        %3792 = vmatpush1.msra.mxu0 0.0
        %3793 = vmatprep.subr.mxu0 0.0
        %3794 = vmatpush1.msra.mxu0 0.0
        %3795 = vmatprep.subr.mxu0 0.0
        %3796 = vmatpush1.msra.mxu0 0.0
        %3797 = vmatprep.subr.mxu0 0.0
        %3798 = vmatpush1.msra.mxu0 %v2188
        %3799 = vmatprep.subr.mxu0 0.0
        %3800 = vmatpush1.msra.mxu0 %v2187
        %3801 = vmatprep.subr.mxu0 0.0
        %3802 = vmatpush1.msra.mxu0 %v2186
        %3803 = vmatprep.subr.mxu0 0.0
        %3804 = vmatpush1.msra.mxu0 %v2185
        %3805 = vmatprep.subr.mxu0 0.0
        %3806 = vmatpush1.msra.mxu0 %v2184
        %3807 = vmatprep.subr.mxu0 0.0
        %3808 = vmatpush1.msra.mxu0 %v2183
        %3809 = vmatprep.subr.mxu0 0.0
        %3810 = vmatpush1.msra.mxu0 %v2182
        %3811 = vmatprep.subr.mxu0 0.0
        %3812 = vmatpush1.msra.mxu0 %v2181
        %3813 = vmatprep.subr.mxu0 0.0
        %3814 = vmatpush2.msra.mxu0 0.0
        %3815 = vmatprep.subr.mxu0 0.0
        %3816 = vmatpush2.msra.mxu0 0.0
        %3817 = vmatprep.subr.mxu0 0.0
        %3818 = vmatpush2.msra.mxu0 0.0
        %3819 = vmatprep.subr.mxu0 0.0
        %3820 = vmatpush2.msra.mxu0 0.0
        %3821 = vmatprep.subr.mxu0 0.0
        %3822 = vmatpush2.msra.mxu0 0.0
        %3823 = vmatprep.subr.mxu0 0.0
        %3824 = vmatpush2.msra.mxu0 0.0
        %3825 = vmatprep.subr.mxu0 0.0
        %3826 = vmatpush2.msra.mxu0 0.0
        %3827 = vmatprep.subr.mxu0 0.0
        %3828 = vmatpush2.msra.mxu0 0.0
        %3829 = vmatprep.subr.mxu0 0.0
        %3830 = vmatpush2.msra.mxu0 0.0
        %3831 = vmatprep.subr.mxu0 0.0
        %3832 = vmatpush2.msra.mxu0 0.0
        %3833 = vmatprep.subr.mxu0 0.0
        %3834 = vmatpush2.msra.mxu0 0.0
        %3835 = vmatprep.subr.mxu0 0.0
        %3836 = vmatpush2.msra.mxu0 0.0
        %3837 = vmatprep.subr.mxu0 0.0
        %3838 = vmatpush2.msra.mxu0 0.0
        %3839 = vmatprep.subr.mxu0 0.0
        %3840 = vmatpush2.msra.mxu0 0.0
        %3841 = vmatprep.subr.mxu0 0.0
        %3842 = vmatpush2.msra.mxu0 0.0
        %3843 = vmatprep.subr.mxu0 0.0
        %3844 = vmatpush2.msra.mxu0 0.0
        %3845 = vmatprep.mubr.f32.mxu0 0.0
        %3846 = vmatmul.mubr.f32.gmra.mxu0 %v2808
        %v3847 = vpop.f32.mrf.mxu0
        %v3848 = vadd.f32 0.0, %v3847
        %v3849 = vpop.f32.mrf.mxu0
        %3850 = vdwg.mxu0
        %v3852 = vsel %vm1127, %v3848, 0
        %3854 = vmatprep.subr.mxu0 0.0
        %3855 = vmatpush1.xpose.msra.mxu0 0.0
        %3856 = vmatprep.subr.mxu0 0.0
        %3857 = vmatpush1.xpose.msra.mxu0 0.0
        %3858 = vmatprep.subr.mxu0 0.0
        %3859 = vmatpush1.xpose.msra.mxu0 0.0
        %3860 = vmatprep.subr.mxu0 0.0
        %3861 = vmatpush1.xpose.msra.mxu0 0.0
        %3862 = vmatprep.subr.mxu0 0.0
        %3863 = vmatpush1.xpose.msra.mxu0 0.0
        %3864 = vmatprep.subr.mxu0 0.0
        %3865 = vmatpush1.xpose.msra.mxu0 0.0
        %3866 = vmatprep.subr.mxu0 0.0
        %3867 = vmatpush1.xpose.msra.mxu0 0.0
        %3868 = vmatprep.subr.mxu0 0.0
        %3869 = vmatpush1.xpose.msra.mxu0 0.0
        %3870 = vmatprep.subr.mxu0 0.0
        %3871 = vmatpush1.xpose.msra.mxu0 0.0
        %3872 = vmatprep.subr.mxu0 0.0
        %3873 = vmatpush1.xpose.msra.mxu0 0.0
        %3874 = vmatprep.subr.mxu0 0.0
        %3875 = vmatpush1.xpose.msra.mxu0 0.0
        %3876 = vmatprep.subr.mxu0 0.0
        %3877 = vmatpush1.xpose.msra.mxu0 0.0
        %3878 = vmatprep.subr.mxu0 0.0
        %3879 = vmatpush1.xpose.msra.mxu0 0.0
        %3880 = vmatprep.subr.mxu0 0.0
        %3881 = vmatpush1.xpose.msra.mxu0 0.0
        %3882 = vmatprep.subr.mxu0 0.0
        %3883 = vmatpush1.xpose.msra.mxu0 0.0
        %3884 = vmatprep.subr.mxu0 0.0
        %3885 = vmatpush1.xpose.msra.mxu0 %v2808
        %3886 = vmatprep.subr.mxu0 0.0
        %3887 = vmatpush2.xpose.msra.mxu0 0.0
        %3888 = vmatprep.subr.mxu0 0.0
        %3889 = vmatpush2.xpose.msra.mxu0 0.0
        %3890 = vmatprep.subr.mxu0 0.0
        %3891 = vmatpush2.xpose.msra.mxu0 0.0
        %3892 = vmatprep.subr.mxu0 0.0
        %3893 = vmatpush2.xpose.msra.mxu0 0.0
        %3894 = vmatprep.subr.mxu0 0.0
        %3895 = vmatpush2.xpose.msra.mxu0 0.0
        %3896 = vmatprep.subr.mxu0 0.0
        %3897 = vmatpush2.xpose.msra.mxu0 0.0
        %3898 = vmatprep.subr.mxu0 0.0
        %3899 = vmatpush2.xpose.msra.mxu0 0.0
        %3900 = vmatprep.subr.mxu0 0.0
        %3901 = vmatpush2.xpose.msra.mxu0 0.0
        %3902 = vmatprep.subr.mxu0 0.0
        %3903 = vmatpush2.xpose.msra.mxu0 0.0
        %3904 = vmatprep.subr.mxu0 0.0
        %3905 = vmatpush2.xpose.msra.mxu0 0.0
        %3906 = vmatprep.subr.mxu0 0.0
        %3907 = vmatpush2.xpose.msra.mxu0 0.0
        %3908 = vmatprep.subr.mxu0 0.0
        %3909 = vmatpush2.xpose.msra.mxu0 0.0
        %3910 = vmatprep.subr.mxu0 0.0
        %3911 = vmatpush2.xpose.msra.mxu0 0.0
        %3912 = vmatprep.subr.mxu0 0.0
        %3913 = vmatpush2.xpose.msra.mxu0 0.0
        %3914 = vmatprep.subr.mxu0 0.0
        %3915 = vmatpush2.xpose.msra.mxu0 0.0
        %3916 = vmatprep.subr.mxu0 0.0
        %3917 = vmatpush2.xpose.msra.mxu0 0.0
        %3918 = vmatprep.mubr.f32.mxu0 0.0
        %3919 = vmatmul.mubr.f32.gmra.mxu0 %v3852
        %v3920 = vpop.f32.mrf.mxu0
        %v3921 = vadd.f32 0.0, %v3920
        %v3922 = vpop.f32.mrf.mxu0
        %3923 = vdwg.mxu0
        %v3924 = vsel %vm1388, %v3921, -inf
        %3925 = vmax.xlane.f32.xlu0 %v3924
        %v3926 = vpop.xlane.xlu0 %3925
        %v3927 = vsub.f32 %v3921, %v3926
        %v3928 = vmul.f32 %v3927, 1.442695
        %v3929 = vpow.pop %v3928
        %v3930 = vsel %vm1388, %v3929, 0.0
        %3931 = vadd.xlane.f32.xlu0 %v3930
        %v3932 = vpop.xlane.xlu0 %3931
        %v3934 = vsel %vm1388, %v3929, 0
        %3936 = vmatprep.subr.mxu0 0.0
        %3937 = vmatpush1.msra.mxu0 0.0
        %3938 = vmatprep.subr.mxu0 0.0
        %3939 = vmatpush1.msra.mxu0 0.0
        %3940 = vmatprep.subr.mxu0 0.0
        %3941 = vmatpush1.msra.mxu0 0.0
        %3942 = vmatprep.subr.mxu0 0.0
        %3943 = vmatpush1.msra.mxu0 0.0
        %3944 = vmatprep.subr.mxu0 0.0
        %3945 = vmatpush1.msra.mxu0 0.0
        %3946 = vmatprep.subr.mxu0 0.0
        %3947 = vmatpush1.msra.mxu0 0.0
        %3948 = vmatprep.subr.mxu0 0.0
        %3949 = vmatpush1.msra.mxu0 0.0
        %3950 = vmatprep.subr.mxu0 0.0
        %3951 = vmatpush1.msra.mxu0 0.0
        %3952 = vmatprep.subr.mxu0 0.0
        %3953 = vmatpush1.msra.mxu0 0.0
        %3954 = vmatprep.subr.mxu0 0.0
        %3955 = vmatpush1.msra.mxu0 0.0
        %3956 = vmatprep.subr.mxu0 0.0
        %3957 = vmatpush1.msra.mxu0 0.0
        %3958 = vmatprep.subr.mxu0 0.0
        %3959 = vmatpush1.msra.mxu0 0.0
        %3960 = vmatprep.subr.mxu0 0.0
        %3961 = vmatpush1.msra.mxu0 0.0
        %3962 = vmatprep.subr.mxu0 0.0
        %3963 = vmatpush1.msra.mxu0 0.0
        %3964 = vmatprep.subr.mxu0 0.0
        %3965 = vmatpush1.msra.mxu0 0.0
        %3966 = vmatprep.subr.mxu0 0.0
        %3967 = vmatpush1.msra.mxu0 %v2877
        %3968 = vmatprep.subr.mxu0 0.0
        %3969 = vmatpush2.msra.mxu0 0.0
        %3970 = vmatprep.subr.mxu0 0.0
        %3971 = vmatpush2.msra.mxu0 0.0
        %3972 = vmatprep.subr.mxu0 0.0
        %3973 = vmatpush2.msra.mxu0 0.0
        %3974 = vmatprep.subr.mxu0 0.0
        %3975 = vmatpush2.msra.mxu0 0.0
        %3976 = vmatprep.subr.mxu0 0.0
        %3977 = vmatpush2.msra.mxu0 0.0
        %3978 = vmatprep.subr.mxu0 0.0
        %3979 = vmatpush2.msra.mxu0 0.0
        %3980 = vmatprep.subr.mxu0 0.0
        %3981 = vmatpush2.msra.mxu0 0.0
        %3982 = vmatprep.subr.mxu0 0.0
        %3983 = vmatpush2.msra.mxu0 0.0
        %3984 = vmatprep.subr.mxu0 0.0
        %3985 = vmatpush2.msra.mxu0 0.0
        %3986 = vmatprep.subr.mxu0 0.0
        %3987 = vmatpush2.msra.mxu0 0.0
        %3988 = vmatprep.subr.mxu0 0.0
        %3989 = vmatpush2.msra.mxu0 0.0
        %3990 = vmatprep.subr.mxu0 0.0
        %3991 = vmatpush2.msra.mxu0 0.0
        %3992 = vmatprep.subr.mxu0 0.0
        %3993 = vmatpush2.msra.mxu0 0.0
        %3994 = vmatprep.subr.mxu0 0.0
        %3995 = vmatpush2.msra.mxu0 0.0
        %3996 = vmatprep.subr.mxu0 0.0
        %3997 = vmatpush2.msra.mxu0 0.0
        %3998 = vmatprep.subr.mxu0 0.0
        %3999 = vmatpush2.msra.mxu0 0.0
        %4000 = vmatprep.mubr.f32.mxu0 0.0
        %4001 = vmatmul.mubr.f32.gmra.mxu0 %v3934
        %v4002 = vpop.f32.mrf.mxu0
        %v4003 = vadd.f32 0.0, %v4002
        %v4004 = vpop.f32.mrf.mxu0
        %4005 = vdwg.mxu0
        %v4006 = vrcp.pop %v3932
        %v4007 = vmul.f32 %v4003, %v4006
        %v4009 = vsel %vm1718, %v4007, 0
        %4011 = vmatprep.subr.mxu0 0.0
        %4012 = vmatpush1.msra.mxu0 0.0
        %4013 = vmatprep.subr.mxu0 0.0
        %4014 = vmatpush1.msra.mxu0 0.0
        %4015 = vmatprep.subr.mxu0 0.0
        %4016 = vmatpush1.msra.mxu0 0.0
        %4017 = vmatprep.subr.mxu0 0.0
        %4018 = vmatpush1.msra.mxu0 0.0
        %4019 = vmatprep.subr.mxu0 0.0
        %4020 = vmatpush1.msra.mxu0 0.0
        %4021 = vmatprep.subr.mxu0 0.0
        %4022 = vmatpush1.msra.mxu0 0.0
        %4023 = vmatprep.subr.mxu0 0.0
        %4024 = vmatpush1.msra.mxu0 0.0
        %4025 = vmatprep.subr.mxu0 0.0
        %4026 = vmatpush1.msra.mxu0 0.0
        %4027 = vmatprep.subr.mxu0 0.0
        %4028 = vmatpush1.msra.mxu0 0.0
        %4029 = vmatprep.subr.mxu0 0.0
        %4030 = vmatpush1.msra.mxu0 0.0
        %4031 = vmatprep.subr.mxu0 0.0
        %4032 = vmatpush1.msra.mxu0 0.0
        %4033 = vmatprep.subr.mxu0 0.0
        %4034 = vmatpush1.msra.mxu0 0.0
        %4035 = vmatprep.subr.mxu0 0.0
        %4036 = vmatpush1.msra.mxu0 %v2420
        %4037 = vmatprep.subr.mxu0 0.0
        %4038 = vmatpush1.msra.mxu0 %v2419
        %4039 = vmatprep.subr.mxu0 0.0
        %4040 = vmatpush1.msra.mxu0 %v2418
        %4041 = vmatprep.subr.mxu0 0.0
        %4042 = vmatpush1.msra.mxu0 %v2417
        %4043 = vmatprep.subr.mxu0 0.0
        %4044 = vmatpush2.msra.mxu0 0.0
        %4045 = vmatprep.subr.mxu0 0.0
        %4046 = vmatpush2.msra.mxu0 0.0
        %4047 = vmatprep.subr.mxu0 0.0
        %4048 = vmatpush2.msra.mxu0 0.0
        %4049 = vmatprep.subr.mxu0 0.0
        %4050 = vmatpush2.msra.mxu0 0.0
        %4051 = vmatprep.subr.mxu0 0.0
        %4052 = vmatpush2.msra.mxu0 0.0
        %4053 = vmatprep.subr.mxu0 0.0
        %4054 = vmatpush2.msra.mxu0 0.0
        %4055 = vmatprep.subr.mxu0 0.0
        %4056 = vmatpush2.msra.mxu0 0.0
        %4057 = vmatprep.subr.mxu0 0.0
        %4058 = vmatpush2.msra.mxu0 0.0
        %4059 = vmatprep.subr.mxu0 0.0
        %4060 = vmatpush2.msra.mxu0 0.0
        %4061 = vmatprep.subr.mxu0 0.0
        %4062 = vmatpush2.msra.mxu0 0.0
        %4063 = vmatprep.subr.mxu0 0.0
        %4064 = vmatpush2.msra.mxu0 0.0
        %4065 = vmatprep.subr.mxu0 0.0
        %4066 = vmatpush2.msra.mxu0 0.0
        %4067 = vmatprep.subr.mxu0 0.0
        %4068 = vmatpush2.msra.mxu0 0.0
        %4069 = vmatprep.subr.mxu0 0.0
        %4070 = vmatpush2.msra.mxu0 0.0
        %4071 = vmatprep.subr.mxu0 0.0
        %4072 = vmatpush2.msra.mxu0 0.0
        %4073 = vmatprep.subr.mxu0 0.0
        %4074 = vmatpush2.msra.mxu0 0.0
        %4075 = vmatprep.mubr.f32.mxu0 0.0
        %4076 = vmatmul.mubr.f32.gmra.mxu0 %v4009
        %v4077 = vpop.f32.mrf.mxu0
        %v4078 = vadd.f32 0.0, %v4077
        %v4079 = vpop.f32.mrf.mxu0
        %4080 = vdwg.mxu0
        %v4081 = vadd.f32 %v3780, %v4078
        %v4082 = vadd.f32 %v4081, %v2500
        %v4083 = vadd.f32 %v4082, %v2791
        %v4084 = vsel %vm1127, %v4083, 0.0
        %4085 = vadd.xlane.f32.xlu0 %v4084
        %v4086 = vpop.xlane.xlu0 %4085
        %v4087 = vmul.f32 %v4086, %v1131
        %v4088 = vsub.f32 %v4083, %v4087
        %v4089 = vmul.f32 %v4088, %v4088
        %v4090 = vsel %vm1127, %v4089, 0.0
        %4091 = vadd.xlane.f32.xlu0 %v4090
        %v4092 = vpop.xlane.xlu0 %4091
        %v4093 = vmul.f32 %v4092, %v1131
        %v4094 = vadd.f32 %v4093, 1e-05
        %v4095 = vrsqrt.pop %v4094
        %v4096 = vmul.f32 %v4088, %v4095
        %v4097 = vmul.f32 %v4096, %v2523
        %v4098 = vadd.f32 %v4097, %v2530
        %v4100 = vsel %vm1127, %v4098, 0
        %4102 = vmatprep.subr.mxu0 0.0
        %4103 = vmatpush1.msra.mxu0 0.0
        %4104 = vmatprep.subr.mxu0 0.0
        %4105 = vmatpush1.msra.mxu0 0.0
        %4106 = vmatprep.subr.mxu0 0.0
        %4107 = vmatpush1.msra.mxu0 0.0
        %4108 = vmatprep.subr.mxu0 0.0
        %4109 = vmatpush1.msra.mxu0 0.0
        %4110 = vmatprep.subr.mxu0 0.0
        %4111 = vmatpush1.msra.mxu0 0.0
        %4112 = vmatprep.subr.mxu0 0.0
        %4113 = vmatpush1.msra.mxu0 0.0
        %4114 = vmatprep.subr.mxu0 0.0
        %4115 = vmatpush1.msra.mxu0 0.0
        %4116 = vmatprep.subr.mxu0 0.0
        %4117 = vmatpush1.msra.mxu0 0.0
        %4118 = vmatprep.subr.mxu0 0.0
        %4119 = vmatpush1.msra.mxu0 %v2540
        %4120 = vmatprep.subr.mxu0 0.0
        %4121 = vmatpush1.msra.mxu0 %v2539
        %4122 = vmatprep.subr.mxu0 0.0
        %4123 = vmatpush1.msra.mxu0 %v2538
        %4124 = vmatprep.subr.mxu0 0.0
        %4125 = vmatpush1.msra.mxu0 %v2537
        %4126 = vmatprep.subr.mxu0 0.0
        %4127 = vmatpush1.msra.mxu0 %v2536
        %4128 = vmatprep.subr.mxu0 0.0
        %4129 = vmatpush1.msra.mxu0 %v2535
        %4130 = vmatprep.subr.mxu0 0.0
        %4131 = vmatpush1.msra.mxu0 %v2534
        %4132 = vmatprep.subr.mxu0 0.0
        %4133 = vmatpush1.msra.mxu0 %v2533
        %4134 = vmatprep.subr.mxu0 0.0
        %4135 = vmatpush2.msra.mxu0 0.0
        %4136 = vmatprep.subr.mxu0 0.0
        %4137 = vmatpush2.msra.mxu0 0.0
        %4138 = vmatprep.subr.mxu0 0.0
        %4139 = vmatpush2.msra.mxu0 0.0
        %4140 = vmatprep.subr.mxu0 0.0
        %4141 = vmatpush2.msra.mxu0 0.0
        %4142 = vmatprep.subr.mxu0 0.0
        %4143 = vmatpush2.msra.mxu0 0.0
        %4144 = vmatprep.subr.mxu0 0.0
        %4145 = vmatpush2.msra.mxu0 0.0
        %4146 = vmatprep.subr.mxu0 0.0
        %4147 = vmatpush2.msra.mxu0 0.0
        %4148 = vmatprep.subr.mxu0 0.0
        %4149 = vmatpush2.msra.mxu0 0.0
        %4150 = vmatprep.subr.mxu0 0.0
        %4151 = vmatpush2.msra.mxu0 0.0
        %4152 = vmatprep.subr.mxu0 0.0
        %4153 = vmatpush2.msra.mxu0 0.0
        %4154 = vmatprep.subr.mxu0 0.0
        %4155 = vmatpush2.msra.mxu0 0.0
        %4156 = vmatprep.subr.mxu0 0.0
        %4157 = vmatpush2.msra.mxu0 0.0
        %4158 = vmatprep.subr.mxu0 0.0
        %4159 = vmatpush2.msra.mxu0 0.0
        %4160 = vmatprep.subr.mxu0 0.0
        %4161 = vmatpush2.msra.mxu0 0.0
        %4162 = vmatprep.subr.mxu0 0.0
        %4163 = vmatpush2.msra.mxu0 0.0
        %4164 = vmatprep.subr.mxu0 0.0
        %4165 = vmatpush2.msra.mxu0 0.0
        %4166 = vmatprep.mubr.f32.mxu0 0.0
        %4167 = vmatmul.mubr.f32.gmra.mxu0 %v4100
        %v4168 = vpop.f32.mrf.mxu0
        %v4169 = vadd.f32 %v2546, %v4168
        %v4170 = vpop.f32.mrf.mxu0
        %4171 = vdwg.mxu0
        %v4172 = vmul.f32 %v4169, %v4169
        %v4173 = vmul.f32 %v4169, %v4172
        %v4174 = vmul.f32 %v4173, 0.044715
        %v4175 = vadd.f32 %v4169, %v4174
        %v4176 = vmul.f32 %v4175, 0.7978846
        %v4177 = vtanh.pop %v4176
        %v4178 = vadd.f32 %v4177, 1.0
        %v4179 = vmul.f32 %v4178, 0.5
        %v4180 = vmul.f32 %v4169, %v4179
        %v4182 = vsel %vm1718, %v4180, 0
        %4184 = vmatprep.subr.mxu0 0.0
        %4185 = vmatpush1.msra.mxu0 0.0
        %4186 = vmatprep.subr.mxu0 0.0
        %4187 = vmatpush1.msra.mxu0 0.0
        %4188 = vmatprep.subr.mxu0 0.0
        %4189 = vmatpush1.msra.mxu0 0.0
        %4190 = vmatprep.subr.mxu0 0.0
        %4191 = vmatpush1.msra.mxu0 0.0
        %4192 = vmatprep.subr.mxu0 0.0
        %4193 = vmatpush1.msra.mxu0 0.0
        %4194 = vmatprep.subr.mxu0 0.0
        %4195 = vmatpush1.msra.mxu0 0.0
        %4196 = vmatprep.subr.mxu0 0.0
        %4197 = vmatpush1.msra.mxu0 0.0
        %4198 = vmatprep.subr.mxu0 0.0
        %4199 = vmatpush1.msra.mxu0 0.0
        %4200 = vmatprep.subr.mxu0 0.0
        %4201 = vmatpush1.msra.mxu0 0.0
        %4202 = vmatprep.subr.mxu0 0.0
        %4203 = vmatpush1.msra.mxu0 0.0
        %4204 = vmatprep.subr.mxu0 0.0
        %4205 = vmatpush1.msra.mxu0 0.0
        %4206 = vmatprep.subr.mxu0 0.0
        %4207 = vmatpush1.msra.mxu0 0.0
        %4208 = vmatprep.subr.mxu0 0.0
        %4209 = vmatpush1.msra.mxu0 %v2633
        %4210 = vmatprep.subr.mxu0 0.0
        %4211 = vmatpush1.msra.mxu0 %v2632
        %4212 = vmatprep.subr.mxu0 0.0
        %4213 = vmatpush1.msra.mxu0 %v2631
        %4214 = vmatprep.subr.mxu0 0.0
        %4215 = vmatpush1.msra.mxu0 %v2630
        %4216 = vmatprep.subr.mxu0 0.0
        %4217 = vmatpush2.msra.mxu0 0.0
        %4218 = vmatprep.subr.mxu0 0.0
        %4219 = vmatpush2.msra.mxu0 0.0
        %4220 = vmatprep.subr.mxu0 0.0
        %4221 = vmatpush2.msra.mxu0 0.0
        %4222 = vmatprep.subr.mxu0 0.0
        %4223 = vmatpush2.msra.mxu0 0.0
        %4224 = vmatprep.subr.mxu0 0.0
        %4225 = vmatpush2.msra.mxu0 0.0
        %4226 = vmatprep.subr.mxu0 0.0
        %4227 = vmatpush2.msra.mxu0 0.0
        %4228 = vmatprep.subr.mxu0 0.0
        %4229 = vmatpush2.msra.mxu0 0.0
        %4230 = vmatprep.subr.mxu0 0.0
        %4231 = vmatpush2.msra.mxu0 0.0
        %4232 = vmatprep.subr.mxu0 0.0
        %4233 = vmatpush2.msra.mxu0 0.0
        %4234 = vmatprep.subr.mxu0 0.0
        %4235 = vmatpush2.msra.mxu0 0.0
        %4236 = vmatprep.subr.mxu0 0.0
        %4237 = vmatpush2.msra.mxu0 0.0
        %4238 = vmatprep.subr.mxu0 0.0
        %4239 = vmatpush2.msra.mxu0 0.0
        %4240 = vmatprep.subr.mxu0 0.0
        %4241 = vmatpush2.msra.mxu0 0.0
        %4242 = vmatprep.subr.mxu0 0.0
        %4243 = vmatpush2.msra.mxu0 0.0
        %4244 = vmatprep.subr.mxu0 0.0
        %4245 = vmatpush2.msra.mxu0 0.0
        %4246 = vmatprep.subr.mxu0 0.0
        %4247 = vmatpush2.msra.mxu0 0.0
        %4248 = vmatprep.mubr.f32.mxu0 0.0
        %4249 = vmatmul.mubr.f32.gmra.mxu0 %v4182
        %v4250 = vpop.f32.mrf.mxu0
        %v4251 = vadd.f32 %v2639, %v4250
        %v4252 = vpop.f32.mrf.mxu0
        %4253 = vdwg.mxu0
        %v4254 = vadd.f32 %v4251, %v4083
        %v4255 = vadd.f32 %v2715, %v4254
        %s4256 = scalar_lea.vmem %s836, 16 [#allocation5]
        %v4257 = vld [vmem:[%s4256] sm:$0xff]
        %v4259 = vsel %vm974, %v4257, 0
        %4261 = vmatprep.subr.mxu0 0.0
        %4262 = vmatpush1.msra.mxu0 0.0
        %4263 = vmatprep.subr.mxu0 0.0
        %4264 = vmatpush1.msra.mxu0 0.0
        %4265 = vmatprep.subr.mxu0 0.0
        %4266 = vmatpush1.msra.mxu0 0.0
        %4267 = vmatprep.subr.mxu0 0.0
        %4268 = vmatpush1.msra.mxu0 0.0
        %4269 = vmatprep.subr.mxu0 0.0
        %4270 = vmatpush1.msra.mxu0 0.0
        %4271 = vmatprep.subr.mxu0 0.0
        %4272 = vmatpush1.msra.mxu0 0.0
        %4273 = vmatprep.subr.mxu0 0.0
        %4274 = vmatpush1.msra.mxu0 0.0
        %4275 = vmatprep.subr.mxu0 0.0
        %4276 = vmatpush1.msra.mxu0 0.0
        %4277 = vmatprep.subr.mxu0 0.0
        %4278 = vmatpush1.msra.mxu0 0.0
        %4279 = vmatprep.subr.mxu0 0.0
        %4280 = vmatpush1.msra.mxu0 0.0
        %4281 = vmatprep.subr.mxu0 0.0
        %4282 = vmatpush1.msra.mxu0 0.0
        %4283 = vmatprep.subr.mxu0 0.0
        %4284 = vmatpush1.msra.mxu0 0.0
        %4285 = vmatprep.subr.mxu0 0.0
        %4286 = vmatpush1.msra.mxu0 0.0
        %4287 = vmatprep.subr.mxu0 0.0
        %4288 = vmatpush1.msra.mxu0 0.0
        %4289 = vmatprep.subr.mxu0 0.0
        %4290 = vmatpush1.msra.mxu0 %v1050
        %4291 = vmatprep.subr.mxu0 0.0
        %4292 = vmatpush1.msra.mxu0 %v1049
        %4293 = vmatprep.subr.mxu0 0.0
        %4294 = vmatpush2.msra.mxu0 0.0
        %4295 = vmatprep.subr.mxu0 0.0
        %4296 = vmatpush2.msra.mxu0 0.0
        %4297 = vmatprep.subr.mxu0 0.0
        %4298 = vmatpush2.msra.mxu0 0.0
        %4299 = vmatprep.subr.mxu0 0.0
        %4300 = vmatpush2.msra.mxu0 0.0
        %4301 = vmatprep.subr.mxu0 0.0
        %4302 = vmatpush2.msra.mxu0 0.0
        %4303 = vmatprep.subr.mxu0 0.0
        %4304 = vmatpush2.msra.mxu0 0.0
        %4305 = vmatprep.subr.mxu0 0.0
        %4306 = vmatpush2.msra.mxu0 0.0
        %4307 = vmatprep.subr.mxu0 0.0
        %4308 = vmatpush2.msra.mxu0 0.0
        %4309 = vmatprep.subr.mxu0 0.0
        %4310 = vmatpush2.msra.mxu0 0.0
        %4311 = vmatprep.subr.mxu0 0.0
        %4312 = vmatpush2.msra.mxu0 0.0
        %4313 = vmatprep.subr.mxu0 0.0
        %4314 = vmatpush2.msra.mxu0 0.0
        %4315 = vmatprep.subr.mxu0 0.0
        %4316 = vmatpush2.msra.mxu0 0.0
        %4317 = vmatprep.subr.mxu0 0.0
        %4318 = vmatpush2.msra.mxu0 0.0
        %4319 = vmatprep.subr.mxu0 0.0
        %4320 = vmatpush2.msra.mxu0 0.0
        %4321 = vmatprep.subr.mxu0 0.0
        %4322 = vmatpush2.msra.mxu0 0.0
        %4323 = vmatprep.subr.mxu0 0.0
        %4324 = vmatpush2.msra.mxu0 0.0
        %4325 = vmatprep.mubr.f32.mxu0 0.0
        %4326 = vmatmul.mubr.f32.gmra.mxu0 %v4259
        %v4327 = vpop.f32.mrf.mxu0
        %v4328 = vadd.f32 0.0, %v4327
        %v4329 = vpop.f32.mrf.mxu0
        %4330 = vdwg.mxu0
        %v4331 = vadd.f32 %v1045, %v4328
        %v4332 = vsel %vm1127, %v4331, 0.0
        %4333 = vadd.xlane.f32.xlu0 %v4332
        %v4334 = vpop.xlane.xlu0 %4333
        %v4335 = vmul.f32 %v4334, %v1131
        %v4336 = vsub.f32 %v4331, %v4335
        %v4337 = vmul.f32 %v4336, %v4336
        %v4338 = vsel %vm1127, %v4337, 0.0
        %4339 = vadd.xlane.f32.xlu0 %v4338
        %v4340 = vpop.xlane.xlu0 %4339
        %v4341 = vmul.f32 %v4340, %v1131
        %v4342 = vadd.f32 %v4341, 1e-05
        %v4343 = vrsqrt.pop %v4342
        %v4344 = vmul.f32 %v4336, %v4343
        %v4345 = vmul.f32 %v4344, %v1146
        %v4346 = vadd.f32 %v4345, %v1153
        %v4348 = vsel %vm1127, %v4346, 0
        %4350 = vmatprep.subr.mxu0 0.0
        %4351 = vmatpush1.msra.mxu0 0.0
        %4352 = vmatprep.subr.mxu0 0.0
        %4353 = vmatpush1.msra.mxu0 0.0
        %4354 = vmatprep.subr.mxu0 0.0
        %4355 = vmatpush1.msra.mxu0 0.0
        %4356 = vmatprep.subr.mxu0 0.0
        %4357 = vmatpush1.msra.mxu0 0.0
        %4358 = vmatprep.subr.mxu0 0.0
        %4359 = vmatpush1.msra.mxu0 0.0
        %4360 = vmatprep.subr.mxu0 0.0
        %4361 = vmatpush1.msra.mxu0 0.0
        %4362 = vmatprep.subr.mxu0 0.0
        %4363 = vmatpush1.msra.mxu0 0.0
        %4364 = vmatprep.subr.mxu0 0.0
        %4365 = vmatpush1.msra.mxu0 0.0
        %4366 = vmatprep.subr.mxu0 0.0
        %4367 = vmatpush1.msra.mxu0 %v1163
        %4368 = vmatprep.subr.mxu0 0.0
        %4369 = vmatpush1.msra.mxu0 %v1162
        %4370 = vmatprep.subr.mxu0 0.0
        %4371 = vmatpush1.msra.mxu0 %v1161
        %4372 = vmatprep.subr.mxu0 0.0
        %4373 = vmatpush1.msra.mxu0 %v1160
        %4374 = vmatprep.subr.mxu0 0.0
        %4375 = vmatpush1.msra.mxu0 %v1159
        %4376 = vmatprep.subr.mxu0 0.0
        %4377 = vmatpush1.msra.mxu0 %v1158
        %4378 = vmatprep.subr.mxu0 0.0
        %4379 = vmatpush1.msra.mxu0 %v1157
        %4380 = vmatprep.subr.mxu0 0.0
        %4381 = vmatpush1.msra.mxu0 %v1156
        %4382 = vmatprep.subr.mxu0 0.0
        %4383 = vmatpush2.msra.mxu0 0.0
        %4384 = vmatprep.subr.mxu0 0.0
        %4385 = vmatpush2.msra.mxu0 0.0
        %4386 = vmatprep.subr.mxu0 0.0
        %4387 = vmatpush2.msra.mxu0 0.0
        %4388 = vmatprep.subr.mxu0 0.0
        %4389 = vmatpush2.msra.mxu0 0.0
        %4390 = vmatprep.subr.mxu0 0.0
        %4391 = vmatpush2.msra.mxu0 0.0
        %4392 = vmatprep.subr.mxu0 0.0
        %4393 = vmatpush2.msra.mxu0 0.0
        %4394 = vmatprep.subr.mxu0 0.0
        %4395 = vmatpush2.msra.mxu0 0.0
        %4396 = vmatprep.subr.mxu0 0.0
        %4397 = vmatpush2.msra.mxu0 0.0
        %4398 = vmatprep.subr.mxu0 0.0
        %4399 = vmatpush2.msra.mxu0 0.0
        %4400 = vmatprep.subr.mxu0 0.0
        %4401 = vmatpush2.msra.mxu0 0.0
        %4402 = vmatprep.subr.mxu0 0.0
        %4403 = vmatpush2.msra.mxu0 0.0
        %4404 = vmatprep.subr.mxu0 0.0
        %4405 = vmatpush2.msra.mxu0 0.0
        %4406 = vmatprep.subr.mxu0 0.0
        %4407 = vmatpush2.msra.mxu0 0.0
        %4408 = vmatprep.subr.mxu0 0.0
        %4409 = vmatpush2.msra.mxu0 0.0
        %4410 = vmatprep.subr.mxu0 0.0
        %4411 = vmatpush2.msra.mxu0 0.0
        %4412 = vmatprep.subr.mxu0 0.0
        %4413 = vmatpush2.msra.mxu0 0.0
        %4414 = vmatprep.mubr.f32.mxu0 0.0
        %4415 = vmatmul.mubr.f32.gmra.mxu0 %v4348
        %v4416 = vpop.f32.mrf.mxu0
        %v4417 = vadd.f32 0.0, %v4416
        %v4418 = vpop.f32.mrf.mxu0
        %4419 = vdwg.mxu0
        %4420 = vmatprep.subr.mxu0 0.0
        %4421 = vmatpush1.msra.mxu0 0.0
        %4422 = vmatprep.subr.mxu0 0.0
        %4423 = vmatpush1.msra.mxu0 0.0
        %4424 = vmatprep.subr.mxu0 0.0
        %4425 = vmatpush1.msra.mxu0 0.0
        %4426 = vmatprep.subr.mxu0 0.0
        %4427 = vmatpush1.msra.mxu0 0.0
        %4428 = vmatprep.subr.mxu0 0.0
        %4429 = vmatpush1.msra.mxu0 0.0
        %4430 = vmatprep.subr.mxu0 0.0
        %4431 = vmatpush1.msra.mxu0 0.0
        %4432 = vmatprep.subr.mxu0 0.0
        %4433 = vmatpush1.msra.mxu0 0.0
        %4434 = vmatprep.subr.mxu0 0.0
        %4435 = vmatpush1.msra.mxu0 0.0
        %4436 = vmatprep.subr.mxu0 0.0
        %4437 = vmatpush1.msra.mxu0 %v1244
        %4438 = vmatprep.subr.mxu0 0.0
        %4439 = vmatpush1.msra.mxu0 %v1243
        %4440 = vmatprep.subr.mxu0 0.0
        %4441 = vmatpush1.msra.mxu0 %v1242
        %4442 = vmatprep.subr.mxu0 0.0
        %4443 = vmatpush1.msra.mxu0 %v1241
        %4444 = vmatprep.subr.mxu0 0.0
        %4445 = vmatpush1.msra.mxu0 %v1240
        %4446 = vmatprep.subr.mxu0 0.0
        %4447 = vmatpush1.msra.mxu0 %v1239
        %4448 = vmatprep.subr.mxu0 0.0
        %4449 = vmatpush1.msra.mxu0 %v1238
        %4450 = vmatprep.subr.mxu0 0.0
        %4451 = vmatpush1.msra.mxu0 %v1237
        %4452 = vmatprep.subr.mxu0 0.0
        %4453 = vmatpush2.msra.mxu0 0.0
        %4454 = vmatprep.subr.mxu0 0.0
        %4455 = vmatpush2.msra.mxu0 0.0
        %4456 = vmatprep.subr.mxu0 0.0
        %4457 = vmatpush2.msra.mxu0 0.0
        %4458 = vmatprep.subr.mxu0 0.0
        %4459 = vmatpush2.msra.mxu0 0.0
        %4460 = vmatprep.subr.mxu0 0.0
        %4461 = vmatpush2.msra.mxu0 0.0
        %4462 = vmatprep.subr.mxu0 0.0
        %4463 = vmatpush2.msra.mxu0 0.0
        %4464 = vmatprep.subr.mxu0 0.0
        %4465 = vmatpush2.msra.mxu0 0.0
        %4466 = vmatprep.subr.mxu0 0.0
        %4467 = vmatpush2.msra.mxu0 0.0
        %4468 = vmatprep.subr.mxu0 0.0
        %4469 = vmatpush2.msra.mxu0 0.0
        %4470 = vmatprep.subr.mxu0 0.0
        %4471 = vmatpush2.msra.mxu0 0.0
        %4472 = vmatprep.subr.mxu0 0.0
        %4473 = vmatpush2.msra.mxu0 0.0
        %4474 = vmatprep.subr.mxu0 0.0
        %4475 = vmatpush2.msra.mxu0 0.0
        %4476 = vmatprep.subr.mxu0 0.0
        %4477 = vmatpush2.msra.mxu0 0.0
        %4478 = vmatprep.subr.mxu0 0.0
        %4479 = vmatpush2.msra.mxu0 0.0
        %4480 = vmatprep.subr.mxu0 0.0
        %4481 = vmatpush2.msra.mxu0 0.0
        %4482 = vmatprep.subr.mxu0 0.0
        %4483 = vmatpush2.msra.mxu0 0.0
        %4484 = vmatprep.mubr.f32.mxu0 0.0
        %4485 = vmatmul.mubr.f32.gmra.mxu0 %v4348
        %v4486 = vpop.f32.mrf.mxu0
        %v4487 = vadd.f32 0.0, %v4486
        %v4488 = vpop.f32.mrf.mxu0
        %4489 = vdwg.mxu0
        %v4491 = vsel %vm1127, %v4487, 0
        %4493 = vmatprep.subr.mxu0 0.0
        %4494 = vmatpush1.xpose.msra.mxu0 0.0
        %4495 = vmatprep.subr.mxu0 0.0
        %4496 = vmatpush1.xpose.msra.mxu0 0.0
        %4497 = vmatprep.subr.mxu0 0.0
        %4498 = vmatpush1.xpose.msra.mxu0 0.0
        %4499 = vmatprep.subr.mxu0 0.0
        %4500 = vmatpush1.xpose.msra.mxu0 0.0
        %4501 = vmatprep.subr.mxu0 0.0
        %4502 = vmatpush1.xpose.msra.mxu0 0.0
        %4503 = vmatprep.subr.mxu0 0.0
        %4504 = vmatpush1.xpose.msra.mxu0 0.0
        %4505 = vmatprep.subr.mxu0 0.0
        %4506 = vmatpush1.xpose.msra.mxu0 0.0
        %4507 = vmatprep.subr.mxu0 0.0
        %4508 = vmatpush1.xpose.msra.mxu0 0.0
        %4509 = vmatprep.subr.mxu0 0.0
        %4510 = vmatpush1.xpose.msra.mxu0 0.0
        %4511 = vmatprep.subr.mxu0 0.0
        %4512 = vmatpush1.xpose.msra.mxu0 0.0
        %4513 = vmatprep.subr.mxu0 0.0
        %4514 = vmatpush1.xpose.msra.mxu0 0.0
        %4515 = vmatprep.subr.mxu0 0.0
        %4516 = vmatpush1.xpose.msra.mxu0 0.0
        %4517 = vmatprep.subr.mxu0 0.0
        %4518 = vmatpush1.xpose.msra.mxu0 0.0
        %4519 = vmatprep.subr.mxu0 0.0
        %4520 = vmatpush1.xpose.msra.mxu0 0.0
        %4521 = vmatprep.subr.mxu0 0.0
        %4522 = vmatpush1.xpose.msra.mxu0 0.0
        %4523 = vmatprep.subr.mxu0 0.0
        %4524 = vmatpush1.xpose.msra.mxu0 %v4348
        %4525 = vmatprep.subr.mxu0 0.0
        %4526 = vmatpush2.xpose.msra.mxu0 0.0
        %4527 = vmatprep.subr.mxu0 0.0
        %4528 = vmatpush2.xpose.msra.mxu0 0.0
        %4529 = vmatprep.subr.mxu0 0.0
        %4530 = vmatpush2.xpose.msra.mxu0 0.0
        %4531 = vmatprep.subr.mxu0 0.0
        %4532 = vmatpush2.xpose.msra.mxu0 0.0
        %4533 = vmatprep.subr.mxu0 0.0
        %4534 = vmatpush2.xpose.msra.mxu0 0.0
        %4535 = vmatprep.subr.mxu0 0.0
        %4536 = vmatpush2.xpose.msra.mxu0 0.0
        %4537 = vmatprep.subr.mxu0 0.0
        %4538 = vmatpush2.xpose.msra.mxu0 0.0
        %4539 = vmatprep.subr.mxu0 0.0
        %4540 = vmatpush2.xpose.msra.mxu0 0.0
        %4541 = vmatprep.subr.mxu0 0.0
        %4542 = vmatpush2.xpose.msra.mxu0 0.0
        %4543 = vmatprep.subr.mxu0 0.0
        %4544 = vmatpush2.xpose.msra.mxu0 0.0
        %4545 = vmatprep.subr.mxu0 0.0
        %4546 = vmatpush2.xpose.msra.mxu0 0.0
        %4547 = vmatprep.subr.mxu0 0.0
        %4548 = vmatpush2.xpose.msra.mxu0 0.0
        %4549 = vmatprep.subr.mxu0 0.0
        %4550 = vmatpush2.xpose.msra.mxu0 0.0
        %4551 = vmatprep.subr.mxu0 0.0
        %4552 = vmatpush2.xpose.msra.mxu0 0.0
        %4553 = vmatprep.subr.mxu0 0.0
        %4554 = vmatpush2.xpose.msra.mxu0 0.0
        %4555 = vmatprep.subr.mxu0 0.0
        %4556 = vmatpush2.xpose.msra.mxu0 0.0
        %4557 = vmatprep.mubr.f32.mxu0 0.0
        %4558 = vmatmul.mubr.f32.gmra.mxu0 %v4491
        %v4559 = vpop.f32.mrf.mxu0
        %v4560 = vadd.f32 0.0, %v4559
        %v4561 = vpop.f32.mrf.mxu0
        %4562 = vdwg.mxu0
        %v4563 = vsel %vm1388, %v4560, -inf
        %4564 = vmax.xlane.f32.xlu0 %v4563
        %v4565 = vpop.xlane.xlu0 %4564
        %v4566 = vsub.f32 %v4560, %v4565
        %v4567 = vmul.f32 %v4566, 1.442695
        %v4568 = vpow.pop %v4567
        %v4569 = vsel %vm1388, %v4568, 0.0
        %4570 = vadd.xlane.f32.xlu0 %v4569
        %v4571 = vpop.xlane.xlu0 %4570
        %v4573 = vsel %vm1388, %v4568, 0
        %4575 = vmatprep.subr.mxu0 0.0
        %4576 = vmatpush1.msra.mxu0 0.0
        %4577 = vmatprep.subr.mxu0 0.0
        %4578 = vmatpush1.msra.mxu0 0.0
        %4579 = vmatprep.subr.mxu0 0.0
        %4580 = vmatpush1.msra.mxu0 0.0
        %4581 = vmatprep.subr.mxu0 0.0
        %4582 = vmatpush1.msra.mxu0 0.0
        %4583 = vmatprep.subr.mxu0 0.0
        %4584 = vmatpush1.msra.mxu0 0.0
        %4585 = vmatprep.subr.mxu0 0.0
        %4586 = vmatpush1.msra.mxu0 0.0
        %4587 = vmatprep.subr.mxu0 0.0
        %4588 = vmatpush1.msra.mxu0 0.0
        %4589 = vmatprep.subr.mxu0 0.0
        %4590 = vmatpush1.msra.mxu0 0.0
        %4591 = vmatprep.subr.mxu0 0.0
        %4592 = vmatpush1.msra.mxu0 0.0
        %4593 = vmatprep.subr.mxu0 0.0
        %4594 = vmatpush1.msra.mxu0 0.0
        %4595 = vmatprep.subr.mxu0 0.0
        %4596 = vmatpush1.msra.mxu0 0.0
        %4597 = vmatprep.subr.mxu0 0.0
        %4598 = vmatpush1.msra.mxu0 0.0
        %4599 = vmatprep.subr.mxu0 0.0
        %4600 = vmatpush1.msra.mxu0 0.0
        %4601 = vmatprep.subr.mxu0 0.0
        %4602 = vmatpush1.msra.mxu0 0.0
        %4603 = vmatprep.subr.mxu0 0.0
        %4604 = vmatpush1.msra.mxu0 0.0
        %4605 = vmatprep.subr.mxu0 0.0
        %4606 = vmatpush1.msra.mxu0 %v4417
        %4607 = vmatprep.subr.mxu0 0.0
        %4608 = vmatpush2.msra.mxu0 0.0
        %4609 = vmatprep.subr.mxu0 0.0
        %4610 = vmatpush2.msra.mxu0 0.0
        %4611 = vmatprep.subr.mxu0 0.0
        %4612 = vmatpush2.msra.mxu0 0.0
        %4613 = vmatprep.subr.mxu0 0.0
        %4614 = vmatpush2.msra.mxu0 0.0
        %4615 = vmatprep.subr.mxu0 0.0
        %4616 = vmatpush2.msra.mxu0 0.0
        %4617 = vmatprep.subr.mxu0 0.0
        %4618 = vmatpush2.msra.mxu0 0.0
        %4619 = vmatprep.subr.mxu0 0.0
        %4620 = vmatpush2.msra.mxu0 0.0
        %4621 = vmatprep.subr.mxu0 0.0
        %4622 = vmatpush2.msra.mxu0 0.0
        %4623 = vmatprep.subr.mxu0 0.0
        %4624 = vmatpush2.msra.mxu0 0.0
        %4625 = vmatprep.subr.mxu0 0.0
        %4626 = vmatpush2.msra.mxu0 0.0
        %4627 = vmatprep.subr.mxu0 0.0
        %4628 = vmatpush2.msra.mxu0 0.0
        %4629 = vmatprep.subr.mxu0 0.0
        %4630 = vmatpush2.msra.mxu0 0.0
        %4631 = vmatprep.subr.mxu0 0.0
        %4632 = vmatpush2.msra.mxu0 0.0
        %4633 = vmatprep.subr.mxu0 0.0
        %4634 = vmatpush2.msra.mxu0 0.0
        %4635 = vmatprep.subr.mxu0 0.0
        %4636 = vmatpush2.msra.mxu0 0.0
        %4637 = vmatprep.subr.mxu0 0.0
        %4638 = vmatpush2.msra.mxu0 0.0
        %4639 = vmatprep.mubr.f32.mxu0 0.0
        %4640 = vmatmul.mubr.f32.gmra.mxu0 %v4573
        %v4641 = vpop.f32.mrf.mxu0
        %v4642 = vadd.f32 0.0, %v4641
        %v4643 = vpop.f32.mrf.mxu0
        %4644 = vdwg.mxu0
        %v4645 = vrcp.pop %v4571
        %v4646 = vmul.f32 %v4642, %v4645
        %4647 = vmatprep.subr.mxu0 0.0
        %4648 = vmatpush1.msra.mxu0 0.0
        %4649 = vmatprep.subr.mxu0 0.0
        %4650 = vmatpush1.msra.mxu0 0.0
        %4651 = vmatprep.subr.mxu0 0.0
        %4652 = vmatpush1.msra.mxu0 0.0
        %4653 = vmatprep.subr.mxu0 0.0
        %4654 = vmatpush1.msra.mxu0 0.0
        %4655 = vmatprep.subr.mxu0 0.0
        %4656 = vmatpush1.msra.mxu0 0.0
        %4657 = vmatprep.subr.mxu0 0.0
        %4658 = vmatpush1.msra.mxu0 0.0
        %4659 = vmatprep.subr.mxu0 0.0
        %4660 = vmatpush1.msra.mxu0 0.0
        %4661 = vmatprep.subr.mxu0 0.0
        %4662 = vmatpush1.msra.mxu0 0.0
        %4663 = vmatprep.subr.mxu0 0.0
        %4664 = vmatpush1.msra.mxu0 %v1485
        %4665 = vmatprep.subr.mxu0 0.0
        %4666 = vmatpush1.msra.mxu0 %v1484
        %4667 = vmatprep.subr.mxu0 0.0
        %4668 = vmatpush1.msra.mxu0 %v1483
        %4669 = vmatprep.subr.mxu0 0.0
        %4670 = vmatpush1.msra.mxu0 %v1482
        %4671 = vmatprep.subr.mxu0 0.0
        %4672 = vmatpush1.msra.mxu0 %v1481
        %4673 = vmatprep.subr.mxu0 0.0
        %4674 = vmatpush1.msra.mxu0 %v1480
        %4675 = vmatprep.subr.mxu0 0.0
        %4676 = vmatpush1.msra.mxu0 %v1479
        %4677 = vmatprep.subr.mxu0 0.0
        %4678 = vmatpush1.msra.mxu0 %v1478
        %4679 = vmatprep.subr.mxu0 0.0
        %4680 = vmatpush2.msra.mxu0 0.0
        %4681 = vmatprep.subr.mxu0 0.0
        %4682 = vmatpush2.msra.mxu0 0.0
        %4683 = vmatprep.subr.mxu0 0.0
        %4684 = vmatpush2.msra.mxu0 0.0
        %4685 = vmatprep.subr.mxu0 0.0
        %4686 = vmatpush2.msra.mxu0 0.0
        %4687 = vmatprep.subr.mxu0 0.0
        %4688 = vmatpush2.msra.mxu0 0.0
        %4689 = vmatprep.subr.mxu0 0.0
        %4690 = vmatpush2.msra.mxu0 0.0
        %4691 = vmatprep.subr.mxu0 0.0
        %4692 = vmatpush2.msra.mxu0 0.0
        %4693 = vmatprep.subr.mxu0 0.0
        %4694 = vmatpush2.msra.mxu0 0.0
        %4695 = vmatprep.subr.mxu0 0.0
        %4696 = vmatpush2.msra.mxu0 0.0
        %4697 = vmatprep.subr.mxu0 0.0
        %4698 = vmatpush2.msra.mxu0 0.0
        %4699 = vmatprep.subr.mxu0 0.0
        %4700 = vmatpush2.msra.mxu0 0.0
        %4701 = vmatprep.subr.mxu0 0.0
        %4702 = vmatpush2.msra.mxu0 0.0
        %4703 = vmatprep.subr.mxu0 0.0
        %4704 = vmatpush2.msra.mxu0 0.0
        %4705 = vmatprep.subr.mxu0 0.0
        %4706 = vmatpush2.msra.mxu0 0.0
        %4707 = vmatprep.subr.mxu0 0.0
        %4708 = vmatpush2.msra.mxu0 0.0
        %4709 = vmatprep.subr.mxu0 0.0
        %4710 = vmatpush2.msra.mxu0 0.0
        %4711 = vmatprep.mubr.f32.mxu0 0.0
        %4712 = vmatmul.mubr.f32.gmra.mxu0 %v4348
        %v4713 = vpop.f32.mrf.mxu0
        %v4714 = vadd.f32 0.0, %v4713
        %v4715 = vpop.f32.mrf.mxu0
        %4716 = vdwg.mxu0
        %v4718 = vsel %vm1127, %v4714, 0
        %4720 = vmatprep.subr.mxu0 0.0
        %4721 = vmatpush1.xpose.msra.mxu0 0.0
        %4722 = vmatprep.subr.mxu0 0.0
        %4723 = vmatpush1.xpose.msra.mxu0 0.0
        %4724 = vmatprep.subr.mxu0 0.0
        %4725 = vmatpush1.xpose.msra.mxu0 0.0
        %4726 = vmatprep.subr.mxu0 0.0
        %4727 = vmatpush1.xpose.msra.mxu0 0.0
        %4728 = vmatprep.subr.mxu0 0.0
        %4729 = vmatpush1.xpose.msra.mxu0 0.0
        %4730 = vmatprep.subr.mxu0 0.0
        %4731 = vmatpush1.xpose.msra.mxu0 0.0
        %4732 = vmatprep.subr.mxu0 0.0
        %4733 = vmatpush1.xpose.msra.mxu0 0.0
        %4734 = vmatprep.subr.mxu0 0.0
        %4735 = vmatpush1.xpose.msra.mxu0 0.0
        %4736 = vmatprep.subr.mxu0 0.0
        %4737 = vmatpush1.xpose.msra.mxu0 0.0
        %4738 = vmatprep.subr.mxu0 0.0
        %4739 = vmatpush1.xpose.msra.mxu0 0.0
        %4740 = vmatprep.subr.mxu0 0.0
        %4741 = vmatpush1.xpose.msra.mxu0 0.0
        %4742 = vmatprep.subr.mxu0 0.0
        %4743 = vmatpush1.xpose.msra.mxu0 0.0
        %4744 = vmatprep.subr.mxu0 0.0
        %4745 = vmatpush1.xpose.msra.mxu0 0.0
        %4746 = vmatprep.subr.mxu0 0.0
        %4747 = vmatpush1.xpose.msra.mxu0 0.0
        %4748 = vmatprep.subr.mxu0 0.0
        %4749 = vmatpush1.xpose.msra.mxu0 0.0
        %4750 = vmatprep.subr.mxu0 0.0
        %4751 = vmatpush1.xpose.msra.mxu0 %v4348
        %4752 = vmatprep.subr.mxu0 0.0
        %4753 = vmatpush2.xpose.msra.mxu0 0.0
        %4754 = vmatprep.subr.mxu0 0.0
        %4755 = vmatpush2.xpose.msra.mxu0 0.0
        %4756 = vmatprep.subr.mxu0 0.0
        %4757 = vmatpush2.xpose.msra.mxu0 0.0
        %4758 = vmatprep.subr.mxu0 0.0
        %4759 = vmatpush2.xpose.msra.mxu0 0.0
        %4760 = vmatprep.subr.mxu0 0.0
        %4761 = vmatpush2.xpose.msra.mxu0 0.0
        %4762 = vmatprep.subr.mxu0 0.0
        %4763 = vmatpush2.xpose.msra.mxu0 0.0
        %4764 = vmatprep.subr.mxu0 0.0
        %4765 = vmatpush2.xpose.msra.mxu0 0.0
        %4766 = vmatprep.subr.mxu0 0.0
        %4767 = vmatpush2.xpose.msra.mxu0 0.0
        %4768 = vmatprep.subr.mxu0 0.0
        %4769 = vmatpush2.xpose.msra.mxu0 0.0
        %4770 = vmatprep.subr.mxu0 0.0
        %4771 = vmatpush2.xpose.msra.mxu0 0.0
        %4772 = vmatprep.subr.mxu0 0.0
        %4773 = vmatpush2.xpose.msra.mxu0 0.0
        %4774 = vmatprep.subr.mxu0 0.0
        %4775 = vmatpush2.xpose.msra.mxu0 0.0
        %4776 = vmatprep.subr.mxu0 0.0
        %4777 = vmatpush2.xpose.msra.mxu0 0.0
        %4778 = vmatprep.subr.mxu0 0.0
        %4779 = vmatpush2.xpose.msra.mxu0 0.0
        %4780 = vmatprep.subr.mxu0 0.0
        %4781 = vmatpush2.xpose.msra.mxu0 0.0
        %4782 = vmatprep.subr.mxu0 0.0
        %4783 = vmatpush2.xpose.msra.mxu0 0.0
        %4784 = vmatprep.mubr.f32.mxu0 0.0
        %4785 = vmatmul.mubr.f32.gmra.mxu0 %v4718
        %v4786 = vpop.f32.mrf.mxu0
        %v4787 = vadd.f32 0.0, %v4786
        %v4788 = vpop.f32.mrf.mxu0
        %4789 = vdwg.mxu0
        %v4790 = vsel %vm1388, %v4787, -inf
        %4791 = vmax.xlane.f32.xlu0 %v4790
        %v4792 = vpop.xlane.xlu0 %4791
        %v4793 = vsub.f32 %v4787, %v4792
        %v4794 = vmul.f32 %v4793, 1.442695
        %v4795 = vpow.pop %v4794
        %v4796 = vsel %vm1388, %v4795, 0.0
        %4797 = vadd.xlane.f32.xlu0 %v4796
        %v4798 = vpop.xlane.xlu0 %4797
        %v4800 = vsel %vm1388, %v4795, 0
        %4802 = vmatprep.subr.mxu0 0.0
        %4803 = vmatpush1.msra.mxu0 0.0
        %4804 = vmatprep.subr.mxu0 0.0
        %4805 = vmatpush1.msra.mxu0 0.0
        %4806 = vmatprep.subr.mxu0 0.0
        %4807 = vmatpush1.msra.mxu0 0.0
        %4808 = vmatprep.subr.mxu0 0.0
        %4809 = vmatpush1.msra.mxu0 0.0
        %4810 = vmatprep.subr.mxu0 0.0
        %4811 = vmatpush1.msra.mxu0 0.0
        %4812 = vmatprep.subr.mxu0 0.0
        %4813 = vmatpush1.msra.mxu0 0.0
        %4814 = vmatprep.subr.mxu0 0.0
        %4815 = vmatpush1.msra.mxu0 0.0
        %4816 = vmatprep.subr.mxu0 0.0
        %4817 = vmatpush1.msra.mxu0 0.0
        %4818 = vmatprep.subr.mxu0 0.0
        %4819 = vmatpush1.msra.mxu0 0.0
        %4820 = vmatprep.subr.mxu0 0.0
        %4821 = vmatpush1.msra.mxu0 0.0
        %4822 = vmatprep.subr.mxu0 0.0
        %4823 = vmatpush1.msra.mxu0 0.0
        %4824 = vmatprep.subr.mxu0 0.0
        %4825 = vmatpush1.msra.mxu0 0.0
        %4826 = vmatprep.subr.mxu0 0.0
        %4827 = vmatpush1.msra.mxu0 0.0
        %4828 = vmatprep.subr.mxu0 0.0
        %4829 = vmatpush1.msra.mxu0 0.0
        %4830 = vmatprep.subr.mxu0 0.0
        %4831 = vmatpush1.msra.mxu0 0.0
        %4832 = vmatprep.subr.mxu0 0.0
        %4833 = vmatpush1.msra.mxu0 %v4417
        %4834 = vmatprep.subr.mxu0 0.0
        %4835 = vmatpush2.msra.mxu0 0.0
        %4836 = vmatprep.subr.mxu0 0.0
        %4837 = vmatpush2.msra.mxu0 0.0
        %4838 = vmatprep.subr.mxu0 0.0
        %4839 = vmatpush2.msra.mxu0 0.0
        %4840 = vmatprep.subr.mxu0 0.0
        %4841 = vmatpush2.msra.mxu0 0.0
        %4842 = vmatprep.subr.mxu0 0.0
        %4843 = vmatpush2.msra.mxu0 0.0
        %4844 = vmatprep.subr.mxu0 0.0
        %4845 = vmatpush2.msra.mxu0 0.0
        %4846 = vmatprep.subr.mxu0 0.0
        %4847 = vmatpush2.msra.mxu0 0.0
        %4848 = vmatprep.subr.mxu0 0.0
        %4849 = vmatpush2.msra.mxu0 0.0
        %4850 = vmatprep.subr.mxu0 0.0
        %4851 = vmatpush2.msra.mxu0 0.0
        %4852 = vmatprep.subr.mxu0 0.0
        %4853 = vmatpush2.msra.mxu0 0.0
        %4854 = vmatprep.subr.mxu0 0.0
        %4855 = vmatpush2.msra.mxu0 0.0
        %4856 = vmatprep.subr.mxu0 0.0
        %4857 = vmatpush2.msra.mxu0 0.0
        %4858 = vmatprep.subr.mxu0 0.0
        %4859 = vmatpush2.msra.mxu0 0.0
        %4860 = vmatprep.subr.mxu0 0.0
        %4861 = vmatpush2.msra.mxu0 0.0
        %4862 = vmatprep.subr.mxu0 0.0
        %4863 = vmatpush2.msra.mxu0 0.0
        %4864 = vmatprep.subr.mxu0 0.0
        %4865 = vmatpush2.msra.mxu0 0.0
        %4866 = vmatprep.mubr.f32.mxu0 0.0
        %4867 = vmatmul.mubr.f32.gmra.mxu0 %v4800
        %v4868 = vpop.f32.mrf.mxu0
        %v4869 = vadd.f32 0.0, %v4868
        %v4870 = vpop.f32.mrf.mxu0
        %4871 = vdwg.mxu0
        %v4872 = vrcp.pop %v4798
        %v4873 = vmul.f32 %v4869, %v4872
        %v4875 = vsel %vm1718, %v4873, 0
        %4877 = vmatprep.subr.mxu0 0.0
        %4878 = vmatpush1.msra.mxu0 0.0
        %4879 = vmatprep.subr.mxu0 0.0
        %4880 = vmatpush1.msra.mxu0 0.0
        %4881 = vmatprep.subr.mxu0 0.0
        %4882 = vmatpush1.msra.mxu0 0.0
        %4883 = vmatprep.subr.mxu0 0.0
        %4884 = vmatpush1.msra.mxu0 0.0
        %4885 = vmatprep.subr.mxu0 0.0
        %4886 = vmatpush1.msra.mxu0 0.0
        %4887 = vmatprep.subr.mxu0 0.0
        %4888 = vmatpush1.msra.mxu0 0.0
        %4889 = vmatprep.subr.mxu0 0.0
        %4890 = vmatpush1.msra.mxu0 0.0
        %4891 = vmatprep.subr.mxu0 0.0
        %4892 = vmatpush1.msra.mxu0 0.0
        %4893 = vmatprep.subr.mxu0 0.0
        %4894 = vmatpush1.msra.mxu0 0.0
        %4895 = vmatprep.subr.mxu0 0.0
        %4896 = vmatpush1.msra.mxu0 0.0
        %4897 = vmatprep.subr.mxu0 0.0
        %4898 = vmatpush1.msra.mxu0 0.0
        %4899 = vmatprep.subr.mxu0 0.0
        %4900 = vmatpush1.msra.mxu0 0.0
        %4901 = vmatprep.subr.mxu0 0.0
        %4902 = vmatpush1.msra.mxu0 %v1717
        %4903 = vmatprep.subr.mxu0 0.0
        %4904 = vmatpush1.msra.mxu0 %v1716
        %4905 = vmatprep.subr.mxu0 0.0
        %4906 = vmatpush1.msra.mxu0 %v1715
        %4907 = vmatprep.subr.mxu0 0.0
        %4908 = vmatpush1.msra.mxu0 %v1714
        %4909 = vmatprep.subr.mxu0 0.0
        %4910 = vmatpush2.msra.mxu0 0.0
        %4911 = vmatprep.subr.mxu0 0.0
        %4912 = vmatpush2.msra.mxu0 0.0
        %4913 = vmatprep.subr.mxu0 0.0
        %4914 = vmatpush2.msra.mxu0 0.0
        %4915 = vmatprep.subr.mxu0 0.0
        %4916 = vmatpush2.msra.mxu0 0.0
        %4917 = vmatprep.subr.mxu0 0.0
        %4918 = vmatpush2.msra.mxu0 0.0
        %4919 = vmatprep.subr.mxu0 0.0
        %4920 = vmatpush2.msra.mxu0 0.0
        %4921 = vmatprep.subr.mxu0 0.0
        %4922 = vmatpush2.msra.mxu0 0.0
        %4923 = vmatprep.subr.mxu0 0.0
        %4924 = vmatpush2.msra.mxu0 0.0
        %4925 = vmatprep.subr.mxu0 0.0
        %4926 = vmatpush2.msra.mxu0 0.0
        %4927 = vmatprep.subr.mxu0 0.0
        %4928 = vmatpush2.msra.mxu0 0.0
        %4929 = vmatprep.subr.mxu0 0.0
        %4930 = vmatpush2.msra.mxu0 0.0
        %4931 = vmatprep.subr.mxu0 0.0
        %4932 = vmatpush2.msra.mxu0 0.0
        %4933 = vmatprep.subr.mxu0 0.0
        %4934 = vmatpush2.msra.mxu0 0.0
        %4935 = vmatprep.subr.mxu0 0.0
        %4936 = vmatpush2.msra.mxu0 0.0
        %4937 = vmatprep.subr.mxu0 0.0
        %4938 = vmatpush2.msra.mxu0 0.0
        %4939 = vmatprep.subr.mxu0 0.0
        %4940 = vmatpush2.msra.mxu0 0.0
        %4941 = vmatprep.mubr.f32.mxu0 0.0
        %4942 = vmatmul.mubr.f32.gmra.mxu0 %v4875
        %v4943 = vpop.f32.mrf.mxu0
        %v4944 = vadd.f32 0.0, %v4943
        %v4945 = vpop.f32.mrf.mxu0
        %4946 = vdwg.mxu0
        %v4948 = vsel %vm1718, %v4646, 0
        %4950 = vmatprep.subr.mxu0 0.0
        %4951 = vmatpush1.msra.mxu0 0.0
        %4952 = vmatprep.subr.mxu0 0.0
        %4953 = vmatpush1.msra.mxu0 0.0
        %4954 = vmatprep.subr.mxu0 0.0
        %4955 = vmatpush1.msra.mxu0 0.0
        %4956 = vmatprep.subr.mxu0 0.0
        %4957 = vmatpush1.msra.mxu0 0.0
        %4958 = vmatprep.subr.mxu0 0.0
        %4959 = vmatpush1.msra.mxu0 0.0
        %4960 = vmatprep.subr.mxu0 0.0
        %4961 = vmatpush1.msra.mxu0 0.0
        %4962 = vmatprep.subr.mxu0 0.0
        %4963 = vmatpush1.msra.mxu0 0.0
        %4964 = vmatprep.subr.mxu0 0.0
        %4965 = vmatpush1.msra.mxu0 0.0
        %4966 = vmatprep.subr.mxu0 0.0
        %4967 = vmatpush1.msra.mxu0 0.0
        %4968 = vmatprep.subr.mxu0 0.0
        %4969 = vmatpush1.msra.mxu0 0.0
        %4970 = vmatprep.subr.mxu0 0.0
        %4971 = vmatpush1.msra.mxu0 0.0
        %4972 = vmatprep.subr.mxu0 0.0
        %4973 = vmatpush1.msra.mxu0 0.0
        %4974 = vmatprep.subr.mxu0 0.0
        %4975 = vmatpush1.msra.mxu0 %v1476
        %4976 = vmatprep.subr.mxu0 0.0
        %4977 = vmatpush1.msra.mxu0 %v1475
        %4978 = vmatprep.subr.mxu0 0.0
        %4979 = vmatpush1.msra.mxu0 %v1474
        %4980 = vmatprep.subr.mxu0 0.0
        %4981 = vmatpush1.msra.mxu0 %v1473
        %4982 = vmatprep.subr.mxu0 0.0
        %4983 = vmatpush2.msra.mxu0 0.0
        %4984 = vmatprep.subr.mxu0 0.0
        %4985 = vmatpush2.msra.mxu0 0.0
        %4986 = vmatprep.subr.mxu0 0.0
        %4987 = vmatpush2.msra.mxu0 0.0
        %4988 = vmatprep.subr.mxu0 0.0
        %4989 = vmatpush2.msra.mxu0 0.0
        %4990 = vmatprep.subr.mxu0 0.0
        %4991 = vmatpush2.msra.mxu0 0.0
        %4992 = vmatprep.subr.mxu0 0.0
        %4993 = vmatpush2.msra.mxu0 0.0
        %4994 = vmatprep.subr.mxu0 0.0
        %4995 = vmatpush2.msra.mxu0 0.0
        %4996 = vmatprep.subr.mxu0 0.0
        %4997 = vmatpush2.msra.mxu0 0.0
        %4998 = vmatprep.subr.mxu0 0.0
        %4999 = vmatpush2.msra.mxu0 0.0
        %5000 = vmatprep.subr.mxu0 0.0
        %5001 = vmatpush2.msra.mxu0 0.0
        %5002 = vmatprep.subr.mxu0 0.0
        %5003 = vmatpush2.msra.mxu0 0.0
        %5004 = vmatprep.subr.mxu0 0.0
        %5005 = vmatpush2.msra.mxu0 0.0
        %5006 = vmatprep.subr.mxu0 0.0
        %5007 = vmatpush2.msra.mxu0 0.0
        %5008 = vmatprep.subr.mxu0 0.0
        %5009 = vmatpush2.msra.mxu0 0.0
        %5010 = vmatprep.subr.mxu0 0.0
        %5011 = vmatpush2.msra.mxu0 0.0
        %5012 = vmatprep.subr.mxu0 0.0
        %5013 = vmatpush2.msra.mxu0 0.0
        %5014 = vmatprep.mubr.f32.mxu0 0.0
        %5015 = vmatmul.mubr.f32.gmra.mxu0 %v4948
        %v5016 = vpop.f32.mrf.mxu0
        %v5017 = vadd.f32 %v4944, %v5016
        %v5018 = vpop.f32.mrf.mxu0
        %5019 = vdwg.mxu0
        %5020 = vmatprep.subr.mxu0 0.0
        %5021 = vmatpush1.msra.mxu0 0.0
        %5022 = vmatprep.subr.mxu0 0.0
        %5023 = vmatpush1.msra.mxu0 0.0
        %5024 = vmatprep.subr.mxu0 0.0
        %5025 = vmatpush1.msra.mxu0 0.0
        %5026 = vmatprep.subr.mxu0 0.0
        %5027 = vmatpush1.msra.mxu0 0.0
        %5028 = vmatprep.subr.mxu0 0.0
        %5029 = vmatpush1.msra.mxu0 0.0
        %5030 = vmatprep.subr.mxu0 0.0
        %5031 = vmatpush1.msra.mxu0 0.0
        %5032 = vmatprep.subr.mxu0 0.0
        %5033 = vmatpush1.msra.mxu0 0.0
        %5034 = vmatprep.subr.mxu0 0.0
        %5035 = vmatpush1.msra.mxu0 0.0
        %5036 = vmatprep.subr.mxu0 0.0
        %5037 = vmatpush1.msra.mxu0 %v1873
        %5038 = vmatprep.subr.mxu0 0.0
        %5039 = vmatpush1.msra.mxu0 %v1872
        %5040 = vmatprep.subr.mxu0 0.0
        %5041 = vmatpush1.msra.mxu0 %v1871
        %5042 = vmatprep.subr.mxu0 0.0
        %5043 = vmatpush1.msra.mxu0 %v1870
        %5044 = vmatprep.subr.mxu0 0.0
        %5045 = vmatpush1.msra.mxu0 %v1869
        %5046 = vmatprep.subr.mxu0 0.0
        %5047 = vmatpush1.msra.mxu0 %v1868
        %5048 = vmatprep.subr.mxu0 0.0
        %5049 = vmatpush1.msra.mxu0 %v1867
        %5050 = vmatprep.subr.mxu0 0.0
        %5051 = vmatpush1.msra.mxu0 %v1866
        %5052 = vmatprep.subr.mxu0 0.0
        %5053 = vmatpush2.msra.mxu0 0.0
        %5054 = vmatprep.subr.mxu0 0.0
        %5055 = vmatpush2.msra.mxu0 0.0
        %5056 = vmatprep.subr.mxu0 0.0
        %5057 = vmatpush2.msra.mxu0 0.0
        %5058 = vmatprep.subr.mxu0 0.0
        %5059 = vmatpush2.msra.mxu0 0.0
        %5060 = vmatprep.subr.mxu0 0.0
        %5061 = vmatpush2.msra.mxu0 0.0
        %5062 = vmatprep.subr.mxu0 0.0
        %5063 = vmatpush2.msra.mxu0 0.0
        %5064 = vmatprep.subr.mxu0 0.0
        %5065 = vmatpush2.msra.mxu0 0.0
        %5066 = vmatprep.subr.mxu0 0.0
        %5067 = vmatpush2.msra.mxu0 0.0
        %5068 = vmatprep.subr.mxu0 0.0
        %5069 = vmatpush2.msra.mxu0 0.0
        %5070 = vmatprep.subr.mxu0 0.0
        %5071 = vmatpush2.msra.mxu0 0.0
        %5072 = vmatprep.subr.mxu0 0.0
        %5073 = vmatpush2.msra.mxu0 0.0
        %5074 = vmatprep.subr.mxu0 0.0
        %5075 = vmatpush2.msra.mxu0 0.0
        %5076 = vmatprep.subr.mxu0 0.0
        %5077 = vmatpush2.msra.mxu0 0.0
        %5078 = vmatprep.subr.mxu0 0.0
        %5079 = vmatpush2.msra.mxu0 0.0
        %5080 = vmatprep.subr.mxu0 0.0
        %5081 = vmatpush2.msra.mxu0 0.0
        %5082 = vmatprep.subr.mxu0 0.0
        %5083 = vmatpush2.msra.mxu0 0.0
        %5084 = vmatprep.mubr.f32.mxu0 0.0
        %5085 = vmatmul.mubr.f32.gmra.mxu0 %v4348
        %v5086 = vpop.f32.mrf.mxu0
        %v5087 = vadd.f32 0.0, %v5086
        %v5088 = vpop.f32.mrf.mxu0
        %5089 = vdwg.mxu0
        %v5091 = vsel %vm1127, %v5087, 0
        %5093 = vmatprep.subr.mxu0 0.0
        %5094 = vmatpush1.xpose.msra.mxu0 0.0
        %5095 = vmatprep.subr.mxu0 0.0
        %5096 = vmatpush1.xpose.msra.mxu0 0.0
        %5097 = vmatprep.subr.mxu0 0.0
        %5098 = vmatpush1.xpose.msra.mxu0 0.0
        %5099 = vmatprep.subr.mxu0 0.0
        %5100 = vmatpush1.xpose.msra.mxu0 0.0
        %5101 = vmatprep.subr.mxu0 0.0
        %5102 = vmatpush1.xpose.msra.mxu0 0.0
        %5103 = vmatprep.subr.mxu0 0.0
        %5104 = vmatpush1.xpose.msra.mxu0 0.0
        %5105 = vmatprep.subr.mxu0 0.0
        %5106 = vmatpush1.xpose.msra.mxu0 0.0
        %5107 = vmatprep.subr.mxu0 0.0
        %5108 = vmatpush1.xpose.msra.mxu0 0.0
        %5109 = vmatprep.subr.mxu0 0.0
        %5110 = vmatpush1.xpose.msra.mxu0 0.0
        %5111 = vmatprep.subr.mxu0 0.0
        %5112 = vmatpush1.xpose.msra.mxu0 0.0
        %5113 = vmatprep.subr.mxu0 0.0
        %5114 = vmatpush1.xpose.msra.mxu0 0.0
        %5115 = vmatprep.subr.mxu0 0.0
        %5116 = vmatpush1.xpose.msra.mxu0 0.0
        %5117 = vmatprep.subr.mxu0 0.0
        %5118 = vmatpush1.xpose.msra.mxu0 0.0
        %5119 = vmatprep.subr.mxu0 0.0
        %5120 = vmatpush1.xpose.msra.mxu0 0.0
        %5121 = vmatprep.subr.mxu0 0.0
        %5122 = vmatpush1.xpose.msra.mxu0 0.0
        %5123 = vmatprep.subr.mxu0 0.0
        %5124 = vmatpush1.xpose.msra.mxu0 %v4348
        %5125 = vmatprep.subr.mxu0 0.0
        %5126 = vmatpush2.xpose.msra.mxu0 0.0
        %5127 = vmatprep.subr.mxu0 0.0
        %5128 = vmatpush2.xpose.msra.mxu0 0.0
        %5129 = vmatprep.subr.mxu0 0.0
        %5130 = vmatpush2.xpose.msra.mxu0 0.0
        %5131 = vmatprep.subr.mxu0 0.0
        %5132 = vmatpush2.xpose.msra.mxu0 0.0
        %5133 = vmatprep.subr.mxu0 0.0
        %5134 = vmatpush2.xpose.msra.mxu0 0.0
        %5135 = vmatprep.subr.mxu0 0.0
        %5136 = vmatpush2.xpose.msra.mxu0 0.0
        %5137 = vmatprep.subr.mxu0 0.0
        %5138 = vmatpush2.xpose.msra.mxu0 0.0
        %5139 = vmatprep.subr.mxu0 0.0
        %5140 = vmatpush2.xpose.msra.mxu0 0.0
        %5141 = vmatprep.subr.mxu0 0.0
        %5142 = vmatpush2.xpose.msra.mxu0 0.0
        %5143 = vmatprep.subr.mxu0 0.0
        %5144 = vmatpush2.xpose.msra.mxu0 0.0
        %5145 = vmatprep.subr.mxu0 0.0
        %5146 = vmatpush2.xpose.msra.mxu0 0.0
        %5147 = vmatprep.subr.mxu0 0.0
        %5148 = vmatpush2.xpose.msra.mxu0 0.0
        %5149 = vmatprep.subr.mxu0 0.0
        %5150 = vmatpush2.xpose.msra.mxu0 0.0
        %5151 = vmatprep.subr.mxu0 0.0
        %5152 = vmatpush2.xpose.msra.mxu0 0.0
        %5153 = vmatprep.subr.mxu0 0.0
        %5154 = vmatpush2.xpose.msra.mxu0 0.0
        %5155 = vmatprep.subr.mxu0 0.0
        %5156 = vmatpush2.xpose.msra.mxu0 0.0
        %5157 = vmatprep.mubr.f32.mxu0 0.0
        %5158 = vmatmul.mubr.f32.gmra.mxu0 %v5091
        %v5159 = vpop.f32.mrf.mxu0
        %v5160 = vadd.f32 0.0, %v5159
        %v5161 = vpop.f32.mrf.mxu0
        %5162 = vdwg.mxu0
        %v5163 = vsel %vm1388, %v5160, -inf
        %5164 = vmax.xlane.f32.xlu0 %v5163
        %v5165 = vpop.xlane.xlu0 %5164
        %v5166 = vsub.f32 %v5160, %v5165
        %v5167 = vmul.f32 %v5166, 1.442695
        %v5168 = vpow.pop %v5167
        %v5169 = vsel %vm1388, %v5168, 0.0
        %5170 = vadd.xlane.f32.xlu0 %v5169
        %v5171 = vpop.xlane.xlu0 %5170
        %v5173 = vsel %vm1388, %v5168, 0
        %5175 = vmatprep.subr.mxu0 0.0
        %5176 = vmatpush1.msra.mxu0 0.0
        %5177 = vmatprep.subr.mxu0 0.0
        %5178 = vmatpush1.msra.mxu0 0.0
        %5179 = vmatprep.subr.mxu0 0.0
        %5180 = vmatpush1.msra.mxu0 0.0
        %5181 = vmatprep.subr.mxu0 0.0
        %5182 = vmatpush1.msra.mxu0 0.0
        %5183 = vmatprep.subr.mxu0 0.0
        %5184 = vmatpush1.msra.mxu0 0.0
        %5185 = vmatprep.subr.mxu0 0.0
        %5186 = vmatpush1.msra.mxu0 0.0
        %5187 = vmatprep.subr.mxu0 0.0
        %5188 = vmatpush1.msra.mxu0 0.0
        %5189 = vmatprep.subr.mxu0 0.0
        %5190 = vmatpush1.msra.mxu0 0.0
        %5191 = vmatprep.subr.mxu0 0.0
        %5192 = vmatpush1.msra.mxu0 0.0
        %5193 = vmatprep.subr.mxu0 0.0
        %5194 = vmatpush1.msra.mxu0 0.0
        %5195 = vmatprep.subr.mxu0 0.0
        %5196 = vmatpush1.msra.mxu0 0.0
        %5197 = vmatprep.subr.mxu0 0.0
        %5198 = vmatpush1.msra.mxu0 0.0
        %5199 = vmatprep.subr.mxu0 0.0
        %5200 = vmatpush1.msra.mxu0 0.0
        %5201 = vmatprep.subr.mxu0 0.0
        %5202 = vmatpush1.msra.mxu0 0.0
        %5203 = vmatprep.subr.mxu0 0.0
        %5204 = vmatpush1.msra.mxu0 0.0
        %5205 = vmatprep.subr.mxu0 0.0
        %5206 = vmatpush1.msra.mxu0 %v4417
        %5207 = vmatprep.subr.mxu0 0.0
        %5208 = vmatpush2.msra.mxu0 0.0
        %5209 = vmatprep.subr.mxu0 0.0
        %5210 = vmatpush2.msra.mxu0 0.0
        %5211 = vmatprep.subr.mxu0 0.0
        %5212 = vmatpush2.msra.mxu0 0.0
        %5213 = vmatprep.subr.mxu0 0.0
        %5214 = vmatpush2.msra.mxu0 0.0
        %5215 = vmatprep.subr.mxu0 0.0
        %5216 = vmatpush2.msra.mxu0 0.0
        %5217 = vmatprep.subr.mxu0 0.0
        %5218 = vmatpush2.msra.mxu0 0.0
        %5219 = vmatprep.subr.mxu0 0.0
        %5220 = vmatpush2.msra.mxu0 0.0
        %5221 = vmatprep.subr.mxu0 0.0
        %5222 = vmatpush2.msra.mxu0 0.0
        %5223 = vmatprep.subr.mxu0 0.0
        %5224 = vmatpush2.msra.mxu0 0.0
        %5225 = vmatprep.subr.mxu0 0.0
        %5226 = vmatpush2.msra.mxu0 0.0
        %5227 = vmatprep.subr.mxu0 0.0
        %5228 = vmatpush2.msra.mxu0 0.0
        %5229 = vmatprep.subr.mxu0 0.0
        %5230 = vmatpush2.msra.mxu0 0.0
        %5231 = vmatprep.subr.mxu0 0.0
        %5232 = vmatpush2.msra.mxu0 0.0
        %5233 = vmatprep.subr.mxu0 0.0
        %5234 = vmatpush2.msra.mxu0 0.0
        %5235 = vmatprep.subr.mxu0 0.0
        %5236 = vmatpush2.msra.mxu0 0.0
        %5237 = vmatprep.subr.mxu0 0.0
        %5238 = vmatpush2.msra.mxu0 0.0
        %5239 = vmatprep.mubr.f32.mxu0 0.0
        %5240 = vmatmul.mubr.f32.gmra.mxu0 %v5173
        %v5241 = vpop.f32.mrf.mxu0
        %v5242 = vadd.f32 0.0, %v5241
        %v5243 = vpop.f32.mrf.mxu0
        %5244 = vdwg.mxu0
        %v5245 = vrcp.pop %v5171
        %v5246 = vmul.f32 %v5242, %v5245
        %v5248 = vsel %vm1718, %v5246, 0
        %5250 = vmatprep.subr.mxu0 0.0
        %5251 = vmatpush1.msra.mxu0 0.0
        %5252 = vmatprep.subr.mxu0 0.0
        %5253 = vmatpush1.msra.mxu0 0.0
        %5254 = vmatprep.subr.mxu0 0.0
        %5255 = vmatpush1.msra.mxu0 0.0
        %5256 = vmatprep.subr.mxu0 0.0
        %5257 = vmatpush1.msra.mxu0 0.0
        %5258 = vmatprep.subr.mxu0 0.0
        %5259 = vmatpush1.msra.mxu0 0.0
        %5260 = vmatprep.subr.mxu0 0.0
        %5261 = vmatpush1.msra.mxu0 0.0
        %5262 = vmatprep.subr.mxu0 0.0
        %5263 = vmatpush1.msra.mxu0 0.0
        %5264 = vmatprep.subr.mxu0 0.0
        %5265 = vmatpush1.msra.mxu0 0.0
        %5266 = vmatprep.subr.mxu0 0.0
        %5267 = vmatpush1.msra.mxu0 0.0
        %5268 = vmatprep.subr.mxu0 0.0
        %5269 = vmatpush1.msra.mxu0 0.0
        %5270 = vmatprep.subr.mxu0 0.0
        %5271 = vmatpush1.msra.mxu0 0.0
        %5272 = vmatprep.subr.mxu0 0.0
        %5273 = vmatpush1.msra.mxu0 0.0
        %5274 = vmatprep.subr.mxu0 0.0
        %5275 = vmatpush1.msra.mxu0 %v2105
        %5276 = vmatprep.subr.mxu0 0.0
        %5277 = vmatpush1.msra.mxu0 %v2104
        %5278 = vmatprep.subr.mxu0 0.0
        %5279 = vmatpush1.msra.mxu0 %v2103
        %5280 = vmatprep.subr.mxu0 0.0
        %5281 = vmatpush1.msra.mxu0 %v2102
        %5282 = vmatprep.subr.mxu0 0.0
        %5283 = vmatpush2.msra.mxu0 0.0
        %5284 = vmatprep.subr.mxu0 0.0
        %5285 = vmatpush2.msra.mxu0 0.0
        %5286 = vmatprep.subr.mxu0 0.0
        %5287 = vmatpush2.msra.mxu0 0.0
        %5288 = vmatprep.subr.mxu0 0.0
        %5289 = vmatpush2.msra.mxu0 0.0
        %5290 = vmatprep.subr.mxu0 0.0
        %5291 = vmatpush2.msra.mxu0 0.0
        %5292 = vmatprep.subr.mxu0 0.0
        %5293 = vmatpush2.msra.mxu0 0.0
        %5294 = vmatprep.subr.mxu0 0.0
        %5295 = vmatpush2.msra.mxu0 0.0
        %5296 = vmatprep.subr.mxu0 0.0
        %5297 = vmatpush2.msra.mxu0 0.0
        %5298 = vmatprep.subr.mxu0 0.0
        %5299 = vmatpush2.msra.mxu0 0.0
        %5300 = vmatprep.subr.mxu0 0.0
        %5301 = vmatpush2.msra.mxu0 0.0
        %5302 = vmatprep.subr.mxu0 0.0
        %5303 = vmatpush2.msra.mxu0 0.0
        %5304 = vmatprep.subr.mxu0 0.0
        %5305 = vmatpush2.msra.mxu0 0.0
        %5306 = vmatprep.subr.mxu0 0.0
        %5307 = vmatpush2.msra.mxu0 0.0
        %5308 = vmatprep.subr.mxu0 0.0
        %5309 = vmatpush2.msra.mxu0 0.0
        %5310 = vmatprep.subr.mxu0 0.0
        %5311 = vmatpush2.msra.mxu0 0.0
        %5312 = vmatprep.subr.mxu0 0.0
        %5313 = vmatpush2.msra.mxu0 0.0
        %5314 = vmatprep.mubr.f32.mxu0 0.0
        %5315 = vmatmul.mubr.f32.gmra.mxu0 %v5248
        %v5316 = vpop.f32.mrf.mxu0
        %v5317 = vadd.f32 0.0, %v5316
        %v5318 = vpop.f32.mrf.mxu0
        %5319 = vdwg.mxu0
        %v5320 = vadd.f32 %v5017, %v5317
        %5321 = vmatprep.subr.mxu0 0.0
        %5322 = vmatpush1.msra.mxu0 0.0
        %5323 = vmatprep.subr.mxu0 0.0
        %5324 = vmatpush1.msra.mxu0 0.0
        %5325 = vmatprep.subr.mxu0 0.0
        %5326 = vmatpush1.msra.mxu0 0.0
        %5327 = vmatprep.subr.mxu0 0.0
        %5328 = vmatpush1.msra.mxu0 0.0
        %5329 = vmatprep.subr.mxu0 0.0
        %5330 = vmatpush1.msra.mxu0 0.0
        %5331 = vmatprep.subr.mxu0 0.0
        %5332 = vmatpush1.msra.mxu0 0.0
        %5333 = vmatprep.subr.mxu0 0.0
        %5334 = vmatpush1.msra.mxu0 0.0
        %5335 = vmatprep.subr.mxu0 0.0
        %5336 = vmatpush1.msra.mxu0 0.0
        %5337 = vmatprep.subr.mxu0 0.0
        %5338 = vmatpush1.msra.mxu0 %v2188
        %5339 = vmatprep.subr.mxu0 0.0
        %5340 = vmatpush1.msra.mxu0 %v2187
        %5341 = vmatprep.subr.mxu0 0.0
        %5342 = vmatpush1.msra.mxu0 %v2186
        %5343 = vmatprep.subr.mxu0 0.0
        %5344 = vmatpush1.msra.mxu0 %v2185
        %5345 = vmatprep.subr.mxu0 0.0
        %5346 = vmatpush1.msra.mxu0 %v2184
        %5347 = vmatprep.subr.mxu0 0.0
        %5348 = vmatpush1.msra.mxu0 %v2183
        %5349 = vmatprep.subr.mxu0 0.0
        %5350 = vmatpush1.msra.mxu0 %v2182
        %5351 = vmatprep.subr.mxu0 0.0
        %5352 = vmatpush1.msra.mxu0 %v2181
        %5353 = vmatprep.subr.mxu0 0.0
        %5354 = vmatpush2.msra.mxu0 0.0
        %5355 = vmatprep.subr.mxu0 0.0
        %5356 = vmatpush2.msra.mxu0 0.0
        %5357 = vmatprep.subr.mxu0 0.0
        %5358 = vmatpush2.msra.mxu0 0.0
        %5359 = vmatprep.subr.mxu0 0.0
        %5360 = vmatpush2.msra.mxu0 0.0
        %5361 = vmatprep.subr.mxu0 0.0
        %5362 = vmatpush2.msra.mxu0 0.0
        %5363 = vmatprep.subr.mxu0 0.0
        %5364 = vmatpush2.msra.mxu0 0.0
        %5365 = vmatprep.subr.mxu0 0.0
        %5366 = vmatpush2.msra.mxu0 0.0
        %5367 = vmatprep.subr.mxu0 0.0
        %5368 = vmatpush2.msra.mxu0 0.0
        %5369 = vmatprep.subr.mxu0 0.0
        %5370 = vmatpush2.msra.mxu0 0.0
        %5371 = vmatprep.subr.mxu0 0.0
        %5372 = vmatpush2.msra.mxu0 0.0
        %5373 = vmatprep.subr.mxu0 0.0
        %5374 = vmatpush2.msra.mxu0 0.0
        %5375 = vmatprep.subr.mxu0 0.0
        %5376 = vmatpush2.msra.mxu0 0.0
        %5377 = vmatprep.subr.mxu0 0.0
        %5378 = vmatpush2.msra.mxu0 0.0
        %5379 = vmatprep.subr.mxu0 0.0
        %5380 = vmatpush2.msra.mxu0 0.0
        %5381 = vmatprep.subr.mxu0 0.0
        %5382 = vmatpush2.msra.mxu0 0.0
        %5383 = vmatprep.subr.mxu0 0.0
        %5384 = vmatpush2.msra.mxu0 0.0
        %5385 = vmatprep.mubr.f32.mxu0 0.0
        %5386 = vmatmul.mubr.f32.gmra.mxu0 %v4348
        %v5387 = vpop.f32.mrf.mxu0
        %v5388 = vadd.f32 0.0, %v5387
        %v5389 = vpop.f32.mrf.mxu0
        %5390 = vdwg.mxu0
        %v5392 = vsel %vm1127, %v5388, 0
        %5394 = vmatprep.subr.mxu0 0.0
        %5395 = vmatpush1.xpose.msra.mxu0 0.0
        %5396 = vmatprep.subr.mxu0 0.0
        %5397 = vmatpush1.xpose.msra.mxu0 0.0
        %5398 = vmatprep.subr.mxu0 0.0
        %5399 = vmatpush1.xpose.msra.mxu0 0.0
        %5400 = vmatprep.subr.mxu0 0.0
        %5401 = vmatpush1.xpose.msra.mxu0 0.0
        %5402 = vmatprep.subr.mxu0 0.0
        %5403 = vmatpush1.xpose.msra.mxu0 0.0
        %5404 = vmatprep.subr.mxu0 0.0
        %5405 = vmatpush1.xpose.msra.mxu0 0.0
        %5406 = vmatprep.subr.mxu0 0.0
        %5407 = vmatpush1.xpose.msra.mxu0 0.0
        %5408 = vmatprep.subr.mxu0 0.0
        %5409 = vmatpush1.xpose.msra.mxu0 0.0
        %5410 = vmatprep.subr.mxu0 0.0
        %5411 = vmatpush1.xpose.msra.mxu0 0.0
        %5412 = vmatprep.subr.mxu0 0.0
        %5413 = vmatpush1.xpose.msra.mxu0 0.0
        %5414 = vmatprep.subr.mxu0 0.0
        %5415 = vmatpush1.xpose.msra.mxu0 0.0
        %5416 = vmatprep.subr.mxu0 0.0
        %5417 = vmatpush1.xpose.msra.mxu0 0.0
        %5418 = vmatprep.subr.mxu0 0.0
        %5419 = vmatpush1.xpose.msra.mxu0 0.0
        %5420 = vmatprep.subr.mxu0 0.0
        %5421 = vmatpush1.xpose.msra.mxu0 0.0
        %5422 = vmatprep.subr.mxu0 0.0
        %5423 = vmatpush1.xpose.msra.mxu0 0.0
        %5424 = vmatprep.subr.mxu0 0.0
        %5425 = vmatpush1.xpose.msra.mxu0 %v4348
        %5426 = vmatprep.subr.mxu0 0.0
        %5427 = vmatpush2.xpose.msra.mxu0 0.0
        %5428 = vmatprep.subr.mxu0 0.0
        %5429 = vmatpush2.xpose.msra.mxu0 0.0
        %5430 = vmatprep.subr.mxu0 0.0
        %5431 = vmatpush2.xpose.msra.mxu0 0.0
        %5432 = vmatprep.subr.mxu0 0.0
        %5433 = vmatpush2.xpose.msra.mxu0 0.0
        %5434 = vmatprep.subr.mxu0 0.0
        %5435 = vmatpush2.xpose.msra.mxu0 0.0
        %5436 = vmatprep.subr.mxu0 0.0
        %5437 = vmatpush2.xpose.msra.mxu0 0.0
        %5438 = vmatprep.subr.mxu0 0.0
        %5439 = vmatpush2.xpose.msra.mxu0 0.0
        %5440 = vmatprep.subr.mxu0 0.0
        %5441 = vmatpush2.xpose.msra.mxu0 0.0
        %5442 = vmatprep.subr.mxu0 0.0
        %5443 = vmatpush2.xpose.msra.mxu0 0.0
        %5444 = vmatprep.subr.mxu0 0.0
        %5445 = vmatpush2.xpose.msra.mxu0 0.0
        %5446 = vmatprep.subr.mxu0 0.0
        %5447 = vmatpush2.xpose.msra.mxu0 0.0
        %5448 = vmatprep.subr.mxu0 0.0
        %5449 = vmatpush2.xpose.msra.mxu0 0.0
        %5450 = vmatprep.subr.mxu0 0.0
        %5451 = vmatpush2.xpose.msra.mxu0 0.0
        %5452 = vmatprep.subr.mxu0 0.0
        %5453 = vmatpush2.xpose.msra.mxu0 0.0
        %5454 = vmatprep.subr.mxu0 0.0
        %5455 = vmatpush2.xpose.msra.mxu0 0.0
        %5456 = vmatprep.subr.mxu0 0.0
        %5457 = vmatpush2.xpose.msra.mxu0 0.0
        %5458 = vmatprep.mubr.f32.mxu0 0.0
        %5459 = vmatmul.mubr.f32.gmra.mxu0 %v5392
        %v5460 = vpop.f32.mrf.mxu0
        %v5461 = vadd.f32 0.0, %v5460
        %v5462 = vpop.f32.mrf.mxu0
        %5463 = vdwg.mxu0
        %v5464 = vsel %vm1388, %v5461, -inf
        %5465 = vmax.xlane.f32.xlu0 %v5464
        %v5466 = vpop.xlane.xlu0 %5465
        %v5467 = vsub.f32 %v5461, %v5466
        %v5468 = vmul.f32 %v5467, 1.442695
        %v5469 = vpow.pop %v5468
        %v5470 = vsel %vm1388, %v5469, 0.0
        %5471 = vadd.xlane.f32.xlu0 %v5470
        %v5472 = vpop.xlane.xlu0 %5471
        %v5474 = vsel %vm1388, %v5469, 0
        %5476 = vmatprep.subr.mxu0 0.0
        %5477 = vmatpush1.msra.mxu0 0.0
        %5478 = vmatprep.subr.mxu0 0.0
        %5479 = vmatpush1.msra.mxu0 0.0
        %5480 = vmatprep.subr.mxu0 0.0
        %5481 = vmatpush1.msra.mxu0 0.0
        %5482 = vmatprep.subr.mxu0 0.0
        %5483 = vmatpush1.msra.mxu0 0.0
        %5484 = vmatprep.subr.mxu0 0.0
        %5485 = vmatpush1.msra.mxu0 0.0
        %5486 = vmatprep.subr.mxu0 0.0
        %5487 = vmatpush1.msra.mxu0 0.0
        %5488 = vmatprep.subr.mxu0 0.0
        %5489 = vmatpush1.msra.mxu0 0.0
        %5490 = vmatprep.subr.mxu0 0.0
        %5491 = vmatpush1.msra.mxu0 0.0
        %5492 = vmatprep.subr.mxu0 0.0
        %5493 = vmatpush1.msra.mxu0 0.0
        %5494 = vmatprep.subr.mxu0 0.0
        %5495 = vmatpush1.msra.mxu0 0.0
        %5496 = vmatprep.subr.mxu0 0.0
        %5497 = vmatpush1.msra.mxu0 0.0
        %5498 = vmatprep.subr.mxu0 0.0
        %5499 = vmatpush1.msra.mxu0 0.0
        %5500 = vmatprep.subr.mxu0 0.0
        %5501 = vmatpush1.msra.mxu0 0.0
        %5502 = vmatprep.subr.mxu0 0.0
        %5503 = vmatpush1.msra.mxu0 0.0
        %5504 = vmatprep.subr.mxu0 0.0
        %5505 = vmatpush1.msra.mxu0 0.0
        %5506 = vmatprep.subr.mxu0 0.0
        %5507 = vmatpush1.msra.mxu0 %v4417
        %5508 = vmatprep.subr.mxu0 0.0
        %5509 = vmatpush2.msra.mxu0 0.0
        %5510 = vmatprep.subr.mxu0 0.0
        %5511 = vmatpush2.msra.mxu0 0.0
        %5512 = vmatprep.subr.mxu0 0.0
        %5513 = vmatpush2.msra.mxu0 0.0
        %5514 = vmatprep.subr.mxu0 0.0
        %5515 = vmatpush2.msra.mxu0 0.0
        %5516 = vmatprep.subr.mxu0 0.0
        %5517 = vmatpush2.msra.mxu0 0.0
        %5518 = vmatprep.subr.mxu0 0.0
        %5519 = vmatpush2.msra.mxu0 0.0
        %5520 = vmatprep.subr.mxu0 0.0
        %5521 = vmatpush2.msra.mxu0 0.0
        %5522 = vmatprep.subr.mxu0 0.0
        %5523 = vmatpush2.msra.mxu0 0.0
        %5524 = vmatprep.subr.mxu0 0.0
        %5525 = vmatpush2.msra.mxu0 0.0
        %5526 = vmatprep.subr.mxu0 0.0
        %5527 = vmatpush2.msra.mxu0 0.0
        %5528 = vmatprep.subr.mxu0 0.0
        %5529 = vmatpush2.msra.mxu0 0.0
        %5530 = vmatprep.subr.mxu0 0.0
        %5531 = vmatpush2.msra.mxu0 0.0
        %5532 = vmatprep.subr.mxu0 0.0
        %5533 = vmatpush2.msra.mxu0 0.0
        %5534 = vmatprep.subr.mxu0 0.0
        %5535 = vmatpush2.msra.mxu0 0.0
        %5536 = vmatprep.subr.mxu0 0.0
        %5537 = vmatpush2.msra.mxu0 0.0
        %5538 = vmatprep.subr.mxu0 0.0
        %5539 = vmatpush2.msra.mxu0 0.0
        %5540 = vmatprep.mubr.f32.mxu0 0.0
        %5541 = vmatmul.mubr.f32.gmra.mxu0 %v5474
        %v5542 = vpop.f32.mrf.mxu0
        %v5543 = vadd.f32 0.0, %v5542
        %v5544 = vpop.f32.mrf.mxu0
        %5545 = vdwg.mxu0
        %v5546 = vrcp.pop %v5472
        %v5547 = vmul.f32 %v5543, %v5546
        %v5549 = vsel %vm1718, %v5547, 0
        %5551 = vmatprep.subr.mxu0 0.0
        %5552 = vmatpush1.msra.mxu0 0.0
        %5553 = vmatprep.subr.mxu0 0.0
        %5554 = vmatpush1.msra.mxu0 0.0
        %5555 = vmatprep.subr.mxu0 0.0
        %5556 = vmatpush1.msra.mxu0 0.0
        %5557 = vmatprep.subr.mxu0 0.0
        %5558 = vmatpush1.msra.mxu0 0.0
        %5559 = vmatprep.subr.mxu0 0.0
        %5560 = vmatpush1.msra.mxu0 0.0
        %5561 = vmatprep.subr.mxu0 0.0
        %5562 = vmatpush1.msra.mxu0 0.0
        %5563 = vmatprep.subr.mxu0 0.0
        %5564 = vmatpush1.msra.mxu0 0.0
        %5565 = vmatprep.subr.mxu0 0.0
        %5566 = vmatpush1.msra.mxu0 0.0
        %5567 = vmatprep.subr.mxu0 0.0
        %5568 = vmatpush1.msra.mxu0 0.0
        %5569 = vmatprep.subr.mxu0 0.0
        %5570 = vmatpush1.msra.mxu0 0.0
        %5571 = vmatprep.subr.mxu0 0.0
        %5572 = vmatpush1.msra.mxu0 0.0
        %5573 = vmatprep.subr.mxu0 0.0
        %5574 = vmatpush1.msra.mxu0 0.0
        %5575 = vmatprep.subr.mxu0 0.0
        %5576 = vmatpush1.msra.mxu0 %v2420
        %5577 = vmatprep.subr.mxu0 0.0
        %5578 = vmatpush1.msra.mxu0 %v2419
        %5579 = vmatprep.subr.mxu0 0.0
        %5580 = vmatpush1.msra.mxu0 %v2418
        %5581 = vmatprep.subr.mxu0 0.0
        %5582 = vmatpush1.msra.mxu0 %v2417
        %5583 = vmatprep.subr.mxu0 0.0
        %5584 = vmatpush2.msra.mxu0 0.0
        %5585 = vmatprep.subr.mxu0 0.0
        %5586 = vmatpush2.msra.mxu0 0.0
        %5587 = vmatprep.subr.mxu0 0.0
        %5588 = vmatpush2.msra.mxu0 0.0
        %5589 = vmatprep.subr.mxu0 0.0
        %5590 = vmatpush2.msra.mxu0 0.0
        %5591 = vmatprep.subr.mxu0 0.0
        %5592 = vmatpush2.msra.mxu0 0.0
        %5593 = vmatprep.subr.mxu0 0.0
        %5594 = vmatpush2.msra.mxu0 0.0
        %5595 = vmatprep.subr.mxu0 0.0
        %5596 = vmatpush2.msra.mxu0 0.0
        %5597 = vmatprep.subr.mxu0 0.0
        %5598 = vmatpush2.msra.mxu0 0.0
        %5599 = vmatprep.subr.mxu0 0.0
        %5600 = vmatpush2.msra.mxu0 0.0
        %5601 = vmatprep.subr.mxu0 0.0
        %5602 = vmatpush2.msra.mxu0 0.0
        %5603 = vmatprep.subr.mxu0 0.0
        %5604 = vmatpush2.msra.mxu0 0.0
        %5605 = vmatprep.subr.mxu0 0.0
        %5606 = vmatpush2.msra.mxu0 0.0
        %5607 = vmatprep.subr.mxu0 0.0
        %5608 = vmatpush2.msra.mxu0 0.0
        %5609 = vmatprep.subr.mxu0 0.0
        %5610 = vmatpush2.msra.mxu0 0.0
        %5611 = vmatprep.subr.mxu0 0.0
        %5612 = vmatpush2.msra.mxu0 0.0
        %5613 = vmatprep.subr.mxu0 0.0
        %5614 = vmatpush2.msra.mxu0 0.0
        %5615 = vmatprep.mubr.f32.mxu0 0.0
        %5616 = vmatmul.mubr.f32.gmra.mxu0 %v5549
        %v5617 = vpop.f32.mrf.mxu0
        %v5618 = vadd.f32 0.0, %v5617
        %v5619 = vpop.f32.mrf.mxu0
        %5620 = vdwg.mxu0
        %v5621 = vadd.f32 %v5320, %v5618
        %v5622 = vadd.f32 %v5621, %v2500
        %v5623 = vadd.f32 %v5622, %v4331
        %v5624 = vsel %vm1127, %v5623, 0.0
        %5625 = vadd.xlane.f32.xlu0 %v5624
        %v5626 = vpop.xlane.xlu0 %5625
        %v5627 = vmul.f32 %v5626, %v1131
        %v5628 = vsub.f32 %v5623, %v5627
        %v5629 = vmul.f32 %v5628, %v5628
        %v5630 = vsel %vm1127, %v5629, 0.0
        %5631 = vadd.xlane.f32.xlu0 %v5630
        %v5632 = vpop.xlane.xlu0 %5631
        %v5633 = vmul.f32 %v5632, %v1131
        %v5634 = vadd.f32 %v5633, 1e-05
        %v5635 = vrsqrt.pop %v5634
        %v5636 = vmul.f32 %v5628, %v5635
        %v5637 = vmul.f32 %v5636, %v2523
        %v5638 = vadd.f32 %v5637, %v2530
        %v5640 = vsel %vm1127, %v5638, 0
        %5642 = vmatprep.subr.mxu0 0.0
        %5643 = vmatpush1.msra.mxu0 0.0
        %5644 = vmatprep.subr.mxu0 0.0
        %5645 = vmatpush1.msra.mxu0 0.0
        %5646 = vmatprep.subr.mxu0 0.0
        %5647 = vmatpush1.msra.mxu0 0.0
        %5648 = vmatprep.subr.mxu0 0.0
        %5649 = vmatpush1.msra.mxu0 0.0
        %5650 = vmatprep.subr.mxu0 0.0
        %5651 = vmatpush1.msra.mxu0 0.0
        %5652 = vmatprep.subr.mxu0 0.0
        %5653 = vmatpush1.msra.mxu0 0.0
        %5654 = vmatprep.subr.mxu0 0.0
        %5655 = vmatpush1.msra.mxu0 0.0
        %5656 = vmatprep.subr.mxu0 0.0
        %5657 = vmatpush1.msra.mxu0 0.0
        %5658 = vmatprep.subr.mxu0 0.0
        %5659 = vmatpush1.msra.mxu0 %v2540
        %5660 = vmatprep.subr.mxu0 0.0
        %5661 = vmatpush1.msra.mxu0 %v2539
        %5662 = vmatprep.subr.mxu0 0.0
        %5663 = vmatpush1.msra.mxu0 %v2538
        %5664 = vmatprep.subr.mxu0 0.0
        %5665 = vmatpush1.msra.mxu0 %v2537
        %5666 = vmatprep.subr.mxu0 0.0
        %5667 = vmatpush1.msra.mxu0 %v2536
        %5668 = vmatprep.subr.mxu0 0.0
        %5669 = vmatpush1.msra.mxu0 %v2535
        %5670 = vmatprep.subr.mxu0 0.0
        %5671 = vmatpush1.msra.mxu0 %v2534
        %5672 = vmatprep.subr.mxu0 0.0
        %5673 = vmatpush1.msra.mxu0 %v2533
        %5674 = vmatprep.subr.mxu0 0.0
        %5675 = vmatpush2.msra.mxu0 0.0
        %5676 = vmatprep.subr.mxu0 0.0
        %5677 = vmatpush2.msra.mxu0 0.0
        %5678 = vmatprep.subr.mxu0 0.0
        %5679 = vmatpush2.msra.mxu0 0.0
        %5680 = vmatprep.subr.mxu0 0.0
        %5681 = vmatpush2.msra.mxu0 0.0
        %5682 = vmatprep.subr.mxu0 0.0
        %5683 = vmatpush2.msra.mxu0 0.0
        %5684 = vmatprep.subr.mxu0 0.0
        %5685 = vmatpush2.msra.mxu0 0.0
        %5686 = vmatprep.subr.mxu0 0.0
        %5687 = vmatpush2.msra.mxu0 0.0
        %5688 = vmatprep.subr.mxu0 0.0
        %5689 = vmatpush2.msra.mxu0 0.0
        %5690 = vmatprep.subr.mxu0 0.0
        %5691 = vmatpush2.msra.mxu0 0.0
        %5692 = vmatprep.subr.mxu0 0.0
        %5693 = vmatpush2.msra.mxu0 0.0
        %5694 = vmatprep.subr.mxu0 0.0
        %5695 = vmatpush2.msra.mxu0 0.0
        %5696 = vmatprep.subr.mxu0 0.0
        %5697 = vmatpush2.msra.mxu0 0.0
        %5698 = vmatprep.subr.mxu0 0.0
        %5699 = vmatpush2.msra.mxu0 0.0
        %5700 = vmatprep.subr.mxu0 0.0
        %5701 = vmatpush2.msra.mxu0 0.0
        %5702 = vmatprep.subr.mxu0 0.0
        %5703 = vmatpush2.msra.mxu0 0.0
        %5704 = vmatprep.subr.mxu0 0.0
        %5705 = vmatpush2.msra.mxu0 0.0
        %5706 = vmatprep.mubr.f32.mxu0 0.0
        %5707 = vmatmul.mubr.f32.gmra.mxu0 %v5640
        %v5708 = vpop.f32.mrf.mxu0
        %v5709 = vadd.f32 %v2546, %v5708
        %v5710 = vpop.f32.mrf.mxu0
        %5711 = vdwg.mxu0
        %v5712 = vmul.f32 %v5709, %v5709
        %v5713 = vmul.f32 %v5709, %v5712
        %v5714 = vmul.f32 %v5713, 0.044715
        %v5715 = vadd.f32 %v5709, %v5714
        %v5716 = vmul.f32 %v5715, 0.7978846
        %v5717 = vtanh.pop %v5716
        %v5718 = vadd.f32 %v5717, 1.0
        %v5719 = vmul.f32 %v5718, 0.5
        %v5720 = vmul.f32 %v5709, %v5719
        %v5722 = vsel %vm1718, %v5720, 0
        %5724 = vmatprep.subr.mxu0 0.0
        %5725 = vmatpush1.msra.mxu0 0.0
        %5726 = vmatprep.subr.mxu0 0.0
        %5727 = vmatpush1.msra.mxu0 0.0
        %5728 = vmatprep.subr.mxu0 0.0
        %5729 = vmatpush1.msra.mxu0 0.0
        %5730 = vmatprep.subr.mxu0 0.0
        %5731 = vmatpush1.msra.mxu0 0.0
        %5732 = vmatprep.subr.mxu0 0.0
        %5733 = vmatpush1.msra.mxu0 0.0
        %5734 = vmatprep.subr.mxu0 0.0
        %5735 = vmatpush1.msra.mxu0 0.0
        %5736 = vmatprep.subr.mxu0 0.0
        %5737 = vmatpush1.msra.mxu0 0.0
        %5738 = vmatprep.subr.mxu0 0.0
        %5739 = vmatpush1.msra.mxu0 0.0
        %5740 = vmatprep.subr.mxu0 0.0
        %5741 = vmatpush1.msra.mxu0 0.0
        %5742 = vmatprep.subr.mxu0 0.0
        %5743 = vmatpush1.msra.mxu0 0.0
        %5744 = vmatprep.subr.mxu0 0.0
        %5745 = vmatpush1.msra.mxu0 0.0
        %5746 = vmatprep.subr.mxu0 0.0
        %5747 = vmatpush1.msra.mxu0 0.0
        %5748 = vmatprep.subr.mxu0 0.0
        %5749 = vmatpush1.msra.mxu0 %v2633
        %5750 = vmatprep.subr.mxu0 0.0
        %5751 = vmatpush1.msra.mxu0 %v2632
        %5752 = vmatprep.subr.mxu0 0.0
        %5753 = vmatpush1.msra.mxu0 %v2631
        %5754 = vmatprep.subr.mxu0 0.0
        %5755 = vmatpush1.msra.mxu0 %v2630
        %5756 = vmatprep.subr.mxu0 0.0
        %5757 = vmatpush2.msra.mxu0 0.0
        %5758 = vmatprep.subr.mxu0 0.0
        %5759 = vmatpush2.msra.mxu0 0.0
        %5760 = vmatprep.subr.mxu0 0.0
        %5761 = vmatpush2.msra.mxu0 0.0
        %5762 = vmatprep.subr.mxu0 0.0
        %5763 = vmatpush2.msra.mxu0 0.0
        %5764 = vmatprep.subr.mxu0 0.0
        %5765 = vmatpush2.msra.mxu0 0.0
        %5766 = vmatprep.subr.mxu0 0.0
        %5767 = vmatpush2.msra.mxu0 0.0
        %5768 = vmatprep.subr.mxu0 0.0
        %5769 = vmatpush2.msra.mxu0 0.0
        %5770 = vmatprep.subr.mxu0 0.0
        %5771 = vmatpush2.msra.mxu0 0.0
        %5772 = vmatprep.subr.mxu0 0.0
        %5773 = vmatpush2.msra.mxu0 0.0
        %5774 = vmatprep.subr.mxu0 0.0
        %5775 = vmatpush2.msra.mxu0 0.0
        %5776 = vmatprep.subr.mxu0 0.0
        %5777 = vmatpush2.msra.mxu0 0.0
        %5778 = vmatprep.subr.mxu0 0.0
        %5779 = vmatpush2.msra.mxu0 0.0
        %5780 = vmatprep.subr.mxu0 0.0
        %5781 = vmatpush2.msra.mxu0 0.0
        %5782 = vmatprep.subr.mxu0 0.0
        %5783 = vmatpush2.msra.mxu0 0.0
        %5784 = vmatprep.subr.mxu0 0.0
        %5785 = vmatpush2.msra.mxu0 0.0
        %5786 = vmatprep.subr.mxu0 0.0
        %5787 = vmatpush2.msra.mxu0 0.0
        %5788 = vmatprep.mubr.f32.mxu0 0.0
        %5789 = vmatmul.mubr.f32.gmra.mxu0 %v5722
        %v5790 = vpop.f32.mrf.mxu0
        %v5791 = vadd.f32 %v2639, %v5790
        %v5792 = vpop.f32.mrf.mxu0
        %5793 = vdwg.mxu0
        %v5794 = vadd.f32 %v5791, %v5623
        %v5795 = vadd.f32 %v4255, %v5794
        %v5796 = vld [vmem:[%s17] sm:$0xff]
        %v5797 = vld [vmem:[%s17 + $0x8] sm:$0xff]
        %v5798 = vld [vmem:[%s17 + $0x10] sm:$0xff]
        %v5799 = vld [vmem:[%s17 + $0x18] sm:$0xff]
        %v5800 = vld [vmem:[%s17 + $0x20] sm:$0xff]
        %v5801 = vld [vmem:[%s17 + $0x28] sm:$0xff]
        %v5802 = vld [vmem:[%s17 + $0x30] sm:$0xff]
        %v5803 = vld [vmem:[%s17 + $0x38] sm:$0xff]
        %v5804 = vld [vmem:[#allocation25] sm:$0x1]
        %v5805 = vmul.f32 %v5804, 3.0
        %v5807 = vlaneseq
        %v5808 = vshrl.u32 %v5807, 7
        %v5809 = vsub.s32 0, %v5808
        %v5810 = vrot.slane %v5805, %v5809
        %v5813 = vsel %vm1127, %v5795, 0
        %5815 = vmatprep.subr.mxu0 0.0
        %5816 = vmatpush1.msra.mxu0 0.0
        %5817 = vmatprep.subr.mxu0 0.0
        %5818 = vmatpush1.msra.mxu0 0.0
        %5819 = vmatprep.subr.mxu0 0.0
        %5820 = vmatpush1.msra.mxu0 0.0
        %5821 = vmatprep.subr.mxu0 0.0
        %5822 = vmatpush1.msra.mxu0 0.0
        %5823 = vmatprep.subr.mxu0 0.0
        %5824 = vmatpush1.msra.mxu0 0.0
        %5825 = vmatprep.subr.mxu0 0.0
        %5826 = vmatpush1.msra.mxu0 0.0
        %5827 = vmatprep.subr.mxu0 0.0
        %5828 = vmatpush1.msra.mxu0 0.0
        %5829 = vmatprep.subr.mxu0 0.0
        %5830 = vmatpush1.msra.mxu0 0.0
        %5831 = vmatprep.subr.mxu0 0.0
        %5832 = vmatpush1.msra.mxu0 %v5803
        %5833 = vmatprep.subr.mxu0 0.0
        %5834 = vmatpush1.msra.mxu0 %v5802
        %5835 = vmatprep.subr.mxu0 0.0
        %5836 = vmatpush1.msra.mxu0 %v5801
        %5837 = vmatprep.subr.mxu0 0.0
        %5838 = vmatpush1.msra.mxu0 %v5800
        %5839 = vmatprep.subr.mxu0 0.0
        %5840 = vmatpush1.msra.mxu0 %v5799
        %5841 = vmatprep.subr.mxu0 0.0
        %5842 = vmatpush1.msra.mxu0 %v5798
        %5843 = vmatprep.subr.mxu0 0.0
        %5844 = vmatpush1.msra.mxu0 %v5797
        %5845 = vmatprep.subr.mxu0 0.0
        %5846 = vmatpush1.msra.mxu0 %v5796
        %5847 = vmatprep.subr.mxu0 0.0
        %5848 = vmatpush2.msra.mxu0 0.0
        %5849 = vmatprep.subr.mxu0 0.0
        %5850 = vmatpush2.msra.mxu0 0.0
        %5851 = vmatprep.subr.mxu0 0.0
        %5852 = vmatpush2.msra.mxu0 0.0
        %5853 = vmatprep.subr.mxu0 0.0
        %5854 = vmatpush2.msra.mxu0 0.0
        %5855 = vmatprep.subr.mxu0 0.0
        %5856 = vmatpush2.msra.mxu0 0.0
        %5857 = vmatprep.subr.mxu0 0.0
        %5858 = vmatpush2.msra.mxu0 0.0
        %5859 = vmatprep.subr.mxu0 0.0
        %5860 = vmatpush2.msra.mxu0 0.0
        %5861 = vmatprep.subr.mxu0 0.0
        %5862 = vmatpush2.msra.mxu0 0.0
        %5863 = vmatprep.subr.mxu0 0.0
        %5864 = vmatpush2.msra.mxu0 0.0
        %5865 = vmatprep.subr.mxu0 0.0
        %5866 = vmatpush2.msra.mxu0 0.0
        %5867 = vmatprep.subr.mxu0 0.0
        %5868 = vmatpush2.msra.mxu0 0.0
        %5869 = vmatprep.subr.mxu0 0.0
        %5870 = vmatpush2.msra.mxu0 0.0
        %5871 = vmatprep.subr.mxu0 0.0
        %5872 = vmatpush2.msra.mxu0 0.0
        %5873 = vmatprep.subr.mxu0 0.0
        %5874 = vmatpush2.msra.mxu0 0.0
        %5875 = vmatprep.subr.mxu0 0.0
        %5876 = vmatpush2.msra.mxu0 0.0
        %5877 = vmatprep.subr.mxu0 0.0
        %5878 = vmatpush2.msra.mxu0 0.0
        %5879 = vmatprep.mubr.f32.mxu0 0.0
        %5880 = vmatmul.mubr.f32.gmra.mxu0 %v5813
        %v5881 = vpop.f32.mrf.mxu0
        %v5882 = vadd.f32 %v5810, %v5881
        %v5883 = vpop.f32.mrf.mxu0
        %5884 = vdwg.mxu0
        %v5885 = vld [vmem:[#allocation26] sm:$0x1]
        %v5886 = vld [vmem:[%s20] sm:$0x1]
        %v5887 = vsel %vm1718, %v5882, 0.0
        %5888 = vadd.xlane.f32.xlu0 %v5887
        %v5889 = vpop.xlane.xlu0 %5888
        %v5890 = vrcp.pop 32.0
        %v5891 = vmul.f32 %v5889, %v5890
        %v5892 = vsub.f32 %v5882, %v5891
        %v5893 = vmul.f32 %v5892, %v5892
        %v5894 = vsel %vm1718, %v5893, 0.0
        %5895 = vadd.xlane.f32.xlu0 %v5894
        %v5896 = vpop.xlane.xlu0 %5895
        %v5897 = vmul.f32 %v5896, %v5890
        %v5898 = vadd.f32 %v5897, 1e-05
        %v5899 = vrsqrt.pop %v5898
        %v5900 = vmul.f32 %v5892, %v5899
        %v5902 = vlaneseq
        %v5903 = vshrl.u32 %v5902, 7
        %v5904 = vsub.s32 0, %v5903
        %v5905 = vrot.slane %v5885, %v5904
        %v5907 = vmul.f32 %v5900, %v5905
        %v5909 = vlaneseq
        %v5910 = vshrl.u32 %v5909, 7
        %v5911 = vsub.s32 0, %v5910
        %v5912 = vrot.slane %v5886, %v5911
        %v5914 = vadd.f32 %v5907, %v5912
        %v5915 = vld [vmem:[%s21] sm:$0xff]
        %v5916 = vld [vmem:[%s21 + $0x8] sm:$0xff]
        %v5917 = vld [vmem:[%s21 + $0x10] sm:$0xff]
        %v5918 = vld [vmem:[%s21 + $0x18] sm:$0xff]
        %v5919 = vld [vmem:[%s22] sm:$0x1]
        %v5921 = vlaneseq
        %v5922 = vshrl.u32 %v5921, 7
        %v5923 = vsub.s32 0, %v5922
        %v5924 = vrot.slane %v5919, %v5923
        %v5927 = vsel %vm1718, %v5914, 0
        %5929 = vmatprep.subr.mxu0 0.0
        %5930 = vmatpush1.msra.mxu0 0.0
        %5931 = vmatprep.subr.mxu0 0.0
        %5932 = vmatpush1.msra.mxu0 0.0
        %5933 = vmatprep.subr.mxu0 0.0
        %5934 = vmatpush1.msra.mxu0 0.0
        %5935 = vmatprep.subr.mxu0 0.0
        %5936 = vmatpush1.msra.mxu0 0.0
        %5937 = vmatprep.subr.mxu0 0.0
        %5938 = vmatpush1.msra.mxu0 0.0
        %5939 = vmatprep.subr.mxu0 0.0
        %5940 = vmatpush1.msra.mxu0 0.0
        %5941 = vmatprep.subr.mxu0 0.0
        %5942 = vmatpush1.msra.mxu0 0.0
        %5943 = vmatprep.subr.mxu0 0.0
        %5944 = vmatpush1.msra.mxu0 0.0
        %5945 = vmatprep.subr.mxu0 0.0
        %5946 = vmatpush1.msra.mxu0 0.0
        %5947 = vmatprep.subr.mxu0 0.0
        %5948 = vmatpush1.msra.mxu0 0.0
        %5949 = vmatprep.subr.mxu0 0.0
        %5950 = vmatpush1.msra.mxu0 0.0
        %5951 = vmatprep.subr.mxu0 0.0
        %5952 = vmatpush1.msra.mxu0 0.0
        %5953 = vmatprep.subr.mxu0 0.0
        %5954 = vmatpush1.msra.mxu0 %v5918
        %5955 = vmatprep.subr.mxu0 0.0
        %5956 = vmatpush1.msra.mxu0 %v5917
        %5957 = vmatprep.subr.mxu0 0.0
        %5958 = vmatpush1.msra.mxu0 %v5916
        %5959 = vmatprep.subr.mxu0 0.0
        %5960 = vmatpush1.msra.mxu0 %v5915
        %5961 = vmatprep.subr.mxu0 0.0
        %5962 = vmatpush2.msra.mxu0 0.0
        %5963 = vmatprep.subr.mxu0 0.0
        %5964 = vmatpush2.msra.mxu0 0.0
        %5965 = vmatprep.subr.mxu0 0.0
        %5966 = vmatpush2.msra.mxu0 0.0
        %5967 = vmatprep.subr.mxu0 0.0
        %5968 = vmatpush2.msra.mxu0 0.0
        %5969 = vmatprep.subr.mxu0 0.0
        %5970 = vmatpush2.msra.mxu0 0.0
        %5971 = vmatprep.subr.mxu0 0.0
        %5972 = vmatpush2.msra.mxu0 0.0
        %5973 = vmatprep.subr.mxu0 0.0
        %5974 = vmatpush2.msra.mxu0 0.0
        %5975 = vmatprep.subr.mxu0 0.0
        %5976 = vmatpush2.msra.mxu0 0.0
        %5977 = vmatprep.subr.mxu0 0.0
        %5978 = vmatpush2.msra.mxu0 0.0
        %5979 = vmatprep.subr.mxu0 0.0
        %5980 = vmatpush2.msra.mxu0 0.0
        %5981 = vmatprep.subr.mxu0 0.0
        %5982 = vmatpush2.msra.mxu0 0.0
        %5983 = vmatprep.subr.mxu0 0.0
        %5984 = vmatpush2.msra.mxu0 0.0
        %5985 = vmatprep.subr.mxu0 0.0
        %5986 = vmatpush2.msra.mxu0 0.0
        %5987 = vmatprep.subr.mxu0 0.0
        %5988 = vmatpush2.msra.mxu0 0.0
        %5989 = vmatprep.subr.mxu0 0.0
        %5990 = vmatpush2.msra.mxu0 0.0
        %5991 = vmatprep.subr.mxu0 0.0
        %5992 = vmatpush2.msra.mxu0 0.0
        %5993 = vmatprep.mubr.f32.mxu0 0.0
        %5994 = vmatmul.mubr.f32.gmra.mxu0 %v5927
        %v5995 = vpop.f32.mrf.mxu0
        %v5996 = vadd.f32 %v5924, %v5995
        %v5997 = vpop.f32.mrf.mxu0
        %5998 = vdwg.mxu0
        %5999 = vst.msk [vmem:[%s969] sm:$0xff] %vm1718, %v5996
        %s6000 = sand.u32 %s556, 1
        %s6001 = scalar_lea.sflag [#allocation4], %s6000
        %s6002 = sand.u32 %s556, 1
        %s6003 = smul.addr %s6002, 8
        %s6004 = scalar_lea.vmem [#allocation28], %s6003
        // Predicated region
        $region177: #{tpu_custom_call.1} parent=111 // pred_check
          %p6005 = pneg %p566
        $region178: #{tpu_custom_call.1} parent=111 // pred_check_branch
          %6007 = sbr.rel (%p6005) target = $region180
        $region179: #{tpu_custom_call.1} parent=111 // pred_region
          %s6009 = ssub.s32 128, 128
          %6010 = vsyncadd %s6001, %s6009
          %s6011 = smul.addr %s50, 128
          %s6012 = scalar_lea.hbm %s23, %s6011
          %s6014 = sshll.u32 %s6004, 4
          %s6015 = int_to_ptr.vmem [resolvable:$true] %s6014
          %6017 = dma.vmem_to_hbm [thread:$0]  %s6015, 128, %s6012, %s6001
        $region180: #{tpu_custom_call.1} parent=111 // pred_fallthru
          _
      $region112: #{tpu_custom_call.1} parent=5 // pred_fallthru
        _
      %p6018 = scmp.le.s32.totalorder 2, %s45
      // Predicated region
      $region181: #{tpu_custom_call.1} parent=5 // pred_check
        %p6019 = pneg %p6018
      $region182: #{tpu_custom_call.1} parent=5 // pred_check_branch
        %6021 = sbr.rel (%p6019) target = $region184
      $region183: #{tpu_custom_call.1} parent=5 // pred_region
        %s6022 = ssub.s32 %s45, 2
        // Predicated region
        $region185: #{tpu_custom_call.1} parent=183 // pred_check
          %p6023 = pneg %p572
        $region186: #{tpu_custom_call.1} parent=183 // pred_check_branch
          %6025 = sbr.rel (%p6023) target = $region188
        $region187: #{tpu_custom_call.1} parent=183 // pred_region
          %s6026 = sand.u32 %s557, 1
          %s6027 = scalar_lea.sflag [#allocation4], %s6026
          %s6028 = sand.u32 %s557, 1
          %s6029 = smul.addr %s6028, 8
          %s6030 = scalar_lea.vmem [#allocation28], %s6029
          %6031 = dma.done %s6027, 128
        $region188: #{tpu_custom_call.1} parent=183 // pred_fallthru
          _
      $region184: #{tpu_custom_call.1} parent=5 // pred_fallthru
        _
    $region6: #{tpu_custom_call.1} parent=1 // loop_footer
      %s49 = sadd.s32 1, %s45
    $region7: #{tpu_custom_call.1} parent=1 // loop_footer_branch
      %44 = sbr.rel target = $region3
    $region8: #{tpu_custom_call.1} parent=1 // loop_exit
      _
    %6032 = vsyncpa [#allocation3], 1
    %s6033 = scalar_lea.sflag [#allocation3], 1
    %6034 = vsyncpa %s6033, 1
    %6035 = vsyncpa [#allocation6], 1
    %s6036 = scalar_lea.sflag [#allocation6], 1
    %6037 = vsyncpa %s6036, 1
    %6038 = vsyncpa [#allocation9], 1
    %6039 = vsyncpa [#allocation12], 1
    %6040 = vsyncpa [#allocation15], 1
    %6041 = vsyncpa [#allocation18], 1
    %6042 = vsyncpa [#allocation21], 1
    %6043 = vsyncpa [#allocation24], 1
    %6044 = vsyncpa [#allocation27], 1
    %6045 = vsyncpa [#allocation4], 1
    %s6046 = scalar_lea.sflag [#allocation4], 1
    %6047 = vsyncpa %s6046, 1

</llo_original>
